<compile_context>
chip_gen: v7x
topology: tpu7x:2x2x1
jax: 0.10.0
libtpu: 0.0.40
codegen_flags: <defaults>
</compile_context>

<pallas_src>
import functools
import math

import jax
import jax.numpy as jnp
from jax import lax
from jax.experimental import pallas as pl
from jax.experimental.pallas import tpu as pltpu

# ---------------- synthetic "cfg" ----------------
NUM_ANCHORS = 3
ANCHOR_SIZES = (2.0, 4.0, 8.0)
BACKBONE_OUT = 32            # backbone.out_channels (real, unpadded)
BACKBONE_STRIDE = 1          # backbone.stride
RPN_TOPK = 8                 # proposals kept per image
NUM_CLASSES = 5
DET_HIDDEN = 64              # detector hidden width

RPN_OUT = 16                 # [objectness(3) | box-deltas(12) | pad(1)]
HEADW = 128                  # fused detector head [cls(5)|reg(4)|sigma(4)|pad]
BBOX_XFORM_CLIP = math.log(1000.0 / 16.0)

_TAPS = tuple((dh, dw) for dh in range(3) for dw in range(3))
_VMEM_LIMIT = 32 * 1024 * 1024   # safe default on v5e/v6e/v7x at these tile sizes


# ---------------- Pallas kernels ----------------
def _backbone_rpn_kernel(xpad_ref, bbw_ref, bbb_ref, rpnw_ref, rpnb_ref,
                         rhw_ref, rhb_ref, feat_ref, rpn_ref, fpad_ref,
                         *, H, W, C_IN, C_FEAT):
    """Fused backbone 3x3 conv + ReLU, RPN 3x3 conv + ReLU and the fused
    [objectness | box-delta] 1x1 head, for ONE image (grid axis = batch).
    Both convs use 9 shifted accumulating matmuls (no im2col materialization);
    the padded backbone feature map only exists in a VMEM halo scratch."""
    HW = H * W
    x = xpad_ref[0]                                        # (H+2, W+2, C_IN) bf16

    # Backbone conv: per-tap accumulation into an f32 accumulator.
    acc = jnp.zeros((HW, C_FEAT), jnp.float32)
    for t, (dh, dw) in enumerate(_TAPS):
        xs = x[dh:dh + H, dw:dw + W, :].reshape(HW, C_IN)
        acc = acc + jnp.dot(xs, bbw_ref[t], preferred_element_type=jnp.float32)
    feat = jnp.maximum(acc + bbb_ref[...], 0.0)            # (HW, C_FEAT) f32
    feat_bf = feat.astype(jnp.bfloat16)
    feat_ref[0] = feat_bf                                  # output for detector

    # Stage the feature map with a 1-pixel zero halo in VMEM (never hits HBM).
    fpad_ref[...] = jnp.zeros((H + 2, W + 2, C_FEAT), jnp.bfloat16)
    fpad_ref[1:H + 1, 1:W + 1, :] = feat_bf.reshape(H, W, C_FEAT)

    # RPN hidden conv: per-tap accumulation, real (unpadded) 32-ch contraction.
    acc2 = jnp.zeros((HW, C_FEAT), jnp.float32)
    for t, (dh, dw) in enumerate(_TAPS):
        fs = fpad_ref[dh:dh + H, dw:dw + W, :].reshape(HW, C_FEAT)
        acc2 = acc2 + jnp.dot(fs, rpnw_ref[t],
                              preferred_element_type=jnp.float32)
    hid = jnp.maximum(acc2 + rpnb_ref[...], 0.0)

    # Fused [objectness(3) | box-deltas(12)] head; only 16 lanes written back.
    y = jnp.dot(hid.astype(jnp.bfloat16), rhw_ref[...],
                preferred_element_type=jnp.float32) + rhb_ref[...]
    rpn_ref[0] = y


def _detector_kernel(feat_ref, boxes_ref, w1_ref, b1_ref, wh_ref, bh_ref,
                     out_ref, *, H, W, K, num_classes):
    """Fused detector for ONE image (grid axis = batch): masked-average ROI
    pool (separable row/col masks -> one MXU dot), fc1 + ReLU, fused
    [cls|reg|sigma] head, and in-kernel softmax / softplus epilogue.
    Output is a (K, 128) lane-dense slab."""
    # TODO(synk): RoIAlign bilinear sampling has no clean Pallas form here;
    # this is a center-inclusion masked-average pool.
    feat = feat_ref[0]                                     # (H*W, C) bf16
    boxes = boxes_ref[0]                                   # (K, 4) f32 x1,y1,x2,y2
    x1, y1 = boxes[:, 0:1], boxes[:, 1:2]
    x2, y2 = boxes[:, 2:3], boxes[:, 3:4]
    ycent = lax.broadcasted_iota(jnp.int32, (K, H), 1).astype(jnp.float32) + 0.5
    xcent = lax.broadcasted_iota(jnp.int32, (K, W), 1).astype(jnp.float32) + 0.5
    in_y = ((ycent >= y1) & (ycent <= y2)).astype(jnp.float32)   # (K, H)
    in_x = ((xcent >= x1) & (xcent <= x2)).astype(jnp.float32)   # (K, W)
    area = jnp.maximum(jnp.sum(in_y, axis=1, keepdims=True) *
                       jnp.sum(in_x, axis=1, keepdims=True), 1.0)
    mask = (in_y[:, :, None] * in_x[:, None, :]).reshape(K, H * W)
    pooled = jnp.dot(mask.astype(jnp.bfloat16), feat,
                     preferred_element_type=jnp.float32) / area  # (K, C)

    h = jnp.dot(pooled.astype(jnp.bfloat16), w1_ref[...],
                preferred_element_type=jnp.float32)
    h = jnp.maximum(h + b1_ref[...], 0.0)
    y = jnp.dot(h.astype(jnp.bfloat16), wh_ref[...],
                preferred_element_type=jnp.float32) + bh_ref[...]  # (K, 128)

    # Fused epilogue, kept 128-lane dense via lane selects:
    #   lanes [0, C)      -> softmax probabilities
    #   lanes [C, C+4)    -> raw box regression deltas
    #   lanes [C+4, C+8)  -> softplus(sigma)
    lane = lax.broadcasted_iota(jnp.int32, y.shape, 1)
    is_cls = lane < num_classes
    is_sig = (lane >= num_classes + 4) & (lane < num_classes + 8)
    masked = jnp.where(is_cls, y, jnp.float32(-1e30))
    m = jnp.max(masked, axis=-1, keepdims=True)
    e = jnp.exp(masked - m)
    denom = jnp.sum(e, axis=-1, keepdims=True)
    probs = e * pl.reciprocal(denom, approx=True)
    softplus = jnp.maximum(y, 0.0) + jnp.log(1.0 + jnp.exp(-jnp.abs(y)))
    out_ref[0] = jnp.where(is_cls, probs, jnp.where(is_sig, softplus, y))


# ---------------- Pallas wrappers ----------------
def backbone_rpn(xpad, params, *, N, H, W, C_IN):
    C = BACKBONE_OUT
    HW = H * W
    flops = 2 * N * HW * (9 * C_IN * C + 9 * C * C + C * RPN_OUT)
    bytes_accessed = (N * (H + 2) * (W + 2) * C_IN * 2
                      + (9 * C_IN * C + 9 * C * C + C * RPN_OUT) * 2
                      + (C + C + RPN_OUT) * 4
                      + N * HW * C * 2 + N * HW * RPN_OUT * 4)
    return pl.pallas_call(
        functools.partial(_backbone_rpn_kernel, H=H, W=W, C_IN=C_IN, C_FEAT=C),
        grid=(N,),
        in_specs=[
            pl.BlockSpec((1, H + 2, W + 2, C_IN), lambda n: (n, 0, 0, 0)),
            pl.BlockSpec((9, C_IN, C), lambda n: (0, 0, 0)),
            pl.BlockSpec((1, C), lambda n: (0, 0)),
            pl.BlockSpec((9, C, C), lambda n: (0, 0, 0)),
            pl.BlockSpec((1, C), lambda n: (0, 0)),
            pl.BlockSpec((C, RPN_OUT), lambda n: (0, 0)),
            pl.BlockSpec((1, RPN_OUT), lambda n: (0, 0)),
        ],
        out_specs=(
            pl.BlockSpec((1, HW, C), lambda n: (n, 0, 0)),
            pl.BlockSpec((1, HW, RPN_OUT), lambda n: (n, 0, 0)),
        ),
        out_shape=(
            jax.ShapeDtypeStruct((N, HW, C), jnp.bfloat16),
            jax.ShapeDtypeStruct((N, HW, RPN_OUT), jnp.float32),
        ),
        scratch_shapes=[pltpu.VMEM((H + 2, W + 2, C), jnp.bfloat16)],
        compiler_params=pltpu.CompilerParams(
            dimension_semantics=("parallel",),
            vmem_limit_bytes=_VMEM_LIMIT),
        cost_estimate=pl.CostEstimate(flops=flops, transcendentals=0,
                                      bytes_accessed=bytes_accessed),
    )(xpad, params['bb_w'], params['bb_b'], params['rpn_w'], params['rpn_b'],
      params['rpn_head_w'], params['rpn_head_b'])


def detector(feat, boxes, params, *, N, H, W, K):
    C = BACKBONE_OUT
    HW = H * W
    flops = 2 * N * (K * HW * C + K * C * DET_HIDDEN + K * DET_HIDDEN * HEADW)
    transcendentals = N * K * HEADW * 3
    bytes_accessed = (N * HW * C * 2 + N * K * 4 * 4
                      + (C * DET_HIDDEN + DET_HIDDEN * HEADW) * 2
                      + (DET_HIDDEN + HEADW) * 4 + N * K * HEADW * 4)
    return pl.pallas_call(
        functools.partial(_detector_kernel, H=H, W=W, K=K,
                          num_classes=NUM_CLASSES),
        grid=(N,),
        in_specs=[
            pl.BlockSpec((1, HW, C), lambda n: (n, 0, 0)),
            pl.BlockSpec((1, K, 4), lambda n: (n, 0, 0)),
            pl.BlockSpec((C, DET_HIDDEN), lambda n: (0, 0)),
            pl.BlockSpec((1, DET_HIDDEN), lambda n: (0, 0)),
            pl.BlockSpec((DET_HIDDEN, HEADW), lambda n: (0, 0)),
            pl.BlockSpec((1, HEADW), lambda n: (0, 0)),
        ],
        out_specs=pl.BlockSpec((1, K, HEADW), lambda n: (n, 0, 0)),
        out_shape=jax.ShapeDtypeStruct((N, K, HEADW), jnp.float32),
        compiler_params=pltpu.CompilerParams(
            dimension_semantics=("parallel",),
            vmem_limit_bytes=_VMEM_LIMIT),
        cost_estimate=pl.CostEstimate(flops=flops,
                                      transcendentals=transcendentals,
                                      bytes_accessed=bytes_accessed),
    )(feat, boxes, params['fc1_w'], params['fc1_b'],
      params['det_head_w'], params['det_head_b'])


# ---------------- box utilities (glue) ----------------
def _xyxy_to_cxcywh(boxes):
    x1, y1, x2, y2 = jnp.split(boxes, 4, axis=-1)
    return jnp.concatenate([(x1 + x2) / 2, (y1 + y2) / 2, x2 - x1, y2 - y1], -1)


def _decode(anchors_cxcywh, deltas):
    cx, cy, w, h = jnp.split(anchors_cxcywh, 4, axis=-1)
    dx, dy, dw, dh = jnp.split(deltas, 4, axis=-1)
    dw = jnp.minimum(dw, BBOX_XFORM_CLIP)      # avoid inf extents (torchvision)
    dh = jnp.minimum(dh, BBOX_XFORM_CLIP)
    pcx = cx + w * dx
    pcy = cy + h * dy
    pw = w * jnp.exp(dw)
    ph = h * jnp.exp(dh)
    return jnp.concatenate(
        [pcx - pw / 2, pcy - ph / 2, pcx + pw / 2, pcy + ph / 2], -1)


def _clip(boxes, img_h, img_w):
    x1, y1, x2, y2 = jnp.split(boxes, 4, axis=-1)
    return jnp.concatenate(
        [jnp.clip(x1, 0.0, img_w), jnp.clip(y1, 0.0, img_h),
         jnp.clip(x2, 0.0, img_w), jnp.clip(y2, 0.0, img_h)], -1)


# ---------------- parameters ----------------
def _rnd(k, shape):
    return jax.random.normal(k, shape, jnp.float32) * 0.05


def init_params(key, in_channels):
    ks = jax.random.split(key, 16)
    # 3x3 convs stored per-tap: (9, Cin, Cout) — matches the per-tap matmuls.
    bb_w = _rnd(ks[0], (3, 3, in_channels, BACKBONE_OUT)).reshape(
        9, in_channels, BACKBONE_OUT)
    bb_b = _rnd(ks[1], (1, BACKBONE_OUT))
    rpn_w = _rnd(ks[2], (3, 3, BACKBONE_OUT, BACKBONE_OUT)).reshape(
        9, BACKBONE_OUT, BACKBONE_OUT)
    rpn_b = _rnd(ks[3], (1, BACKBONE_OUT))
    # Fused RPN head: [objectness(3) | box-deltas(12) | pad(1)] -> 16 lanes.
    rpn_head_w = jnp.concatenate(
        [_rnd(ks[4], (BACKBONE_OUT, NUM_ANCHORS)),
         _rnd(ks[6], (BACKBONE_OUT, NUM_ANCHORS * 4)),
         jnp.zeros((BACKBONE_OUT, RPN_OUT - 5 * NUM_ANCHORS), jnp.float32)], 1)
    rpn_head_b = jnp.concatenate(
        [_rnd(ks[5], (1, NUM_ANCHORS)),
         _rnd(ks[7], (1, NUM_ANCHORS * 4)),
         jnp.zeros((1, RPN_OUT - 5 * NUM_ANCHORS), jnp.float32)], 1)
    # Detector: fc1, then fused [cls(5) | reg(4) | sigma(4) | pad] -> 128 lanes.
    fc1_w = _rnd(ks[8], (BACKBONE_OUT, DET_HIDDEN))
    fc1_b = _rnd(ks[9], (1, DET_HIDDEN))
    det_head_w = jnp.concatenate(
        [_rnd(ks[10], (DET_HIDDEN, NUM_CLASSES)),
         _rnd(ks[12], (DET_HIDDEN, 4)),
         _rnd(ks[14], (DET_HIDDEN, 4)),
         jnp.zeros((DET_HIDDEN, HEADW - NUM_CLASSES - 8), jnp.float32)], 1)
    det_head_b = jnp.concatenate(
        [_rnd(ks[11], (1, NUM_CLASSES)),
         _rnd(ks[13], (1, 4)),
         _rnd(ks[15], (1, 4)),
         jnp.zeros((1, HEADW - NUM_CLASSES - 8), jnp.float32)], 1)
    return {
        'bb_w': bb_w.astype(jnp.bfloat16), 'bb_b': bb_b,
        'rpn_w': rpn_w.astype(jnp.bfloat16), 'rpn_b': rpn_b,
        'rpn_head_w': rpn_head_w.astype(jnp.bfloat16), 'rpn_head_b': rpn_head_b,
        'fc1_w': fc1_w.astype(jnp.bfloat16), 'fc1_b': fc1_b,
        'det_head_w': det_head_w.astype(jnp.bfloat16), 'det_head_b': det_head_b,
    }


# ---------------- FasterRCNN forward ----------------
def faster_rcnn_forward(params, image, gt_target=None, is_training=False):
    """Mirrors FasterRCNN.forward (inference): returns
       (rpn_proposals, detections, rpn_losses, detection_loss)."""
    N, H_img, W_img, C_in = image.shape
    Hf, Wf = H_img, W_img                        # stride-1 backbone
    HW = Hf * Wf

    # Pad the (tiny) input image for the backbone 3x3 conv. The backbone->RPN
    # padded feature map never exists in HBM (fused kernel with VMEM halo).
    xpad = jnp.pad(image.astype(jnp.bfloat16), ((0, 0), (1, 1), (1, 1), (0, 0)))

    feat_flat, rpn_raw = backbone_rpn(xpad, params, N=N, H=Hf, W=Wf, C_IN=C_in)

    r = rpn_raw.reshape(N, Hf, Wf, RPN_OUT)
    obj_logits = r[..., :NUM_ANCHORS]
    box_deltas = r[..., NUM_ANCHORS:NUM_ANCHORS + 4 * NUM_ANCHORS].reshape(
        N, Hf, Wf, NUM_ANCHORS, 4)

    # anchors (cx, cy, w, h) per feature location
    ys = (jnp.arange(Hf, dtype=jnp.float32) + 0.5) * BACKBONE_STRIDE
    xs = (jnp.arange(Wf, dtype=jnp.float32) + 0.5) * BACKBONE_STRIDE
    cy, cx = jnp.meshgrid(ys, xs, indexing='ij')
    sizes = jnp.asarray(ANCHOR_SIZES, jnp.float32)
    acx = jnp.broadcast_to(cx[..., None], (Hf, Wf, NUM_ANCHORS))
    acy = jnp.broadcast_to(cy[..., None], (Hf, Wf, NUM_ANCHORS))
    asz = jnp.broadcast_to(sizes[None, None, :], (Hf, Wf, NUM_ANCHORS))
    anchors = jnp.stack([acx, acy, asz, asz], axis=-1)     # (Hf, Wf, A, 4)

    proposals = _decode(anchors[None], box_deltas)          # xyxy
    proposals = _clip(proposals, float(H_img), float(W_img))
    proposals = proposals.reshape(N, HW * NUM_ANCHORS, 4)
    obj_flat = obj_logits.reshape(N, HW * NUM_ANCHORS)

    # TODO(synk): NMS over proposals (data-dependent suppression) has no clean
    # Pallas equivalent; keep the top-k most-confident proposals only.
    top_scores, top_idx = jax.lax.top_k(obj_flat, RPN_TOPK)
    top_boxes = jnp.take_along_axis(proposals, top_idx[..., None], axis=1)

    rpn_proposals = {'proposal_boxes': top_boxes,
                     'objectness_logits': top_scores}
    rpn_losses = {}      # inference: gt_target is None / is_training=False

    feat_boxes = top_boxes / float(BACKBONE_STRIDE)          # feature space
    det_raw = detector(feat_flat, feat_boxes, params,
                       N=N, H=Hf, W=Wf, K=RPN_TOPK)          # (N, K, 128) f32

    probs = det_raw[..., :NUM_CLASSES]
    reg = det_raw[..., NUM_CLASSES:NUM_CLASSES + 4].reshape(N * RPN_TOPK, 4)
    pred_sigma = det_raw[..., NUM_CLASSES + 4:NUM_CLASSES + 8]
    scores = jnp.max(probs, axis=-1)
    pred_classes = jnp.argmax(probs, axis=-1)

    prop_cxcywh = _xyxy_to_cxcywh(top_boxes.reshape(N * RPN_TOPK, 4))
    pred_boxes = _decode(prop_cxcywh, reg)
    pred_boxes = _clip(pred_boxes, float(H_img), float(W_img)).reshape(
        N, RPN_TOPK, 4)

    detections = {'pred_boxes': pred_boxes, 'scores': scores,
                  'pred_sigma': pred_sigma, 'pred_classes': pred_classes}
    detection_loss = {}  # inference

    return rpn_proposals, detections, rpn_losses, detection_loss


# ---------------- demo ----------------
if __name__ == "__main__":
    key = jax.random.PRNGKey(0)
    k_img, k_par = jax.random.split(key)
    image = jax.random.normal(k_img, (2, 16, 16, 4), jnp.float32)  # N,H,W,C
    params = init_params(k_par, in_channels=4)

    fwd = jax.jit(faster_rcnn_forward)
    rpn_proposals, detections, rpn_losses, detection_loss = fwd(params, image)
    jax.block_until_ready((rpn_proposals, detections))

    assert rpn_proposals['proposal_boxes'].shape == (2, RPN_TOPK, 4)
    assert rpn_proposals['objectness_logits'].shape == (2, RPN_TOPK)
    assert detections['pred_boxes'].shape == (2, RPN_TOPK, 4)
    assert detections['scores'].shape == (2, RPN_TOPK)
    assert detections['pred_sigma'].shape == (2, RPN_TOPK, 4)
    assert detections['pred_classes'].shape == (2, RPN_TOPK)
    assert bool(jnp.all(jnp.isfinite(detections['pred_boxes'])))
    assert bool(jnp.all(jnp.isfinite(detections['scores'])))
    print("KERNEL_OK")
</pallas_src>

<mosaic_0001>
module attributes {stable_mosaic.version = 11 : i64} {
  func.func @_backbone_rpn_kernel(%arg0: i32, %arg1: memref<1x18x18x4xbf16, #tpu.memory_space<vmem>>, %arg2: memref<9x4x32xbf16, #tpu.memory_space<vmem>>, %arg3: memref<1x32xf32, #tpu.memory_space<vmem>>, %arg4: memref<9x32x32xbf16, #tpu.memory_space<vmem>>, %arg5: memref<1x32xf32, #tpu.memory_space<vmem>>, %arg6: memref<32x16xbf16, #tpu.memory_space<vmem>>, %arg7: memref<1x16xf32, #tpu.memory_space<vmem>>, %arg8: memref<1x256x32xbf16, #tpu.memory_space<vmem>>, %arg9: memref<1x256x16xf32, #tpu.memory_space<vmem>>, %arg10: memref<18x18x32xbf16, #tpu.memory_space<vmem>>) attributes {dimension_semantics = [#tpu.dimension_semantics<parallel>], iteration_bounds = array<i64: 2>, scalar_prefetch = 0 : i64, scratch_operands = 1 : i64, tpu.core_type = #tpu.core_type<tc>, window_params = [{transform_indices = @transform_0, window_bounds = array<i64: 1, 18, 18, 4>}, {pipeline_mode = #tpu.pipeline_mode<synchronous>, transform_indices = @transform_1, window_bounds = array<i64: 9, 4, 32>}, {pipeline_mode = #tpu.pipeline_mode<synchronous>, transform_indices = @transform_2, window_bounds = array<i64: 1, 32>}, {pipeline_mode = #tpu.pipeline_mode<synchronous>, transform_indices = @transform_3, window_bounds = array<i64: 9, 32, 32>}, {pipeline_mode = #tpu.pipeline_mode<synchronous>, transform_indices = @transform_4, window_bounds = array<i64: 1, 32>}, {pipeline_mode = #tpu.pipeline_mode<synchronous>, transform_indices = @transform_5, window_bounds = array<i64: 32, 16>}, {pipeline_mode = #tpu.pipeline_mode<synchronous>, transform_indices = @transform_6, window_bounds = array<i64: 1, 16>}, {transform_indices = @transform_7, window_bounds = array<i64: 1, 256, 32>}, {transform_indices = @transform_8, window_bounds = array<i64: 1, 256, 16>}]} {
    %c0 = arith.constant 0 : index
    %c0_0 = arith.constant 0 : index
    %c0_1 = arith.constant 0 : index
    %c0_2 = arith.constant 0 : index
    %0 = vector.load %arg1[%c0, %c0_0, %c0_1, %c0_2] : memref<1x18x18x4xbf16, #tpu.memory_space<vmem>>, vector<1x18x18x4xbf16>
    %1 = vector.shape_cast %0 : vector<1x18x18x4xbf16> to vector<18x18x4xbf16>
    %cst = arith.constant 0.000000e+00 : f32
    %2 = vector.broadcast %cst : f32 to vector<256x32xf32>
    %3 = vector.extract_strided_slice %1 {offsets = [0, 0, 0], sizes = [16, 16, 4], strides = [1, 1, 1]} : vector<18x18x4xbf16> to vector<16x16x4xbf16>
    %4 = vector.shape_cast %3 : vector<16x16x4xbf16> to vector<256x4xbf16>
    %c0_3 = arith.constant 0 : index
    %c0_4 = arith.constant 0 : index
    %c0_5 = arith.constant 0 : index
    %5 = vector.load %arg2[%c0_3, %c0_4, %c0_5] : memref<9x4x32xbf16, #tpu.memory_space<vmem>>, vector<1x4x32xbf16>
    %6 = vector.shape_cast %5 : vector<1x4x32xbf16> to vector<4x32xbf16>
    %cst_6 = arith.constant dense<0.000000e+00> : vector<256x32xf32>
    %7 = tpu.matmul %4, %6, %cst_6 {dimension_numbers = #tpu.dot_dimension_numbers<[1], [0], [0], [1], [0, 0, 1, 1], [], []>} : vector<256x4xbf16>, vector<4x32xbf16>, vector<256x32xf32> -> vector<256x32xf32>
    %8 = arith.addf %2, %7 : vector<256x32xf32>
    %9 = vector.extract_strided_slice %1 {offsets = [0, 1, 0], sizes = [16, 16, 4], strides = [1, 1, 1]} : vector<18x18x4xbf16> to vector<16x16x4xbf16>
    %10 = vector.shape_cast %9 : vector<16x16x4xbf16> to vector<256x4xbf16>
    %c1 = arith.constant 1 : index
    %c0_7 = arith.constant 0 : index
    %c0_8 = arith.constant 0 : index
    %11 = vector.load %arg2[%c1, %c0_7, %c0_8] : memref<9x4x32xbf16, #tpu.memory_space<vmem>>, vector<1x4x32xbf16>
    %12 = vector.shape_cast %11 : vector<1x4x32xbf16> to vector<4x32xbf16>
    %cst_9 = arith.constant dense<0.000000e+00> : vector<256x32xf32>
    %13 = tpu.matmul %10, %12, %cst_9 {dimension_numbers = #tpu.dot_dimension_numbers<[1], [0], [0], [1], [0, 0, 1, 1], [], []>} : vector<256x4xbf16>, vector<4x32xbf16>, vector<256x32xf32> -> vector<256x32xf32>
    %14 = arith.addf %8, %13 : vector<256x32xf32>
    %15 = vector.extract_strided_slice %1 {offsets = [0, 2, 0], sizes = [16, 16, 4], strides = [1, 1, 1]} : vector<18x18x4xbf16> to vector<16x16x4xbf16>
    %16 = vector.shape_cast %15 : vector<16x16x4xbf16> to vector<256x4xbf16>
    %c2 = arith.constant 2 : index
    %c0_10 = arith.constant 0 : index
    %c0_11 = arith.constant 0 : index
    %17 = vector.load %arg2[%c2, %c0_10, %c0_11] : memref<9x4x32xbf16, #tpu.memory_space<vmem>>, vector<1x4x32xbf16>
    %18 = vector.shape_cast %17 : vector<1x4x32xbf16> to vector<4x32xbf16>
    %cst_12 = arith.constant dense<0.000000e+00> : vector<256x32xf32>
    %19 = tpu.matmul %16, %18, %cst_12 {dimension_numbers = #tpu.dot_dimension_numbers<[1], [0], [0], [1], [0, 0, 1, 1], [], []>} : vector<256x4xbf16>, vector<4x32xbf16>, vector<256x32xf32> -> vector<256x32xf32>
    %20 = arith.addf %14, %19 : vector<256x32xf32>
    %21 = vector.extract_strided_slice %1 {offsets = [1, 0, 0], sizes = [16, 16, 4], strides = [1, 1, 1]} : vector<18x18x4xbf16> to vector<16x16x4xbf16>
    %22 = vector.shape_cast %21 : vector<16x16x4xbf16> to vector<256x4xbf16>
    %c3 = arith.constant 3 : index
    %c0_13 = arith.constant 0 : index
    %c0_14 = arith.constant 0 : index
    %23 = vector.load %arg2[%c3, %c0_13, %c0_14] : memref<9x4x32xbf16, #tpu.memory_space<vmem>>, vector<1x4x32xbf16>
    %24 = vector.shape_cast %23 : vector<1x4x32xbf16> to vector<4x32xbf16>
    %cst_15 = arith.constant dense<0.000000e+00> : vector<256x32xf32>
    %25 = tpu.matmul %22, %24, %cst_15 {dimension_numbers = #tpu.dot_dimension_numbers<[1], [0], [0], [1], [0, 0, 1, 1], [], []>} : vector<256x4xbf16>, vector<4x32xbf16>, vector<256x32xf32> -> vector<256x32xf32>
    %26 = arith.addf %20, %25 : vector<256x32xf32>
    %27 = vector.extract_strided_slice %1 {offsets = [1, 1, 0], sizes = [16, 16, 4], strides = [1, 1, 1]} : vector<18x18x4xbf16> to vector<16x16x4xbf16>
    %28 = vector.shape_cast %27 : vector<16x16x4xbf16> to vector<256x4xbf16>
    %c4 = arith.constant 4 : index
    %c0_16 = arith.constant 0 : index
    %c0_17 = arith.constant 0 : index
    %29 = vector.load %arg2[%c4, %c0_16, %c0_17] : memref<9x4x32xbf16, #tpu.memory_space<vmem>>, vector<1x4x32xbf16>
    %30 = vector.shape_cast %29 : vector<1x4x32xbf16> to vector<4x32xbf16>
    %cst_18 = arith.constant dense<0.000000e+00> : vector<256x32xf32>
    %31 = tpu.matmul %28, %30, %cst_18 {dimension_numbers = #tpu.dot_dimension_numbers<[1], [0], [0], [1], [0, 0, 1, 1], [], []>} : vector<256x4xbf16>, vector<4x32xbf16>, vector<256x32xf32> -> vector<256x32xf32>
    %32 = arith.addf %26, %31 : vector<256x32xf32>
    %33 = vector.extract_strided_slice %1 {offsets = [1, 2, 0], sizes = [16, 16, 4], strides = [1, 1, 1]} : vector<18x18x4xbf16> to vector<16x16x4xbf16>
    %34 = vector.shape_cast %33 : vector<16x16x4xbf16> to vector<256x4xbf16>
    %c5 = arith.constant 5 : index
    %c0_19 = arith.constant 0 : index
    %c0_20 = arith.constant 0 : index
    %35 = vector.load %arg2[%c5, %c0_19, %c0_20] : memref<9x4x32xbf16, #tpu.memory_space<vmem>>, vector<1x4x32xbf16>
    %36 = vector.shape_cast %35 : vector<1x4x32xbf16> to vector<4x32xbf16>
    %cst_21 = arith.constant dense<0.000000e+00> : vector<256x32xf32>
    %37 = tpu.matmul %34, %36, %cst_21 {dimension_numbers = #tpu.dot_dimension_numbers<[1], [0], [0], [1], [0, 0, 1, 1], [], []>} : vector<256x4xbf16>, vector<4x32xbf16>, vector<256x32xf32> -> vector<256x32xf32>
    %38 = arith.addf %32, %37 : vector<256x32xf32>
    %39 = vector.extract_strided_slice %1 {offsets = [2, 0, 0], sizes = [16, 16, 4], strides = [1, 1, 1]} : vector<18x18x4xbf16> to vector<16x16x4xbf16>
    %40 = vector.shape_cast %39 : vector<16x16x4xbf16> to vector<256x4xbf16>
    %c6 = arith.constant 6 : index
    %c0_22 = arith.constant 0 : index
    %c0_23 = arith.constant 0 : index
    %41 = vector.load %arg2[%c6, %c0_22, %c0_23] : memref<9x4x32xbf16, #tpu.memory_space<vmem>>, vector<1x4x32xbf16>
    %42 = vector.shape_cast %41 : vector<1x4x32xbf16> to vector<4x32xbf16>
    %cst_24 = arith.constant dense<0.000000e+00> : vector<256x32xf32>
    %43 = tpu.matmul %40, %42, %cst_24 {dimension_numbers = #tpu.dot_dimension_numbers<[1], [0], [0], [1], [0, 0, 1, 1], [], []>} : vector<256x4xbf16>, vector<4x32xbf16>, vector<256x32xf32> -> vector<256x32xf32>
    %44 = arith.addf %38, %43 : vector<256x32xf32>
    %45 = vector.extract_strided_slice %1 {offsets = [2, 1, 0], sizes = [16, 16, 4], strides = [1, 1, 1]} : vector<18x18x4xbf16> to vector<16x16x4xbf16>
    %46 = vector.shape_cast %45 : vector<16x16x4xbf16> to vector<256x4xbf16>
    %c7 = arith.constant 7 : index
    %c0_25 = arith.constant 0 : index
    %c0_26 = arith.constant 0 : index
    %47 = vector.load %arg2[%c7, %c0_25, %c0_26] : memref<9x4x32xbf16, #tpu.memory_space<vmem>>, vector<1x4x32xbf16>
    %48 = vector.shape_cast %47 : vector<1x4x32xbf16> to vector<4x32xbf16>
    %cst_27 = arith.constant dense<0.000000e+00> : vector<256x32xf32>
    %49 = tpu.matmul %46, %48, %cst_27 {dimension_numbers = #tpu.dot_dimension_numbers<[1], [0], [0], [1], [0, 0, 1, 1], [], []>} : vector<256x4xbf16>, vector<4x32xbf16>, vector<256x32xf32> -> vector<256x32xf32>
    %50 = arith.addf %44, %49 : vector<256x32xf32>
    %51 = vector.extract_strided_slice %1 {offsets = [2, 2, 0], sizes = [16, 16, 4], strides = [1, 1, 1]} : vector<18x18x4xbf16> to vector<16x16x4xbf16>
    %52 = vector.shape_cast %51 : vector<16x16x4xbf16> to vector<256x4xbf16>
    %c8 = arith.constant 8 : index
    %c0_28 = arith.constant 0 : index
    %c0_29 = arith.constant 0 : index
    %53 = vector.load %arg2[%c8, %c0_28, %c0_29] : memref<9x4x32xbf16, #tpu.memory_space<vmem>>, vector<1x4x32xbf16>
    %54 = vector.shape_cast %53 : vector<1x4x32xbf16> to vector<4x32xbf16>
    %cst_30 = arith.constant dense<0.000000e+00> : vector<256x32xf32>
    %55 = tpu.matmul %52, %54, %cst_30 {dimension_numbers = #tpu.dot_dimension_numbers<[1], [0], [0], [1], [0, 0, 1, 1], [], []>} : vector<256x4xbf16>, vector<4x32xbf16>, vector<256x32xf32> -> vector<256x32xf32>
    %56 = arith.addf %50, %55 : vector<256x32xf32>
    %c0_31 = arith.constant 0 : index
    %c0_32 = arith.constant 0 : index
    %57 = vector.load %arg3[%c0_31, %c0_32] : memref<1x32xf32, #tpu.memory_space<vmem>>, vector<1x32xf32>
    %58 = vector.broadcast %57 : vector<1x32xf32> to vector<256x32xf32>
    %59 = arith.addf %56, %58 : vector<256x32xf32>
    %cst_33 = arith.constant 0.000000e+00 : f32
    %60 = vector.broadcast %cst_33 : f32 to vector<256x32xf32>
    %61 = arith.maximumf %59, %60 : vector<256x32xf32>
    %62 = arith.truncf %61 : vector<256x32xf32> to vector<256x32xbf16>
    %c0_34 = arith.constant 0 : index
    %c0_35 = arith.constant 0 : index
    %c0_36 = arith.constant 0 : index
    %63 = vector.load %arg8[%c0_34, %c0_35, %c0_36] : memref<1x256x32xbf16, #tpu.memory_space<vmem>>, vector<1x256x32xbf16>
    %64 = vector.shape_cast %63 : vector<1x256x32xbf16> to vector<256x32xbf16>
    %65 = vector.shape_cast %62 : vector<256x32xbf16> to vector<1x256x32xbf16>
    tpu.vector_store %arg8[%c0_34, %c0_35, %c0_36], %65 {strides = array<i32>} : memref<1x256x32xbf16, #tpu.memory_space<vmem>>, vector<1x256x32xbf16>,
    %cst_37 = arith.constant 0.000000e+00 : bf16
    %66 = vector.broadcast %cst_37 : bf16 to vector<18x18x32xbf16>
    %c0_38 = arith.constant 0 : index
    %c0_39 = arith.constant 0 : index
    %c0_40 = arith.constant 0 : index
    %67 = vector.load %arg10[%c0_38, %c0_39, %c0_40] : memref<18x18x32xbf16, #tpu.memory_space<vmem>>, vector<18x18x32xbf16>
    tpu.vector_store %arg10[%c0_38, %c0_39, %c0_40], %66 {strides = array<i32>} : memref<18x18x32xbf16, #tpu.memory_space<vmem>>, vector<18x18x32xbf16>,
    %68 = vector.shape_cast %62 : vector<256x32xbf16> to vector<16x16x32xbf16>
    %c1_41 = arith.constant 1 : index
    %c1_42 = arith.constant 1 : index
    %c0_43 = arith.constant 0 : index
    %69 = vector.load %arg10[%c1_41, %c1_42, %c0_43] : memref<18x18x32xbf16, #tpu.memory_space<vmem>>, vector<16x16x32xbf16>
    tpu.vector_store %arg10[%c1_41, %c1_42, %c0_43], %68 {strides = array<i32>} : memref<18x18x32xbf16, #tpu.memory_space<vmem>>, vector<16x16x32xbf16>,
    %cst_44 = arith.constant 0.000000e+00 : f32
    %70 = vector.broadcast %cst_44 : f32 to vector<256x32xf32>
    %c0_45 = arith.constant 0 : index
    %c0_46 = arith.constant 0 : index
    %c0_47 = arith.constant 0 : index
    %71 = vector.load %arg10[%c0_45, %c0_46, %c0_47] : memref<18x18x32xbf16, #tpu.memory_space<vmem>>, vector<16x16x32xbf16>
    %72 = vector.shape_cast %71 : vector<16x16x32xbf16> to vector<256x32xbf16>
    %c0_48 = arith.constant 0 : index
    %c0_49 = arith.constant 0 : index
    %c0_50 = arith.constant 0 : index
    %73 = vector.load %arg4[%c0_48, %c0_49, %c0_50] : memref<9x32x32xbf16, #tpu.memory_space<vmem>>, vector<1x32x32xbf16>
    %74 = vector.shape_cast %73 : vector<1x32x32xbf16> to vector<32x32xbf16>
    %cst_51 = arith.constant dense<0.000000e+00> : vector<256x32xf32>
    %75 = tpu.matmul %72, %74, %cst_51 {dimension_numbers = #tpu.dot_dimension_numbers<[1], [0], [0], [1], [0, 0, 1, 1], [], []>} : vector<256x32xbf16>, vector<32x32xbf16>, vector<256x32xf32> -> vector<256x32xf32>
    %76 = arith.addf %70, %75 : vector<256x32xf32>
    %c0_52 = arith.constant 0 : index
    %c1_53 = arith.constant 1 : index
    %c0_54 = arith.constant 0 : index
    %77 = vector.load %arg10[%c0_52, %c1_53, %c0_54] : memref<18x18x32xbf16, #tpu.memory_space<vmem>>, vector<16x16x32xbf16>
    %78 = vector.shape_cast %77 : vector<16x16x32xbf16> to vector<256x32xbf16>
    %c1_55 = arith.constant 1 : index
    %c0_56 = arith.constant 0 : index
    %c0_57 = arith.constant 0 : index
    %79 = vector.load %arg4[%c1_55, %c0_56, %c0_57] : memref<9x32x32xbf16, #tpu.memory_space<vmem>>, vector<1x32x32xbf16>
    %80 = vector.shape_cast %79 : vector<1x32x32xbf16> to vector<32x32xbf16>
    %cst_58 = arith.constant dense<0.000000e+00> : vector<256x32xf32>
    %81 = tpu.matmul %78, %80, %cst_58 {dimension_numbers = #tpu.dot_dimension_numbers<[1], [0], [0], [1], [0, 0, 1, 1], [], []>} : vector<256x32xbf16>, vector<32x32xbf16>, vector<256x32xf32> -> vector<256x32xf32>
    %82 = arith.addf %76, %81 : vector<256x32xf32>
    %c0_59 = arith.constant 0 : index
    %c2_60 = arith.constant 2 : index
    %c0_61 = arith.constant 0 : index
    %83 = vector.load %arg10[%c0_59, %c2_60, %c0_61] : memref<18x18x32xbf16, #tpu.memory_space<vmem>>, vector<16x16x32xbf16>
    %84 = vector.shape_cast %83 : vector<16x16x32xbf16> to vector<256x32xbf16>
    %c2_62 = arith.constant 2 : index
    %c0_63 = arith.constant 0 : index
    %c0_64 = arith.constant 0 : index
    %85 = vector.load %arg4[%c2_62, %c0_63, %c0_64] : memref<9x32x32xbf16, #tpu.memory_space<vmem>>, vector<1x32x32xbf16>
    %86 = vector.shape_cast %85 : vector<1x32x32xbf16> to vector<32x32xbf16>
    %cst_65 = arith.constant dense<0.000000e+00> : vector<256x32xf32>
    %87 = tpu.matmul %84, %86, %cst_65 {dimension_numbers = #tpu.dot_dimension_numbers<[1], [0], [0], [1], [0, 0, 1, 1], [], []>} : vector<256x32xbf16>, vector<32x32xbf16>, vector<256x32xf32> -> vector<256x32xf32>
    %88 = arith.addf %82, %87 : vector<256x32xf32>
    %c1_66 = arith.constant 1 : index
    %c0_67 = arith.constant 0 : index
    %c0_68 = arith.constant 0 : index
    %89 = vector.load %arg10[%c1_66, %c0_67, %c0_68] : memref<18x18x32xbf16, #tpu.memory_space<vmem>>, vector<16x16x32xbf16>
    %90 = vector.shape_cast %89 : vector<16x16x32xbf16> to vector<256x32xbf16>
    %c3_69 = arith.constant 3 : index
    %c0_70 = arith.constant 0 : index
    %c0_71 = arith.constant 0 : index
    %91 = vector.load %arg4[%c3_69, %c0_70, %c0_71] : memref<9x32x32xbf16, #tpu.memory_space<vmem>>, vector<1x32x32xbf16>
    %92 = vector.shape_cast %91 : vector<1x32x32xbf16> to vector<32x32xbf16>
    %cst_72 = arith.constant dense<0.000000e+00> : vector<256x32xf32>
    %93 = tpu.matmul %90, %92, %cst_72 {dimension_numbers = #tpu.dot_dimension_numbers<[1], [0], [0], [1], [0, 0, 1, 1], [], []>} : vector<256x32xbf16>, vector<32x32xbf16>, vector<256x32xf32> -> vector<256x32xf32>
    %94 = arith.addf %88, %93 : vector<256x32xf32>
    %c1_73 = arith.constant 1 : index
    %c1_74 = arith.constant 1 : index
    %c0_75 = arith.constant 0 : index
    %95 = vector.load %arg10[%c1_73, %c1_74, %c0_75] : memref<18x18x32xbf16, #tpu.memory_space<vmem>>, vector<16x16x32xbf16>
    %96 = vector.shape_cast %95 : vector<16x16x32xbf16> to vector<256x32xbf16>
    %c4_76 = arith.constant 4 : index
    %c0_77 = arith.constant 0 : index
    %c0_78 = arith.constant 0 : index
    %97 = vector.load %arg4[%c4_76, %c0_77, %c0_78] : memref<9x32x32xbf16, #tpu.memory_space<vmem>>, vector<1x32x32xbf16>
    %98 = vector.shape_cast %97 : vector<1x32x32xbf16> to vector<32x32xbf16>
    %cst_79 = arith.constant dense<0.000000e+00> : vector<256x32xf32>
    %99 = tpu.matmul %96, %98, %cst_79 {dimension_numbers = #tpu.dot_dimension_numbers<[1], [0], [0], [1], [0, 0, 1, 1], [], []>} : vector<256x32xbf16>, vector<32x32xbf16>, vector<256x32xf32> -> vector<256x32xf32>
    %100 = arith.addf %94, %99 : vector<256x32xf32>
    %c1_80 = arith.constant 1 : index
    %c2_81 = arith.constant 2 : index
    %c0_82 = arith.constant 0 : index
    %101 = vector.load %arg10[%c1_80, %c2_81, %c0_82] : memref<18x18x32xbf16, #tpu.memory_space<vmem>>, vector<16x16x32xbf16>
    %102 = vector.shape_cast %101 : vector<16x16x32xbf16> to vector<256x32xbf16>
    %c5_83 = arith.constant 5 : index
    %c0_84 = arith.constant 0 : index
    %c0_85 = arith.constant 0 : index
    %103 = vector.load %arg4[%c5_83, %c0_84, %c0_85] : memref<9x32x32xbf16, #tpu.memory_space<vmem>>, vector<1x32x32xbf16>
    %104 = vector.shape_cast %103 : vector<1x32x32xbf16> to vector<32x32xbf16>
    %cst_86 = arith.constant dense<0.000000e+00> : vector<256x32xf32>
    %105 = tpu.matmul %102, %104, %cst_86 {dimension_numbers = #tpu.dot_dimension_numbers<[1], [0], [0], [1], [0, 0, 1, 1], [], []>} : vector<256x32xbf16>, vector<32x32xbf16>, vector<256x32xf32> -> vector<256x32xf32>
    %106 = arith.addf %100, %105 : vector<256x32xf32>
    %c2_87 = arith.constant 2 : index
    %c0_88 = arith.constant 0 : index
    %c0_89 = arith.constant 0 : index
    %107 = vector.load %arg10[%c2_87, %c0_88, %c0_89] : memref<18x18x32xbf16, #tpu.memory_space<vmem>>, vector<16x16x32xbf16>
    %108 = vector.shape_cast %107 : vector<16x16x32xbf16> to vector<256x32xbf16>
    %c6_90 = arith.constant 6 : index
    %c0_91 = arith.constant 0 : index
    %c0_92 = arith.constant 0 : index
    %109 = vector.load %arg4[%c6_90, %c0_91, %c0_92] : memref<9x32x32xbf16, #tpu.memory_space<vmem>>, vector<1x32x32xbf16>
    %110 = vector.shape_cast %109 : vector<1x32x32xbf16> to vector<32x32xbf16>
    %cst_93 = arith.constant dense<0.000000e+00> : vector<256x32xf32>
    %111 = tpu.matmul %108, %110, %cst_93 {dimension_numbers = #tpu.dot_dimension_numbers<[1], [0], [0], [1], [0, 0, 1, 1], [], []>} : vector<256x32xbf16>, vector<32x32xbf16>, vector<256x32xf32> -> vector<256x32xf32>
    %112 = arith.addf %106, %111 : vector<256x32xf32>
    %c2_94 = arith.constant 2 : index
    %c1_95 = arith.constant 1 : index
    %c0_96 = arith.constant 0 : index
    %113 = vector.load %arg10[%c2_94, %c1_95, %c0_96] : memref<18x18x32xbf16, #tpu.memory_space<vmem>>, vector<16x16x32xbf16>
    %114 = vector.shape_cast %113 : vector<16x16x32xbf16> to vector<256x32xbf16>
    %c7_97 = arith.constant 7 : index
    %c0_98 = arith.constant 0 : index
    %c0_99 = arith.constant 0 : index
    %115 = vector.load %arg4[%c7_97, %c0_98, %c0_99] : memref<9x32x32xbf16, #tpu.memory_space<vmem>>, vector<1x32x32xbf16>
    %116 = vector.shape_cast %115 : vector<1x32x32xbf16> to vector<32x32xbf16>
    %cst_100 = arith.constant dense<0.000000e+00> : vector<256x32xf32>
    %117 = tpu.matmul %114, %116, %cst_100 {dimension_numbers = #tpu.dot_dimension_numbers<[1], [0], [0], [1], [0, 0, 1, 1], [], []>} : vector<256x32xbf16>, vector<32x32xbf16>, vector<256x32xf32> -> vector<256x32xf32>
    %118 = arith.addf %112, %117 : vector<256x32xf32>
    %c2_101 = arith.constant 2 : index
    %c2_102 = arith.constant 2 : index
    %c0_103 = arith.constant 0 : index
    %119 = vector.load %arg10[%c2_101, %c2_102, %c0_103] : memref<18x18x32xbf16, #tpu.memory_space<vmem>>, vector<16x16x32xbf16>
    %120 = vector.shape_cast %119 : vector<16x16x32xbf16> to vector<256x32xbf16>
    %c8_104 = arith.constant 8 : index
    %c0_105 = arith.constant 0 : index
    %c0_106 = arith.constant 0 : index
    %121 = vector.load %arg4[%c8_104, %c0_105, %c0_106] : memref<9x32x32xbf16, #tpu.memory_space<vmem>>, vector<1x32x32xbf16>
    %122 = vector.shape_cast %121 : vector<1x32x32xbf16> to vector<32x32xbf16>
    %cst_107 = arith.constant dense<0.000000e+00> : vector<256x32xf32>
    %123 = tpu.matmul %120, %122, %cst_107 {dimension_numbers = #tpu.dot_dimension_numbers<[1], [0], [0], [1], [0, 0, 1, 1], [], []>} : vector<256x32xbf16>, vector<32x32xbf16>, vector<256x32xf32> -> vector<256x32xf32>
    %124 = arith.addf %118, %123 : vector<256x32xf32>
    %c0_108 = arith.constant 0 : index
    %c0_109 = arith.constant 0 : index
    %125 = vector.load %arg5[%c0_108, %c0_109] : memref<1x32xf32, #tpu.memory_space<vmem>>, vector<1x32xf32>
    %126 = vector.broadcast %125 : vector<1x32xf32> to vector<256x32xf32>
    %127 = arith.addf %124, %126 : vector<256x32xf32>
    %cst_110 = arith.constant 0.000000e+00 : f32
    %128 = vector.broadcast %cst_110 : f32 to vector<256x32xf32>
    %129 = arith.maximumf %127, %128 : vector<256x32xf32>
    %130 = arith.truncf %129 : vector<256x32xf32> to vector<256x32xbf16>
    %c0_111 = arith.constant 0 : index
    %c0_112 = arith.constant 0 : index
    %131 = vector.load %arg6[%c0_111, %c0_112] : memref<32x16xbf16, #tpu.memory_space<vmem>>, vector<32x16xbf16>
    %cst_113 = arith.constant dense<0.000000e+00> : vector<256x16xf32>
    %132 = tpu.matmul %130, %131, %cst_113 {dimension_numbers = #tpu.dot_dimension_numbers<[1], [0], [0], [1], [0, 0, 1, 1], [], []>} : vector<256x32xbf16>, vector<32x16xbf16>, vector<256x16xf32> -> vector<256x16xf32>
    %c0_114 = arith.constant 0 : index
    %c0_115 = arith.constant 0 : index
    %133 = vector.load %arg7[%c0_114, %c0_115] : memref<1x16xf32, #tpu.memory_space<vmem>>, vector<1x16xf32>
    %134 = vector.broadcast %133 : vector<1x16xf32> to vector<256x16xf32>
    %135 = arith.addf %132, %134 : vector<256x16xf32>
    %c0_116 = arith.constant 0 : index
    %c0_117 = arith.constant 0 : index
    %c0_118 = arith.constant 0 : index
    %136 = vector.load %arg9[%c0_116, %c0_117, %c0_118] : memref<1x256x16xf32, #tpu.memory_space<vmem>>, vector<1x256x16xf32>
    %137 = vector.shape_cast %136 : vector<1x256x16xf32> to vector<256x16xf32>
    %138 = vector.shape_cast %135 : vector<256x16xf32> to vector<1x256x16xf32>
    tpu.vector_store %arg9[%c0_116, %c0_117, %c0_118], %138 {strides = array<i32>} : memref<1x256x16xf32, #tpu.memory_space<vmem>>, vector<1x256x16xf32>,
    return
  }
  func.func @transform_0(%arg0: i32) -> (i32, i32, i32, i32) {
    %c0_i32 = arith.constant 0 : i32
    %c0_i32_0 = arith.constant 0 : i32
    %c0_i32_1 = arith.constant 0 : i32
    %c0_i32_2 = arith.constant 0 : i32
    return %arg0, %c0_i32, %c0_i32_0, %c0_i32_1 : i32, i32, i32, i32
  }
  func.func @transform_1(%arg0: i32) -> (i32, i32, i32) {
    %c0_i32 = arith.constant 0 : i32
    %c0_i32_0 = arith.constant 0 : i32
    %c0_i32_1 = arith.constant 0 : i32
    %c0_i32_2 = arith.constant 0 : i32
    return %c0_i32, %c0_i32_0, %c0_i32_1 : i32, i32, i32
  }
  func.func @transform_2(%arg0: i32) -> (i32, i32) {
    %c0_i32 = arith.constant 0 : i32
    %c0_i32_0 = arith.constant 0 : i32
    %c0_i32_1 = arith.constant 0 : i32
    return %c0_i32, %c0_i32_0 : i32, i32
  }
  func.func @transform_3(%arg0: i32) -> (i32, i32, i32) {
    %c0_i32 = arith.constant 0 : i32
    %c0_i32_0 = arith.constant 0 : i32
    %c0_i32_1 = arith.constant 0 : i32
    %c0_i32_2 = arith.constant 0 : i32
    return %c0_i32, %c0_i32_0, %c0_i32_1 : i32, i32, i32
  }
  func.func @transform_4(%arg0: i32) -> (i32, i32) {
    %c0_i32 = arith.constant 0 : i32
    %c0_i32_0 = arith.constant 0 : i32
    %c0_i32_1 = arith.constant 0 : i32
    return %c0_i32, %c0_i32_0 : i32, i32
  }
  func.func @transform_5(%arg0: i32) -> (i32, i32) {
    %c0_i32 = arith.constant 0 : i32
    %c0_i32_0 = arith.constant 0 : i32
    %c0_i32_1 = arith.constant 0 : i32
    return %c0_i32, %c0_i32_0 : i32, i32
  }
  func.func @transform_6(%arg0: i32) -> (i32, i32) {
    %c0_i32 = arith.constant 0 : i32
    %c0_i32_0 = arith.constant 0 : i32
    %c0_i32_1 = arith.constant 0 : i32
    return %c0_i32, %c0_i32_0 : i32, i32
  }
  func.func @transform_7(%arg0: i32) -> (i32, i32, i32) {
    %c0_i32 = arith.constant 0 : i32
    %c0_i32_0 = arith.constant 0 : i32
    %c0_i32_1 = arith.constant 0 : i32
    return %arg0, %c0_i32, %c0_i32_0 : i32, i32, i32
  }
  func.func @transform_8(%arg0: i32) -> (i32, i32, i32) {
    %c0_i32 = arith.constant 0 : i32
    %c0_i32_0 = arith.constant 0 : i32
    %c0_i32_1 = arith.constant 0 : i32
    return %arg0, %c0_i32, %c0_i32_0 : i32, i32, i32
  }
}

module attributes {stable_mosaic.version = 11 : i64} {
  func.func @_detector_kernel(%arg0: i32, %arg1: memref<1x256x32xbf16, #tpu.memory_space<vmem>>, %arg2: memref<1x8x4xf32, #tpu.memory_space<vmem>>, %arg3: memref<32x64xbf16, #tpu.memory_space<vmem>>, %arg4: memref<1x64xf32, #tpu.memory_space<vmem>>, %arg5: memref<64x128xbf16, #tpu.memory_space<vmem>>, %arg6: memref<1x128xf32, #tpu.memory_space<vmem>>, %arg7: memref<1x8x128xf32, #tpu.memory_space<vmem>>) attributes {dimension_semantics = [#tpu.dimension_semantics<parallel>], iteration_bounds = array<i64: 2>, scalar_prefetch = 0 : i64, scratch_operands = 0 : i64, tpu.core_type = #tpu.core_type<tc>, window_params = [{transform_indices = @transform_0, window_bounds = array<i64: 1, 256, 32>}, {transform_indices = @transform_1, window_bounds = array<i64: 1, 8, 4>}, {pipeline_mode = #tpu.pipeline_mode<synchronous>, transform_indices = @transform_2, window_bounds = array<i64: 32, 64>}, {pipeline_mode = #tpu.pipeline_mode<synchronous>, transform_indices = @transform_3, window_bounds = array<i64: 1, 64>}, {pipeline_mode = #tpu.pipeline_mode<synchronous>, transform_indices = @transform_4, window_bounds = array<i64: 64, 128>}, {pipeline_mode = #tpu.pipeline_mode<synchronous>, transform_indices = @transform_5, window_bounds = array<i64: 1, 128>}, {transform_indices = @transform_6, window_bounds = array<i64: 1, 8, 128>}]} {
    %c0 = arith.constant 0 : index
    %c0_0 = arith.constant 0 : index
    %c0_1 = arith.constant 0 : index
    %0 = vector.load %arg1[%c0, %c0_0, %c0_1] : memref<1x256x32xbf16, #tpu.memory_space<vmem>>, vector<1x256x32xbf16>
    %1 = vector.shape_cast %0 : vector<1x256x32xbf16> to vector<256x32xbf16>
    %c0_2 = arith.constant 0 : index
    %c0_3 = arith.constant 0 : index
    %c0_4 = arith.constant 0 : index
    %2 = vector.load %arg2[%c0_2, %c0_3, %c0_4] : memref<1x8x4xf32, #tpu.memory_space<vmem>>, vector<1x8x4xf32>
    %3 = vector.shape_cast %2 : vector<1x8x4xf32> to vector<8x4xf32>
    %4 = vector.extract_strided_slice %3 {offsets = [0, 0], sizes = [8, 1], strides = [1, 1]} : vector<8x4xf32> to vector<8x1xf32>
    %5 = vector.extract_strided_slice %3 {offsets = [0, 1], sizes = [8, 1], strides = [1, 1]} : vector<8x4xf32> to vector<8x1xf32>
    %6 = vector.extract_strided_slice %3 {offsets = [0, 2], sizes = [8, 1], strides = [1, 1]} : vector<8x4xf32> to vector<8x1xf32>
    %7 = vector.extract_strided_slice %3 {offsets = [0, 3], sizes = [8, 1], strides = [1, 1]} : vector<8x4xf32> to vector<8x1xf32>
    %8 = tpu.iota {dimensions = array<i32: 1>} : vector<8x16xi32>
    %9 = arith.sitofp %8 : vector<8x16xi32> to vector<8x16xf32>
    %cst = arith.constant 5.000000e-01 : f32
    %10 = vector.broadcast %cst : f32 to vector<8x16xf32>
    %11 = arith.addf %9, %10 : vector<8x16xf32>
    %12 = tpu.iota {dimensions = array<i32: 1>} : vector<8x16xi32>
    %13 = arith.sitofp %12 : vector<8x16xi32> to vector<8x16xf32>
    %cst_5 = arith.constant 5.000000e-01 : f32
    %14 = vector.broadcast %cst_5 : f32 to vector<8x16xf32>
    %15 = arith.addf %13, %14 : vector<8x16xf32>
    %16 = vector.broadcast %5 : vector<8x1xf32> to vector<8x16xf32>
    %17 = arith.cmpf oge, %11, %16 : vector<8x16xf32>
    %18 = vector.broadcast %7 : vector<8x1xf32> to vector<8x16xf32>
    %19 = arith.cmpf ole, %11, %18 : vector<8x16xf32>
    %20 = arith.andi %17, %19 : vector<8x16xi1>
    %21 = arith.extui %20 : vector<8x16xi1> to vector<8x16xi32>
    %22 = arith.sitofp %21 : vector<8x16xi32> to vector<8x16xf32>
    %23 = vector.broadcast %4 : vector<8x1xf32> to vector<8x16xf32>
    %24 = arith.cmpf oge, %15, %23 : vector<8x16xf32>
    %25 = vector.broadcast %6 : vector<8x1xf32> to vector<8x16xf32>
    %26 = arith.cmpf ole, %15, %25 : vector<8x16xf32>
    %27 = arith.andi %24, %26 : vector<8x16xi1>
    %28 = arith.extui %27 : vector<8x16xi1> to vector<8x16xi32>
    %29 = arith.sitofp %28 : vector<8x16xi32> to vector<8x16xf32>
    %cst_6 = arith.constant dense<0.000000e+00> : vector<8xf32>
    %30 = vector.multi_reduction <add>, %22, %cst_6 [1] : vector<8x16xf32> to vector<8xf32>
    %31 = vector.shape_cast %30 : vector<8xf32> to vector<8x1xf32>
    %cst_7 = arith.constant dense<0.000000e+00> : vector<8xf32>
    %32 = vector.multi_reduction <add>, %29, %cst_7 [1] : vector<8x16xf32> to vector<8xf32>
    %33 = vector.shape_cast %32 : vector<8xf32> to vector<8x1xf32>
    %34 = arith.mulf %31, %33 : vector<8x1xf32>
    %cst_8 = arith.constant 1.000000e+00 : f32
    %35 = vector.broadcast %cst_8 : f32 to vector<8x1xf32>
    %36 = arith.maximumf %34, %35 : vector<8x1xf32>
    %37 = vector.shape_cast %22 : vector<8x16xf32> to vector<8x16x1xf32>
    %38 = vector.shape_cast %29 : vector<8x16xf32> to vector<8x1x16xf32>
    %39 = vector.broadcast %37 : vector<8x16x1xf32> to vector<8x16x16xf32>
    %40 = vector.broadcast %38 : vector<8x1x16xf32> to vector<8x16x16xf32>
    %41 = arith.mulf %39, %40 : vector<8x16x16xf32>
    %42 = vector.shape_cast %41 : vector<8x16x16xf32> to vector<8x256xf32>
    %43 = arith.truncf %42 : vector<8x256xf32> to vector<8x256xbf16>
    %cst_9 = arith.constant dense<0.000000e+00> : vector<8x32xf32>
    %44 = tpu.matmul %43, %1, %cst_9 {dimension_numbers = #tpu.dot_dimension_numbers<[1], [0], [0], [1], [0, 0, 1, 1], [], []>} : vector<8x256xbf16>, vector<256x32xbf16>, vector<8x32xf32> -> vector<8x32xf32>
    %45 = vector.broadcast %36 : vector<8x1xf32> to vector<8x32xf32>
    %46 = arith.divf %44, %45 : vector<8x32xf32>
    %47 = arith.truncf %46 : vector<8x32xf32> to vector<8x32xbf16>
    %c0_10 = arith.constant 0 : index
    %c0_11 = arith.constant 0 : index
    %48 = vector.load %arg3[%c0_10, %c0_11] : memref<32x64xbf16, #tpu.memory_space<vmem>>, vector<32x64xbf16>
    %cst_12 = arith.constant dense<0.000000e+00> : vector<8x64xf32>
    %49 = tpu.matmul %47, %48, %cst_12 {dimension_numbers = #tpu.dot_dimension_numbers<[1], [0], [0], [1], [0, 0, 1, 1], [], []>} : vector<8x32xbf16>, vector<32x64xbf16>, vector<8x64xf32> -> vector<8x64xf32>
    %c0_13 = arith.constant 0 : index
    %c0_14 = arith.constant 0 : index
    %50 = vector.load %arg4[%c0_13, %c0_14] : memref<1x64xf32, #tpu.memory_space<vmem>>, vector<1x64xf32>
    %51 = vector.broadcast %50 : vector<1x64xf32> to vector<8x64xf32>
    %52 = arith.addf %49, %51 : vector<8x64xf32>
    %cst_15 = arith.constant 0.000000e+00 : f32
    %53 = vector.broadcast %cst_15 : f32 to vector<8x64xf32>
    %54 = arith.maximumf %52, %53 : vector<8x64xf32>
    %55 = arith.truncf %54 : vector<8x64xf32> to vector<8x64xbf16>
    %c0_16 = arith.constant 0 : index
    %c0_17 = arith.constant 0 : index
    %56 = vector.load %arg5[%c0_16, %c0_17] : memref<64x128xbf16, #tpu.memory_space<vmem>>, vector<64x128xbf16>
    %cst_18 = arith.constant dense<0.000000e+00> : vector<8x128xf32>
    %57 = tpu.matmul %55, %56, %cst_18 {dimension_numbers = #tpu.dot_dimension_numbers<[1], [0], [0], [1], [0, 0, 1, 1], [], []>} : vector<8x64xbf16>, vector<64x128xbf16>, vector<8x128xf32> -> vector<8x128xf32>
    %c0_19 = arith.constant 0 : index
    %c0_20 = arith.constant 0 : index
    %58 = vector.load %arg6[%c0_19, %c0_20] : memref<1x128xf32, #tpu.memory_space<vmem>>, vector<1x128xf32>
    %59 = vector.broadcast %58 : vector<1x128xf32> to vector<8x128xf32>
    %60 = arith.addf %57, %59 : vector<8x128xf32>
    %61 = tpu.iota {dimensions = array<i32: 1>} : vector<8x128xi32>
    %c5_i32 = arith.constant 5 : i32
    %62 = vector.broadcast %c5_i32 : i32 to vector<8x128xi32>
    %63 = arith.cmpi slt, %61, %62 : vector<8x128xi32>
    %c9_i32 = arith.constant 9 : i32
    %64 = vector.broadcast %c9_i32 : i32 to vector<8x128xi32>
    %65 = arith.cmpi sge, %61, %64 : vector<8x128xi32>
    %c13_i32 = arith.constant 13 : i32
    %66 = vector.broadcast %c13_i32 : i32 to vector<8x128xi32>
    %67 = arith.cmpi slt, %61, %66 : vector<8x128xi32>
    %68 = arith.andi %65, %67 : vector<8x128xi1>
    %cst_21 = arith.constant -1.000000e+30 : f32
    %69 = vector.broadcast %cst_21 : f32 to vector<8x128xf32>
    %70 = arith.select %63, %60, %69 : vector<8x128xi1>, vector<8x128xf32>
    %cst_22 = arith.constant dense<0xFF800000> : vector<8xf32>
    %71 = vector.multi_reduction <maximumf>, %70, %cst_22 [1] : vector<8x128xf32> to vector<8xf32>
    %72 = vector.shape_cast %71 : vector<8xf32> to vector<8x1xf32>
    %73 = vector.broadcast %72 : vector<8x1xf32> to vector<8x128xf32>
    %74 = arith.subf %70, %73 : vector<8x128xf32>
    %75 = math.exp %74 : vector<8x128xf32>
    %cst_23 = arith.constant dense<0.000000e+00> : vector<8xf32>
    %76 = vector.multi_reduction <add>, %75, %cst_23 [1] : vector<8x128xf32> to vector<8xf32>
    %77 = vector.shape_cast %76 : vector<8xf32> to vector<8x1xf32>
    %78 = tpu.reciprocal %77 {approx = true} : vector<8x1xf32> -> vector<8x1xf32>
    %79 = vector.broadcast %78 : vector<8x1xf32> to vector<8x128xf32>
    %80 = arith.mulf %75, %79 : vector<8x128xf32>
    %cst_24 = arith.constant 0.000000e+00 : f32
    %81 = vector.broadcast %cst_24 : f32 to vector<8x128xf32>
    %82 = arith.maximumf %60, %81 : vector<8x128xf32>
    %83 = math.absf %60 : vector<8x128xf32>
    %cst_25 = arith.constant 0.000000e+00 : f32
    %84 = vector.broadcast %cst_25 : f32 to vector<8x128xf32>
    %85 = arith.subf %84, %83 : vector<8x128xf32>
    %86 = math.exp %85 : vector<8x128xf32>
    %cst_26 = arith.constant 1.000000e+00 : f32
    %87 = vector.broadcast %cst_26 : f32 to vector<8x128xf32>
    %88 = arith.addf %87, %86 : vector<8x128xf32>
    %89 = math.log %88 : vector<8x128xf32>
    %90 = arith.addf %82, %89 : vector<8x128xf32>
    %91 = arith.select %68, %90, %60 : vector<8x128xi1>, vector<8x128xf32>
    %92 = arith.select %63, %80, %91 : vector<8x128xi1>, vector<8x128xf32>
    %c0_27 = arith.constant 0 : index
    %c0_28 = arith.constant 0 : index
    %c0_29 = arith.constant 0 : index
    %93 = vector.load %arg7[%c0_27, %c0_28, %c0_29] : memref<1x8x128xf32, #tpu.memory_space<vmem>>, vector<1x8x128xf32>
    %94 = vector.shape_cast %93 : vector<1x8x128xf32> to vector<8x128xf32>
    %95 = vector.shape_cast %92 : vector<8x128xf32> to vector<1x8x128xf32>
    tpu.vector_store %arg7[%c0_27, %c0_28, %c0_29], %95 {strides = array<i32>} : memref<1x8x128xf32, #tpu.memory_space<vmem>>, vector<1x8x128xf32>,
    return
  }
  func.func @transform_0(%arg0: i32) -> (i32, i32, i32) {
    %c0_i32 = arith.constant 0 : i32
    %c0_i32_0 = arith.constant 0 : i32
    %c0_i32_1 = arith.constant 0 : i32
    return %arg0, %c0_i32, %c0_i32_0 : i32, i32, i32
  }
  func.func @transform_1(%arg0: i32) -> (i32, i32, i32) {
    %c0_i32 = arith.constant 0 : i32
    %c0_i32_0 = arith.constant 0 : i32
    %c0_i32_1 = arith.constant 0 : i32
    return %arg0, %c0_i32, %c0_i32_0 : i32, i32, i32
  }
  func.func @transform_2(%arg0: i32) -> (i32, i32) {
    %c0_i32 = arith.constant 0 : i32
    %c0_i32_0 = arith.constant 0 : i32
    %c0_i32_1 = arith.constant 0 : i32
    return %c0_i32, %c0_i32_0 : i32, i32
  }
  func.func @transform_3(%arg0: i32) -> (i32, i32) {
    %c0_i32 = arith.constant 0 : i32
    %c0_i32_0 = arith.constant 0 : i32
    %c0_i32_1 = arith.constant 0 : i32
    return %c0_i32, %c0_i32_0 : i32, i32
  }
  func.func @transform_4(%arg0: i32) -> (i32, i32) {
    %c0_i32 = arith.constant 0 : i32
    %c0_i32_0 = arith.constant 0 : i32
    %c0_i32_1 = arith.constant 0 : i32
    return %c0_i32, %c0_i32_0 : i32, i32
  }
  func.func @transform_5(%arg0: i32) -> (i32, i32) {
    %c0_i32 = arith.constant 0 : i32
    %c0_i32_0 = arith.constant 0 : i32
    %c0_i32_1 = arith.constant 0 : i32
    return %c0_i32, %c0_i32_0 : i32, i32
  }
  func.func @transform_6(%arg0: i32) -> (i32, i32, i32) {
    %c0_i32 = arith.constant 0 : i32
    %c0_i32_0 = arith.constant 0 : i32
    %c0_i32_1 = arith.constant 0 : i32
    return %arg0, %c0_i32, %c0_i32_0 : i32, i32, i32
  }
}

</mosaic_0001>

<llo_original>
// kernel: custom-call
$region0: #{custom-call}
  #allocation0 [shape = 'u32[8,128]{1,0}', space=vmem, size = 0x1000, scoped, tag = 'scratch']
  #allocation1 [shape = 'u32[8,128]{1,0}', space=vmem, size = 0x1000, scoped, tag = 'scratch']
  #allocation2 [shape = 'u32[8,128]{1,0}', space=vmem, size = 0x1000, scoped, tag = 'scratch']
  #allocation3 [shape = 'u32[8,128]{1,0}', space=vmem, size = 0x1000, scoped, tag = 'scratch']
  #allocation4 [shape = 'u32[8,128]{1,0}', space=vmem, size = 0x1000, scoped, tag = 'scratch']
  #allocation5 [shape = 'u32[8,128]{1,0}', space=vmem, size = 0x1000, scoped, tag = 'scratch']
  #allocation6 [shape = 'u32[8,128]{1,0}', space=vmem, size = 0x1000, scoped, tag = 'scratch']
  %s0 = inlined_call_operand.vmem [shape: f32[2,768], index: 0, kind: input, shape index: {}]
  %s1 = inlined_call_operand.hbm [shape: f32[2,8], index: 1, kind: output, shape index: {0}]
  %s2 = inlined_call_operand.vmem [shape: s32[2,8], index: 2, kind: output, shape index: {1}]
  %3 = xla_tuple %s1, %s2
  %4 = xla_tuple 2147483648, 2147483647
  $region1: #{custom-call} parent=0
    #allocation7 [shape = 'u8[4096]{0}', space=vmem, size = 0x1000, scoped, tag = 'operand span for operand 1']
    #allocation8 [shape = 'u8[1024]{0}', space=vmem, size = 0x400, scoped, tag = 'packed  for operand 1']
    #allocation9 [shape = 's32[1]{0}', space=sflag, size = 0x4, scoped, tag = 'scoped memory for custom-call']
    #allocation10 [shape = 'u8[4096]{0}', space=vmem, size = 0x1000, scoped, tag = 'operand span for operand 2']
    #allocation11 [shape = 'u8[1024]{0}', space=vmem, size = 0x400, scoped, tag = 'packed  for operand 2']
    #allocation12 [shape = 'f32[8,2]{1,0:T(8,128)}', space=vmem, size = 0x1000, scoped, tag = 'scoped memory for custom-call']
    #allocation13 [shape = 'f32[8,2]{1,0:T(8,128)}', space=vmem, size = 0x1000, scoped, tag = 'scoped memory for custom-call']
    #allocation14 [shape = 's32[8,2]{1,0:T(8,128)}', space=vmem, size = 0x1000, scoped, tag = 'scoped memory for custom-call']
    #allocation15 [shape = 's32[8,2]{1,0:T(8,128)}', space=vmem, size = 0x1000, scoped, tag = 'scoped memory for custom-call']
    %5 = vsyncpa [#allocation9], 0
    %6 = xla_tuple [#allocation7], [#allocation10]
    %7 = vst [vmem:[#allocation12] sm:$0xff] 2147483648
    %8 = vst [vmem:[#allocation14] sm:$0xff] 2147483647
    %9 = xla_tuple [#allocation12], [#allocation14]
    %10 = xla_tuple [#allocation13], [#allocation15]
    $region2: #{custom-call} parent=1
      #allocation16 [shape = 'u8[8192]{0}', space=vmem, size = 0x2000, scoped, tag = 'operand span for operand 0']
      #allocation17 [shape = 's32[2048]{0}', space=vmem, size = 0x2000, scoped, tag = 'scoped memory for custom-call']
      // Predicated region
      $region3: #{custom-call} parent=2 // pred_check
        _
      $region4: #{custom-call} parent=2 // pred_check_branch
        %12 = sbr.rel (0) target = $region6
      $region5: #{custom-call} parent=2 // pred_region
        // Predicated region
        $region7: #{custom-call} parent=5 // pred_check
          _
        $region8: #{custom-call} parent=5 // pred_check_branch
          %14 = sbr.rel (0) target = $region10
        $region9: #{custom-call} parent=5 // pred_region
          // Predicated region
          $region11: #{custom-call} parent=9 // pred_check
            _
          $region12: #{custom-call} parent=9 // pred_check_branch
            %16 = sbr.rel (0) target = $region14
          $region13: #{custom-call} parent=9 // pred_region
            %s17 = scalar_lea.vmem %s0, 8
            %s18 = scalar_lea.vmem [#allocation16], 8
            loop: start=0, step=1, limit=1
            $region15: #{custom-call} parent=13 // loop_pre_header
              _
            $region16: #{custom-call} parent=13 // loop_header
              %s20 = sphi 0, %s24
              %p21 = scmp.ge.s32.totalorder %s20, 1
              %s25 = sphi %s0, %s0
              %s26 = sphi [#allocation16], [#allocation16]
            $region17: #{custom-call} parent=13 // loop_header_branch
              %23 = sbr.rel (%p21) target = $region21
            $region18: #{custom-call} parent=13 // loop_body
              %v27 = vld [vmem:[%s25] sm:$0xff]
              %28 = vst [vmem:[%s26] sm:$0xff] %v27
            $region19: #{custom-call} parent=13 // loop_footer
              %s24 = sadd.s32 1, %s20
            $region20: #{custom-call} parent=13 // loop_footer_branch
              %19 = sbr.rel target = $region16
            $region21: #{custom-call} parent=13 // loop_exit
              _
            loop: start=0, step=1, limit=1
            $region22: #{custom-call} parent=13 // loop_pre_header
              _
            $region23: #{custom-call} parent=13 // loop_header
              %s31 = sphi 0, %s35
              %p32 = scmp.ge.s32.totalorder %s31, 1
              %s36 = sphi %s17, %s17
              %s37 = sphi %s18, %s18
            $region24: #{custom-call} parent=13 // loop_header_branch
              %34 = sbr.rel (%p32) target = $region28
            $region25: #{custom-call} parent=13 // loop_body
              %v38 = vld [vmem:[%s36] sm:$0xf]
              %39 = vst [vmem:[%s37] sm:$0xf] %v38
            $region26: #{custom-call} parent=13 // loop_footer
              %s35 = sadd.s32 1, %s31
            $region27: #{custom-call} parent=13 // loop_footer_branch
              %30 = sbr.rel target = $region23
            $region28: #{custom-call} parent=13 // loop_exit
              _
          $region14: #{custom-call} parent=9 // pred_fallthru
            _
        $region10: #{custom-call} parent=5 // pred_fallthru
          _
        %40 = vnop
      $region6: #{custom-call} parent=2 // pred_fallthru
        _
      // Predicated region
      $region29: #{custom-call} parent=2 // pred_check
        _
      $region30: #{custom-call} parent=2 // pred_check_branch
        %42 = sbr.rel (0) target = $region32
      $region31: #{custom-call} parent=2 // pred_region
        _
      $region32: #{custom-call} parent=2 // pred_fallthru
        _
      %v43 = vlaneseq
      %v44 = vand.u32 %v43, 127
      %v45 = vlaneseq
      %v46 = vshrl.u32 %v45, 7
      %v47 = vshrl.u32 %v46, 1
      %v48 = vand.u32 %v46, 1
      %v49 = vmul.u32 %v47, 128
      %v50 = vadd.s32 %v44, %v49
      %v52 = vld [vmem:[#allocation16] sm:$0xff]
      %vm53 = vcmp.lt.s32.totalorder %v52, 0
      %v54 = vsub.s32 2147483647, %v52
      %v55 = vsel %vm53, %v54, %v52
      %vm57 = vcmp.lt.s32.totalorder %v50, 768
      %v58 = vsel %vm57, %v55, 2147483648
      %59 = vst [vmem:[#allocation16] sm:$0xff] %v58
      %s60 = scalar_lea.vmem [#allocation16], 8
      %v61 = vld [vmem:[%s60] sm:$0xff]
      %vm62 = vcmp.lt.s32.totalorder %v61, 0
      %v63 = vsub.s32 2147483647, %v61
      %v64 = vsel %vm62, %v63, %v61
      %v65 = vadd.s32 %v50, 512
      %vm66 = vcmp.lt.s32.totalorder %v65, 768
      %v67 = vsel %vm66, %v64, 2147483648
      %68 = vst [vmem:[%s60] sm:$0xff] %v67
      %v69 = vlaneseq
      %v70 = vand.u32 %v69, 127
      %v71 = vlaneseq
      %v72 = vshrl.u32 %v71, 7
      %v73 = vshrl.u32 %v72, 1
      %v74 = vand.u32 %v72, 1
      %v75 = vmul.u32 %v73, 128
      %v76 = vadd.s32 %v70, %v75
      %79 = vst [vmem:[#allocation17] sm:$0xff] %v76
      %v80 = vadd.s32 %v76, 512
      %s81 = scalar_lea.vmem [#allocation17], 8
      %82 = vst [vmem:[%s81] sm:$0xff] %v80
      %83 = xla_tuple [#allocation16], [#allocation17]
      %84 = vst [vmem:[#allocation13] sm:$0xff] 2147483648
      %85 = vst [vmem:[#allocation15] sm:$0xff] 2147483647
      %86 = xla_tuple [#allocation13], [#allocation15]
      loop: start=0, step=1, limit=8
      $region33: #{custom-call} parent=2 // loop_pre_header
        _
      $region34: #{custom-call} parent=2 // loop_header
        %s88 = sphi 0, %s92
        %p89 = scmp.ge.s32.totalorder %s88, 8
      $region35: #{custom-call} parent=2 // loop_header_branch
        %91 = sbr.rel (%p89) target = $region39
      $region36: #{custom-call} parent=2 // loop_body
        %v93 = vld [vmem:[#allocation16] sm:$0xff]
        %v94 = vld [vmem:[#allocation17] sm:$0xff]
        %95 = xla_tuple %v93, %v94
        %s96 = scalar_lea.vmem [#allocation16], 8
        %v97 = vld [vmem:[%s96] sm:$0xff]
        %s98 = scalar_lea.vmem [#allocation17], 8
        %v99 = vld [vmem:[%s98] sm:$0xff]
        %100 = xla_tuple %v97, %v99
        %vm101 = vcmp.gt.s32.totalorder %v97, %v93
        %vm102 = vcmp.eq.s32.totalorder %v97, %v93
        %vm103 = vcmp.lt.s32.totalorder %v99, %v94
        %vm104 = vmand %vm102, %vm103
        %vm105 = vmor %vm101, %vm104
        %v106 = vsel %vm105, %v97, %v93
        %v107 = vsel %vm105, %v99, %v94
        %108 = xla_tuple %v106, %v107
        %v109 = vrot.slane %v106, 2
        %v110 = vrot.slane %v107, 2
        %111 = xla_tuple %v109, %v110
        %vm112 = vcmp.gt.s32.totalorder %v109, %v106
        %vm113 = vcmp.eq.s32.totalorder %v109, %v106
        %vm114 = vcmp.lt.s32.totalorder %v110, %v107
        %vm115 = vmand %vm113, %vm114
        %vm116 = vmor %vm112, %vm115
        %v117 = vsel %vm116, %v109, %v106
        %v118 = vsel %vm116, %v110, %v107
        %119 = xla_tuple %v117, %v118
        %v120 = vrot.slane %v117, 2
        %v121 = vrot.slane %v118, 2
        %122 = xla_tuple %v120, %v121
        %vm123 = vcmp.gt.s32.totalorder %v120, %v117
        %vm124 = vcmp.eq.s32.totalorder %v120, %v117
        %vm125 = vcmp.lt.s32.totalorder %v121, %v118
        %vm126 = vmand %vm124, %vm125
        %vm127 = vmor %vm123, %vm126
        %v128 = vsel %vm127, %v120, %v117
        %v129 = vsel %vm127, %v121, %v118
        %130 = xla_tuple %v128, %v129
        %v131 = vrot.slane %v128, 2
        %v132 = vrot.slane %v129, 2
        %133 = xla_tuple %v131, %v132
        %vm134 = vcmp.gt.s32.totalorder %v131, %v128
        %vm135 = vcmp.eq.s32.totalorder %v131, %v128
        %vm136 = vcmp.lt.s32.totalorder %v132, %v129
        %vm137 = vmand %vm135, %vm136
        %vm138 = vmor %vm134, %vm137
        %v139 = vsel %vm138, %v131, %v128
        %v140 = vsel %vm138, %v132, %v129
        %141 = xla_tuple %v139, %v140
        %142 = vxpose.xlu0.b32.start [1/16] %v139, 128
        %143 = vxpose.xlu0.b32.cont [2/16] %v139, 128
        %144 = vxpose.xlu0.b32.cont [3/16] %v139, 128
        %145 = vxpose.xlu0.b32.cont [4/16] %v139, 128
        %146 = vxpose.xlu0.b32.cont [5/16] %v139, 128
        %147 = vxpose.xlu0.b32.cont [6/16] %v139, 128
        %148 = vxpose.xlu0.b32.cont [7/16] %v139, 128
        %149 = vxpose.xlu0.b32.cont [8/16] %v139, 128
        %150 = vxpose.xlu0.b32.cont [9/16] %v139, 128
        %151 = vxpose.xlu0.b32.cont [10/16] %v139, 128
        %152 = vxpose.xlu0.b32.cont [11/16] %v139, 128
        %153 = vxpose.xlu0.b32.cont [12/16] %v139, 128
        %154 = vxpose.xlu0.b32.cont [13/16] %v139, 128
        %155 = vxpose.xlu0.b32.cont [14/16] %v139, 128
        %156 = vxpose.xlu0.b32.cont [15/16] %v139, 128
        %157 = vxpose.xlu0.b32.end [16/16] %v139, 128
        %v158 = vpop.trf.xlu0
        %v159 = vpop.trf.xlu0
        %v160 = vpop.trf.xlu0
        %v161 = vpop.trf.xlu0
        %v162 = vpop.trf.xlu0
        %v163 = vpop.trf.xlu0
        %v164 = vpop.trf.xlu0
        %v165 = vpop.trf.xlu0
        %v166 = vpop.trf.xlu0
        %v167 = vpop.trf.xlu0
        %v168 = vpop.trf.xlu0
        %v169 = vpop.trf.xlu0
        %v170 = vpop.trf.xlu0
        %v171 = vpop.trf.xlu0
        %v172 = vpop.trf.xlu0
        %v173 = vpop.trf.xlu0
        %174 = vxpose.xlu0.b32.start [1/16] %v140, 128
        %175 = vxpose.xlu0.b32.cont [2/16] %v140, 128
        %176 = vxpose.xlu0.b32.cont [3/16] %v140, 128
        %177 = vxpose.xlu0.b32.cont [4/16] %v140, 128
        %178 = vxpose.xlu0.b32.cont [5/16] %v140, 128
        %179 = vxpose.xlu0.b32.cont [6/16] %v140, 128
        %180 = vxpose.xlu0.b32.cont [7/16] %v140, 128
        %181 = vxpose.xlu0.b32.cont [8/16] %v140, 128
        %182 = vxpose.xlu0.b32.cont [9/16] %v140, 128
        %183 = vxpose.xlu0.b32.cont [10/16] %v140, 128
        %184 = vxpose.xlu0.b32.cont [11/16] %v140, 128
        %185 = vxpose.xlu0.b32.cont [12/16] %v140, 128
        %186 = vxpose.xlu0.b32.cont [13/16] %v140, 128
        %187 = vxpose.xlu0.b32.cont [14/16] %v140, 128
        %188 = vxpose.xlu0.b32.cont [15/16] %v140, 128
        %189 = vxpose.xlu0.b32.end [16/16] %v140, 128
        %v190 = vpop.trf.xlu0
        %v191 = vpop.trf.xlu0
        %v192 = vpop.trf.xlu0
        %v193 = vpop.trf.xlu0
        %v194 = vpop.trf.xlu0
        %v195 = vpop.trf.xlu0
        %v196 = vpop.trf.xlu0
        %v197 = vpop.trf.xlu0
        %v198 = vpop.trf.xlu0
        %v199 = vpop.trf.xlu0
        %v200 = vpop.trf.xlu0
        %v201 = vpop.trf.xlu0
        %v202 = vpop.trf.xlu0
        %v203 = vpop.trf.xlu0
        %v204 = vpop.trf.xlu0
        %v205 = vpop.trf.xlu0
        %206 = xla_tuple %v158, %v190
        %207 = xla_tuple %v159, %v191
        %vm208 = vcmp.gt.s32.totalorder %v159, %v158
        %vm209 = vcmp.eq.s32.totalorder %v159, %v158
        %vm210 = vcmp.lt.s32.totalorder %v191, %v190
        %vm211 = vmand %vm209, %vm210
        %vm212 = vmor %vm208, %vm211
        %v213 = vsel %vm212, %v159, %v158
        %v214 = vsel %vm212, %v191, %v190
        %215 = xla_tuple %v213, %v214
        %216 = xla_tuple %v160, %v192
        %vm217 = vcmp.gt.s32.totalorder %v160, %v213
        %vm218 = vcmp.eq.s32.totalorder %v160, %v213
        %vm219 = vcmp.lt.s32.totalorder %v192, %v214
        %vm220 = vmand %vm218, %vm219
        %vm221 = vmor %vm217, %vm220
        %v222 = vsel %vm221, %v160, %v213
        %v223 = vsel %vm221, %v192, %v214
        %224 = xla_tuple %v222, %v223
        %225 = xla_tuple %v161, %v193
        %vm226 = vcmp.gt.s32.totalorder %v161, %v222
        %vm227 = vcmp.eq.s32.totalorder %v161, %v222
        %vm228 = vcmp.lt.s32.totalorder %v193, %v223
        %vm229 = vmand %vm227, %vm228
        %vm230 = vmor %vm226, %vm229
        %v231 = vsel %vm230, %v161, %v222
        %v232 = vsel %vm230, %v193, %v223
        %233 = xla_tuple %v231, %v232
        %234 = xla_tuple %v162, %v194
        %vm235 = vcmp.gt.s32.totalorder %v162, %v231
        %vm236 = vcmp.eq.s32.totalorder %v162, %v231
        %vm237 = vcmp.lt.s32.totalorder %v194, %v232
        %vm238 = vmand %vm236, %vm237
        %vm239 = vmor %vm235, %vm238
        %v240 = vsel %vm239, %v162, %v231
        %v241 = vsel %vm239, %v194, %v232
        %242 = xla_tuple %v240, %v241
        %243 = xla_tuple %v163, %v195
        %vm244 = vcmp.gt.s32.totalorder %v163, %v240
        %vm245 = vcmp.eq.s32.totalorder %v163, %v240
        %vm246 = vcmp.lt.s32.totalorder %v195, %v241
        %vm247 = vmand %vm245, %vm246
        %vm248 = vmor %vm244, %vm247
        %v249 = vsel %vm248, %v163, %v240
        %v250 = vsel %vm248, %v195, %v241
        %251 = xla_tuple %v249, %v250
        %252 = xla_tuple %v164, %v196
        %vm253 = vcmp.gt.s32.totalorder %v164, %v249
        %vm254 = vcmp.eq.s32.totalorder %v164, %v249
        %vm255 = vcmp.lt.s32.totalorder %v196, %v250
        %vm256 = vmand %vm254, %vm255
        %vm257 = vmor %vm253, %vm256
        %v258 = vsel %vm257, %v164, %v249
        %v259 = vsel %vm257, %v196, %v250
        %260 = xla_tuple %v258, %v259
        %261 = xla_tuple %v165, %v197
        %vm262 = vcmp.gt.s32.totalorder %v165, %v258
        %vm263 = vcmp.eq.s32.totalorder %v165, %v258
        %vm264 = vcmp.lt.s32.totalorder %v197, %v259
        %vm265 = vmand %vm263, %vm264
        %vm266 = vmor %vm262, %vm265
        %v267 = vsel %vm266, %v165, %v258
        %v268 = vsel %vm266, %v197, %v259
        %269 = xla_tuple %v267, %v268
        %270 = xla_tuple %v166, %v198
        %vm271 = vcmp.gt.s32.totalorder %v166, %v267
        %vm272 = vcmp.eq.s32.totalorder %v166, %v267
        %vm273 = vcmp.lt.s32.totalorder %v198, %v268
        %vm274 = vmand %vm272, %vm273
        %vm275 = vmor %vm271, %vm274
        %v276 = vsel %vm275, %v166, %v267
        %v277 = vsel %vm275, %v198, %v268
        %278 = xla_tuple %v276, %v277
        %279 = xla_tuple %v167, %v199
        %vm280 = vcmp.gt.s32.totalorder %v167, %v276
        %vm281 = vcmp.eq.s32.totalorder %v167, %v276
        %vm282 = vcmp.lt.s32.totalorder %v199, %v277
        %vm283 = vmand %vm281, %vm282
        %vm284 = vmor %vm280, %vm283
        %v285 = vsel %vm284, %v167, %v276
        %v286 = vsel %vm284, %v199, %v277
        %287 = xla_tuple %v285, %v286
        %288 = xla_tuple %v168, %v200
        %vm289 = vcmp.gt.s32.totalorder %v168, %v285
        %vm290 = vcmp.eq.s32.totalorder %v168, %v285
        %vm291 = vcmp.lt.s32.totalorder %v200, %v286
        %vm292 = vmand %vm290, %vm291
        %vm293 = vmor %vm289, %vm292
        %v294 = vsel %vm293, %v168, %v285
        %v295 = vsel %vm293, %v200, %v286
        %296 = xla_tuple %v294, %v295
        %297 = xla_tuple %v169, %v201
        %vm298 = vcmp.gt.s32.totalorder %v169, %v294
        %vm299 = vcmp.eq.s32.totalorder %v169, %v294
        %vm300 = vcmp.lt.s32.totalorder %v201, %v295
        %vm301 = vmand %vm299, %vm300
        %vm302 = vmor %vm298, %vm301
        %v303 = vsel %vm302, %v169, %v294
        %v304 = vsel %vm302, %v201, %v295
        %305 = xla_tuple %v303, %v304
        %306 = xla_tuple %v170, %v202
        %vm307 = vcmp.gt.s32.totalorder %v170, %v303
        %vm308 = vcmp.eq.s32.totalorder %v170, %v303
        %vm309 = vcmp.lt.s32.totalorder %v202, %v304
        %vm310 = vmand %vm308, %vm309
        %vm311 = vmor %vm307, %vm310
        %v312 = vsel %vm311, %v170, %v303
        %v313 = vsel %vm311, %v202, %v304
        %314 = xla_tuple %v312, %v313
        %315 = xla_tuple %v171, %v203
        %vm316 = vcmp.gt.s32.totalorder %v171, %v312
        %vm317 = vcmp.eq.s32.totalorder %v171, %v312
        %vm318 = vcmp.lt.s32.totalorder %v203, %v313
        %vm319 = vmand %vm317, %vm318
        %vm320 = vmor %vm316, %vm319
        %v321 = vsel %vm320, %v171, %v312
        %v322 = vsel %vm320, %v203, %v313
        %323 = xla_tuple %v321, %v322
        %324 = xla_tuple %v172, %v204
        %vm325 = vcmp.gt.s32.totalorder %v172, %v321
        %vm326 = vcmp.eq.s32.totalorder %v172, %v321
        %vm327 = vcmp.lt.s32.totalorder %v204, %v322
        %vm328 = vmand %vm326, %vm327
        %vm329 = vmor %vm325, %vm328
        %v330 = vsel %vm329, %v172, %v321
        %v331 = vsel %vm329, %v204, %v322
        %332 = xla_tuple %v330, %v331
        %333 = xla_tuple %v173, %v205
        %vm334 = vcmp.gt.s32.totalorder %v173, %v330
        %vm335 = vcmp.eq.s32.totalorder %v173, %v330
        %vm336 = vcmp.lt.s32.totalorder %v205, %v331
        %vm337 = vmand %vm335, %vm336
        %vm338 = vmor %vm334, %vm337
        %v339 = vsel %vm338, %v173, %v330
        %v340 = vsel %vm338, %v205, %v331
        %341 = xla_tuple %v339, %v340
        %v342 = vrot.slane %v339, 1
        %v343 = vrot.slane %v340, 1
        %344 = xla_tuple %v342, %v343
        %vm345 = vcmp.gt.s32.totalorder %v342, %v339
        %vm346 = vcmp.eq.s32.totalorder %v342, %v339
        %vm347 = vcmp.lt.s32.totalorder %v343, %v340
        %vm348 = vmand %vm346, %vm347
        %vm349 = vmor %vm345, %vm348
        %v350 = vsel %vm349, %v342, %v339
        %v351 = vsel %vm349, %v343, %v340
        %352 = xla_tuple %v350, %v351
        %v353 = vrot.slane %v350, 1
        %v354 = vrot.slane %v351, 1
        %355 = xla_tuple %v353, %v354
        %vm356 = vcmp.gt.s32.totalorder %v353, %v350
        %vm357 = vcmp.eq.s32.totalorder %v353, %v350
        %vm358 = vcmp.lt.s32.totalorder %v354, %v351
        %vm359 = vmand %vm357, %vm358
        %vm360 = vmor %vm356, %vm359
        %v361 = vsel %vm360, %v353, %v350
        %v362 = vsel %vm360, %v354, %v351
        %363 = xla_tuple %v361, %v362
        %v364 = vrot.slane %v361, 1
        %v365 = vrot.slane %v362, 1
        %366 = xla_tuple %v364, %v365
        %vm367 = vcmp.gt.s32.totalorder %v364, %v361
        %vm368 = vcmp.eq.s32.totalorder %v364, %v361
        %vm369 = vcmp.lt.s32.totalorder %v365, %v362
        %vm370 = vmand %vm368, %vm369
        %vm371 = vmor %vm367, %vm370
        %v372 = vsel %vm371, %v364, %v361
        %v373 = vsel %vm371, %v365, %v362
        %374 = xla_tuple %v372, %v373
        %v375 = vrot.slane %v372, 1
        %v376 = vrot.slane %v373, 1
        %377 = xla_tuple %v375, %v376
        %vm378 = vcmp.gt.s32.totalorder %v375, %v372
        %vm379 = vcmp.eq.s32.totalorder %v375, %v372
        %vm380 = vcmp.lt.s32.totalorder %v376, %v373
        %vm381 = vmand %vm379, %vm380
        %vm382 = vmor %vm378, %vm381
        %v383 = vsel %vm382, %v375, %v372
        %v384 = vsel %vm382, %v376, %v373
        %385 = xla_tuple %v383, %v384
        %v386 = vrot.slane %v383, 1
        %v387 = vrot.slane %v384, 1
        %388 = xla_tuple %v386, %v387
        %vm389 = vcmp.gt.s32.totalorder %v386, %v383
        %vm390 = vcmp.eq.s32.totalorder %v386, %v383
        %vm391 = vcmp.lt.s32.totalorder %v387, %v384
        %vm392 = vmand %vm390, %vm391
        %vm393 = vmor %vm389, %vm392
        %v394 = vsel %vm393, %v386, %v383
        %v395 = vsel %vm393, %v387, %v384
        %396 = xla_tuple %v394, %v395
        %v397 = vrot.slane %v394, 1
        %v398 = vrot.slane %v395, 1
        %399 = xla_tuple %v397, %v398
        %vm400 = vcmp.gt.s32.totalorder %v397, %v394
        %vm401 = vcmp.eq.s32.totalorder %v397, %v394
        %vm402 = vcmp.lt.s32.totalorder %v398, %v395
        %vm403 = vmand %vm401, %vm402
        %vm404 = vmor %vm400, %vm403
        %v405 = vsel %vm404, %v397, %v394
        %v406 = vsel %vm404, %v398, %v395
        %407 = xla_tuple %v405, %v406
        %v408 = vrot.slane %v405, 1
        %v409 = vrot.slane %v406, 1
        %410 = xla_tuple %v408, %v409
        %vm411 = vcmp.gt.s32.totalorder %v408, %v405
        %vm412 = vcmp.eq.s32.totalorder %v408, %v405
        %vm413 = vcmp.lt.s32.totalorder %v409, %v406
        %vm414 = vmand %vm412, %vm413
        %vm415 = vmor %vm411, %vm414
        %v416 = vsel %vm415, %v408, %v405
        %v417 = vsel %vm415, %v409, %v406
        %418 = xla_tuple %v416, %v417
        %s419 = scalar_lea.vmem [#allocation13], %s88
        %420 = vst [vmem:[%s419] sm:$0x1] %v416
        %s421 = scalar_lea.vmem [#allocation15], %s88
        %422 = vst [vmem:[%s421] sm:$0x1] %v417
        %423 = xla_tuple %420, %422
        %424 = vxpose.xlu0.b32.start [1/16] %v417, 128
        %425 = vxpose.xlu0.b32.cont [2/16] 0.0, 128
        %426 = vxpose.xlu0.b32.cont [3/16] 0.0, 128
        %427 = vxpose.xlu0.b32.cont [4/16] 0.0, 128
        %428 = vxpose.xlu0.b32.cont [5/16] 0.0, 128
        %429 = vxpose.xlu0.b32.cont [6/16] 0.0, 128
        %430 = vxpose.xlu0.b32.cont [7/16] 0.0, 128
        %431 = vxpose.xlu0.b32.cont [8/16] 0.0, 128
        %432 = vxpose.xlu0.b32.cont [9/16] 0.0, 128
        %433 = vxpose.xlu0.b32.cont [10/16] 0.0, 128
        %434 = vxpose.xlu0.b32.cont [11/16] 0.0, 128
        %435 = vxpose.xlu0.b32.cont [12/16] 0.0, 128
        %436 = vxpose.xlu0.b32.cont [13/16] 0.0, 128
        %437 = vxpose.xlu0.b32.cont [14/16] 0.0, 128
        %438 = vxpose.xlu0.b32.cont [15/16] 0.0, 128
        %439 = vxpose.xlu0.b32.end [16/16] 0.0, 128
        %v440 = vpop.trf.xlu0
        %v441 = vpop.trf.xlu0
        %v442 = vpop.trf.xlu0
        %v443 = vpop.trf.xlu0
        %v444 = vpop.trf.xlu0
        %v445 = vpop.trf.xlu0
        %v446 = vpop.trf.xlu0
        %v447 = vpop.trf.xlu0
        %v448 = vpop.trf.xlu0
        %v449 = vpop.trf.xlu0
        %v450 = vpop.trf.xlu0
        %v451 = vpop.trf.xlu0
        %v452 = vpop.trf.xlu0
        %v453 = vpop.trf.xlu0
        %v454 = vpop.trf.xlu0
        %v455 = vpop.trf.xlu0
        %s456 = vtos %v440
        %s457 = sshrl.u32 %s456, 9
        %p458 = scmp.lt.s32.totalorder %s456, 0
        %s459 = ssub.s32 0, %s456
        %s460 = scalar_select %p458, %s459, %s456
        %s461 = sand.u32 %s460, 511
        %s462 = ssub.s32 0, %s461
        %s463 = scalar_select %p458, %s462, %s461
        %s464 = sshrl.u32 %s463, 7
        %s465 = smul.u32 %s464, 256
        %s466 = sand.u32 %s463, 127
        %s467 = sadd.s32 %s465, %s466
        %v468 = vlaneseq
        %v469 = vstv %s467
        %vm471 = vcmp.eq.s32.totalorder %v468, %v469
        %s472 = smul.addr %s457, 8
        %s473 = scalar_lea.vmem [#allocation16], %s472
        %474 = vst.msk [vmem:[%s473] sm:$0xff] %vm471, 2147483648
        %s475 = smul.addr %s457, 8
        %s476 = scalar_lea.vmem [#allocation17], %s475
        %477 = vst.msk [vmem:[%s476] sm:$0xff] %vm471, 2147483647
        %478 = xla_tuple %474, %477
        %v479 = vrot.slane %v440, 1
        %s480 = vtos %v479
        %s481 = sshrl.u32 %s480, 9
        %p482 = scmp.lt.s32.totalorder %s480, 0
        %s483 = ssub.s32 0, %s480
        %s484 = scalar_select %p482, %s483, %s480
        %s485 = sand.u32 %s484, 511
        %s486 = ssub.s32 0, %s485
        %s487 = scalar_select %p482, %s486, %s485
        %s488 = sshrl.u32 %s487, 7
        %s489 = smul.u32 %s488, 256
        %s490 = sand.u32 %s487, 127
        %s491 = sadd.s32 %s489, %s490
        %v492 = vlaneseq
        %v493 = vstv %s491
        %v494 = vadd.s32 %v493, 128
        %vm495 = vcmp.eq.s32.totalorder %v492, %v494
        %s496 = smul.addr %s481, 8
        %s497 = scalar_lea.vmem [#allocation16], %s496
        %498 = vst.msk [vmem:[%s497] sm:$0xff] %vm495, 2147483648
        %s499 = smul.addr %s481, 8
        %s500 = scalar_lea.vmem [#allocation17], %s499
        %501 = vst.msk [vmem:[%s500] sm:$0xff] %vm495, 2147483647
        %502 = xla_tuple %498, %501
        %v503 = vrot.slane %v479, 1
      $region37: #{custom-call} parent=2 // loop_footer
        %s92 = sadd.s32 1, %s88
      $region38: #{custom-call} parent=2 // loop_footer_branch
        %87 = sbr.rel target = $region34
      $region39: #{custom-call} parent=2 // loop_exit
        _
      %s504 = scalar_lea.vmem [#allocation13], 7
      %v505 = vld [vmem:[%s504] ss:$-1 sm:$0xff]
      %s506 = scalar_lea.vmem [#allocation13], 7
      %v507 = vld [vmem:[%s506] ss:$-1 sm:$0xff]
      %508 = vst [vmem:[#allocation13] sm:$0xff] %v507
      %509 = vst [vmem:[#allocation13] sm:$0xff] %v505
      %s510 = scalar_lea.vmem [#allocation15], 7
      %v511 = vld [vmem:[%s510] ss:$-1 sm:$0xff]
      %s512 = scalar_lea.vmem [#allocation15], 7
      %v513 = vld [vmem:[%s512] ss:$-1 sm:$0xff]
      %514 = vst [vmem:[#allocation15] sm:$0xff] %v513
      %515 = vst [vmem:[#allocation15] sm:$0xff] %v511
      %516 = xla_tuple %509, %515
      %v517 = vld [vmem:[#allocation12] sm:$0xff]
      %v518 = vld [vmem:[#allocation14] sm:$0xff]
      %519 = xla_tuple %v517, %v518
      %v520 = vld [vmem:[#allocation13] sm:$0xff]
      %v521 = vld [vmem:[#allocation15] sm:$0xff]
      %522 = xla_tuple %v520, %v521
      %vm523 = vcmp.gt.s32.totalorder %v517, %v520
      %vm524 = vcmp.eq.s32.totalorder %v517, %v520
      %vm525 = vcmp.lt.s32.totalorder %v518, %v521
      %vm526 = vmand %vm524, %vm525
      %vm527 = vmor %vm523, %vm526
      %v528 = vsel %vm527, %v517, %v520
      %529 = vst [vmem:[#allocation12] sm:$0xff] %v528
      %v530 = vsel %vm527, %v520, %v517
      %531 = vst [vmem:[#allocation13] sm:$0xff] %v530
      %v532 = vsel %vm527, %v518, %v521
      %533 = vst [vmem:[#allocation14] sm:$0xff] %v532
      %v534 = vsel %vm527, %v521, %v518
      %535 = vst [vmem:[#allocation15] sm:$0xff] %v534
      %536 = xla_tuple %531, %535
      %537 = xla_tuple [#allocation12], [#allocation14]
      %v538 = vld [vmem:[#allocation12] sm:$0xff]
      %v539 = vld [vmem:[#allocation14] sm:$0xff]
      %540 = xla_tuple %v538, %v539
      %v542 = vunpack.c.l.s4 839939668
      %v543 = vunpack.c.0.s8 %v542
      %v544 = vlaneseq
      %v545 = vshrl.u32 %v544, 7
      %v546 = vsub.s32 %v543, %v545
      %v547 = vrot.slane %v538, %v546
      %v549 = vunpack.c.l.s4 839939668
      %v550 = vunpack.c.0.s8 %v549
      %v551 = vlaneseq
      %v552 = vshrl.u32 %v551, 7
      %v553 = vsub.s32 %v550, %v552
      %v554 = vrot.slane %v539, %v553
      %555 = xla_tuple %v547, %v554
      %vm556 = vcmp.gt.s32.totalorder %v538, %v547
      %vm557 = vcmp.eq.s32.totalorder %v538, %v547
      %vm558 = vcmp.lt.s32.totalorder %v539, %v554
      %vm559 = vmand %vm557, %vm558
      %vm560 = vmor %vm556, %vm559
      %v561 = vlaneseq
      %v562 = vshrl.u32 %v561, 7
      %v563 = vand.u32 %v562, 4
      %vm564 = vcmp.ne.s32.totalorder %v563, 0
      %vm565 = vmxor %vm560, %vm564
      %v566 = vsel %vm565, %v538, %v547
      %v567 = vsel %vm565, %v539, %v554
      %568 = xla_tuple %v566, %v567
      %v570 = vunpack.c.l.s4 1417023538
      %v571 = vunpack.c.0.s8 %v570
      %v572 = vlaneseq
      %v573 = vshrl.u32 %v572, 7
      %v574 = vsub.s32 %v571, %v573
      %v575 = vrot.slane %v566, %v574
      %v577 = vunpack.c.l.s4 1417023538
      %v578 = vunpack.c.0.s8 %v577
      %v579 = vlaneseq
      %v580 = vshrl.u32 %v579, 7
      %v581 = vsub.s32 %v578, %v580
      %v582 = vrot.slane %v567, %v581
      %583 = xla_tuple %v575, %v582
      %vm584 = vcmp.gt.s32.totalorder %v566, %v575
      %vm585 = vcmp.eq.s32.totalorder %v566, %v575
      %vm586 = vcmp.lt.s32.totalorder %v567, %v582
      %vm587 = vmand %vm585, %vm586
      %vm588 = vmor %vm584, %vm587
      %v589 = vlaneseq
      %v590 = vshrl.u32 %v589, 7
      %v591 = vand.u32 %v590, 2
      %vm592 = vcmp.ne.s32.totalorder %v591, 0
      %vm593 = vmxor %vm588, %vm592
      %v594 = vsel %vm593, %v566, %v575
      %v595 = vsel %vm593, %v567, %v582
      %596 = xla_tuple %v594, %v595
      %v598 = vunpack.c.l.s4 1732584193
      %v599 = vunpack.c.0.s8 %v598
      %v600 = vlaneseq
      %v601 = vshrl.u32 %v600, 7
      %v602 = vsub.s32 %v599, %v601
      %v603 = vrot.slane %v594, %v602
      %v605 = vunpack.c.l.s4 1732584193
      %v606 = vunpack.c.0.s8 %v605
      %v607 = vlaneseq
      %v608 = vshrl.u32 %v607, 7
      %v609 = vsub.s32 %v606, %v608
      %v610 = vrot.slane %v595, %v609
      %611 = xla_tuple %v603, %v610
      %vm612 = vcmp.gt.s32.totalorder %v594, %v603
      %vm613 = vcmp.eq.s32.totalorder %v594, %v603
      %vm614 = vcmp.lt.s32.totalorder %v595, %v610
      %vm615 = vmand %vm613, %vm614
      %vm616 = vmor %vm612, %vm615
      %v617 = vlaneseq
      %v618 = vshrl.u32 %v617, 7
      %v619 = vand.u32 %v618, 1
      %vm620 = vcmp.ne.s32.totalorder %v619, 0
      %vm621 = vmxor %vm616, %vm620
      %v622 = vsel %vm621, %v594, %v603
      %v623 = vsel %vm621, %v595, %v610
      %624 = xla_tuple %v622, %v623
      %625 = vst [vmem:[#allocation12] sm:$0xff] %v622
      %626 = vst [vmem:[#allocation14] sm:$0xff] %v623
      %627 = xla_tuple %625, %626
      %v628 = vld [vmem:[#allocation12] sm:$0xff]
      %v629 = vld [vmem:[#allocation14] sm:$0xff]
      %630 = xla_tuple %v628, %v629
      %v632 = vunpack.c.l.s4 839939668
      %v633 = vunpack.c.0.s8 %v632
      %v634 = vlaneseq
      %v635 = vshrl.u32 %v634, 7
      %v636 = vsub.s32 %v633, %v635
      %v637 = vrot.slane %v628, %v636
      %v639 = vunpack.c.l.s4 839939668
      %v640 = vunpack.c.0.s8 %v639
      %v641 = vlaneseq
      %v642 = vshrl.u32 %v641, 7
      %v643 = vsub.s32 %v640, %v642
      %v644 = vrot.slane %v629, %v643
      %645 = xla_tuple %v637, %v644
      %vm646 = vcmp.gt.s32.totalorder %v628, %v637
      %vm647 = vcmp.eq.s32.totalorder %v628, %v637
      %vm648 = vcmp.lt.s32.totalorder %v629, %v644
      %vm649 = vmand %vm647, %vm648
      %vm650 = vmor %vm646, %vm649
      %v651 = vlaneseq
      %v652 = vshrl.u32 %v651, 7
      %v653 = vand.u32 %v652, 4
      %vm654 = vcmp.ne.s32.totalorder %v653, 0
      %vm655 = vmxor %vm650, %vm654
      %v656 = vsel %vm655, %v628, %v637
      %v657 = vsel %vm655, %v629, %v644
      %658 = xla_tuple %v656, %v657
      %v660 = vunpack.c.l.s4 1417023538
      %v661 = vunpack.c.0.s8 %v660
      %v662 = vlaneseq
      %v663 = vshrl.u32 %v662, 7
      %v664 = vsub.s32 %v661, %v663
      %v665 = vrot.slane %v656, %v664
      %v667 = vunpack.c.l.s4 1417023538
      %v668 = vunpack.c.0.s8 %v667
      %v669 = vlaneseq
      %v670 = vshrl.u32 %v669, 7
      %v671 = vsub.s32 %v668, %v670
      %v672 = vrot.slane %v657, %v671
      %673 = xla_tuple %v665, %v672
      %vm674 = vcmp.gt.s32.totalorder %v656, %v665
      %vm675 = vcmp.eq.s32.totalorder %v656, %v665
      %vm676 = vcmp.lt.s32.totalorder %v657, %v672
      %vm677 = vmand %vm675, %vm676
      %vm678 = vmor %vm674, %vm677
      %v679 = vlaneseq
      %v680 = vshrl.u32 %v679, 7
      %v681 = vand.u32 %v680, 2
      %vm682 = vcmp.ne.s32.totalorder %v681, 0
      %vm683 = vmxor %vm678, %vm682
      %v684 = vsel %vm683, %v656, %v665
      %v685 = vsel %vm683, %v657, %v672
      %686 = xla_tuple %v684, %v685
      %v688 = vunpack.c.l.s4 1732584193
      %v689 = vunpack.c.0.s8 %v688
      %v690 = vlaneseq
      %v691 = vshrl.u32 %v690, 7
      %v692 = vsub.s32 %v689, %v691
      %v693 = vrot.slane %v684, %v692
      %v695 = vunpack.c.l.s4 1732584193
      %v696 = vunpack.c.0.s8 %v695
      %v697 = vlaneseq
      %v698 = vshrl.u32 %v697, 7
      %v699 = vsub.s32 %v696, %v698
      %v700 = vrot.slane %v685, %v699
      %701 = xla_tuple %v693, %v700
      %vm702 = vcmp.gt.s32.totalorder %v684, %v693
      %vm703 = vcmp.eq.s32.totalorder %v684, %v693
      %vm704 = vcmp.lt.s32.totalorder %v685, %v700
      %vm705 = vmand %vm703, %vm704
      %vm706 = vmor %vm702, %vm705
      %v707 = vlaneseq
      %v708 = vshrl.u32 %v707, 7
      %v709 = vand.u32 %v708, 1
      %vm710 = vcmp.ne.s32.totalorder %v709, 0
      %vm711 = vmxor %vm706, %vm710
      %v712 = vsel %vm711, %v684, %v693
      %v713 = vsel %vm711, %v685, %v700
      %714 = xla_tuple %v712, %v713
      %715 = vst [vmem:[#allocation12] sm:$0xff] %v712
      %716 = vst [vmem:[#allocation14] sm:$0xff] %v713
      %717 = xla_tuple %715, %716
      %718 = xla_tuple [#allocation13], [#allocation15]
      %v719 = vld [vmem:[#allocation13] sm:$0xff]
      %v720 = vld [vmem:[#allocation15] sm:$0xff]
      %721 = xla_tuple %v719, %v720
      %v723 = vunpack.c.l.s4 839939668
      %v724 = vunpack.c.0.s8 %v723
      %v725 = vlaneseq
      %v726 = vshrl.u32 %v725, 7
      %v727 = vsub.s32 %v724, %v726
      %v728 = vrot.slane %v719, %v727
      %v730 = vunpack.c.l.s4 839939668
      %v731 = vunpack.c.0.s8 %v730
      %v732 = vlaneseq
      %v733 = vshrl.u32 %v732, 7
      %v734 = vsub.s32 %v731, %v733
      %v735 = vrot.slane %v720, %v734
      %736 = xla_tuple %v728, %v735
      %vm737 = vcmp.gt.s32.totalorder %v719, %v728
      %vm738 = vcmp.eq.s32.totalorder %v719, %v728
      %vm739 = vcmp.lt.s32.totalorder %v720, %v735
      %vm740 = vmand %vm738, %vm739
      %vm741 = vmor %vm737, %vm740
      %v742 = vlaneseq
      %v743 = vshrl.u32 %v742, 7
      %v744 = vand.u32 %v743, 4
      %vm745 = vcmp.ne.s32.totalorder %v744, 0
      %vm746 = vmxor %vm741, %vm745
      %v747 = vsel %vm746, %v719, %v728
      %v748 = vsel %vm746, %v720, %v735
      %749 = xla_tuple %v747, %v748
      %v751 = vunpack.c.l.s4 1417023538
      %v752 = vunpack.c.0.s8 %v751
      %v753 = vlaneseq
      %v754 = vshrl.u32 %v753, 7
      %v755 = vsub.s32 %v752, %v754
      %v756 = vrot.slane %v747, %v755
      %v758 = vunpack.c.l.s4 1417023538
      %v759 = vunpack.c.0.s8 %v758
      %v760 = vlaneseq
      %v761 = vshrl.u32 %v760, 7
      %v762 = vsub.s32 %v759, %v761
      %v763 = vrot.slane %v748, %v762
      %764 = xla_tuple %v756, %v763
      %vm765 = vcmp.gt.s32.totalorder %v747, %v756
      %vm766 = vcmp.eq.s32.totalorder %v747, %v756
      %vm767 = vcmp.lt.s32.totalorder %v748, %v763
      %vm768 = vmand %vm766, %vm767
      %vm769 = vmor %vm765, %vm768
      %v770 = vlaneseq
      %v771 = vshrl.u32 %v770, 7
      %v772 = vand.u32 %v771, 2
      %vm773 = vcmp.ne.s32.totalorder %v772, 0
      %vm774 = vmxor %vm769, %vm773
      %v775 = vsel %vm774, %v747, %v756
      %v776 = vsel %vm774, %v748, %v763
      %777 = xla_tuple %v775, %v776
      %v779 = vunpack.c.l.s4 1732584193
      %v780 = vunpack.c.0.s8 %v779
      %v781 = vlaneseq
      %v782 = vshrl.u32 %v781, 7
      %v783 = vsub.s32 %v780, %v782
      %v784 = vrot.slane %v775, %v783
      %v786 = vunpack.c.l.s4 1732584193
      %v787 = vunpack.c.0.s8 %v786
      %v788 = vlaneseq
      %v789 = vshrl.u32 %v788, 7
      %v790 = vsub.s32 %v787, %v789
      %v791 = vrot.slane %v776, %v790
      %792 = xla_tuple %v784, %v791
      %vm793 = vcmp.gt.s32.totalorder %v775, %v784
      %vm794 = vcmp.eq.s32.totalorder %v775, %v784
      %vm795 = vcmp.lt.s32.totalorder %v776, %v791
      %vm796 = vmand %vm794, %vm795
      %vm797 = vmor %vm793, %vm796
      %v798 = vlaneseq
      %v799 = vshrl.u32 %v798, 7
      %v800 = vand.u32 %v799, 1
      %vm801 = vcmp.ne.s32.totalorder %v800, 0
      %vm802 = vmxor %vm797, %vm801
      %v803 = vsel %vm802, %v775, %v784
      %v804 = vsel %vm802, %v776, %v791
      %805 = xla_tuple %v803, %v804
      %806 = vst [vmem:[#allocation13] sm:$0xff] %v803
      %807 = vst [vmem:[#allocation15] sm:$0xff] %v804
      %808 = xla_tuple %806, %807
      %v809 = vld [vmem:[#allocation13] sm:$0xff]
      %v810 = vld [vmem:[#allocation15] sm:$0xff]
      %811 = xla_tuple %v809, %v810
      %v813 = vunpack.c.l.s4 839939668
      %v814 = vunpack.c.0.s8 %v813
      %v815 = vlaneseq
      %v816 = vshrl.u32 %v815, 7
      %v817 = vsub.s32 %v814, %v816
      %v818 = vrot.slane %v809, %v817
      %v820 = vunpack.c.l.s4 839939668
      %v821 = vunpack.c.0.s8 %v820
      %v822 = vlaneseq
      %v823 = vshrl.u32 %v822, 7
      %v824 = vsub.s32 %v821, %v823
      %v825 = vrot.slane %v810, %v824
      %826 = xla_tuple %v818, %v825
      %vm827 = vcmp.gt.s32.totalorder %v809, %v818
      %vm828 = vcmp.eq.s32.totalorder %v809, %v818
      %vm829 = vcmp.lt.s32.totalorder %v810, %v825
      %vm830 = vmand %vm828, %vm829
      %vm831 = vmor %vm827, %vm830
      %v832 = vlaneseq
      %v833 = vshrl.u32 %v832, 7
      %v834 = vand.u32 %v833, 4
      %vm835 = vcmp.ne.s32.totalorder %v834, 0
      %vm836 = vmxor %vm831, %vm835
      %v837 = vsel %vm836, %v809, %v818
      %v838 = vsel %vm836, %v810, %v825
      %839 = xla_tuple %v837, %v838
      %v841 = vunpack.c.l.s4 1417023538
      %v842 = vunpack.c.0.s8 %v841
      %v843 = vlaneseq
      %v844 = vshrl.u32 %v843, 7
      %v845 = vsub.s32 %v842, %v844
      %v846 = vrot.slane %v837, %v845
      %v848 = vunpack.c.l.s4 1417023538
      %v849 = vunpack.c.0.s8 %v848
      %v850 = vlaneseq
      %v851 = vshrl.u32 %v850, 7
      %v852 = vsub.s32 %v849, %v851
      %v853 = vrot.slane %v838, %v852
      %854 = xla_tuple %v846, %v853
      %vm855 = vcmp.gt.s32.totalorder %v837, %v846
      %vm856 = vcmp.eq.s32.totalorder %v837, %v846
      %vm857 = vcmp.lt.s32.totalorder %v838, %v853
      %vm858 = vmand %vm856, %vm857
      %vm859 = vmor %vm855, %vm858
      %v860 = vlaneseq
      %v861 = vshrl.u32 %v860, 7
      %v862 = vand.u32 %v861, 2
      %vm863 = vcmp.ne.s32.totalorder %v862, 0
      %vm864 = vmxor %vm859, %vm863
      %v865 = vsel %vm864, %v837, %v846
      %v866 = vsel %vm864, %v838, %v853
      %867 = xla_tuple %v865, %v866
      %v869 = vunpack.c.l.s4 1732584193
      %v870 = vunpack.c.0.s8 %v869
      %v871 = vlaneseq
      %v872 = vshrl.u32 %v871, 7
      %v873 = vsub.s32 %v870, %v872
      %v874 = vrot.slane %v865, %v873
      %v876 = vunpack.c.l.s4 1732584193
      %v877 = vunpack.c.0.s8 %v876
      %v878 = vlaneseq
      %v879 = vshrl.u32 %v878, 7
      %v880 = vsub.s32 %v877, %v879
      %v881 = vrot.slane %v866, %v880
      %882 = xla_tuple %v874, %v881
      %vm883 = vcmp.gt.s32.totalorder %v865, %v874
      %vm884 = vcmp.eq.s32.totalorder %v865, %v874
      %vm885 = vcmp.lt.s32.totalorder %v866, %v881
      %vm886 = vmand %vm884, %vm885
      %vm887 = vmor %vm883, %vm886
      %v888 = vlaneseq
      %v889 = vshrl.u32 %v888, 7
      %v890 = vand.u32 %v889, 1
      %vm891 = vcmp.ne.s32.totalorder %v890, 0
      %vm892 = vmxor %vm887, %vm891
      %v893 = vsel %vm892, %v865, %v874
      %v894 = vsel %vm892, %v866, %v881
      %895 = xla_tuple %v893, %v894
      %896 = vst [vmem:[#allocation13] sm:$0xff] %v893
      %897 = vst [vmem:[#allocation15] sm:$0xff] %v894
      %898 = xla_tuple %896, %897
    %v899 = vld [vmem:[#allocation12] sm:$0xff]
    %vm900 = vcmp.lt.s32.totalorder %v899, 0
    %v901 = vsub.s32 2147483647, %v899
    %v902 = vsel %vm900, %v901, %v899
    %903 = vst [vmem:[#allocation12] sm:$0xff] %v902
    %v904 = vld [vmem:[#allocation12] sm:$0xff]
    %905 = vxpose.xlu0.b32.start.end [1/1] (short) %v904, 128
    %v906 = vpop.trf.xlu0
    %v907 = vpop.trf.xlu0
    %v908 = vpop.trf.xlu0
    %v909 = vpop.trf.xlu0
    %v910 = vpop.trf.xlu0
    %v911 = vpop.trf.xlu0
    %v912 = vpop.trf.xlu0
    %v913 = vpop.trf.xlu0
    %v914 = vpop.trf.xlu0
    %v915 = vpop.trf.xlu0
    %v916 = vpop.trf.xlu0
    %v917 = vpop.trf.xlu0
    %v918 = vpop.trf.xlu0
    %v919 = vpop.trf.xlu0
    %v920 = vpop.trf.xlu0
    %v921 = vpop.trf.xlu0
    %922 = vst [vmem:[#allocation7] sm:$0xff] %v906
    %v923 = vld [vmem:[#allocation14] sm:$0xff]
    %924 = vxpose.xlu0.b32.start.end [1/1] (short) %v923, 128
    %v925 = vpop.trf.xlu0
    %v926 = vpop.trf.xlu0
    %v927 = vpop.trf.xlu0
    %v928 = vpop.trf.xlu0
    %v929 = vpop.trf.xlu0
    %v930 = vpop.trf.xlu0
    %v931 = vpop.trf.xlu0
    %v932 = vpop.trf.xlu0
    %v933 = vpop.trf.xlu0
    %v934 = vpop.trf.xlu0
    %v935 = vpop.trf.xlu0
    %v936 = vpop.trf.xlu0
    %v937 = vpop.trf.xlu0
    %v938 = vpop.trf.xlu0
    %v939 = vpop.trf.xlu0
    %v940 = vpop.trf.xlu0
    %941 = vst [vmem:[#allocation10] sm:$0xff] %v925
    %s943 = sshllo.u32 0, 2
    %v945 = vld [vmem:[#allocation7] sm:%s943]
    %s946 = sshllo.u32 0, 2
    %947 = vst [vmem:[#allocation8] sm:%s946] %v945
    %s949 = sshllo.u32 0, 2
    %v951 = vld [vmem:[#allocation10] sm:%s949]
    %s952 = sshllo.u32 0, 2
    %953 = vst [vmem:[#allocation11] sm:%s952] %v951
    %s955 = ssub.s32 32, 32
    %956 = vsyncadd [#allocation9], %s955
    %s958 = sshll.u32 [#allocation8], 4
    %s959 = int_to_ptr.vmem [resolvable:$true] %s958
    %961 = dma.vmem_to_hbm [thread:$0]  %s959, 32, %s1, [#allocation9]
    // Predicated region
    $region40: #{custom-call} parent=1 // pred_check
      _
    $region41: #{custom-call} parent=1 // pred_check_branch
      %963 = sbr.rel (0) target = $region43
    $region42: #{custom-call} parent=1 // pred_region
      // Predicated region
      $region44: #{custom-call} parent=42 // pred_check
        _
      $region45: #{custom-call} parent=42 // pred_check_branch
        %965 = sbr.rel target = $region47
      $region46: #{custom-call} parent=42 // pred_region
        // Predicated region
        $region59: #{custom-call} parent=46 // pred_check
          _
        $region60: #{custom-call} parent=46 // pred_check_branch
          %980 = sbr.rel (0) target = $region62
        $region61: #{custom-call} parent=46 // pred_region
          loop: start=0, step=1, limit=1
          $region63: #{custom-call} parent=61 // loop_pre_header
            _
          $region64: #{custom-call} parent=61 // loop_header
            %s983 = sphi 0, %s987
            %p984 = scmp.ge.s32.totalorder %s983, 1
            %s988 = sphi [#allocation11], [#allocation11]
            %s989 = sphi %s2, %s2
          $region65: #{custom-call} parent=61 // loop_header_branch
            %986 = sbr.rel (%p984) target = $region69
          $region66: #{custom-call} parent=61 // loop_body
            %v990 = vld [vmem:[%s988] sm:$0x3]
            %991 = vst [vmem:[%s989] sm:$0x3] %v990
          $region67: #{custom-call} parent=61 // loop_footer
            %s987 = sadd.s32 1, %s983
          $region68: #{custom-call} parent=61 // loop_footer_branch
            %982 = sbr.rel target = $region64
          $region69: #{custom-call} parent=61 // loop_exit
            _
        $region62: #{custom-call} parent=46 // pred_fallthru
          _
      $region47: #{custom-call} parent=42 // pred_fallthru
        _
      // Predicated region
      $region48: #{custom-call} parent=42 // pred_check
        _
      $region49: #{custom-call} parent=42 // pred_check_branch
        %967 = sbr.rel (0) target = $region51
      $region50: #{custom-call} parent=42 // pred_region
        loop: start=0, step=1, limit=1
        $region52: #{custom-call} parent=50 // loop_pre_header
          _
        $region53: #{custom-call} parent=50 // loop_header
          %s970 = sphi 0, %s974
          %p971 = scmp.ge.s32.totalorder %s970, 1
          %s975 = sphi [#allocation11], [#allocation11]
          %s976 = sphi %s2, %s2
        $region54: #{custom-call} parent=50 // loop_header_branch
          %973 = sbr.rel (%p971) target = $region58
        $region55: #{custom-call} parent=50 // loop_body
          %v977 = vld [vmem:[%s975] sm:$0x3]
          %978 = vst [vmem:[%s976] sm:$0x3] %v977
        $region56: #{custom-call} parent=50 // loop_footer
          %s974 = sadd.s32 1, %s970
        $region57: #{custom-call} parent=50 // loop_footer_branch
          %969 = sbr.rel target = $region53
        $region58: #{custom-call} parent=50 // loop_exit
          _
      $region51: #{custom-call} parent=42 // pred_fallthru
        _
    $region43: #{custom-call} parent=1 // pred_fallthru
      _
    %992 = vnop
    %993 = dma.done [#allocation9], 32
    %994 = vsyncpa [#allocation9], 1

// kernel: faster_rcnn_forward.3
$region0: #{faster_rcnn_forward.3}
  #allocation0 [shape = 'u32[]', space=smem, size = 0x4, offset = 0x4, fixed_abs, tag = 'smem constant byte address 0x4 - core index']
  #allocation1 [shape = 'u32[144,128]{1,0:T(1,128)}', space=vmem, size = 0x12000, scoped, tag = 'internal scratch']
  %s0 = inlined_call_operand.vmem [shape: bf16[2,256,32], index: 0, kind: input, shape index: {}]
  %s1 = inlined_call_operand.vmem [shape: f32[2,8,4], index: 1, kind: input, shape index: {}]
  %s2 = inlined_call_operand.vmem [shape: bf16[32,64], index: 2, kind: input, shape index: {}]
  %s3 = inlined_call_operand.vmem [shape: f32[1,64], index: 3, kind: input, shape index: {}]
  %s4 = inlined_call_operand.vmem [shape: bf16[64,128], index: 4, kind: input, shape index: {}]
  %s5 = inlined_call_operand.vmem [shape: f32[1,128], index: 5, kind: input, shape index: {}]
  %s6 = inlined_call_operand.vmem [shape: f32[2,8,128], index: 6, kind: output, shape index: {}]
  %s7 = sld [smem:[#allocation0]]
  $region57: #{faster_rcnn_forward.3} parent=0
    _
  %s9 = ssub.s32 1, %s7
  %s10 = scalar_select 0, %s9, %s7
  loop: start=0, step=1, limit=4
  $region2: #{faster_rcnn_forward.3} parent=0 // loop_pre_header
    _
  $region3: #{faster_rcnn_forward.3} parent=0 // loop_header
    %s12 = sphi 0, %s16
    %p13 = scmp.ge.s32.totalorder %s12, 4
    %s22 = sphi 0, %s24
    %s25 = sphi 0, %s22
    %s26 = sphi 0, %s25
    %s42 = sphi 0, %s26
    %s48 = sphi 0, %s50
    %s51 = sphi 0, %s48
    %s52 = sphi 0, %s51
    %s68 = sphi 0, %s52
    %s72 = sphi 0, %s72
    %s74 = sphi 0, %s72
    %s75 = sphi 0, %s74
    %s89 = sphi 0, %s75
    %s93 = sphi 0, %s93
    %s95 = sphi 0, %s93
    %s96 = sphi 0, %s95
    %s110 = sphi 0, %s96
    %s114 = sphi 0, %s114
    %s116 = sphi 0, %s114
    %s117 = sphi 0, %s116
    %s131 = sphi 0, %s117
    %s135 = sphi 0, %s135
    %s137 = sphi 0, %s135
    %s138 = sphi 0, %s137
    %s152 = sphi 0, %s138
    %s158 = sphi 0, %s160
    %s161 = sphi 0, %s158
    %s162 = sphi 0, %s161
    %s178 = sphi 0, %s162
  $region4: #{faster_rcnn_forward.3} parent=0 // loop_header_branch
    %15 = sbr.rel (%p13) target = $region8
  $region5: #{faster_rcnn_forward.3} parent=0 // loop_body
    %s17 = ssub.s32 %s12, 1
    %s18 = ssub.s32 %s12, 2
    %s19 = sadd.s32 %s12, 1
    %s20 = ssub.s32 %s12, %s19
    %p21 = scmp.eq.s32.totalorder %s20, 0
    %s23 = sadd.s32 %s22, 1
    %s24 = scalar_select %p21, %s22, %s23
    %p27 = pneg %p21
    %p28 = scmp.eq.s32.totalorder %s12, 1
    %p29 = por %p27, %p28
    %p30 = scmp.ne.s32.totalorder %s22, %s25
    %p31 = scmp.eq.s32.totalorder %s12, 0
    %p32 = por %p30, %p31
    %p33 = scmp.ne.s32.totalorder %s22, %s25
    %p34 = scmp.eq.s32.totalorder %s17, 1
    %p35 = por %p33, %p34
    %p36 = scmp.ne.s32.totalorder %s25, %s26
    %p37 = scmp.eq.s32.totalorder %s17, 0
    %p38 = por %p36, %p37
    %p39 = scmp.ne.s32.totalorder %s25, %s26
    %p40 = scmp.eq.s32.totalorder %s18, 1
    %p41 = por %p39, %p40
    %p43 = scmp.ne.s32.totalorder %s26, %s42
    %p44 = scmp.eq.s32.totalorder %s18, 0
    %p45 = por %p43, %p44
    %s46 = ssub.s32 %s12, %s19
    %p47 = scmp.eq.s32.totalorder %s46, 0
    %s49 = sadd.s32 %s48, 1
    %s50 = scalar_select %p47, %s48, %s49
    %p53 = pneg %p47
    %p54 = scmp.eq.s32.totalorder %s12, 1
    %p55 = por %p53, %p54
    %p56 = scmp.ne.s32.totalorder %s48, %s51
    %p57 = scmp.eq.s32.totalorder %s12, 0
    %p58 = por %p56, %p57
    %p59 = scmp.ne.s32.totalorder %s48, %s51
    %p60 = scmp.eq.s32.totalorder %s17, 1
    %p61 = por %p59, %p60
    %p62 = scmp.ne.s32.totalorder %s51, %s52
    %p63 = scmp.eq.s32.totalorder %s17, 0
    %p64 = por %p62, %p63
    %p65 = scmp.ne.s32.totalorder %s51, %s52
    %p66 = scmp.eq.s32.totalorder %s18, 1
    %p67 = por %p65, %p66
    %p69 = scmp.ne.s32.totalorder %s52, %s68
    %p70 = scmp.eq.s32.totalorder %s18, 0
    %p71 = por %p69, %p70
    %s73 = sadd.s32 %s72, 1
    %p76 = scmp.eq.s32.totalorder %s12, 1
    %p77 = scmp.ne.s32.totalorder %s72, %s74
    %p78 = scmp.eq.s32.totalorder %s12, 0
    %p79 = por %p77, %p78
    %p80 = scmp.ne.s32.totalorder %s72, %s74
    %p81 = scmp.eq.s32.totalorder %s17, 1
    %p82 = por %p80, %p81
    %p83 = scmp.ne.s32.totalorder %s74, %s75
    %p84 = scmp.eq.s32.totalorder %s17, 0
    %p85 = por %p83, %p84
    %p86 = scmp.ne.s32.totalorder %s74, %s75
    %p87 = scmp.eq.s32.totalorder %s18, 1
    %p88 = por %p86, %p87
    %p90 = scmp.ne.s32.totalorder %s75, %s89
    %p91 = scmp.eq.s32.totalorder %s18, 0
    %p92 = por %p90, %p91
    %s94 = sadd.s32 %s93, 1
    %p97 = scmp.eq.s32.totalorder %s12, 1
    %p98 = scmp.ne.s32.totalorder %s93, %s95
    %p99 = scmp.eq.s32.totalorder %s12, 0
    %p100 = por %p98, %p99
    %p101 = scmp.ne.s32.totalorder %s93, %s95
    %p102 = scmp.eq.s32.totalorder %s17, 1
    %p103 = por %p101, %p102
    %p104 = scmp.ne.s32.totalorder %s95, %s96
    %p105 = scmp.eq.s32.totalorder %s17, 0
    %p106 = por %p104, %p105
    %p107 = scmp.ne.s32.totalorder %s95, %s96
    %p108 = scmp.eq.s32.totalorder %s18, 1
    %p109 = por %p107, %p108
    %p111 = scmp.ne.s32.totalorder %s96, %s110
    %p112 = scmp.eq.s32.totalorder %s18, 0
    %p113 = por %p111, %p112
    %s115 = sadd.s32 %s114, 1
    %p118 = scmp.eq.s32.totalorder %s12, 1
    %p119 = scmp.ne.s32.totalorder %s114, %s116
    %p120 = scmp.eq.s32.totalorder %s12, 0
    %p121 = por %p119, %p120
    %p122 = scmp.ne.s32.totalorder %s114, %s116
    %p123 = scmp.eq.s32.totalorder %s17, 1
    %p124 = por %p122, %p123
    %p125 = scmp.ne.s32.totalorder %s116, %s117
    %p126 = scmp.eq.s32.totalorder %s17, 0
    %p127 = por %p125, %p126
    %p128 = scmp.ne.s32.totalorder %s116, %s117
    %p129 = scmp.eq.s32.totalorder %s18, 1
    %p130 = por %p128, %p129
    %p132 = scmp.ne.s32.totalorder %s117, %s131
    %p133 = scmp.eq.s32.totalorder %s18, 0
    %p134 = por %p132, %p133
    %s136 = sadd.s32 %s135, 1
    %p139 = scmp.eq.s32.totalorder %s12, 1
    %p140 = scmp.ne.s32.totalorder %s135, %s137
    %p141 = scmp.eq.s32.totalorder %s12, 0
    %p142 = por %p140, %p141
    %p143 = scmp.ne.s32.totalorder %s135, %s137
    %p144 = scmp.eq.s32.totalorder %s17, 1
    %p145 = por %p143, %p144
    %p146 = scmp.ne.s32.totalorder %s137, %s138
    %p147 = scmp.eq.s32.totalorder %s17, 0
    %p148 = por %p146, %p147
    %p149 = scmp.ne.s32.totalorder %s137, %s138
    %p150 = scmp.eq.s32.totalorder %s18, 1
    %p151 = por %p149, %p150
    %p153 = scmp.ne.s32.totalorder %s138, %s152
    %p154 = scmp.eq.s32.totalorder %s18, 0
    %p155 = por %p153, %p154
    %s156 = ssub.s32 %s12, %s19
    %p157 = scmp.eq.s32.totalorder %s156, 0
    %s159 = sadd.s32 %s158, 1
    %s160 = scalar_select %p157, %s158, %s159
    %p163 = pneg %p157
    %p164 = scmp.eq.s32.totalorder %s12, 1
    %p165 = por %p163, %p164
    %p166 = scmp.ne.s32.totalorder %s158, %s161
    %p167 = scmp.eq.s32.totalorder %s12, 0
    %p168 = por %p166, %p167
    %p169 = scmp.ne.s32.totalorder %s158, %s161
    %p170 = scmp.eq.s32.totalorder %s17, 1
    %p171 = por %p169, %p170
    %p172 = scmp.ne.s32.totalorder %s161, %s162
    %p173 = scmp.eq.s32.totalorder %s17, 0
    %p174 = por %p172, %p173
    %p175 = scmp.ne.s32.totalorder %s161, %s162
    %p176 = scmp.eq.s32.totalorder %s18, 1
    %p177 = por %p175, %p176
    %p179 = scmp.ne.s32.totalorder %s162, %s178
    %p180 = scmp.eq.s32.totalorder %s18, 0
    %p181 = por %p179, %p180
    %p182 = scmp.le.s32.totalorder 1, %s12
    %p183 = scmp.lt.s32.totalorder %s12, 3
    %p184 = pnand %p182, %p183
    %p185 = pneg %p184
    // Predicated region
    $region9: #{faster_rcnn_forward.3} parent=5 // pred_check
      _
    $region10: #{faster_rcnn_forward.3} parent=5 // pred_check_branch
      %187 = sbr.rel (%p184) target = $region12
    $region11: #{faster_rcnn_forward.3} parent=5 // pred_region
      %s188 = ssub.s32 %s12, 1
      // Predicated region
      $region13: #{faster_rcnn_forward.3} parent=11 // pred_check
        %p189 = pneg %p85
      $region14: #{faster_rcnn_forward.3} parent=11 // pred_check_branch
        %191 = sbr.rel (%p189) target = $region16
      $region15: #{faster_rcnn_forward.3} parent=11 // pred_region
        _
      $region16: #{faster_rcnn_forward.3} parent=11 // pred_fallthru
        _
      // Predicated region
      $region17: #{faster_rcnn_forward.3} parent=11 // pred_check
        %p192 = pneg %p106
      $region18: #{faster_rcnn_forward.3} parent=11 // pred_check_branch
        %194 = sbr.rel (%p192) target = $region20
      $region19: #{faster_rcnn_forward.3} parent=11 // pred_region
        _
      $region20: #{faster_rcnn_forward.3} parent=11 // pred_fallthru
        _
      // Predicated region
      $region21: #{faster_rcnn_forward.3} parent=11 // pred_check
        %p195 = pneg %p127
      $region22: #{faster_rcnn_forward.3} parent=11 // pred_check_branch
        %197 = sbr.rel (%p195) target = $region24
      $region23: #{faster_rcnn_forward.3} parent=11 // pred_region
        _
      $region24: #{faster_rcnn_forward.3} parent=11 // pred_fallthru
        _
      // Predicated region
      $region25: #{faster_rcnn_forward.3} parent=11 // pred_check
        %p198 = pneg %p148
      $region26: #{faster_rcnn_forward.3} parent=11 // pred_check_branch
        %200 = sbr.rel (%p198) target = $region28
      $region27: #{faster_rcnn_forward.3} parent=11 // pred_region
        _
      $region28: #{faster_rcnn_forward.3} parent=11 // pred_fallthru
        _
    $region12: #{faster_rcnn_forward.3} parent=5 // pred_fallthru
      _
    %p201 = scmp.lt.s32.totalorder %s12, 2
    // Predicated region
    $region29: #{faster_rcnn_forward.3} parent=5 // pred_check
      %p202 = pneg %p201
    $region30: #{faster_rcnn_forward.3} parent=5 // pred_check_branch
      %204 = sbr.rel (%p202) target = $region32
    $region31: #{faster_rcnn_forward.3} parent=5 // pred_region
      // Predicated region
      $region33: #{faster_rcnn_forward.3} parent=31 // pred_check
        %p205 = pneg %p32
      $region34: #{faster_rcnn_forward.3} parent=31 // pred_check_branch
        %207 = sbr.rel (%p205) target = $region36
      $region35: #{faster_rcnn_forward.3} parent=31 // pred_region
        %p208 = scmp.lt.s32.totalorder %s12, 1
        %s209 = scalar_select %p208, %s12, 1
        %s210 = smul.addr %s209, 32
        %s211 = smul.addr %s210, 4
        %s212 = scalar_lea.vmem %s0, %s211
      $region36: #{faster_rcnn_forward.3} parent=31 // pred_fallthru
        _
      // Predicated region
      $region37: #{faster_rcnn_forward.3} parent=31 // pred_check
        %p213 = pneg %p58
      $region38: #{faster_rcnn_forward.3} parent=31 // pred_check_branch
        %215 = sbr.rel (%p213) target = $region40
      $region39: #{faster_rcnn_forward.3} parent=31 // pred_region
        %p216 = scmp.lt.s32.totalorder %s12, 1
        %s217 = scalar_select %p216, %s12, 1
        %s218 = smul.addr %s217, 8
        %s219 = scalar_lea.vmem %s1, %s218
      $region40: #{faster_rcnn_forward.3} parent=31 // pred_fallthru
        _
    $region32: #{faster_rcnn_forward.3} parent=5 // pred_fallthru
      _
    %p220 = scmp.le.s32.totalorder 1, %s12
    %p221 = scmp.lt.s32.totalorder %s12, 3
    %p222 = pnand %p220, %p221
    %p223 = pneg %p222
    // Predicated region
    $region41: #{faster_rcnn_forward.3} parent=5 // pred_check
      _
    $region42: #{faster_rcnn_forward.3} parent=5 // pred_check_branch
      %225 = sbr.rel (%p222) target = $region44
    $region43: #{faster_rcnn_forward.3} parent=5 // pred_region
      %s226 = ssub.s32 %s12, 1
      %p227 = scmp.lt.s32.totalorder %s17, 1
      %s228 = scalar_select %p227, %s17, 1
      %s229 = smul.addr %s228, 32
      %s230 = smul.addr %s229, 4
      %s231 = scalar_lea.vmem %s0, %s230
      %p232 = pneg %p38
      %p233 = pneg %p35
      %p234 = scmp.lt.s32.totalorder %s17, 1
      %s235 = scalar_select %p234, %s17, 1
      %s236 = smul.addr %s235, 8
      %s237 = scalar_lea.vmem %s1, %s236
      %p238 = pneg %p64
      %p239 = pneg %p61
      %p240 = pneg %p85
      %p241 = pneg %p82
      %p242 = pneg %p106
      %p243 = pneg %p103
      %p244 = pneg %p127
      %p245 = pneg %p124
      %p246 = pneg %p148
      %p247 = pneg %p145
      %p248 = pneg %p174
      %p249 = pneg %p171
      %p250 = scmp.lt.s32.totalorder %s17, 1
      %s251 = scalar_select %p250, %s17, 1
      %s252 = smul.addr %s251, 8
      %s253 = scalar_lea.vmem %s6, %s252
      %p254 = scmp.lt.s32.totalorder %s17, 1
      %s255 = scalar_select %p254, %s17, 1
      %s256 = smul.addr %s255, 32
      %s257 = smul.addr %s256, 4
      %s258 = scalar_lea.vmem %s0, %s257
      %p259 = scmp.lt.s32.totalorder %s17, 1
      %s260 = scalar_select %p259, %s17, 1
      %s261 = smul.addr %s260, 8
      %s262 = scalar_lea.vmem %s1, %s261
      %p263 = scmp.lt.s32.totalorder %s17, 1
      %s264 = scalar_select %p263, %s17, 1
      %s265 = smul.addr %s264, 8
      %s266 = scalar_lea.vmem %s6, %s265
      %v268 = vld [vmem:[%s258] sm:$0xf]
      %v269 = vld [vmem:[%s258 + $0x4] sm:$0xf]
      %v270 = vld [vmem:[%s258 + $0x8] sm:$0xf]
      %v271 = vld [vmem:[%s258 + $0xc] sm:$0xf]
      %v272 = vld [vmem:[%s258 + $0x10] sm:$0xf]
      %v273 = vld [vmem:[%s258 + $0x14] sm:$0xf]
      %v274 = vld [vmem:[%s258 + $0x18] sm:$0xf]
      %v275 = vld [vmem:[%s258 + $0x1c] sm:$0xf]
      %v276 = vld [vmem:[%s258 + $0x20] sm:$0xf]
      %v277 = vld [vmem:[%s258 + $0x24] sm:$0xf]
      %v278 = vld [vmem:[%s258 + $0x28] sm:$0xf]
      %v279 = vld [vmem:[%s258 + $0x2c] sm:$0xf]
      %v280 = vld [vmem:[%s258 + $0x30] sm:$0xf]
      %v281 = vld [vmem:[%s258 + $0x34] sm:$0xf]
      %v282 = vld [vmem:[%s258 + $0x38] sm:$0xf]
      %v283 = vld [vmem:[%s258 + $0x3c] sm:$0xf]
      %v284 = vld [vmem:[%s258 + $0x40] sm:$0xf]
      %v285 = vld [vmem:[%s258 + $0x44] sm:$0xf]
      %v286 = vld [vmem:[%s258 + $0x48] sm:$0xf]
      %v287 = vld [vmem:[%s258 + $0x4c] sm:$0xf]
      %v288 = vld [vmem:[%s258 + $0x50] sm:$0xf]
      %v289 = vld [vmem:[%s258 + $0x54] sm:$0xf]
      %v290 = vld [vmem:[%s258 + $0x58] sm:$0xf]
      %v291 = vld [vmem:[%s258 + $0x5c] sm:$0xf]
      %v292 = vld [vmem:[%s258 + $0x60] sm:$0xf]
      %v293 = vld [vmem:[%s258 + $0x64] sm:$0xf]
      %v294 = vld [vmem:[%s258 + $0x68] sm:$0xf]
      %v295 = vld [vmem:[%s258 + $0x6c] sm:$0xf]
      %v296 = vld [vmem:[%s258 + $0x70] sm:$0xf]
      %v297 = vld [vmem:[%s258 + $0x74] sm:$0xf]
      %v298 = vld [vmem:[%s258 + $0x78] sm:$0xf]
      %v299 = vld [vmem:[%s258 + $0x7c] sm:$0xf]
      %v300 = vld [vmem:[%s262] sm:$0xff]
      %v301 = vlaneseq
      %v302 = vand.u32 %v301, 127
      %v303 = vcvt.s32.f32 %v302
      %v304 = vadd.f32 %v303, 0.5
      %306 = vset.pattern.permute.xlu0 1
      %307 = vperm.xlu0 %306, %v300
      %v308 = vpop.permute.xlu0 %307
      %vm310 = vcmp.ge.f32.partialorder %v304, %v308
      %311 = vset.pattern.permute.xlu0 3
      %312 = vperm.xlu0 %311, %v300
      %v313 = vpop.permute.xlu0 %312
      %vm315 = vcmp.le.f32.partialorder %v304, %v313
      %vm316 = vmand %vm310, %vm315
      %v317 = vsel %vm316, 1, 0
      %v318 = vcvt.s32.f32 %v317
      %319 = vset.pattern.permute.xlu0 0
      %320 = vperm.xlu0 %319, %v300
      %v321 = vpop.permute.xlu0 %320
      %vm323 = vcmp.ge.f32.partialorder %v304, %v321
      %324 = vset.pattern.permute.xlu0 2
      %325 = vperm.xlu0 %324, %v300
      %v326 = vpop.permute.xlu0 %325
      %vm328 = vcmp.le.f32.partialorder %v304, %v326
      %vm329 = vmand %vm323, %vm328
      %v330 = vsel %vm329, 1, 0
      %v331 = vcvt.s32.f32 %v330
      %vm332 = vcmask 130048
      %v333 = vsel %vm332, %v318, 0.0
      %334 = vadd.xlane.f32.xlu0 %v333
      %v335 = vpop.xlane.xlu0 %334
      %v336 = vsel %vm332, %v331, 0.0
      %337 = vadd.xlane.f32.xlu0 %v336
      %v338 = vpop.xlane.xlu0 %337
      %v339 = vmul.f32 %v335, %v338
      %v340 = vmax.f32 %v339, 1.0
      %v341 = vlaneseq
      %v342 = vshrl.u32 %v341, 7
      %v343 = vsub.s32 0, %v342
      %v344 = vrot.slane %v318, %v343
      %346 = vbcast.lane.b32.xlu0 %v344, 256
      %v347 = vpop.permute.xlu0 %346
      %s349 = sor.u32 256, 8
      %350 = vbcast.lane.b32.xlu0 %v344, %s349
      %v351 = vpop.permute.xlu0 %350
      %v352 = vlaneseq
      %v353 = vshrl.u32 %v352, 7
      %v354 = vsub.s32 1, %v353
      %v355 = vrot.slane %v318, %v354
      %357 = vbcast.lane.b32.xlu0 %v355, 256
      %v358 = vpop.permute.xlu0 %357
      %s360 = sor.u32 256, 8
      %361 = vbcast.lane.b32.xlu0 %v355, %s360
      %v362 = vpop.permute.xlu0 %361
      %v363 = vlaneseq
      %v364 = vshrl.u32 %v363, 7
      %v365 = vsub.s32 2, %v364
      %v366 = vrot.slane %v318, %v365
      %368 = vbcast.lane.b32.xlu0 %v366, 256
      %v369 = vpop.permute.xlu0 %368
      %s371 = sor.u32 256, 8
      %372 = vbcast.lane.b32.xlu0 %v366, %s371
      %v373 = vpop.permute.xlu0 %372
      %v374 = vlaneseq
      %v375 = vshrl.u32 %v374, 7
      %v376 = vsub.s32 3, %v375
      %v377 = vrot.slane %v318, %v376
      %379 = vbcast.lane.b32.xlu0 %v377, 256
      %v380 = vpop.permute.xlu0 %379
      %s382 = sor.u32 256, 8
      %383 = vbcast.lane.b32.xlu0 %v377, %s382
      %v384 = vpop.permute.xlu0 %383
      %v385 = vlaneseq
      %v386 = vshrl.u32 %v385, 7
      %v387 = vsub.s32 4, %v386
      %v388 = vrot.slane %v318, %v387
      %390 = vbcast.lane.b32.xlu0 %v388, 256
      %v391 = vpop.permute.xlu0 %390
      %s393 = sor.u32 256, 8
      %394 = vbcast.lane.b32.xlu0 %v388, %s393
      %v395 = vpop.permute.xlu0 %394
      %v396 = vlaneseq
      %v397 = vshrl.u32 %v396, 7
      %v398 = vsub.s32 5, %v397
      %v399 = vrot.slane %v318, %v398
      %401 = vbcast.lane.b32.xlu0 %v399, 256
      %v402 = vpop.permute.xlu0 %401
      %s404 = sor.u32 256, 8
      %405 = vbcast.lane.b32.xlu0 %v399, %s404
      %v406 = vpop.permute.xlu0 %405
      %v407 = vlaneseq
      %v408 = vshrl.u32 %v407, 7
      %v409 = vsub.s32 6, %v408
      %v410 = vrot.slane %v318, %v409
      %412 = vbcast.lane.b32.xlu0 %v410, 256
      %v413 = vpop.permute.xlu0 %412
      %s415 = sor.u32 256, 8
      %416 = vbcast.lane.b32.xlu0 %v410, %s415
      %v417 = vpop.permute.xlu0 %416
      %v418 = vlaneseq
      %v419 = vshrl.u32 %v418, 7
      %v420 = vsub.s32 7, %v419
      %v421 = vrot.slane %v318, %v420
      %423 = vbcast.lane.b32.xlu0 %v421, 256
      %v424 = vpop.permute.xlu0 %423
      %s426 = sor.u32 256, 8
      %427 = vbcast.lane.b32.xlu0 %v421, %s426
      %v428 = vpop.permute.xlu0 %427
      %v430 = vcombine.high %v331, %v331
      %v432 = vunpack.c.l.s4 1966171168
      %v433 = vunpack.c.0.s8 %v432
      %v434 = vlaneseq
      %v435 = vshrl.u32 %v434, 7
      %v436 = vsub.s32 %v433, %v435
      %v437 = vrot.slane %v331, %v436
      %v439 = vunpack.c.l.s4 1966171168
      %v440 = vunpack.c.0.s8 %v439
      %v441 = vlaneseq
      %v442 = vshrl.u32 %v441, 7
      %v443 = vsub.s32 %v440, %v442
      %v444 = vrot.slane %v430, %v443
      %v445 = vcombine.high %v437, %v437
      %v446 = vcombine.high %v444, %v444
      %v448 = vunpack.c.l.s4 1966171168
      %v449 = vunpack.c.0.s8 %v448
      %v450 = vlaneseq
      %v451 = vshrl.u32 %v450, 7
      %v452 = vsub.s32 %v449, %v451
      %v453 = vrot.slane %v437, %v452
      %v455 = vunpack.c.l.s4 1966171168
      %v456 = vunpack.c.0.s8 %v455
      %v457 = vlaneseq
      %v458 = vshrl.u32 %v457, 7
      %v459 = vsub.s32 %v456, %v458
      %v460 = vrot.slane %v444, %v459
      %v462 = vunpack.c.l.s4 1966171168
      %v463 = vunpack.c.0.s8 %v462
      %v464 = vlaneseq
      %v465 = vshrl.u32 %v464, 7
      %v466 = vsub.s32 %v463, %v465
      %v467 = vrot.slane %v445, %v466
      %v469 = vunpack.c.l.s4 1966171168
      %v470 = vunpack.c.0.s8 %v469
      %v471 = vlaneseq
      %v472 = vshrl.u32 %v471, 7
      %v473 = vsub.s32 %v470, %v472
      %v474 = vrot.slane %v446, %v473
      %v475 = vcombine.high %v453, %v453
      %v476 = vcombine.high %v460, %v460
      %v477 = vcombine.high %v467, %v467
      %v478 = vcombine.high %v474, %v474
      %v479 = vlaneseq
      %v480 = vshrl.u32 %v479, 7
      %v481 = vsub.s32 0, %v480
      %v482 = vrot.slane %v453, %v481
      %v483 = vlaneseq
      %v484 = vshrl.u32 %v483, 7
      %v485 = vsub.s32 0, %v484
      %v486 = vrot.slane %v467, %v485
      %v487 = vlaneseq
      %v488 = vshrl.u32 %v487, 7
      %v489 = vsub.s32 0, %v488
      %v490 = vrot.slane %v475, %v489
      %v491 = vlaneseq
      %v492 = vshrl.u32 %v491, 7
      %v493 = vsub.s32 0, %v492
      %v494 = vrot.slane %v477, %v493
      %v495 = vlaneseq
      %v496 = vshrl.u32 %v495, 7
      %v497 = vsub.s32 0, %v496
      %v498 = vrot.slane %v460, %v497
      %v499 = vlaneseq
      %v500 = vshrl.u32 %v499, 7
      %v501 = vsub.s32 0, %v500
      %v502 = vrot.slane %v474, %v501
      %v503 = vlaneseq
      %v504 = vshrl.u32 %v503, 7
      %v505 = vsub.s32 0, %v504
      %v506 = vrot.slane %v476, %v505
      %v507 = vlaneseq
      %v508 = vshrl.u32 %v507, 7
      %v509 = vsub.s32 0, %v508
      %v510 = vrot.slane %v478, %v509
      %v519 = vmul.f32 %v347, %v482
      %v520 = vmul.f32 %v351, %v482
      %v521 = vmul.f32 %v358, %v486
      %v522 = vmul.f32 %v362, %v486
      %v523 = vmul.f32 %v369, %v490
      %v524 = vmul.f32 %v373, %v490
      %v525 = vmul.f32 %v380, %v494
      %v526 = vmul.f32 %v384, %v494
      %v527 = vmul.f32 %v391, %v498
      %v528 = vmul.f32 %v395, %v498
      %v529 = vmul.f32 %v402, %v502
      %v530 = vmul.f32 %v406, %v502
      %v531 = vmul.f32 %v413, %v506
      %v532 = vmul.f32 %v417, %v506
      %v533 = vmul.f32 %v424, %v510
      %v534 = vmul.f32 %v428, %v510
      %v535 = vcombine.low %v519, %v523
      %v536 = vcombine.high %v519, %v523
      %v538 = vunpack.c.l.s4 1983009808
      %v539 = vunpack.c.0.s8 %v538
      %v540 = vlaneseq
      %v541 = vshrl.u32 %v540, 7
      %v542 = vsub.s32 %v539, %v541
      %v543 = vrot.slane %v535, %v542
      %v545 = vunpack.c.l.s4 1983009808
      %v546 = vunpack.c.0.s8 %v545
      %v547 = vlaneseq
      %v548 = vshrl.u32 %v547, 7
      %v549 = vsub.s32 %v546, %v548
      %v550 = vrot.slane %v536, %v549
      %v551 = vcombine.low %v521, %v525
      %v552 = vcombine.high %v521, %v525
      %v554 = vunpack.c.l.s4 1983009808
      %v555 = vunpack.c.0.s8 %v554
      %v556 = vlaneseq
      %v557 = vshrl.u32 %v556, 7
      %v558 = vsub.s32 %v555, %v557
      %v559 = vrot.slane %v551, %v558
      %v561 = vunpack.c.l.s4 1983009808
      %v562 = vunpack.c.0.s8 %v561
      %v563 = vlaneseq
      %v564 = vshrl.u32 %v563, 7
      %v565 = vsub.s32 %v562, %v564
      %v566 = vrot.slane %v552, %v565
      %v567 = vcombine.low %v527, %v531
      %v568 = vcombine.high %v527, %v531
      %v570 = vunpack.c.l.s4 1983009808
      %v571 = vunpack.c.0.s8 %v570
      %v572 = vlaneseq
      %v573 = vshrl.u32 %v572, 7
      %v574 = vsub.s32 %v571, %v573
      %v575 = vrot.slane %v567, %v574
      %v577 = vunpack.c.l.s4 1983009808
      %v578 = vunpack.c.0.s8 %v577
      %v579 = vlaneseq
      %v580 = vshrl.u32 %v579, 7
      %v581 = vsub.s32 %v578, %v580
      %v582 = vrot.slane %v568, %v581
      %v583 = vcombine.low %v529, %v533
      %v584 = vcombine.high %v529, %v533
      %v586 = vunpack.c.l.s4 1983009808
      %v587 = vunpack.c.0.s8 %v586
      %v588 = vlaneseq
      %v589 = vshrl.u32 %v588, 7
      %v590 = vsub.s32 %v587, %v589
      %v591 = vrot.slane %v583, %v590
      %v593 = vunpack.c.l.s4 1983009808
      %v594 = vunpack.c.0.s8 %v593
      %v595 = vlaneseq
      %v596 = vshrl.u32 %v595, 7
      %v597 = vsub.s32 %v594, %v596
      %v598 = vrot.slane %v584, %v597
      %v599 = vcombine.low %v543, %v559
      %v600 = vcombine.high %v543, %v559
      %v602 = vunpack.c.l.s4 1934713408
      %v603 = vunpack.c.0.s8 %v602
      %v604 = vlaneseq
      %v605 = vshrl.u32 %v604, 7
      %v606 = vsub.s32 %v603, %v605
      %v607 = vrot.slane %v599, %v606
      %v609 = vunpack.c.l.s4 1934713408
      %v610 = vunpack.c.0.s8 %v609
      %v611 = vlaneseq
      %v612 = vshrl.u32 %v611, 7
      %v613 = vsub.s32 %v610, %v612
      %v614 = vrot.slane %v600, %v613
      %v615 = vcombine.low %v550, %v566
      %v616 = vcombine.high %v550, %v566
      %v618 = vunpack.c.l.s4 1934713408
      %v619 = vunpack.c.0.s8 %v618
      %v620 = vlaneseq
      %v621 = vshrl.u32 %v620, 7
      %v622 = vsub.s32 %v619, %v621
      %v623 = vrot.slane %v615, %v622
      %v625 = vunpack.c.l.s4 1934713408
      %v626 = vunpack.c.0.s8 %v625
      %v627 = vlaneseq
      %v628 = vshrl.u32 %v627, 7
      %v629 = vsub.s32 %v626, %v628
      %v630 = vrot.slane %v616, %v629
      %v631 = vcombine.low %v575, %v591
      %v632 = vcombine.high %v575, %v591
      %v634 = vunpack.c.l.s4 1934713408
      %v635 = vunpack.c.0.s8 %v634
      %v636 = vlaneseq
      %v637 = vshrl.u32 %v636, 7
      %v638 = vsub.s32 %v635, %v637
      %v639 = vrot.slane %v631, %v638
      %v641 = vunpack.c.l.s4 1934713408
      %v642 = vunpack.c.0.s8 %v641
      %v643 = vlaneseq
      %v644 = vshrl.u32 %v643, 7
      %v645 = vsub.s32 %v642, %v644
      %v646 = vrot.slane %v632, %v645
      %v647 = vcombine.low %v582, %v598
      %v648 = vcombine.high %v582, %v598
      %v650 = vunpack.c.l.s4 1934713408
      %v651 = vunpack.c.0.s8 %v650
      %v652 = vlaneseq
      %v653 = vshrl.u32 %v652, 7
      %v654 = vsub.s32 %v651, %v653
      %v655 = vrot.slane %v647, %v654
      %v657 = vunpack.c.l.s4 1934713408
      %v658 = vunpack.c.0.s8 %v657
      %v659 = vlaneseq
      %v660 = vshrl.u32 %v659, 7
      %v661 = vsub.s32 %v658, %v660
      %v662 = vrot.slane %v648, %v661
      %v663 = vcombine.low %v607, %v639
      %v664 = vcombine.high %v607, %v639
      %v665 = vcombine.low %v614, %v646
      %v666 = vcombine.high %v614, %v646
      %v667 = vcombine.low %v623, %v655
      %v668 = vcombine.high %v623, %v655
      %v669 = vcombine.low %v630, %v662
      %v670 = vcombine.high %v630, %v662
      %v671 = vcombine.low %v520, %v524
      %v672 = vcombine.high %v520, %v524
      %v674 = vunpack.c.l.s4 1983009808
      %v675 = vunpack.c.0.s8 %v674
      %v676 = vlaneseq
      %v677 = vshrl.u32 %v676, 7
      %v678 = vsub.s32 %v675, %v677
      %v679 = vrot.slane %v671, %v678
      %v681 = vunpack.c.l.s4 1983009808
      %v682 = vunpack.c.0.s8 %v681
      %v683 = vlaneseq
      %v684 = vshrl.u32 %v683, 7
      %v685 = vsub.s32 %v682, %v684
      %v686 = vrot.slane %v672, %v685
      %v687 = vcombine.low %v522, %v526
      %v688 = vcombine.high %v522, %v526
      %v690 = vunpack.c.l.s4 1983009808
      %v691 = vunpack.c.0.s8 %v690
      %v692 = vlaneseq
      %v693 = vshrl.u32 %v692, 7
      %v694 = vsub.s32 %v691, %v693
      %v695 = vrot.slane %v687, %v694
      %v697 = vunpack.c.l.s4 1983009808
      %v698 = vunpack.c.0.s8 %v697
      %v699 = vlaneseq
      %v700 = vshrl.u32 %v699, 7
      %v701 = vsub.s32 %v698, %v700
      %v702 = vrot.slane %v688, %v701
      %v703 = vcombine.low %v528, %v532
      %v704 = vcombine.high %v528, %v532
      %v706 = vunpack.c.l.s4 1983009808
      %v707 = vunpack.c.0.s8 %v706
      %v708 = vlaneseq
      %v709 = vshrl.u32 %v708, 7
      %v710 = vsub.s32 %v707, %v709
      %v711 = vrot.slane %v703, %v710
      %v713 = vunpack.c.l.s4 1983009808
      %v714 = vunpack.c.0.s8 %v713
      %v715 = vlaneseq
      %v716 = vshrl.u32 %v715, 7
      %v717 = vsub.s32 %v714, %v716
      %v718 = vrot.slane %v704, %v717
      %v719 = vcombine.low %v530, %v534
      %v720 = vcombine.high %v530, %v534
      %v722 = vunpack.c.l.s4 1983009808
      %v723 = vunpack.c.0.s8 %v722
      %v724 = vlaneseq
      %v725 = vshrl.u32 %v724, 7
      %v726 = vsub.s32 %v723, %v725
      %v727 = vrot.slane %v719, %v726
      %v729 = vunpack.c.l.s4 1983009808
      %v730 = vunpack.c.0.s8 %v729
      %v731 = vlaneseq
      %v732 = vshrl.u32 %v731, 7
      %v733 = vsub.s32 %v730, %v732
      %v734 = vrot.slane %v720, %v733
      %v735 = vcombine.low %v679, %v695
      %v736 = vcombine.high %v679, %v695
      %v738 = vunpack.c.l.s4 1934713408
      %v739 = vunpack.c.0.s8 %v738
      %v740 = vlaneseq
      %v741 = vshrl.u32 %v740, 7
      %v742 = vsub.s32 %v739, %v741
      %v743 = vrot.slane %v735, %v742
      %v745 = vunpack.c.l.s4 1934713408
      %v746 = vunpack.c.0.s8 %v745
      %v747 = vlaneseq
      %v748 = vshrl.u32 %v747, 7
      %v749 = vsub.s32 %v746, %v748
      %v750 = vrot.slane %v736, %v749
      %v751 = vcombine.low %v686, %v702
      %v752 = vcombine.high %v686, %v702
      %v754 = vunpack.c.l.s4 1934713408
      %v755 = vunpack.c.0.s8 %v754
      %v756 = vlaneseq
      %v757 = vshrl.u32 %v756, 7
      %v758 = vsub.s32 %v755, %v757
      %v759 = vrot.slane %v751, %v758
      %v761 = vunpack.c.l.s4 1934713408
      %v762 = vunpack.c.0.s8 %v761
      %v763 = vlaneseq
      %v764 = vshrl.u32 %v763, 7
      %v765 = vsub.s32 %v762, %v764
      %v766 = vrot.slane %v752, %v765
      %v767 = vcombine.low %v711, %v727
      %v768 = vcombine.high %v711, %v727
      %v770 = vunpack.c.l.s4 1934713408
      %v771 = vunpack.c.0.s8 %v770
      %v772 = vlaneseq
      %v773 = vshrl.u32 %v772, 7
      %v774 = vsub.s32 %v771, %v773
      %v775 = vrot.slane %v767, %v774
      %v777 = vunpack.c.l.s4 1934713408
      %v778 = vunpack.c.0.s8 %v777
      %v779 = vlaneseq
      %v780 = vshrl.u32 %v779, 7
      %v781 = vsub.s32 %v778, %v780
      %v782 = vrot.slane %v768, %v781
      %v783 = vcombine.low %v718, %v734
      %v784 = vcombine.high %v718, %v734
      %v786 = vunpack.c.l.s4 1934713408
      %v787 = vunpack.c.0.s8 %v786
      %v788 = vlaneseq
      %v789 = vshrl.u32 %v788, 7
      %v790 = vsub.s32 %v787, %v789
      %v791 = vrot.slane %v783, %v790
      %v793 = vunpack.c.l.s4 1934713408
      %v794 = vunpack.c.0.s8 %v793
      %v795 = vlaneseq
      %v796 = vshrl.u32 %v795, 7
      %v797 = vsub.s32 %v794, %v796
      %v798 = vrot.slane %v784, %v797
      %v799 = vcombine.low %v743, %v775
      %v800 = vcombine.high %v743, %v775
      %v801 = vcombine.low %v750, %v782
      %v802 = vcombine.high %v750, %v782
      %v803 = vcombine.low %v759, %v791
      %v804 = vcombine.high %v759, %v791
      %v805 = vcombine.low %v766, %v798
      %v806 = vcombine.high %v766, %v798
      %808 = vrot.lane.b32.xlu0 %v664, 16
      %v809 = vpop.permute.xlu0 %808
      %812 = vrot.lane.b32.xlu0 %v665, 32
      %v813 = vpop.permute.xlu0 %812
      %816 = vrot.lane.b32.xlu0 %v666, 48
      %v817 = vpop.permute.xlu0 %816
      %820 = vrot.lane.b32.xlu0 %v667, 64
      %v821 = vpop.permute.xlu0 %820
      %824 = vrot.lane.b32.xlu0 %v668, 80
      %v825 = vpop.permute.xlu0 %824
      %828 = vrot.lane.b32.xlu0 %v669, 96
      %v829 = vpop.permute.xlu0 %828
      %832 = vrot.lane.b32.xlu0 %v670, 112
      %v833 = vpop.permute.xlu0 %832
      %836 = vrot.lane.b32.xlu0 %v800, 16
      %v837 = vpop.permute.xlu0 %836
      %840 = vrot.lane.b32.xlu0 %v801, 32
      %v841 = vpop.permute.xlu0 %840
      %844 = vrot.lane.b32.xlu0 %v802, 48
      %v845 = vpop.permute.xlu0 %844
      %848 = vrot.lane.b32.xlu0 %v803, 64
      %v849 = vpop.permute.xlu0 %848
      %852 = vrot.lane.b32.xlu0 %v804, 80
      %v853 = vpop.permute.xlu0 %852
      %856 = vrot.lane.b32.xlu0 %v805, 96
      %v857 = vpop.permute.xlu0 %856
      %860 = vrot.lane.b32.xlu0 %v806, 112
      %v861 = vpop.permute.xlu0 %860
      %v863 = vsel %vm332, %v663, %v809
      %vm864 = vcmask 261120
      %v865 = vsel %vm864, %v863, %v813
      %vm866 = vcmask 392192
      %v867 = vsel %vm866, %v865, %v817
      %vm868 = vcmask 523264
      %v869 = vsel %vm868, %v867, %v821
      %vm870 = vcmask 654336
      %v871 = vsel %vm870, %v869, %v825
      %vm872 = vcmask 785408
      %v873 = vsel %vm872, %v871, %v829
      %vm874 = vcmask 916480
      %v875 = vsel %vm874, %v873, %v833
      %v876 = vsel %vm332, %v799, %v837
      %v877 = vsel %vm864, %v876, %v841
      %v878 = vsel %vm866, %v877, %v845
      %v879 = vsel %vm868, %v878, %v849
      %v880 = vsel %vm870, %v879, %v853
      %v881 = vsel %vm872, %v880, %v857
      %v882 = vsel %vm874, %v881, %v861
      %v883 = vpack.c.bf16 %v875, %v875
      %v884 = vpack.c.bf16 %v882, %v882
      %v917 = vunpack.c.l.b16 %v268
      %v918 = vunpack.c.l.b16 %v269
      %v919 = vunpack.c.l.b16 %v270
      %v920 = vunpack.c.l.b16 %v271
      %v921 = vunpack.c.l.b16 %v272
      %v922 = vunpack.c.l.b16 %v273
      %v923 = vunpack.c.l.b16 %v274
      %v924 = vunpack.c.l.b16 %v275
      %v925 = vunpack.c.l.b16 %v276
      %v926 = vunpack.c.l.b16 %v277
      %v927 = vunpack.c.l.b16 %v278
      %v928 = vunpack.c.l.b16 %v279
      %v929 = vunpack.c.l.b16 %v280
      %v930 = vunpack.c.l.b16 %v281
      %v931 = vunpack.c.l.b16 %v282
      %v932 = vunpack.c.l.b16 %v283
      %v933 = vunpack.c.l.b16 %v284
      %v934 = vunpack.c.l.b16 %v285
      %v935 = vunpack.c.l.b16 %v286
      %v936 = vunpack.c.l.b16 %v287
      %v937 = vunpack.c.l.b16 %v288
      %v938 = vunpack.c.l.b16 %v289
      %v939 = vunpack.c.l.b16 %v290
      %v940 = vunpack.c.l.b16 %v291
      %v941 = vunpack.c.l.b16 %v292
      %v942 = vunpack.c.l.b16 %v293
      %v943 = vunpack.c.l.b16 %v294
      %v944 = vunpack.c.l.b16 %v295
      %v945 = vunpack.c.l.b16 %v296
      %v946 = vunpack.c.l.b16 %v297
      %v947 = vunpack.c.l.b16 %v298
      %v948 = vunpack.c.l.b16 %v299
      %v949 = vpack.c.b16 %v918, %v917
      %v950 = vpack.c.b16 %v920, %v919
      %v951 = vpack.c.b16 %v922, %v921
      %v952 = vpack.c.b16 %v924, %v923
      %v953 = vpack.c.b16 %v926, %v925
      %v954 = vpack.c.b16 %v928, %v927
      %v955 = vpack.c.b16 %v930, %v929
      %v956 = vpack.c.b16 %v932, %v931
      %v957 = vpack.c.b16 %v934, %v933
      %v958 = vpack.c.b16 %v936, %v935
      %v959 = vpack.c.b16 %v938, %v937
      %v960 = vpack.c.b16 %v940, %v939
      %v961 = vpack.c.b16 %v942, %v941
      %v962 = vpack.c.b16 %v944, %v943
      %v963 = vpack.c.b16 %v946, %v945
      %v964 = vpack.c.b16 %v948, %v947
      %981 = vmatprep.subr.bf16.mxu0 0
      %982 = vmatpush1.bf16.msra.mxu0 %v949
      %983 = vmatprep.subr.bf16.mxu0 0
      %984 = vmatpush1.bf16.msra.mxu0 %v950
      %985 = vmatprep.subr.bf16.mxu0 0
      %986 = vmatpush1.bf16.msra.mxu0 %v951
      %987 = vmatprep.subr.bf16.mxu0 0
      %988 = vmatpush1.bf16.msra.mxu0 %v952
      %989 = vmatprep.subr.bf16.mxu0 0
      %990 = vmatpush1.bf16.msra.mxu0 %v953
      %991 = vmatprep.subr.bf16.mxu0 0
      %992 = vmatpush1.bf16.msra.mxu0 %v954
      %993 = vmatprep.subr.bf16.mxu0 0
      %994 = vmatpush1.bf16.msra.mxu0 %v955
      %995 = vmatprep.subr.bf16.mxu0 0
      %996 = vmatpush1.bf16.msra.mxu0 %v956
      %997 = vmatprep.subr.bf16.mxu0 0
      %998 = vmatpush1.bf16.msra.mxu0 %v957
      %999 = vmatprep.subr.bf16.mxu0 0
      %1000 = vmatpush1.bf16.msra.mxu0 %v958
      %1001 = vmatprep.subr.bf16.mxu0 0
      %1002 = vmatpush1.bf16.msra.mxu0 %v959
      %1003 = vmatprep.subr.bf16.mxu0 0
      %1004 = vmatpush1.bf16.msra.mxu0 %v960
      %1005 = vmatprep.subr.bf16.mxu0 0
      %1006 = vmatpush1.bf16.msra.mxu0 %v961
      %1007 = vmatprep.subr.bf16.mxu0 0
      %1008 = vmatpush1.bf16.msra.mxu0 %v962
      %1009 = vmatprep.subr.bf16.mxu0 0
      %1010 = vmatpush1.bf16.msra.mxu0 %v963
      %1011 = vmatprep.subr.bf16.mxu0 0
      %1012 = vmatpush1.bf16.msra.mxu0 %v964
      %1013 = vmatprep.mubr.bf16.mxu0 %v884
      %1014 = vmatmul.mubr.bf16.gmra.mrb[0].mxu0 %v883
      %v1015 = vpop.f32.mrb[0].mxu0
      %v1016 = vadd.f32 0.0, %v1015
      %v1017 = vpop.f32.mrb[0].mxu0
      %v1018 = vpop.f32.mrb[0].mxu0
      %v1019 = vpop.f32.mrb[0].mxu0
      %1020 = vdwg.mxu0
      %v1021 = vrcp.pop %v340
      %v1022 = vmul.f32 %v1016, %v1021
      %v1023 = vpack.c.bf16 %v1022, %v1022
      %v1024 = vld [vmem:[%s2] sm:$0xf]
      %v1025 = vld [vmem:[%s2 + $0x4] sm:$0xf]
      %v1026 = vld [vmem:[%s2 + $0x8] sm:$0xf]
      %v1027 = vld [vmem:[%s2 + $0xc] sm:$0xf]
      %v1028 = vld [vmem:[%s3] sm:$0x1]
      %v1030 = vlaneseq
      %v1031 = vshrl.u32 %v1030, 7
      %v1032 = vsub.s32 0, %v1031
      %v1033 = vrot.slane %v1028, %v1032
      %v1039 = vunpack.c.l.b16 %v1024
      %v1040 = vunpack.c.l.b16 %v1025
      %v1041 = vunpack.c.l.b16 %v1026
      %v1042 = vunpack.c.l.b16 %v1027
      %v1043 = vpack.c.b16 %v1040, %v1039
      %v1044 = vpack.c.b16 %v1042, %v1041
      %v1048 = vsel %vm864, %v1023, 0
      %1050 = vmatprep.subr.bf16.mxu0 0
      %1051 = vmatpush1.bf16.msra.mxu0 %v1043
      %1052 = vmatprep.subr.bf16.mxu0 0
      %1053 = vmatpush1.bf16.msra.mxu0 %v1044
      %1054 = vmatprep.subr.bf16.mxu0 0
      %1055 = vmatpush1.bf16.msra.mxu0 0
      %1056 = vmatprep.subr.bf16.mxu0 0
      %1057 = vmatpush1.bf16.msra.mxu0 0
      %1058 = vmatprep.subr.bf16.mxu0 0
      %1059 = vmatpush1.bf16.msra.mxu0 0
      %1060 = vmatprep.subr.bf16.mxu0 0
      %1061 = vmatpush1.bf16.msra.mxu0 0
      %1062 = vmatprep.subr.bf16.mxu0 0
      %1063 = vmatpush1.bf16.msra.mxu0 0
      %1064 = vmatprep.subr.bf16.mxu0 0
      %1065 = vmatpush1.bf16.msra.mxu0 0
      %1066 = vmatprep.subr.bf16.mxu0 0
      %1067 = vmatpush1.bf16.msra.mxu0 0
      %1068 = vmatprep.subr.bf16.mxu0 0
      %1069 = vmatpush1.bf16.msra.mxu0 0
      %1070 = vmatprep.subr.bf16.mxu0 0
      %1071 = vmatpush1.bf16.msra.mxu0 0
      %1072 = vmatprep.subr.bf16.mxu0 0
      %1073 = vmatpush1.bf16.msra.mxu0 0
      %1074 = vmatprep.subr.bf16.mxu0 0
      %1075 = vmatpush1.bf16.msra.mxu0 0
      %1076 = vmatprep.subr.bf16.mxu0 0
      %1077 = vmatpush1.bf16.msra.mxu0 0
      %1078 = vmatprep.subr.bf16.mxu0 0
      %1079 = vmatpush1.bf16.msra.mxu0 0
      %1080 = vmatprep.subr.bf16.mxu0 0
      %1081 = vmatpush1.bf16.msra.mxu0 0
      %1082 = vmatprep.mubr.bf16.mxu0 0
      %1083 = vmatmul.mubr.bf16.gmra.mrb[0].mxu0 %v1048
      %v1084 = vpop.f32.mrb[0].mxu0
      %v1085 = vadd.f32 %v1033, %v1084
      %v1086 = vpop.f32.mrb[0].mxu0
      %v1087 = vpop.f32.mrb[0].mxu0
      %v1088 = vpop.f32.mrb[0].mxu0
      %1089 = vdwg.mxu0
      %v1090 = vmax.f32 %v1085, 0.0
      %v1091 = vpack.c.bf16 %v1090, %v1090
      %v1092 = vld [vmem:[%s4] sm:$0xf]
      %v1093 = vld [vmem:[%s4 + $0x4] sm:$0xf]
      %v1094 = vld [vmem:[%s4 + $0x8] sm:$0xf]
      %v1095 = vld [vmem:[%s4 + $0xc] sm:$0xf]
      %v1096 = vld [vmem:[%s4 + $0x10] sm:$0xf]
      %v1097 = vld [vmem:[%s4 + $0x14] sm:$0xf]
      %v1098 = vld [vmem:[%s4 + $0x18] sm:$0xf]
      %v1099 = vld [vmem:[%s4 + $0x1c] sm:$0xf]
      %v1100 = vld [vmem:[%s5] sm:$0x1]
      %v1102 = vlaneseq
      %v1103 = vshrl.u32 %v1102, 7
      %v1104 = vsub.s32 0, %v1103
      %v1105 = vrot.slane %v1100, %v1104
      %v1115 = vunpack.c.l.b16 %v1092
      %v1116 = vunpack.c.l.b16 %v1093
      %v1117 = vunpack.c.l.b16 %v1094
      %v1118 = vunpack.c.l.b16 %v1095
      %v1119 = vunpack.c.l.b16 %v1096
      %v1120 = vunpack.c.l.b16 %v1097
      %v1121 = vunpack.c.l.b16 %v1098
      %v1122 = vunpack.c.l.b16 %v1099
      %v1123 = vpack.c.b16 %v1116, %v1115
      %v1124 = vpack.c.b16 %v1118, %v1117
      %v1125 = vpack.c.b16 %v1120, %v1119
      %v1126 = vpack.c.b16 %v1122, %v1121
      %v1132 = vsel %vm868, %v1091, 0
      %1134 = vmatprep.subr.bf16.mxu0 0
      %1135 = vmatpush1.bf16.msra.mxu0 %v1123
      %1136 = vmatprep.subr.bf16.mxu0 0
      %1137 = vmatpush1.bf16.msra.mxu0 %v1124
      %1138 = vmatprep.subr.bf16.mxu0 0
      %1139 = vmatpush1.bf16.msra.mxu0 %v1125
      %1140 = vmatprep.subr.bf16.mxu0 0
      %1141 = vmatpush1.bf16.msra.mxu0 %v1126
      %1142 = vmatprep.subr.bf16.mxu0 0
      %1143 = vmatpush1.bf16.msra.mxu0 0
      %1144 = vmatprep.subr.bf16.mxu0 0
      %1145 = vmatpush1.bf16.msra.mxu0 0
      %1146 = vmatprep.subr.bf16.mxu0 0
      %1147 = vmatpush1.bf16.msra.mxu0 0
      %1148 = vmatprep.subr.bf16.mxu0 0
      %1149 = vmatpush1.bf16.msra.mxu0 0
      %1150 = vmatprep.subr.bf16.mxu0 0
      %1151 = vmatpush1.bf16.msra.mxu0 0
      %1152 = vmatprep.subr.bf16.mxu0 0
      %1153 = vmatpush1.bf16.msra.mxu0 0
      %1154 = vmatprep.subr.bf16.mxu0 0
      %1155 = vmatpush1.bf16.msra.mxu0 0
      %1156 = vmatprep.subr.bf16.mxu0 0
      %1157 = vmatpush1.bf16.msra.mxu0 0
      %1158 = vmatprep.subr.bf16.mxu0 0
      %1159 = vmatpush1.bf16.msra.mxu0 0
      %1160 = vmatprep.subr.bf16.mxu0 0
      %1161 = vmatpush1.bf16.msra.mxu0 0
      %1162 = vmatprep.subr.bf16.mxu0 0
      %1163 = vmatpush1.bf16.msra.mxu0 0
      %1164 = vmatprep.subr.bf16.mxu0 0
      %1165 = vmatpush1.bf16.msra.mxu0 0
      %1166 = vmatprep.mubr.bf16.mxu0 0
      %1167 = vmatmul.mubr.bf16.gmra.mrb[0].mxu0 %v1132
      %v1168 = vpop.f32.mrb[0].mxu0
      %v1169 = vadd.f32 %v1105, %v1168
      %v1170 = vpop.f32.mrb[0].mxu0
      %v1171 = vpop.f32.mrb[0].mxu0
      %v1172 = vpop.f32.mrb[0].mxu0
      %1173 = vdwg.mxu0
      %vm1174 = vcmp.lt.s32.totalorder %v302, 5
      %vm1175 = vcmp.ge.s32.totalorder %v302, 9
      %vm1176 = vcmp.lt.s32.totalorder %v302, 13
      %vm1177 = vmand %vm1175, %vm1176
      %v1178 = vsel %vm1174, %v1169, -1e+30
      %1179 = vmax.xlane.f32.xlu0 %v1178
      %v1180 = vpop.xlane.xlu0 %1179
      %v1181 = vsub.f32 %v1178, %v1180
      %v1182 = vmul.f32 %v1181, 1.442695
      %v1183 = vpow.pop %v1182
      %1184 = vadd.xlane.f32.xlu0 %v1183
      %v1185 = vpop.xlane.xlu0 %1184
      %v1186 = vrcp.pop %v1185
      %v1187 = vmul.f32 %v1183, %v1186
      %v1188 = vmax.f32 %v1169, 0.0
      %v1189 = vand.u32 2147483647, %v1169
      %v1190 = vsub.f32 0.0, %v1189
      %v1191 = vmul.f32 %v1190, 1.442695
      %v1192 = vpow.pop %v1191
      %v1193 = vadd.f32 %v1192, 1.0
      %v1194 = vlog2.pop %v1193
      %v1195 = vmul.f32 %v1194, 0.6931472
      %v1196 = vadd.f32 %v1188, %v1195
      %v1197 = vsel %vm1177, %v1196, %v1169
      %v1198 = vsel %vm1174, %v1187, %v1197
      %1199 = vst [vmem:[%s266] sm:$0xff] %v1198
      %p1200 = scmp.lt.s32.totalorder %s17, 1
      %s1201 = scalar_select %p1200, %s17, 1
      %s1202 = smul.addr %s1201, 8
      %s1203 = scalar_lea.vmem %s6, %s1202
      // Predicated region
      $region45: #{faster_rcnn_forward.3} parent=43 // pred_check
        %p1204 = pneg %p171
      $region46: #{faster_rcnn_forward.3} parent=43 // pred_check_branch
        %1206 = sbr.rel (%p1204) target = $region48
      $region47: #{faster_rcnn_forward.3} parent=43 // pred_region
        _
      $region48: #{faster_rcnn_forward.3} parent=43 // pred_fallthru
        _
    $region44: #{faster_rcnn_forward.3} parent=5 // pred_fallthru
      _
    %p1207 = scmp.le.s32.totalorder 2, %s12
    // Predicated region
    $region49: #{faster_rcnn_forward.3} parent=5 // pred_check
      %p1208 = pneg %p1207
    $region50: #{faster_rcnn_forward.3} parent=5 // pred_check_branch
      %1210 = sbr.rel (%p1208) target = $region52
    $region51: #{faster_rcnn_forward.3} parent=5 // pred_region
      %s1211 = ssub.s32 %s12, 2
      // Predicated region
      $region53: #{faster_rcnn_forward.3} parent=51 // pred_check
        %p1212 = pneg %p177
      $region54: #{faster_rcnn_forward.3} parent=51 // pred_check_branch
        %1214 = sbr.rel (%p1212) target = $region56
      $region55: #{faster_rcnn_forward.3} parent=51 // pred_region
        %p1215 = scmp.lt.s32.totalorder %s18, 1
        %s1216 = scalar_select %p1215, %s18, 1
        %s1217 = smul.addr %s1216, 8
        %s1218 = scalar_lea.vmem %s6, %s1217
      $region56: #{faster_rcnn_forward.3} parent=51 // pred_fallthru
        _
    $region52: #{faster_rcnn_forward.3} parent=5 // pred_fallthru
      _
  $region6: #{faster_rcnn_forward.3} parent=0 // loop_footer
    %s16 = sadd.s32 1, %s12
  $region7: #{faster_rcnn_forward.3} parent=0 // loop_footer_branch
    %11 = sbr.rel target = $region3
  $region8: #{faster_rcnn_forward.3} parent=0 // loop_exit
    _

// kernel: faster_rcnn_forward.2
$region0: #{faster_rcnn_forward.2}
  #allocation0 [shape = 'u32[]', space=smem, size = 0x4, offset = 0x4, fixed_abs, tag = 'smem constant byte address 0x4 - core index']
  #allocation1 [shape = 'u32[144,128]{1,0:T(1,128)}', space=vmem, size = 0x12000, scoped, tag = 'internal scratch']
  #allocation2 [shape = 'bf16[18,18,32]{2,1,0:T(8,128)(2,1)}', space=vmem, size = 0x1b000, scoped, tag = 'scratch operand']
  %s0 = inlined_call_operand.vmem [shape: bf16[2,18,18,4], index: 0, kind: input, shape index: {}]
  %s1 = inlined_call_operand.vmem [shape: bf16[9,4,32], index: 1, kind: input, shape index: {}]
  %s2 = inlined_call_operand.vmem [shape: f32[1,32], index: 2, kind: input, shape index: {}]
  %s3 = inlined_call_operand.vmem [shape: bf16[9,32,32], index: 3, kind: input, shape index: {}]
  %s4 = inlined_call_operand.vmem [shape: f32[1,32], index: 4, kind: input, shape index: {}]
  %s5 = inlined_call_operand.vmem [shape: bf16[32,16], index: 5, kind: input, shape index: {}]
  %s6 = inlined_call_operand.vmem [shape: f32[1,16], index: 6, kind: input, shape index: {}]
  %s7 = inlined_call_operand.vmem [shape: bf16[2,256,32], index: 7, kind: output, shape index: {0}]
  %s8 = inlined_call_operand.vmem [shape: f32[2,256,16], index: 8, kind: output, shape index: {1}]
  %9 = xla_tuple %s7, %s8
  %s10 = sld [smem:[#allocation0]]
  $region69: #{faster_rcnn_forward.2} parent=0
    _
  %s12 = ssub.s32 1, %s10
  %s13 = scalar_select 0, %s12, %s10
  loop: start=0, step=1, limit=4
  $region2: #{faster_rcnn_forward.2} parent=0 // loop_pre_header
    _
  $region3: #{faster_rcnn_forward.2} parent=0 // loop_header
    %s15 = sphi 0, %s19
    %p16 = scmp.ge.s32.totalorder %s15, 4
    %s25 = sphi 0, %s27
    %s28 = sphi 0, %s25
    %s29 = sphi 0, %s28
    %s45 = sphi 0, %s29
    %s49 = sphi 0, %s49
    %s51 = sphi 0, %s49
    %s52 = sphi 0, %s51
    %s66 = sphi 0, %s52
    %s70 = sphi 0, %s70
    %s72 = sphi 0, %s70
    %s73 = sphi 0, %s72
    %s87 = sphi 0, %s73
    %s91 = sphi 0, %s91
    %s93 = sphi 0, %s91
    %s94 = sphi 0, %s93
    %s108 = sphi 0, %s94
    %s112 = sphi 0, %s112
    %s114 = sphi 0, %s112
    %s115 = sphi 0, %s114
    %s129 = sphi 0, %s115
    %s133 = sphi 0, %s133
    %s135 = sphi 0, %s133
    %s136 = sphi 0, %s135
    %s150 = sphi 0, %s136
    %s154 = sphi 0, %s154
    %s156 = sphi 0, %s154
    %s157 = sphi 0, %s156
    %s171 = sphi 0, %s157
    %s177 = sphi 0, %s179
    %s180 = sphi 0, %s177
    %s181 = sphi 0, %s180
    %s197 = sphi 0, %s181
    %s203 = sphi 0, %s205
    %s206 = sphi 0, %s203
    %s207 = sphi 0, %s206
    %s223 = sphi 0, %s207
  $region4: #{faster_rcnn_forward.2} parent=0 // loop_header_branch
    %18 = sbr.rel (%p16) target = $region8
  $region5: #{faster_rcnn_forward.2} parent=0 // loop_body
    %s20 = ssub.s32 %s15, 1
    %s21 = ssub.s32 %s15, 2
    %s22 = sadd.s32 %s15, 1
    %s23 = ssub.s32 %s15, %s22
    %p24 = scmp.eq.s32.totalorder %s23, 0
    %s26 = sadd.s32 %s25, 1
    %s27 = scalar_select %p24, %s25, %s26
    %p30 = pneg %p24
    %p31 = scmp.eq.s32.totalorder %s15, 1
    %p32 = por %p30, %p31
    %p33 = scmp.ne.s32.totalorder %s25, %s28
    %p34 = scmp.eq.s32.totalorder %s15, 0
    %p35 = por %p33, %p34
    %p36 = scmp.ne.s32.totalorder %s25, %s28
    %p37 = scmp.eq.s32.totalorder %s20, 1
    %p38 = por %p36, %p37
    %p39 = scmp.ne.s32.totalorder %s28, %s29
    %p40 = scmp.eq.s32.totalorder %s20, 0
    %p41 = por %p39, %p40
    %p42 = scmp.ne.s32.totalorder %s28, %s29
    %p43 = scmp.eq.s32.totalorder %s21, 1
    %p44 = por %p42, %p43
    %p46 = scmp.ne.s32.totalorder %s29, %s45
    %p47 = scmp.eq.s32.totalorder %s21, 0
    %p48 = por %p46, %p47
    %s50 = sadd.s32 %s49, 1
    %p53 = scmp.eq.s32.totalorder %s15, 1
    %p54 = scmp.ne.s32.totalorder %s49, %s51
    %p55 = scmp.eq.s32.totalorder %s15, 0
    %p56 = por %p54, %p55
    %p57 = scmp.ne.s32.totalorder %s49, %s51
    %p58 = scmp.eq.s32.totalorder %s20, 1
    %p59 = por %p57, %p58
    %p60 = scmp.ne.s32.totalorder %s51, %s52
    %p61 = scmp.eq.s32.totalorder %s20, 0
    %p62 = por %p60, %p61
    %p63 = scmp.ne.s32.totalorder %s51, %s52
    %p64 = scmp.eq.s32.totalorder %s21, 1
    %p65 = por %p63, %p64
    %p67 = scmp.ne.s32.totalorder %s52, %s66
    %p68 = scmp.eq.s32.totalorder %s21, 0
    %p69 = por %p67, %p68
    %s71 = sadd.s32 %s70, 1
    %p74 = scmp.eq.s32.totalorder %s15, 1
    %p75 = scmp.ne.s32.totalorder %s70, %s72
    %p76 = scmp.eq.s32.totalorder %s15, 0
    %p77 = por %p75, %p76
    %p78 = scmp.ne.s32.totalorder %s70, %s72
    %p79 = scmp.eq.s32.totalorder %s20, 1
    %p80 = por %p78, %p79
    %p81 = scmp.ne.s32.totalorder %s72, %s73
    %p82 = scmp.eq.s32.totalorder %s20, 0
    %p83 = por %p81, %p82
    %p84 = scmp.ne.s32.totalorder %s72, %s73
    %p85 = scmp.eq.s32.totalorder %s21, 1
    %p86 = por %p84, %p85
    %p88 = scmp.ne.s32.totalorder %s73, %s87
    %p89 = scmp.eq.s32.totalorder %s21, 0
    %p90 = por %p88, %p89
    %s92 = sadd.s32 %s91, 1
    %p95 = scmp.eq.s32.totalorder %s15, 1
    %p96 = scmp.ne.s32.totalorder %s91, %s93
    %p97 = scmp.eq.s32.totalorder %s15, 0
    %p98 = por %p96, %p97
    %p99 = scmp.ne.s32.totalorder %s91, %s93
    %p100 = scmp.eq.s32.totalorder %s20, 1
    %p101 = por %p99, %p100
    %p102 = scmp.ne.s32.totalorder %s93, %s94
    %p103 = scmp.eq.s32.totalorder %s20, 0
    %p104 = por %p102, %p103
    %p105 = scmp.ne.s32.totalorder %s93, %s94
    %p106 = scmp.eq.s32.totalorder %s21, 1
    %p107 = por %p105, %p106
    %p109 = scmp.ne.s32.totalorder %s94, %s108
    %p110 = scmp.eq.s32.totalorder %s21, 0
    %p111 = por %p109, %p110
    %s113 = sadd.s32 %s112, 1
    %p116 = scmp.eq.s32.totalorder %s15, 1
    %p117 = scmp.ne.s32.totalorder %s112, %s114
    %p118 = scmp.eq.s32.totalorder %s15, 0
    %p119 = por %p117, %p118
    %p120 = scmp.ne.s32.totalorder %s112, %s114
    %p121 = scmp.eq.s32.totalorder %s20, 1
    %p122 = por %p120, %p121
    %p123 = scmp.ne.s32.totalorder %s114, %s115
    %p124 = scmp.eq.s32.totalorder %s20, 0
    %p125 = por %p123, %p124
    %p126 = scmp.ne.s32.totalorder %s114, %s115
    %p127 = scmp.eq.s32.totalorder %s21, 1
    %p128 = por %p126, %p127
    %p130 = scmp.ne.s32.totalorder %s115, %s129
    %p131 = scmp.eq.s32.totalorder %s21, 0
    %p132 = por %p130, %p131
    %s134 = sadd.s32 %s133, 1
    %p137 = scmp.eq.s32.totalorder %s15, 1
    %p138 = scmp.ne.s32.totalorder %s133, %s135
    %p139 = scmp.eq.s32.totalorder %s15, 0
    %p140 = por %p138, %p139
    %p141 = scmp.ne.s32.totalorder %s133, %s135
    %p142 = scmp.eq.s32.totalorder %s20, 1
    %p143 = por %p141, %p142
    %p144 = scmp.ne.s32.totalorder %s135, %s136
    %p145 = scmp.eq.s32.totalorder %s20, 0
    %p146 = por %p144, %p145
    %p147 = scmp.ne.s32.totalorder %s135, %s136
    %p148 = scmp.eq.s32.totalorder %s21, 1
    %p149 = por %p147, %p148
    %p151 = scmp.ne.s32.totalorder %s136, %s150
    %p152 = scmp.eq.s32.totalorder %s21, 0
    %p153 = por %p151, %p152
    %s155 = sadd.s32 %s154, 1
    %p158 = scmp.eq.s32.totalorder %s15, 1
    %p159 = scmp.ne.s32.totalorder %s154, %s156
    %p160 = scmp.eq.s32.totalorder %s15, 0
    %p161 = por %p159, %p160
    %p162 = scmp.ne.s32.totalorder %s154, %s156
    %p163 = scmp.eq.s32.totalorder %s20, 1
    %p164 = por %p162, %p163
    %p165 = scmp.ne.s32.totalorder %s156, %s157
    %p166 = scmp.eq.s32.totalorder %s20, 0
    %p167 = por %p165, %p166
    %p168 = scmp.ne.s32.totalorder %s156, %s157
    %p169 = scmp.eq.s32.totalorder %s21, 1
    %p170 = por %p168, %p169
    %p172 = scmp.ne.s32.totalorder %s157, %s171
    %p173 = scmp.eq.s32.totalorder %s21, 0
    %p174 = por %p172, %p173
    %s175 = ssub.s32 %s15, %s22
    %p176 = scmp.eq.s32.totalorder %s175, 0
    %s178 = sadd.s32 %s177, 1
    %s179 = scalar_select %p176, %s177, %s178
    %p182 = pneg %p176
    %p183 = scmp.eq.s32.totalorder %s15, 1
    %p184 = por %p182, %p183
    %p185 = scmp.ne.s32.totalorder %s177, %s180
    %p186 = scmp.eq.s32.totalorder %s15, 0
    %p187 = por %p185, %p186
    %p188 = scmp.ne.s32.totalorder %s177, %s180
    %p189 = scmp.eq.s32.totalorder %s20, 1
    %p190 = por %p188, %p189
    %p191 = scmp.ne.s32.totalorder %s180, %s181
    %p192 = scmp.eq.s32.totalorder %s20, 0
    %p193 = por %p191, %p192
    %p194 = scmp.ne.s32.totalorder %s180, %s181
    %p195 = scmp.eq.s32.totalorder %s21, 1
    %p196 = por %p194, %p195
    %p198 = scmp.ne.s32.totalorder %s181, %s197
    %p199 = scmp.eq.s32.totalorder %s21, 0
    %p200 = por %p198, %p199
    %s201 = ssub.s32 %s15, %s22
    %p202 = scmp.eq.s32.totalorder %s201, 0
    %s204 = sadd.s32 %s203, 1
    %s205 = scalar_select %p202, %s203, %s204
    %p208 = pneg %p202
    %p209 = scmp.eq.s32.totalorder %s15, 1
    %p210 = por %p208, %p209
    %p211 = scmp.ne.s32.totalorder %s203, %s206
    %p212 = scmp.eq.s32.totalorder %s15, 0
    %p213 = por %p211, %p212
    %p214 = scmp.ne.s32.totalorder %s203, %s206
    %p215 = scmp.eq.s32.totalorder %s20, 1
    %p216 = por %p214, %p215
    %p217 = scmp.ne.s32.totalorder %s206, %s207
    %p218 = scmp.eq.s32.totalorder %s20, 0
    %p219 = por %p217, %p218
    %p220 = scmp.ne.s32.totalorder %s206, %s207
    %p221 = scmp.eq.s32.totalorder %s21, 1
    %p222 = por %p220, %p221
    %p224 = scmp.ne.s32.totalorder %s207, %s223
    %p225 = scmp.eq.s32.totalorder %s21, 0
    %p226 = por %p224, %p225
    %p227 = scmp.le.s32.totalorder 1, %s15
    %p228 = scmp.lt.s32.totalorder %s15, 3
    %p229 = pnand %p227, %p228
    %p230 = pneg %p229
    // Predicated region
    $region9: #{faster_rcnn_forward.2} parent=5 // pred_check
      _
    $region10: #{faster_rcnn_forward.2} parent=5 // pred_check_branch
      %232 = sbr.rel (%p229) target = $region12
    $region11: #{faster_rcnn_forward.2} parent=5 // pred_region
      %s233 = ssub.s32 %s15, 1
      // Predicated region
      $region13: #{faster_rcnn_forward.2} parent=11 // pred_check
        %p234 = pneg %p62
      $region14: #{faster_rcnn_forward.2} parent=11 // pred_check_branch
        %236 = sbr.rel (%p234) target = $region16
      $region15: #{faster_rcnn_forward.2} parent=11 // pred_region
        _
      $region16: #{faster_rcnn_forward.2} parent=11 // pred_fallthru
        _
      // Predicated region
      $region17: #{faster_rcnn_forward.2} parent=11 // pred_check
        %p237 = pneg %p83
      $region18: #{faster_rcnn_forward.2} parent=11 // pred_check_branch
        %239 = sbr.rel (%p237) target = $region20
      $region19: #{faster_rcnn_forward.2} parent=11 // pred_region
        _
      $region20: #{faster_rcnn_forward.2} parent=11 // pred_fallthru
        _
      // Predicated region
      $region21: #{faster_rcnn_forward.2} parent=11 // pred_check
        %p240 = pneg %p104
      $region22: #{faster_rcnn_forward.2} parent=11 // pred_check_branch
        %242 = sbr.rel (%p240) target = $region24
      $region23: #{faster_rcnn_forward.2} parent=11 // pred_region
        _
      $region24: #{faster_rcnn_forward.2} parent=11 // pred_fallthru
        _
      // Predicated region
      $region25: #{faster_rcnn_forward.2} parent=11 // pred_check
        %p243 = pneg %p125
      $region26: #{faster_rcnn_forward.2} parent=11 // pred_check_branch
        %245 = sbr.rel (%p243) target = $region28
      $region27: #{faster_rcnn_forward.2} parent=11 // pred_region
        _
      $region28: #{faster_rcnn_forward.2} parent=11 // pred_fallthru
        _
      // Predicated region
      $region29: #{faster_rcnn_forward.2} parent=11 // pred_check
        %p246 = pneg %p146
      $region30: #{faster_rcnn_forward.2} parent=11 // pred_check_branch
        %248 = sbr.rel (%p246) target = $region32
      $region31: #{faster_rcnn_forward.2} parent=11 // pred_region
        _
      $region32: #{faster_rcnn_forward.2} parent=11 // pred_fallthru
        _
      // Predicated region
      $region33: #{faster_rcnn_forward.2} parent=11 // pred_check
        %p249 = pneg %p167
      $region34: #{faster_rcnn_forward.2} parent=11 // pred_check_branch
        %251 = sbr.rel (%p249) target = $region36
      $region35: #{faster_rcnn_forward.2} parent=11 // pred_region
        _
      $region36: #{faster_rcnn_forward.2} parent=11 // pred_fallthru
        _
    $region12: #{faster_rcnn_forward.2} parent=5 // pred_fallthru
      _
    %p252 = scmp.lt.s32.totalorder %s15, 2
    // Predicated region
    $region37: #{faster_rcnn_forward.2} parent=5 // pred_check
      %p253 = pneg %p252
    $region38: #{faster_rcnn_forward.2} parent=5 // pred_check_branch
      %255 = sbr.rel (%p253) target = $region40
    $region39: #{faster_rcnn_forward.2} parent=5 // pred_region
      // Predicated region
      $region41: #{faster_rcnn_forward.2} parent=39 // pred_check
        %p256 = pneg %p35
      $region42: #{faster_rcnn_forward.2} parent=39 // pred_check_branch
        %258 = sbr.rel (%p256) target = $region44
      $region43: #{faster_rcnn_forward.2} parent=39 // pred_region
        %p259 = scmp.lt.s32.totalorder %s15, 1
        %s260 = scalar_select %p259, %s15, 1
        %s261 = smul.addr %s260, 54
        %s262 = smul.addr %s261, 4
        %s263 = scalar_lea.vmem %s0, %s262
      $region44: #{faster_rcnn_forward.2} parent=39 // pred_fallthru
        _
    $region40: #{faster_rcnn_forward.2} parent=5 // pred_fallthru
      _
    %p264 = scmp.le.s32.totalorder 1, %s15
    %p265 = scmp.lt.s32.totalorder %s15, 3
    %p266 = pnand %p264, %p265
    %p267 = pneg %p266
    // Predicated region
    $region45: #{faster_rcnn_forward.2} parent=5 // pred_check
      _
    $region46: #{faster_rcnn_forward.2} parent=5 // pred_check_branch
      %269 = sbr.rel (%p266) target = $region48
    $region47: #{faster_rcnn_forward.2} parent=5 // pred_region
      %s270 = ssub.s32 %s15, 1
      %p271 = scmp.lt.s32.totalorder %s20, 1
      %s272 = scalar_select %p271, %s20, 1
      %s273 = smul.addr %s272, 54
      %s274 = smul.addr %s273, 4
      %s275 = scalar_lea.vmem %s0, %s274
      %p276 = pneg %p41
      %p277 = pneg %p38
      %p278 = pneg %p62
      %p279 = pneg %p59
      %p280 = pneg %p83
      %p281 = pneg %p80
      %p282 = pneg %p104
      %p283 = pneg %p101
      %p284 = pneg %p125
      %p285 = pneg %p122
      %p286 = pneg %p146
      %p287 = pneg %p143
      %p288 = pneg %p167
      %p289 = pneg %p164
      %p290 = pneg %p193
      %p291 = pneg %p190
      %p292 = scmp.lt.s32.totalorder %s20, 1
      %s293 = scalar_select %p292, %s20, 1
      %s294 = smul.addr %s293, 32
      %s295 = smul.addr %s294, 4
      %s296 = scalar_lea.vmem %s7, %s295
      %p297 = pneg %p219
      %p298 = pneg %p216
      %p299 = scmp.lt.s32.totalorder %s20, 1
      %s300 = scalar_select %p299, %s20, 1
      %s301 = smul.addr %s300, 32
      %s302 = smul.addr %s301, 8
      %s303 = scalar_lea.vmem %s8, %s302
      %p304 = scmp.lt.s32.totalorder %s20, 1
      %s305 = scalar_select %p304, %s20, 1
      %s306 = smul.addr %s305, 54
      %s307 = smul.addr %s306, 4
      %s308 = scalar_lea.vmem %s0, %s307
      %p309 = scmp.lt.s32.totalorder %s20, 1
      %s310 = scalar_select %p309, %s20, 1
      %s311 = smul.addr %s310, 32
      %s312 = smul.addr %s311, 4
      %s313 = scalar_lea.vmem %s7, %s312
      %p314 = scmp.lt.s32.totalorder %s20, 1
      %s315 = scalar_select %p314, %s20, 1
      %s316 = smul.addr %s315, 32
      %s317 = smul.addr %s316, 8
      %s318 = scalar_lea.vmem %s8, %s317
      %v320 = vld [vmem:[%s308] sm:$0xf]
      %v321 = vld [vmem:[%s308 + $0x4] sm:$0xf]
      %v322 = vld [vmem:[%s308 + $0x8] sm:$0x1]
      %v323 = vld [vmem:[%s308 + $0xc] sm:$0xf]
      %v324 = vld [vmem:[%s308 + $0x10] sm:$0xf]
      %v325 = vld [vmem:[%s308 + $0x14] sm:$0x1]
      %v326 = vld [vmem:[%s308 + $0x18] sm:$0xf]
      %v327 = vld [vmem:[%s308 + $0x1c] sm:$0xf]
      %v328 = vld [vmem:[%s308 + $0x20] sm:$0x1]
      %v329 = vld [vmem:[%s308 + $0x24] sm:$0xf]
      %v330 = vld [vmem:[%s308 + $0x28] sm:$0xf]
      %v331 = vld [vmem:[%s308 + $0x2c] sm:$0x1]
      %v332 = vld [vmem:[%s308 + $0x30] sm:$0xf]
      %v333 = vld [vmem:[%s308 + $0x34] sm:$0xf]
      %v334 = vld [vmem:[%s308 + $0x38] sm:$0x1]
      %v335 = vld [vmem:[%s308 + $0x3c] sm:$0xf]
      %v336 = vld [vmem:[%s308 + $0x40] sm:$0xf]
      %v337 = vld [vmem:[%s308 + $0x44] sm:$0x1]
      %v338 = vld [vmem:[%s308 + $0x48] sm:$0xf]
      %v339 = vld [vmem:[%s308 + $0x4c] sm:$0xf]
      %v340 = vld [vmem:[%s308 + $0x50] sm:$0x1]
      %v341 = vld [vmem:[%s308 + $0x54] sm:$0xf]
      %v342 = vld [vmem:[%s308 + $0x58] sm:$0xf]
      %v343 = vld [vmem:[%s308 + $0x5c] sm:$0x1]
      %v344 = vld [vmem:[%s308 + $0x60] sm:$0xf]
      %v345 = vld [vmem:[%s308 + $0x64] sm:$0xf]
      %v346 = vld [vmem:[%s308 + $0x68] sm:$0x1]
      %v347 = vld [vmem:[%s308 + $0x6c] sm:$0xf]
      %v348 = vld [vmem:[%s308 + $0x70] sm:$0xf]
      %v349 = vld [vmem:[%s308 + $0x74] sm:$0x1]
      %v350 = vld [vmem:[%s308 + $0x78] sm:$0xf]
      %v351 = vld [vmem:[%s308 + $0x7c] sm:$0xf]
      %v352 = vld [vmem:[%s308 + $0x80] sm:$0x1]
      %v353 = vld [vmem:[%s308 + $0x84] sm:$0xf]
      %v354 = vld [vmem:[%s308 + $0x88] sm:$0xf]
      %v355 = vld [vmem:[%s308 + $0x8c] sm:$0x1]
      %v356 = vld [vmem:[%s308 + $0x90] sm:$0xf]
      %v357 = vld [vmem:[%s308 + $0x94] sm:$0xf]
      %v358 = vld [vmem:[%s308 + $0x98] sm:$0x1]
      %v359 = vld [vmem:[%s308 + $0x9c] sm:$0xf]
      %v360 = vld [vmem:[%s308 + $0xa0] sm:$0xf]
      %v361 = vld [vmem:[%s308 + $0xa4] sm:$0x1]
      %v362 = vld [vmem:[%s308 + $0xa8] sm:$0xf]
      %v363 = vld [vmem:[%s308 + $0xac] sm:$0xf]
      %v364 = vld [vmem:[%s308 + $0xb0] sm:$0x1]
      %v365 = vld [vmem:[%s308 + $0xb4] sm:$0xf]
      %v366 = vld [vmem:[%s308 + $0xb8] sm:$0xf]
      %v367 = vld [vmem:[%s308 + $0xbc] sm:$0x1]
      %v368 = vld [vmem:[%s308 + $0xc0] sm:$0xf]
      %v369 = vld [vmem:[%s308 + $0xc4] sm:$0xf]
      %v370 = vld [vmem:[%s308 + $0xc8] sm:$0x1]
      %v371 = vld [vmem:[%s308 + $0xcc] sm:$0xf]
      %v372 = vld [vmem:[%s308 + $0xd0] sm:$0xf]
      %v373 = vld [vmem:[%s308 + $0xd4] sm:$0x1]
      %v374 = vld [vmem:[%s1] sm:$0x3]
      %vm375 = vsmask.f32 3328
      %vm376 = vsmask.f32 7440
      %vm377 = vmor %vm375, %vm376
      %v379 = vshrl.u32 %v320, 16
      %v381 = vrot.slane %v379, 4
      %v382 = vshll.u32 %v320, 16
      %v384 = vrot.slane %v382, 5
      %v385 = vor.u32 %v381, %v384
      %v386 = vrot.slane %v385, 4
      %v388 = vshll.u32 %v321, 16
      %v390 = vrot.slane %v388, 5
      %v391 = vsel %vm377, %v386, %v390
      %v392 = vshrl.u32 %v321, 16
      %v394 = vrot.slane %v392, 4
      %v395 = vor.u32 %v394, %v390
      %v396 = vrot.slane %v395, 4
      %v398 = vshll.u32 %v322, 16
      %v400 = vrot.slane %v398, 5
      %v401 = vsel %vm377, %v396, %v400
      %v403 = vshrl.u32 %v323, 16
      %v405 = vrot.slane %v403, 4
      %v406 = vshll.u32 %v323, 16
      %v408 = vrot.slane %v406, 5
      %v409 = vor.u32 %v405, %v408
      %v410 = vrot.slane %v409, 4
      %v412 = vshll.u32 %v324, 16
      %v414 = vrot.slane %v412, 5
      %v415 = vsel %vm377, %v410, %v414
      %v416 = vshrl.u32 %v324, 16
      %v418 = vrot.slane %v416, 4
      %v419 = vor.u32 %v418, %v414
      %v420 = vrot.slane %v419, 4
      %v422 = vshll.u32 %v325, 16
      %v424 = vrot.slane %v422, 5
      %v425 = vsel %vm377, %v420, %v424
      %v427 = vshrl.u32 %v326, 16
      %v429 = vrot.slane %v427, 4
      %v430 = vshll.u32 %v326, 16
      %v432 = vrot.slane %v430, 5
      %v433 = vor.u32 %v429, %v432
      %v434 = vrot.slane %v433, 4
      %v436 = vshll.u32 %v327, 16
      %v438 = vrot.slane %v436, 5
      %v439 = vsel %vm377, %v434, %v438
      %v440 = vshrl.u32 %v327, 16
      %v442 = vrot.slane %v440, 4
      %v443 = vor.u32 %v442, %v438
      %v444 = vrot.slane %v443, 4
      %v446 = vshll.u32 %v328, 16
      %v448 = vrot.slane %v446, 5
      %v449 = vsel %vm377, %v444, %v448
      %v451 = vshrl.u32 %v329, 16
      %v453 = vrot.slane %v451, 4
      %v454 = vshll.u32 %v329, 16
      %v456 = vrot.slane %v454, 5
      %v457 = vor.u32 %v453, %v456
      %v458 = vrot.slane %v457, 4
      %v460 = vshll.u32 %v330, 16
      %v462 = vrot.slane %v460, 5
      %v463 = vsel %vm377, %v458, %v462
      %v464 = vshrl.u32 %v330, 16
      %v466 = vrot.slane %v464, 4
      %v467 = vor.u32 %v466, %v462
      %v468 = vrot.slane %v467, 4
      %v470 = vshll.u32 %v331, 16
      %v472 = vrot.slane %v470, 5
      %v473 = vsel %vm377, %v468, %v472
      %v475 = vshrl.u32 %v332, 16
      %v477 = vrot.slane %v475, 4
      %v478 = vshll.u32 %v332, 16
      %v480 = vrot.slane %v478, 5
      %v481 = vor.u32 %v477, %v480
      %v482 = vrot.slane %v481, 4
      %v484 = vshll.u32 %v333, 16
      %v486 = vrot.slane %v484, 5
      %v487 = vsel %vm377, %v482, %v486
      %v488 = vshrl.u32 %v333, 16
      %v490 = vrot.slane %v488, 4
      %v491 = vor.u32 %v490, %v486
      %v492 = vrot.slane %v491, 4
      %v494 = vshll.u32 %v334, 16
      %v496 = vrot.slane %v494, 5
      %v497 = vsel %vm377, %v492, %v496
      %v499 = vshrl.u32 %v335, 16
      %v501 = vrot.slane %v499, 4
      %v502 = vshll.u32 %v335, 16
      %v504 = vrot.slane %v502, 5
      %v505 = vor.u32 %v501, %v504
      %v506 = vrot.slane %v505, 4
      %v508 = vshll.u32 %v336, 16
      %v510 = vrot.slane %v508, 5
      %v511 = vsel %vm377, %v506, %v510
      %v512 = vshrl.u32 %v336, 16
      %v514 = vrot.slane %v512, 4
      %v515 = vor.u32 %v514, %v510
      %v516 = vrot.slane %v515, 4
      %v518 = vshll.u32 %v337, 16
      %v520 = vrot.slane %v518, 5
      %v521 = vsel %vm377, %v516, %v520
      %v523 = vshrl.u32 %v338, 16
      %v525 = vrot.slane %v523, 4
      %v526 = vshll.u32 %v338, 16
      %v528 = vrot.slane %v526, 5
      %v529 = vor.u32 %v525, %v528
      %v530 = vrot.slane %v529, 4
      %v532 = vshll.u32 %v339, 16
      %v534 = vrot.slane %v532, 5
      %v535 = vsel %vm377, %v530, %v534
      %v536 = vshrl.u32 %v339, 16
      %v538 = vrot.slane %v536, 4
      %v539 = vor.u32 %v538, %v534
      %v540 = vrot.slane %v539, 4
      %v542 = vshll.u32 %v340, 16
      %v544 = vrot.slane %v542, 5
      %v545 = vsel %vm377, %v540, %v544
      %v547 = vshrl.u32 %v341, 16
      %v549 = vrot.slane %v547, 4
      %v550 = vshll.u32 %v341, 16
      %v552 = vrot.slane %v550, 5
      %v553 = vor.u32 %v549, %v552
      %v554 = vrot.slane %v553, 4
      %v556 = vshll.u32 %v342, 16
      %v558 = vrot.slane %v556, 5
      %v559 = vsel %vm377, %v554, %v558
      %v560 = vshrl.u32 %v342, 16
      %v562 = vrot.slane %v560, 4
      %v563 = vor.u32 %v562, %v558
      %v564 = vrot.slane %v563, 4
      %v566 = vshll.u32 %v343, 16
      %v568 = vrot.slane %v566, 5
      %v569 = vsel %vm377, %v564, %v568
      %v571 = vshrl.u32 %v344, 16
      %v573 = vrot.slane %v571, 4
      %v574 = vshll.u32 %v344, 16
      %v576 = vrot.slane %v574, 5
      %v577 = vor.u32 %v573, %v576
      %v578 = vrot.slane %v577, 4
      %v580 = vshll.u32 %v345, 16
      %v582 = vrot.slane %v580, 5
      %v583 = vsel %vm377, %v578, %v582
      %v584 = vshrl.u32 %v345, 16
      %v586 = vrot.slane %v584, 4
      %v587 = vor.u32 %v586, %v582
      %v588 = vrot.slane %v587, 4
      %v590 = vshll.u32 %v346, 16
      %v592 = vrot.slane %v590, 5
      %v593 = vsel %vm377, %v588, %v592
      %v595 = vshrl.u32 %v347, 16
      %v597 = vrot.slane %v595, 4
      %v598 = vshll.u32 %v347, 16
      %v600 = vrot.slane %v598, 5
      %v601 = vor.u32 %v597, %v600
      %v602 = vrot.slane %v601, 4
      %v604 = vshll.u32 %v348, 16
      %v606 = vrot.slane %v604, 5
      %v607 = vsel %vm377, %v602, %v606
      %v608 = vshrl.u32 %v348, 16
      %v610 = vrot.slane %v608, 4
      %v611 = vor.u32 %v610, %v606
      %v612 = vrot.slane %v611, 4
      %v614 = vshll.u32 %v349, 16
      %v616 = vrot.slane %v614, 5
      %v617 = vsel %vm377, %v612, %v616
      %v619 = vshrl.u32 %v350, 16
      %v621 = vrot.slane %v619, 4
      %v622 = vshll.u32 %v350, 16
      %v624 = vrot.slane %v622, 5
      %v625 = vor.u32 %v621, %v624
      %v626 = vrot.slane %v625, 4
      %v628 = vshll.u32 %v351, 16
      %v630 = vrot.slane %v628, 5
      %v631 = vsel %vm377, %v626, %v630
      %v632 = vshrl.u32 %v351, 16
      %v634 = vrot.slane %v632, 4
      %v635 = vor.u32 %v634, %v630
      %v636 = vrot.slane %v635, 4
      %v638 = vshll.u32 %v352, 16
      %v640 = vrot.slane %v638, 5
      %v641 = vsel %vm377, %v636, %v640
      %v643 = vshrl.u32 %v353, 16
      %v645 = vrot.slane %v643, 4
      %v646 = vshll.u32 %v353, 16
      %v648 = vrot.slane %v646, 5
      %v649 = vor.u32 %v645, %v648
      %v650 = vrot.slane %v649, 4
      %v652 = vshll.u32 %v354, 16
      %v654 = vrot.slane %v652, 5
      %v655 = vsel %vm377, %v650, %v654
      %v656 = vshrl.u32 %v354, 16
      %v658 = vrot.slane %v656, 4
      %v659 = vor.u32 %v658, %v654
      %v660 = vrot.slane %v659, 4
      %v662 = vshll.u32 %v355, 16
      %v664 = vrot.slane %v662, 5
      %v665 = vsel %vm377, %v660, %v664
      %v667 = vshrl.u32 %v356, 16
      %v669 = vrot.slane %v667, 4
      %v670 = vshll.u32 %v356, 16
      %v672 = vrot.slane %v670, 5
      %v673 = vor.u32 %v669, %v672
      %v674 = vrot.slane %v673, 4
      %v676 = vshll.u32 %v357, 16
      %v678 = vrot.slane %v676, 5
      %v679 = vsel %vm377, %v674, %v678
      %v680 = vshrl.u32 %v357, 16
      %v682 = vrot.slane %v680, 4
      %v683 = vor.u32 %v682, %v678
      %v684 = vrot.slane %v683, 4
      %v686 = vshll.u32 %v358, 16
      %v688 = vrot.slane %v686, 5
      %v689 = vsel %vm377, %v684, %v688
      %v691 = vshrl.u32 %v359, 16
      %v693 = vrot.slane %v691, 4
      %v694 = vshll.u32 %v359, 16
      %v696 = vrot.slane %v694, 5
      %v697 = vor.u32 %v693, %v696
      %v698 = vrot.slane %v697, 4
      %v700 = vshll.u32 %v360, 16
      %v702 = vrot.slane %v700, 5
      %v703 = vsel %vm377, %v698, %v702
      %v704 = vshrl.u32 %v360, 16
      %v706 = vrot.slane %v704, 4
      %v707 = vor.u32 %v706, %v702
      %v708 = vrot.slane %v707, 4
      %v710 = vshll.u32 %v361, 16
      %v712 = vrot.slane %v710, 5
      %v713 = vsel %vm377, %v708, %v712
      %v715 = vshrl.u32 %v362, 16
      %v717 = vrot.slane %v715, 4
      %v718 = vshll.u32 %v362, 16
      %v720 = vrot.slane %v718, 5
      %v721 = vor.u32 %v717, %v720
      %v722 = vrot.slane %v721, 4
      %v724 = vshll.u32 %v363, 16
      %v726 = vrot.slane %v724, 5
      %v727 = vsel %vm377, %v722, %v726
      %v728 = vshrl.u32 %v363, 16
      %v730 = vrot.slane %v728, 4
      %v731 = vor.u32 %v730, %v726
      %v732 = vrot.slane %v731, 4
      %v734 = vshll.u32 %v364, 16
      %v736 = vrot.slane %v734, 5
      %v737 = vsel %vm377, %v732, %v736
      %v739 = vshrl.u32 %v365, 16
      %v741 = vrot.slane %v739, 4
      %v742 = vshll.u32 %v365, 16
      %v744 = vrot.slane %v742, 5
      %v745 = vor.u32 %v741, %v744
      %v746 = vrot.slane %v745, 4
      %v748 = vshll.u32 %v366, 16
      %v750 = vrot.slane %v748, 5
      %v751 = vsel %vm377, %v746, %v750
      %v752 = vshrl.u32 %v366, 16
      %v754 = vrot.slane %v752, 4
      %v755 = vor.u32 %v754, %v750
      %v756 = vrot.slane %v755, 4
      %v758 = vshll.u32 %v367, 16
      %v760 = vrot.slane %v758, 5
      %v761 = vsel %vm377, %v756, %v760
      %s762 = scalar_lea.vmem %s1, 2
      %v763 = vld [vmem:[%s762] sm:$0x3]
      %v764 = vunpack.c.l.b16 %v391
      %v765 = vunpack.c.l.b16 %v401
      %v766 = vunpack.c.l.b16 %v415
      %v767 = vunpack.c.l.b16 %v425
      %v768 = vunpack.c.l.b16 %v439
      %v769 = vunpack.c.l.b16 %v449
      %v770 = vunpack.c.l.b16 %v463
      %v771 = vunpack.c.l.b16 %v473
      %v772 = vunpack.c.l.b16 %v487
      %v773 = vunpack.c.l.b16 %v497
      %v774 = vunpack.c.l.b16 %v511
      %v775 = vunpack.c.l.b16 %v521
      %v776 = vunpack.c.l.b16 %v535
      %v777 = vunpack.c.l.b16 %v545
      %v778 = vunpack.c.l.b16 %v559
      %v779 = vunpack.c.l.b16 %v569
      %v780 = vunpack.c.l.b16 %v583
      %v781 = vunpack.c.l.b16 %v593
      %v782 = vunpack.c.l.b16 %v607
      %v783 = vunpack.c.l.b16 %v617
      %v784 = vunpack.c.l.b16 %v631
      %v785 = vunpack.c.l.b16 %v641
      %v786 = vunpack.c.l.b16 %v655
      %v787 = vunpack.c.l.b16 %v665
      %v788 = vunpack.c.l.b16 %v679
      %v789 = vunpack.c.l.b16 %v689
      %v790 = vunpack.c.l.b16 %v703
      %v791 = vunpack.c.l.b16 %v713
      %v792 = vunpack.c.l.b16 %v727
      %v793 = vunpack.c.l.b16 %v737
      %v794 = vunpack.c.l.b16 %v751
      %v795 = vunpack.c.l.b16 %v761
      %v796 = vpack.c.b16 %v765, %v764
      %v797 = vpack.c.b16 %v767, %v766
      %v798 = vpack.c.b16 %v769, %v768
      %v799 = vpack.c.b16 %v771, %v770
      %v800 = vpack.c.b16 %v773, %v772
      %v801 = vpack.c.b16 %v775, %v774
      %v802 = vpack.c.b16 %v777, %v776
      %v803 = vpack.c.b16 %v779, %v778
      %v804 = vpack.c.b16 %v781, %v780
      %v805 = vpack.c.b16 %v783, %v782
      %v806 = vpack.c.b16 %v785, %v784
      %v807 = vpack.c.b16 %v787, %v786
      %v808 = vpack.c.b16 %v789, %v788
      %v809 = vpack.c.b16 %v791, %v790
      %v810 = vpack.c.b16 %v793, %v792
      %v811 = vpack.c.b16 %v795, %v794
      %vm812 = vcmask 31744
      %v814 = vsel %vm812, %v796, 0
      %v817 = vsel %vm812, %v797, 0
      %v820 = vsel %vm812, %v798, 0
      %v823 = vsel %vm812, %v799, 0
      %v826 = vsel %vm812, %v800, 0
      %v829 = vsel %vm812, %v801, 0
      %v832 = vsel %vm812, %v802, 0
      %v835 = vsel %vm812, %v803, 0
      %v838 = vsel %vm812, %v804, 0
      %v841 = vsel %vm812, %v805, 0
      %v844 = vsel %vm812, %v806, 0
      %v847 = vsel %vm812, %v807, 0
      %v850 = vsel %vm812, %v808, 0
      %v853 = vsel %vm812, %v809, 0
      %v856 = vsel %vm812, %v810, 0
      %v859 = vsel %vm812, %v811, 0
      %vm861 = vcmask 1041408
      %v863 = vsel %vm861, %v763, 0
      %865 = vmatprep.subr.bf16.mxu0 0
      %866 = vmatpush1.bf16.msra.mxu0 %v863
      %867 = vmatprep.subr.bf16.mxu0 0
      %868 = vmatpush1.bf16.msra.mxu0 0
      %869 = vmatprep.subr.bf16.mxu0 0
      %870 = vmatpush1.bf16.msra.mxu0 0
      %871 = vmatprep.subr.bf16.mxu0 0
      %872 = vmatpush1.bf16.msra.mxu0 0
      %873 = vmatprep.subr.bf16.mxu0 0
      %874 = vmatpush1.bf16.msra.mxu0 0
      %875 = vmatprep.subr.bf16.mxu0 0
      %876 = vmatpush1.bf16.msra.mxu0 0
      %877 = vmatprep.subr.bf16.mxu0 0
      %878 = vmatpush1.bf16.msra.mxu0 0
      %879 = vmatprep.subr.bf16.mxu0 0
      %880 = vmatpush1.bf16.msra.mxu0 0
      %881 = vmatprep.subr.bf16.mxu0 0
      %882 = vmatpush1.bf16.msra.mxu0 0
      %883 = vmatprep.subr.bf16.mxu0 0
      %884 = vmatpush1.bf16.msra.mxu0 0
      %885 = vmatprep.subr.bf16.mxu0 0
      %886 = vmatpush1.bf16.msra.mxu0 0
      %887 = vmatprep.subr.bf16.mxu0 0
      %888 = vmatpush1.bf16.msra.mxu0 0
      %889 = vmatprep.subr.bf16.mxu0 0
      %890 = vmatpush1.bf16.msra.mxu0 0
      %891 = vmatprep.subr.bf16.mxu0 0
      %892 = vmatpush1.bf16.msra.mxu0 0
      %893 = vmatprep.subr.bf16.mxu0 0
      %894 = vmatpush1.bf16.msra.mxu0 0
      %895 = vmatprep.subr.bf16.mxu0 0
      %896 = vmatpush1.bf16.msra.mxu0 0
      %897 = vmatprep.mubr.bf16.mxu0 0
      %898 = vmatmul.mubr.bf16.gmra.mrb[0].mxu0 %v814
      %v899 = vpop.f32.mrb[0].mxu0
      %v900 = vadd.f32 0.0, %v899
      %v901 = vpop.f32.mrb[0].mxu0
      %v902 = vpop.f32.mrb[0].mxu0
      %v903 = vadd.f32 0.0, %v902
      %v904 = vpop.f32.mrb[0].mxu0
      %905 = vmatprep.mubr.bf16.mxu0 0
      %906 = vmatmul.mubr.bf16.gmra.mrb[0].mxu0 %v817
      %v907 = vpop.f32.mrb[0].mxu0
      %v908 = vadd.f32 0.0, %v907
      %v909 = vpop.f32.mrb[0].mxu0
      %v910 = vpop.f32.mrb[0].mxu0
      %v911 = vadd.f32 0.0, %v910
      %v912 = vpop.f32.mrb[0].mxu0
      %913 = vmatprep.mubr.bf16.mxu0 0
      %914 = vmatmul.mubr.bf16.gmra.mrb[0].mxu0 %v820
      %v915 = vpop.f32.mrb[0].mxu0
      %v916 = vadd.f32 0.0, %v915
      %v917 = vpop.f32.mrb[0].mxu0
      %v918 = vpop.f32.mrb[0].mxu0
      %v919 = vadd.f32 0.0, %v918
      %v920 = vpop.f32.mrb[0].mxu0
      %921 = vmatprep.mubr.bf16.mxu0 0
      %922 = vmatmul.mubr.bf16.gmra.mrb[0].mxu0 %v823
      %v923 = vpop.f32.mrb[0].mxu0
      %v924 = vadd.f32 0.0, %v923
      %v925 = vpop.f32.mrb[0].mxu0
      %v926 = vpop.f32.mrb[0].mxu0
      %v927 = vadd.f32 0.0, %v926
      %v928 = vpop.f32.mrb[0].mxu0
      %929 = vmatprep.mubr.bf16.mxu0 0
      %930 = vmatmul.mubr.bf16.gmra.mrb[0].mxu0 %v826
      %v931 = vpop.f32.mrb[0].mxu0
      %v932 = vadd.f32 0.0, %v931
      %v933 = vpop.f32.mrb[0].mxu0
      %v934 = vpop.f32.mrb[0].mxu0
      %v935 = vadd.f32 0.0, %v934
      %v936 = vpop.f32.mrb[0].mxu0
      %937 = vmatprep.mubr.bf16.mxu0 0
      %938 = vmatmul.mubr.bf16.gmra.mrb[0].mxu0 %v829
      %v939 = vpop.f32.mrb[0].mxu0
      %v940 = vadd.f32 0.0, %v939
      %v941 = vpop.f32.mrb[0].mxu0
      %v942 = vpop.f32.mrb[0].mxu0
      %v943 = vadd.f32 0.0, %v942
      %v944 = vpop.f32.mrb[0].mxu0
      %945 = vmatprep.mubr.bf16.mxu0 0
      %946 = vmatmul.mubr.bf16.gmra.mrb[0].mxu0 %v832
      %v947 = vpop.f32.mrb[0].mxu0
      %v948 = vadd.f32 0.0, %v947
      %v949 = vpop.f32.mrb[0].mxu0
      %v950 = vpop.f32.mrb[0].mxu0
      %v951 = vadd.f32 0.0, %v950
      %v952 = vpop.f32.mrb[0].mxu0
      %953 = vmatprep.mubr.bf16.mxu0 0
      %954 = vmatmul.mubr.bf16.gmra.mrb[0].mxu0 %v835
      %v955 = vpop.f32.mrb[0].mxu0
      %v956 = vadd.f32 0.0, %v955
      %v957 = vpop.f32.mrb[0].mxu0
      %v958 = vpop.f32.mrb[0].mxu0
      %v959 = vadd.f32 0.0, %v958
      %v960 = vpop.f32.mrb[0].mxu0
      %961 = vmatprep.mubr.bf16.mxu0 0
      %962 = vmatmul.mubr.bf16.gmra.mrb[0].mxu0 %v838
      %v963 = vpop.f32.mrb[0].mxu0
      %v964 = vadd.f32 0.0, %v963
      %v965 = vpop.f32.mrb[0].mxu0
      %v966 = vpop.f32.mrb[0].mxu0
      %v967 = vadd.f32 0.0, %v966
      %v968 = vpop.f32.mrb[0].mxu0
      %969 = vmatprep.mubr.bf16.mxu0 0
      %970 = vmatmul.mubr.bf16.gmra.mrb[0].mxu0 %v841
      %v971 = vpop.f32.mrb[0].mxu0
      %v972 = vadd.f32 0.0, %v971
      %v973 = vpop.f32.mrb[0].mxu0
      %v974 = vpop.f32.mrb[0].mxu0
      %v975 = vadd.f32 0.0, %v974
      %v976 = vpop.f32.mrb[0].mxu0
      %977 = vmatprep.mubr.bf16.mxu0 0
      %978 = vmatmul.mubr.bf16.gmra.mrb[0].mxu0 %v844
      %v979 = vpop.f32.mrb[0].mxu0
      %v980 = vadd.f32 0.0, %v979
      %v981 = vpop.f32.mrb[0].mxu0
      %v982 = vpop.f32.mrb[0].mxu0
      %v983 = vadd.f32 0.0, %v982
      %v984 = vpop.f32.mrb[0].mxu0
      %985 = vmatprep.mubr.bf16.mxu0 0
      %986 = vmatmul.mubr.bf16.gmra.mrb[0].mxu0 %v847
      %v987 = vpop.f32.mrb[0].mxu0
      %v988 = vadd.f32 0.0, %v987
      %v989 = vpop.f32.mrb[0].mxu0
      %v990 = vpop.f32.mrb[0].mxu0
      %v991 = vadd.f32 0.0, %v990
      %v992 = vpop.f32.mrb[0].mxu0
      %993 = vmatprep.mubr.bf16.mxu0 0
      %994 = vmatmul.mubr.bf16.gmra.mrb[0].mxu0 %v850
      %v995 = vpop.f32.mrb[0].mxu0
      %v996 = vadd.f32 0.0, %v995
      %v997 = vpop.f32.mrb[0].mxu0
      %v998 = vpop.f32.mrb[0].mxu0
      %v999 = vadd.f32 0.0, %v998
      %v1000 = vpop.f32.mrb[0].mxu0
      %1001 = vmatprep.mubr.bf16.mxu0 0
      %1002 = vmatmul.mubr.bf16.gmra.mrb[0].mxu0 %v853
      %v1003 = vpop.f32.mrb[0].mxu0
      %v1004 = vadd.f32 0.0, %v1003
      %v1005 = vpop.f32.mrb[0].mxu0
      %v1006 = vpop.f32.mrb[0].mxu0
      %v1007 = vadd.f32 0.0, %v1006
      %v1008 = vpop.f32.mrb[0].mxu0
      %1009 = vmatprep.mubr.bf16.mxu0 0
      %1010 = vmatmul.mubr.bf16.gmra.mrb[0].mxu0 %v856
      %v1011 = vpop.f32.mrb[0].mxu0
      %v1012 = vadd.f32 0.0, %v1011
      %v1013 = vpop.f32.mrb[0].mxu0
      %v1014 = vpop.f32.mrb[0].mxu0
      %v1015 = vadd.f32 0.0, %v1014
      %v1016 = vpop.f32.mrb[0].mxu0
      %1017 = vmatprep.mubr.bf16.mxu0 0
      %1018 = vmatmul.mubr.bf16.gmra.mrb[0].mxu0 %v859
      %v1019 = vpop.f32.mrb[0].mxu0
      %v1020 = vadd.f32 0.0, %v1019
      %v1021 = vpop.f32.mrb[0].mxu0
      %v1022 = vpop.f32.mrb[0].mxu0
      %v1023 = vadd.f32 0.0, %v1022
      %v1024 = vpop.f32.mrb[0].mxu0
      %1025 = vdwg.mxu0
      %v1058 = vunpack.c.l.b16 %v320
      %v1059 = vunpack.c.l.b16 %v321
      %v1060 = vunpack.c.l.b16 %v323
      %v1061 = vunpack.c.l.b16 %v324
      %v1062 = vunpack.c.l.b16 %v326
      %v1063 = vunpack.c.l.b16 %v327
      %v1064 = vunpack.c.l.b16 %v329
      %v1065 = vunpack.c.l.b16 %v330
      %v1066 = vunpack.c.l.b16 %v332
      %v1067 = vunpack.c.l.b16 %v333
      %v1068 = vunpack.c.l.b16 %v335
      %v1069 = vunpack.c.l.b16 %v336
      %v1070 = vunpack.c.l.b16 %v338
      %v1071 = vunpack.c.l.b16 %v339
      %v1072 = vunpack.c.l.b16 %v341
      %v1073 = vunpack.c.l.b16 %v342
      %v1074 = vunpack.c.l.b16 %v344
      %v1075 = vunpack.c.l.b16 %v345
      %v1076 = vunpack.c.l.b16 %v347
      %v1077 = vunpack.c.l.b16 %v348
      %v1078 = vunpack.c.l.b16 %v350
      %v1079 = vunpack.c.l.b16 %v351
      %v1080 = vunpack.c.l.b16 %v353
      %v1081 = vunpack.c.l.b16 %v354
      %v1082 = vunpack.c.l.b16 %v356
      %v1083 = vunpack.c.l.b16 %v357
      %v1084 = vunpack.c.l.b16 %v359
      %v1085 = vunpack.c.l.b16 %v360
      %v1086 = vunpack.c.l.b16 %v362
      %v1087 = vunpack.c.l.b16 %v363
      %v1088 = vunpack.c.l.b16 %v365
      %v1089 = vunpack.c.l.b16 %v366
      %v1090 = vpack.c.b16 %v1059, %v1058
      %v1091 = vpack.c.b16 %v1061, %v1060
      %v1092 = vpack.c.b16 %v1063, %v1062
      %v1093 = vpack.c.b16 %v1065, %v1064
      %v1094 = vpack.c.b16 %v1067, %v1066
      %v1095 = vpack.c.b16 %v1069, %v1068
      %v1096 = vpack.c.b16 %v1071, %v1070
      %v1097 = vpack.c.b16 %v1073, %v1072
      %v1098 = vpack.c.b16 %v1075, %v1074
      %v1099 = vpack.c.b16 %v1077, %v1076
      %v1100 = vpack.c.b16 %v1079, %v1078
      %v1101 = vpack.c.b16 %v1081, %v1080
      %v1102 = vpack.c.b16 %v1083, %v1082
      %v1103 = vpack.c.b16 %v1085, %v1084
      %v1104 = vpack.c.b16 %v1087, %v1086
      %v1105 = vpack.c.b16 %v1089, %v1088
      %v1107 = vsel %vm812, %v1090, 0
      %v1110 = vsel %vm812, %v1091, 0
      %v1113 = vsel %vm812, %v1092, 0
      %v1116 = vsel %vm812, %v1093, 0
      %v1119 = vsel %vm812, %v1094, 0
      %v1122 = vsel %vm812, %v1095, 0
      %v1125 = vsel %vm812, %v1096, 0
      %v1128 = vsel %vm812, %v1097, 0
      %v1131 = vsel %vm812, %v1098, 0
      %v1134 = vsel %vm812, %v1099, 0
      %v1137 = vsel %vm812, %v1100, 0
      %v1140 = vsel %vm812, %v1101, 0
      %v1143 = vsel %vm812, %v1102, 0
      %v1146 = vsel %vm812, %v1103, 0
      %v1149 = vsel %vm812, %v1104, 0
      %v1152 = vsel %vm812, %v1105, 0
      %v1155 = vsel %vm861, %v374, 0
      %1157 = vmatprep.subr.bf16.mxu0 0
      %1158 = vmatpush1.bf16.msra.mxu0 %v1155
      %1159 = vmatprep.subr.bf16.mxu0 0
      %1160 = vmatpush1.bf16.msra.mxu0 0
      %1161 = vmatprep.subr.bf16.mxu0 0
      %1162 = vmatpush1.bf16.msra.mxu0 0
      %1163 = vmatprep.subr.bf16.mxu0 0
      %1164 = vmatpush1.bf16.msra.mxu0 0
      %1165 = vmatprep.subr.bf16.mxu0 0
      %1166 = vmatpush1.bf16.msra.mxu0 0
      %1167 = vmatprep.subr.bf16.mxu0 0
      %1168 = vmatpush1.bf16.msra.mxu0 0
      %1169 = vmatprep.subr.bf16.mxu0 0
      %1170 = vmatpush1.bf16.msra.mxu0 0
      %1171 = vmatprep.subr.bf16.mxu0 0
      %1172 = vmatpush1.bf16.msra.mxu0 0
      %1173 = vmatprep.subr.bf16.mxu0 0
      %1174 = vmatpush1.bf16.msra.mxu0 0
      %1175 = vmatprep.subr.bf16.mxu0 0
      %1176 = vmatpush1.bf16.msra.mxu0 0
      %1177 = vmatprep.subr.bf16.mxu0 0
      %1178 = vmatpush1.bf16.msra.mxu0 0
      %1179 = vmatprep.subr.bf16.mxu0 0
      %1180 = vmatpush1.bf16.msra.mxu0 0
      %1181 = vmatprep.subr.bf16.mxu0 0
      %1182 = vmatpush1.bf16.msra.mxu0 0
      %1183 = vmatprep.subr.bf16.mxu0 0
      %1184 = vmatpush1.bf16.msra.mxu0 0
      %1185 = vmatprep.subr.bf16.mxu0 0
      %1186 = vmatpush1.bf16.msra.mxu0 0
      %1187 = vmatprep.subr.bf16.mxu0 0
      %1188 = vmatpush1.bf16.msra.mxu0 0
      %1189 = vmatprep.mubr.bf16.mxu0 0
      %1190 = vmatmul.mubr.bf16.gmra.mrb[0].mxu0 %v1107
      %v1191 = vpop.f32.mrb[0].mxu0
      %v1192 = vadd.f32 %v900, %v1191
      %v1193 = vpop.f32.mrb[0].mxu0
      %v1194 = vpop.f32.mrb[0].mxu0
      %v1195 = vadd.f32 %v903, %v1194
      %v1196 = vpop.f32.mrb[0].mxu0
      %1197 = vmatprep.mubr.bf16.mxu0 0
      %1198 = vmatmul.mubr.bf16.gmra.mrb[0].mxu0 %v1110
      %v1199 = vpop.f32.mrb[0].mxu0
      %v1200 = vadd.f32 %v908, %v1199
      %v1201 = vpop.f32.mrb[0].mxu0
      %v1202 = vpop.f32.mrb[0].mxu0
      %v1203 = vadd.f32 %v911, %v1202
      %v1204 = vpop.f32.mrb[0].mxu0
      %1205 = vmatprep.mubr.bf16.mxu0 0
      %1206 = vmatmul.mubr.bf16.gmra.mrb[0].mxu0 %v1113
      %v1207 = vpop.f32.mrb[0].mxu0
      %v1208 = vadd.f32 %v916, %v1207
      %v1209 = vpop.f32.mrb[0].mxu0
      %v1210 = vpop.f32.mrb[0].mxu0
      %v1211 = vadd.f32 %v919, %v1210
      %v1212 = vpop.f32.mrb[0].mxu0
      %1213 = vmatprep.mubr.bf16.mxu0 0
      %1214 = vmatmul.mubr.bf16.gmra.mrb[0].mxu0 %v1116
      %v1215 = vpop.f32.mrb[0].mxu0
      %v1216 = vadd.f32 %v924, %v1215
      %v1217 = vpop.f32.mrb[0].mxu0
      %v1218 = vpop.f32.mrb[0].mxu0
      %v1219 = vadd.f32 %v927, %v1218
      %v1220 = vpop.f32.mrb[0].mxu0
      %1221 = vmatprep.mubr.bf16.mxu0 0
      %1222 = vmatmul.mubr.bf16.gmra.mrb[0].mxu0 %v1119
      %v1223 = vpop.f32.mrb[0].mxu0
      %v1224 = vadd.f32 %v932, %v1223
      %v1225 = vpop.f32.mrb[0].mxu0
      %v1226 = vpop.f32.mrb[0].mxu0
      %v1227 = vadd.f32 %v935, %v1226
      %v1228 = vpop.f32.mrb[0].mxu0
      %1229 = vmatprep.mubr.bf16.mxu0 0
      %1230 = vmatmul.mubr.bf16.gmra.mrb[0].mxu0 %v1122
      %v1231 = vpop.f32.mrb[0].mxu0
      %v1232 = vadd.f32 %v940, %v1231
      %v1233 = vpop.f32.mrb[0].mxu0
      %v1234 = vpop.f32.mrb[0].mxu0
      %v1235 = vadd.f32 %v943, %v1234
      %v1236 = vpop.f32.mrb[0].mxu0
      %1237 = vmatprep.mubr.bf16.mxu0 0
      %1238 = vmatmul.mubr.bf16.gmra.mrb[0].mxu0 %v1125
      %v1239 = vpop.f32.mrb[0].mxu0
      %v1240 = vadd.f32 %v948, %v1239
      %v1241 = vpop.f32.mrb[0].mxu0
      %v1242 = vpop.f32.mrb[0].mxu0
      %v1243 = vadd.f32 %v951, %v1242
      %v1244 = vpop.f32.mrb[0].mxu0
      %1245 = vmatprep.mubr.bf16.mxu0 0
      %1246 = vmatmul.mubr.bf16.gmra.mrb[0].mxu0 %v1128
      %v1247 = vpop.f32.mrb[0].mxu0
      %v1248 = vadd.f32 %v956, %v1247
      %v1249 = vpop.f32.mrb[0].mxu0
      %v1250 = vpop.f32.mrb[0].mxu0
      %v1251 = vadd.f32 %v959, %v1250
      %v1252 = vpop.f32.mrb[0].mxu0
      %1253 = vmatprep.mubr.bf16.mxu0 0
      %1254 = vmatmul.mubr.bf16.gmra.mrb[0].mxu0 %v1131
      %v1255 = vpop.f32.mrb[0].mxu0
      %v1256 = vadd.f32 %v964, %v1255
      %v1257 = vpop.f32.mrb[0].mxu0
      %v1258 = vpop.f32.mrb[0].mxu0
      %v1259 = vadd.f32 %v967, %v1258
      %v1260 = vpop.f32.mrb[0].mxu0
      %1261 = vmatprep.mubr.bf16.mxu0 0
      %1262 = vmatmul.mubr.bf16.gmra.mrb[0].mxu0 %v1134
      %v1263 = vpop.f32.mrb[0].mxu0
      %v1264 = vadd.f32 %v972, %v1263
      %v1265 = vpop.f32.mrb[0].mxu0
      %v1266 = vpop.f32.mrb[0].mxu0
      %v1267 = vadd.f32 %v975, %v1266
      %v1268 = vpop.f32.mrb[0].mxu0
      %1269 = vmatprep.mubr.bf16.mxu0 0
      %1270 = vmatmul.mubr.bf16.gmra.mrb[0].mxu0 %v1137
      %v1271 = vpop.f32.mrb[0].mxu0
      %v1272 = vadd.f32 %v980, %v1271
      %v1273 = vpop.f32.mrb[0].mxu0
      %v1274 = vpop.f32.mrb[0].mxu0
      %v1275 = vadd.f32 %v983, %v1274
      %v1276 = vpop.f32.mrb[0].mxu0
      %1277 = vmatprep.mubr.bf16.mxu0 0
      %1278 = vmatmul.mubr.bf16.gmra.mrb[0].mxu0 %v1140
      %v1279 = vpop.f32.mrb[0].mxu0
      %v1280 = vadd.f32 %v988, %v1279
      %v1281 = vpop.f32.mrb[0].mxu0
      %v1282 = vpop.f32.mrb[0].mxu0
      %v1283 = vadd.f32 %v991, %v1282
      %v1284 = vpop.f32.mrb[0].mxu0
      %1285 = vmatprep.mubr.bf16.mxu0 0
      %1286 = vmatmul.mubr.bf16.gmra.mrb[0].mxu0 %v1143
      %v1287 = vpop.f32.mrb[0].mxu0
      %v1288 = vadd.f32 %v996, %v1287
      %v1289 = vpop.f32.mrb[0].mxu0
      %v1290 = vpop.f32.mrb[0].mxu0
      %v1291 = vadd.f32 %v999, %v1290
      %v1292 = vpop.f32.mrb[0].mxu0
      %1293 = vmatprep.mubr.bf16.mxu0 0
      %1294 = vmatmul.mubr.bf16.gmra.mrb[0].mxu0 %v1146
      %v1295 = vpop.f32.mrb[0].mxu0
      %v1296 = vadd.f32 %v1004, %v1295
      %v1297 = vpop.f32.mrb[0].mxu0
      %v1298 = vpop.f32.mrb[0].mxu0
      %v1299 = vadd.f32 %v1007, %v1298
      %v1300 = vpop.f32.mrb[0].mxu0
      %1301 = vmatprep.mubr.bf16.mxu0 0
      %1302 = vmatmul.mubr.bf16.gmra.mrb[0].mxu0 %v1149
      %v1303 = vpop.f32.mrb[0].mxu0
      %v1304 = vadd.f32 %v1012, %v1303
      %v1305 = vpop.f32.mrb[0].mxu0
      %v1306 = vpop.f32.mrb[0].mxu0
      %v1307 = vadd.f32 %v1015, %v1306
      %v1308 = vpop.f32.mrb[0].mxu0
      %1309 = vmatprep.mubr.bf16.mxu0 0
      %1310 = vmatmul.mubr.bf16.gmra.mrb[0].mxu0 %v1152
      %v1311 = vpop.f32.mrb[0].mxu0
      %v1312 = vadd.f32 %v1020, %v1311
      %v1313 = vpop.f32.mrb[0].mxu0
      %v1314 = vpop.f32.mrb[0].mxu0
      %v1315 = vadd.f32 %v1023, %v1314
      %v1316 = vpop.f32.mrb[0].mxu0
      %1317 = vdwg.mxu0
      %vm1334 = vcmask 1042432
      %vm1335 = vcmask 1046532
      %vm1336 = vmor %vm1334, %vm1335
      %v1337 = vrot.slane %v320, 5
      %v1338 = vrot.slane %v1337, 4
      %v1339 = vrot.slane %v321, 5
      %v1340 = vsel %vm1336, %v1338, %v1339
      %v1341 = vrot.slane %v1339, 4
      %v1342 = vrot.slane %v322, 5
      %v1343 = vsel %vm1336, %v1341, %v1342
      %v1344 = vrot.slane %v323, 5
      %v1345 = vrot.slane %v1344, 4
      %v1346 = vrot.slane %v324, 5
      %v1347 = vsel %vm1336, %v1345, %v1346
      %v1348 = vrot.slane %v1346, 4
      %v1349 = vrot.slane %v325, 5
      %v1350 = vsel %vm1336, %v1348, %v1349
      %v1351 = vrot.slane %v326, 5
      %v1352 = vrot.slane %v1351, 4
      %v1353 = vrot.slane %v327, 5
      %v1354 = vsel %vm1336, %v1352, %v1353
      %v1355 = vrot.slane %v1353, 4
      %v1356 = vrot.slane %v328, 5
      %v1357 = vsel %vm1336, %v1355, %v1356
      %v1358 = vrot.slane %v329, 5
      %v1359 = vrot.slane %v1358, 4
      %v1360 = vrot.slane %v330, 5
      %v1361 = vsel %vm1336, %v1359, %v1360
      %v1362 = vrot.slane %v1360, 4
      %v1363 = vrot.slane %v331, 5
      %v1364 = vsel %vm1336, %v1362, %v1363
      %v1365 = vrot.slane %v332, 5
      %v1366 = vrot.slane %v1365, 4
      %v1367 = vrot.slane %v333, 5
      %v1368 = vsel %vm1336, %v1366, %v1367
      %v1369 = vrot.slane %v1367, 4
      %v1370 = vrot.slane %v334, 5
      %v1371 = vsel %vm1336, %v1369, %v1370
      %v1372 = vrot.slane %v335, 5
      %v1373 = vrot.slane %v1372, 4
      %v1374 = vrot.slane %v336, 5
      %v1375 = vsel %vm1336, %v1373, %v1374
      %v1376 = vrot.slane %v1374, 4
      %v1377 = vrot.slane %v337, 5
      %v1378 = vsel %vm1336, %v1376, %v1377
      %v1379 = vrot.slane %v338, 5
      %v1380 = vrot.slane %v1379, 4
      %v1381 = vrot.slane %v339, 5
      %v1382 = vsel %vm1336, %v1380, %v1381
      %v1383 = vrot.slane %v1381, 4
      %v1384 = vrot.slane %v340, 5
      %v1385 = vsel %vm1336, %v1383, %v1384
      %v1386 = vrot.slane %v341, 5
      %v1387 = vrot.slane %v1386, 4
      %v1388 = vrot.slane %v342, 5
      %v1389 = vsel %vm1336, %v1387, %v1388
      %v1390 = vrot.slane %v1388, 4
      %v1391 = vrot.slane %v343, 5
      %v1392 = vsel %vm1336, %v1390, %v1391
      %v1393 = vrot.slane %v344, 5
      %v1394 = vrot.slane %v1393, 4
      %v1395 = vrot.slane %v345, 5
      %v1396 = vsel %vm1336, %v1394, %v1395
      %v1397 = vrot.slane %v1395, 4
      %v1398 = vrot.slane %v346, 5
      %v1399 = vsel %vm1336, %v1397, %v1398
      %v1400 = vrot.slane %v347, 5
      %v1401 = vrot.slane %v1400, 4
      %v1402 = vrot.slane %v348, 5
      %v1403 = vsel %vm1336, %v1401, %v1402
      %v1404 = vrot.slane %v1402, 4
      %v1405 = vrot.slane %v349, 5
      %v1406 = vsel %vm1336, %v1404, %v1405
      %v1407 = vrot.slane %v350, 5
      %v1408 = vrot.slane %v1407, 4
      %v1409 = vrot.slane %v351, 5
      %v1410 = vsel %vm1336, %v1408, %v1409
      %v1411 = vrot.slane %v1409, 4
      %v1412 = vrot.slane %v352, 5
      %v1413 = vsel %vm1336, %v1411, %v1412
      %v1414 = vrot.slane %v353, 5
      %v1415 = vrot.slane %v1414, 4
      %v1416 = vrot.slane %v354, 5
      %v1417 = vsel %vm1336, %v1415, %v1416
      %v1418 = vrot.slane %v1416, 4
      %v1419 = vrot.slane %v355, 5
      %v1420 = vsel %vm1336, %v1418, %v1419
      %v1421 = vrot.slane %v356, 5
      %v1422 = vrot.slane %v1421, 4
      %v1423 = vrot.slane %v357, 5
      %v1424 = vsel %vm1336, %v1422, %v1423
      %v1425 = vrot.slane %v1423, 4
      %v1426 = vrot.slane %v358, 5
      %v1427 = vsel %vm1336, %v1425, %v1426
      %v1428 = vrot.slane %v359, 5
      %v1429 = vrot.slane %v1428, 4
      %v1430 = vrot.slane %v360, 5
      %v1431 = vsel %vm1336, %v1429, %v1430
      %v1432 = vrot.slane %v1430, 4
      %v1433 = vrot.slane %v361, 5
      %v1434 = vsel %vm1336, %v1432, %v1433
      %v1435 = vrot.slane %v362, 5
      %v1436 = vrot.slane %v1435, 4
      %v1437 = vrot.slane %v363, 5
      %v1438 = vsel %vm1336, %v1436, %v1437
      %v1439 = vrot.slane %v1437, 4
      %v1440 = vrot.slane %v364, 5
      %v1441 = vsel %vm1336, %v1439, %v1440
      %v1442 = vrot.slane %v365, 5
      %v1443 = vrot.slane %v1442, 4
      %v1444 = vrot.slane %v366, 5
      %v1445 = vsel %vm1336, %v1443, %v1444
      %v1446 = vrot.slane %v1444, 4
      %v1447 = vrot.slane %v367, 5
      %v1448 = vsel %vm1336, %v1446, %v1447
      %s1449 = scalar_lea.vmem %s1, 4
      %v1450 = vld [vmem:[%s1449] sm:$0x3]
      %v1451 = vunpack.c.l.b16 %v1340
      %v1452 = vunpack.c.l.b16 %v1343
      %v1453 = vunpack.c.l.b16 %v1347
      %v1454 = vunpack.c.l.b16 %v1350
      %v1455 = vunpack.c.l.b16 %v1354
      %v1456 = vunpack.c.l.b16 %v1357
      %v1457 = vunpack.c.l.b16 %v1361
      %v1458 = vunpack.c.l.b16 %v1364
      %v1459 = vunpack.c.l.b16 %v1368
      %v1460 = vunpack.c.l.b16 %v1371
      %v1461 = vunpack.c.l.b16 %v1375
      %v1462 = vunpack.c.l.b16 %v1378
      %v1463 = vunpack.c.l.b16 %v1382
      %v1464 = vunpack.c.l.b16 %v1385
      %v1465 = vunpack.c.l.b16 %v1389
      %v1466 = vunpack.c.l.b16 %v1392
      %v1467 = vunpack.c.l.b16 %v1396
      %v1468 = vunpack.c.l.b16 %v1399
      %v1469 = vunpack.c.l.b16 %v1403
      %v1470 = vunpack.c.l.b16 %v1406
      %v1471 = vunpack.c.l.b16 %v1410
      %v1472 = vunpack.c.l.b16 %v1413
      %v1473 = vunpack.c.l.b16 %v1417
      %v1474 = vunpack.c.l.b16 %v1420
      %v1475 = vunpack.c.l.b16 %v1424
      %v1476 = vunpack.c.l.b16 %v1427
      %v1477 = vunpack.c.l.b16 %v1431
      %v1478 = vunpack.c.l.b16 %v1434
      %v1479 = vunpack.c.l.b16 %v1438
      %v1480 = vunpack.c.l.b16 %v1441
      %v1481 = vunpack.c.l.b16 %v1445
      %v1482 = vunpack.c.l.b16 %v1448
      %v1483 = vpack.c.b16 %v1452, %v1451
      %v1484 = vpack.c.b16 %v1454, %v1453
      %v1485 = vpack.c.b16 %v1456, %v1455
      %v1486 = vpack.c.b16 %v1458, %v1457
      %v1487 = vpack.c.b16 %v1460, %v1459
      %v1488 = vpack.c.b16 %v1462, %v1461
      %v1489 = vpack.c.b16 %v1464, %v1463
      %v1490 = vpack.c.b16 %v1466, %v1465
      %v1491 = vpack.c.b16 %v1468, %v1467
      %v1492 = vpack.c.b16 %v1470, %v1469
      %v1493 = vpack.c.b16 %v1472, %v1471
      %v1494 = vpack.c.b16 %v1474, %v1473
      %v1495 = vpack.c.b16 %v1476, %v1475
      %v1496 = vpack.c.b16 %v1478, %v1477
      %v1497 = vpack.c.b16 %v1480, %v1479
      %v1498 = vpack.c.b16 %v1482, %v1481
      %v1500 = vsel %vm812, %v1483, 0
      %v1503 = vsel %vm812, %v1484, 0
      %v1506 = vsel %vm812, %v1485, 0
      %v1509 = vsel %vm812, %v1486, 0
      %v1512 = vsel %vm812, %v1487, 0
      %v1515 = vsel %vm812, %v1488, 0
      %v1518 = vsel %vm812, %v1489, 0
      %v1521 = vsel %vm812, %v1490, 0
      %v1524 = vsel %vm812, %v1491, 0
      %v1527 = vsel %vm812, %v1492, 0
      %v1530 = vsel %vm812, %v1493, 0
      %v1533 = vsel %vm812, %v1494, 0
      %v1536 = vsel %vm812, %v1495, 0
      %v1539 = vsel %vm812, %v1496, 0
      %v1542 = vsel %vm812, %v1497, 0
      %v1545 = vsel %vm812, %v1498, 0
      %v1548 = vsel %vm861, %v1450, 0
      %1550 = vmatprep.subr.bf16.mxu0 0
      %1551 = vmatpush1.bf16.msra.mxu0 %v1548
      %1552 = vmatprep.subr.bf16.mxu0 0
      %1553 = vmatpush1.bf16.msra.mxu0 0
      %1554 = vmatprep.subr.bf16.mxu0 0
      %1555 = vmatpush1.bf16.msra.mxu0 0
      %1556 = vmatprep.subr.bf16.mxu0 0
      %1557 = vmatpush1.bf16.msra.mxu0 0
      %1558 = vmatprep.subr.bf16.mxu0 0
      %1559 = vmatpush1.bf16.msra.mxu0 0
      %1560 = vmatprep.subr.bf16.mxu0 0
      %1561 = vmatpush1.bf16.msra.mxu0 0
      %1562 = vmatprep.subr.bf16.mxu0 0
      %1563 = vmatpush1.bf16.msra.mxu0 0
      %1564 = vmatprep.subr.bf16.mxu0 0
      %1565 = vmatpush1.bf16.msra.mxu0 0
      %1566 = vmatprep.subr.bf16.mxu0 0
      %1567 = vmatpush1.bf16.msra.mxu0 0
      %1568 = vmatprep.subr.bf16.mxu0 0
      %1569 = vmatpush1.bf16.msra.mxu0 0
      %1570 = vmatprep.subr.bf16.mxu0 0
      %1571 = vmatpush1.bf16.msra.mxu0 0
      %1572 = vmatprep.subr.bf16.mxu0 0
      %1573 = vmatpush1.bf16.msra.mxu0 0
      %1574 = vmatprep.subr.bf16.mxu0 0
      %1575 = vmatpush1.bf16.msra.mxu0 0
      %1576 = vmatprep.subr.bf16.mxu0 0
      %1577 = vmatpush1.bf16.msra.mxu0 0
      %1578 = vmatprep.subr.bf16.mxu0 0
      %1579 = vmatpush1.bf16.msra.mxu0 0
      %1580 = vmatprep.subr.bf16.mxu0 0
      %1581 = vmatpush1.bf16.msra.mxu0 0
      %1582 = vmatprep.mubr.bf16.mxu0 0
      %1583 = vmatmul.mubr.bf16.gmra.mrb[0].mxu0 %v1500
      %v1584 = vpop.f32.mrb[0].mxu0
      %v1585 = vadd.f32 0.0, %v1584
      %v1586 = vpop.f32.mrb[0].mxu0
      %v1587 = vpop.f32.mrb[0].mxu0
      %v1588 = vadd.f32 0.0, %v1587
      %v1589 = vpop.f32.mrb[0].mxu0
      %1590 = vmatprep.mubr.bf16.mxu0 0
      %1591 = vmatmul.mubr.bf16.gmra.mrb[0].mxu0 %v1503
      %v1592 = vpop.f32.mrb[0].mxu0
      %v1593 = vadd.f32 0.0, %v1592
      %v1594 = vpop.f32.mrb[0].mxu0
      %v1595 = vpop.f32.mrb[0].mxu0
      %v1596 = vadd.f32 0.0, %v1595
      %v1597 = vpop.f32.mrb[0].mxu0
      %1598 = vmatprep.mubr.bf16.mxu0 0
      %1599 = vmatmul.mubr.bf16.gmra.mrb[0].mxu0 %v1506
      %v1600 = vpop.f32.mrb[0].mxu0
      %v1601 = vadd.f32 0.0, %v1600
      %v1602 = vpop.f32.mrb[0].mxu0
      %v1603 = vpop.f32.mrb[0].mxu0
      %v1604 = vadd.f32 0.0, %v1603
      %v1605 = vpop.f32.mrb[0].mxu0
      %1606 = vmatprep.mubr.bf16.mxu0 0
      %1607 = vmatmul.mubr.bf16.gmra.mrb[0].mxu0 %v1509
      %v1608 = vpop.f32.mrb[0].mxu0
      %v1609 = vadd.f32 0.0, %v1608
      %v1610 = vpop.f32.mrb[0].mxu0
      %v1611 = vpop.f32.mrb[0].mxu0
      %v1612 = vadd.f32 0.0, %v1611
      %v1613 = vpop.f32.mrb[0].mxu0
      %1614 = vmatprep.mubr.bf16.mxu0 0
      %1615 = vmatmul.mubr.bf16.gmra.mrb[0].mxu0 %v1512
      %v1616 = vpop.f32.mrb[0].mxu0
      %v1617 = vadd.f32 0.0, %v1616
      %v1618 = vpop.f32.mrb[0].mxu0
      %v1619 = vpop.f32.mrb[0].mxu0
      %v1620 = vadd.f32 0.0, %v1619
      %v1621 = vpop.f32.mrb[0].mxu0
      %1622 = vmatprep.mubr.bf16.mxu0 0
      %1623 = vmatmul.mubr.bf16.gmra.mrb[0].mxu0 %v1515
      %v1624 = vpop.f32.mrb[0].mxu0
      %v1625 = vadd.f32 0.0, %v1624
      %v1626 = vpop.f32.mrb[0].mxu0
      %v1627 = vpop.f32.mrb[0].mxu0
      %v1628 = vadd.f32 0.0, %v1627
      %v1629 = vpop.f32.mrb[0].mxu0
      %1630 = vmatprep.mubr.bf16.mxu0 0
      %1631 = vmatmul.mubr.bf16.gmra.mrb[0].mxu0 %v1518
      %v1632 = vpop.f32.mrb[0].mxu0
      %v1633 = vadd.f32 0.0, %v1632
      %v1634 = vpop.f32.mrb[0].mxu0
      %v1635 = vpop.f32.mrb[0].mxu0
      %v1636 = vadd.f32 0.0, %v1635
      %v1637 = vpop.f32.mrb[0].mxu0
      %1638 = vmatprep.mubr.bf16.mxu0 0
      %1639 = vmatmul.mubr.bf16.gmra.mrb[0].mxu0 %v1521
      %v1640 = vpop.f32.mrb[0].mxu0
      %v1641 = vadd.f32 0.0, %v1640
      %v1642 = vpop.f32.mrb[0].mxu0
      %v1643 = vpop.f32.mrb[0].mxu0
      %v1644 = vadd.f32 0.0, %v1643
      %v1645 = vpop.f32.mrb[0].mxu0
      %1646 = vmatprep.mubr.bf16.mxu0 0
      %1647 = vmatmul.mubr.bf16.gmra.mrb[0].mxu0 %v1524
      %v1648 = vpop.f32.mrb[0].mxu0
      %v1649 = vadd.f32 0.0, %v1648
      %v1650 = vpop.f32.mrb[0].mxu0
      %v1651 = vpop.f32.mrb[0].mxu0
      %v1652 = vadd.f32 0.0, %v1651
      %v1653 = vpop.f32.mrb[0].mxu0
      %1654 = vmatprep.mubr.bf16.mxu0 0
      %1655 = vmatmul.mubr.bf16.gmra.mrb[0].mxu0 %v1527
      %v1656 = vpop.f32.mrb[0].mxu0
      %v1657 = vadd.f32 0.0, %v1656
      %v1658 = vpop.f32.mrb[0].mxu0
      %v1659 = vpop.f32.mrb[0].mxu0
      %v1660 = vadd.f32 0.0, %v1659
      %v1661 = vpop.f32.mrb[0].mxu0
      %1662 = vmatprep.mubr.bf16.mxu0 0
      %1663 = vmatmul.mubr.bf16.gmra.mrb[0].mxu0 %v1530
      %v1664 = vpop.f32.mrb[0].mxu0
      %v1665 = vadd.f32 0.0, %v1664
      %v1666 = vpop.f32.mrb[0].mxu0
      %v1667 = vpop.f32.mrb[0].mxu0
      %v1668 = vadd.f32 0.0, %v1667
      %v1669 = vpop.f32.mrb[0].mxu0
      %1670 = vmatprep.mubr.bf16.mxu0 0
      %1671 = vmatmul.mubr.bf16.gmra.mrb[0].mxu0 %v1533
      %v1672 = vpop.f32.mrb[0].mxu0
      %v1673 = vadd.f32 0.0, %v1672
      %v1674 = vpop.f32.mrb[0].mxu0
      %v1675 = vpop.f32.mrb[0].mxu0
      %v1676 = vadd.f32 0.0, %v1675
      %v1677 = vpop.f32.mrb[0].mxu0
      %1678 = vmatprep.mubr.bf16.mxu0 0
      %1679 = vmatmul.mubr.bf16.gmra.mrb[0].mxu0 %v1536
      %v1680 = vpop.f32.mrb[0].mxu0
      %v1681 = vadd.f32 0.0, %v1680
      %v1682 = vpop.f32.mrb[0].mxu0
      %v1683 = vpop.f32.mrb[0].mxu0
      %v1684 = vadd.f32 0.0, %v1683
      %v1685 = vpop.f32.mrb[0].mxu0
      %1686 = vmatprep.mubr.bf16.mxu0 0
      %1687 = vmatmul.mubr.bf16.gmra.mrb[0].mxu0 %v1539
      %v1688 = vpop.f32.mrb[0].mxu0
      %v1689 = vadd.f32 0.0, %v1688
      %v1690 = vpop.f32.mrb[0].mxu0
      %v1691 = vpop.f32.mrb[0].mxu0
      %v1692 = vadd.f32 0.0, %v1691
      %v1693 = vpop.f32.mrb[0].mxu0
      %1694 = vmatprep.mubr.bf16.mxu0 0
      %1695 = vmatmul.mubr.bf16.gmra.mrb[0].mxu0 %v1542
      %v1696 = vpop.f32.mrb[0].mxu0
      %v1697 = vadd.f32 0.0, %v1696
      %v1698 = vpop.f32.mrb[0].mxu0
      %v1699 = vpop.f32.mrb[0].mxu0
      %v1700 = vadd.f32 0.0, %v1699
      %v1701 = vpop.f32.mrb[0].mxu0
      %1702 = vmatprep.mubr.bf16.mxu0 0
      %1703 = vmatmul.mubr.bf16.gmra.mrb[0].mxu0 %v1545
      %v1704 = vpop.f32.mrb[0].mxu0
      %v1705 = vadd.f32 0.0, %v1704
      %v1706 = vpop.f32.mrb[0].mxu0
      %v1707 = vpop.f32.mrb[0].mxu0
      %v1708 = vadd.f32 0.0, %v1707
      %v1709 = vpop.f32.mrb[0].mxu0
      %1710 = vdwg.mxu0
      %v1711 = vadd.f32 %v1192, %v1585
      %v1712 = vadd.f32 %v1195, %v1588
      %v1713 = vadd.f32 %v1200, %v1593
      %v1714 = vadd.f32 %v1203, %v1596
      %v1715 = vadd.f32 %v1208, %v1601
      %v1716 = vadd.f32 %v1211, %v1604
      %v1717 = vadd.f32 %v1216, %v1609
      %v1718 = vadd.f32 %v1219, %v1612
      %v1719 = vadd.f32 %v1224, %v1617
      %v1720 = vadd.f32 %v1227, %v1620
      %v1721 = vadd.f32 %v1232, %v1625
      %v1722 = vadd.f32 %v1235, %v1628
      %v1723 = vadd.f32 %v1240, %v1633
      %v1724 = vadd.f32 %v1243, %v1636
      %v1725 = vadd.f32 %v1248, %v1641
      %v1726 = vadd.f32 %v1251, %v1644
      %v1727 = vadd.f32 %v1256, %v1649
      %v1728 = vadd.f32 %v1259, %v1652
      %v1729 = vadd.f32 %v1264, %v1657
      %v1730 = vadd.f32 %v1267, %v1660
      %v1731 = vadd.f32 %v1272, %v1665
      %v1732 = vadd.f32 %v1275, %v1668
      %v1733 = vadd.f32 %v1280, %v1673
      %v1734 = vadd.f32 %v1283, %v1676
      %v1735 = vadd.f32 %v1288, %v1681
      %v1736 = vadd.f32 %v1291, %v1684
      %v1737 = vadd.f32 %v1296, %v1689
      %v1738 = vadd.f32 %v1299, %v1692
      %v1739 = vadd.f32 %v1304, %v1697
      %v1740 = vadd.f32 %v1307, %v1700
      %v1741 = vadd.f32 %v1312, %v1705
      %v1742 = vadd.f32 %v1315, %v1708
      %s1743 = scalar_lea.vmem %s1, 6
      %v1744 = vld [vmem:[%s1743] sm:$0x3]
      %v1747 = vunpack.c.l.b16 %v368
      %v1748 = vunpack.c.l.b16 %v369
      %v1749 = vpack.c.b16 %v1748, %v1747
      %v1751 = vsel %vm812, %v1749, 0
      %v1754 = vsel %vm861, %v1744, 0
      %1756 = vmatprep.subr.bf16.mxu0 0
      %1757 = vmatpush1.bf16.msra.mxu0 %v1754
      %1758 = vmatprep.subr.bf16.mxu0 0
      %1759 = vmatpush1.bf16.msra.mxu0 0
      %1760 = vmatprep.subr.bf16.mxu0 0
      %1761 = vmatpush1.bf16.msra.mxu0 0
      %1762 = vmatprep.subr.bf16.mxu0 0
      %1763 = vmatpush1.bf16.msra.mxu0 0
      %1764 = vmatprep.subr.bf16.mxu0 0
      %1765 = vmatpush1.bf16.msra.mxu0 0
      %1766 = vmatprep.subr.bf16.mxu0 0
      %1767 = vmatpush1.bf16.msra.mxu0 0
      %1768 = vmatprep.subr.bf16.mxu0 0
      %1769 = vmatpush1.bf16.msra.mxu0 0
      %1770 = vmatprep.subr.bf16.mxu0 0
      %1771 = vmatpush1.bf16.msra.mxu0 0
      %1772 = vmatprep.subr.bf16.mxu0 0
      %1773 = vmatpush1.bf16.msra.mxu0 0
      %1774 = vmatprep.subr.bf16.mxu0 0
      %1775 = vmatpush1.bf16.msra.mxu0 0
      %1776 = vmatprep.subr.bf16.mxu0 0
      %1777 = vmatpush1.bf16.msra.mxu0 0
      %1778 = vmatprep.subr.bf16.mxu0 0
      %1779 = vmatpush1.bf16.msra.mxu0 0
      %1780 = vmatprep.subr.bf16.mxu0 0
      %1781 = vmatpush1.bf16.msra.mxu0 0
      %1782 = vmatprep.subr.bf16.mxu0 0
      %1783 = vmatpush1.bf16.msra.mxu0 0
      %1784 = vmatprep.subr.bf16.mxu0 0
      %1785 = vmatpush1.bf16.msra.mxu0 0
      %1786 = vmatprep.subr.bf16.mxu0 0
      %1787 = vmatpush1.bf16.msra.mxu0 0
      %1788 = vmatprep.mubr.bf16.mxu0 0
      %1789 = vmatmul.mubr.bf16.gmra.mrb[0].mxu0 %v1110
      %v1790 = vpop.f32.mrb[0].mxu0
      %v1791 = vadd.f32 0.0, %v1790
      %v1792 = vpop.f32.mrb[0].mxu0
      %v1793 = vpop.f32.mrb[0].mxu0
      %v1794 = vadd.f32 0.0, %v1793
      %v1795 = vpop.f32.mrb[0].mxu0
      %1796 = vmatprep.mubr.bf16.mxu0 0
      %1797 = vmatmul.mubr.bf16.gmra.mrb[0].mxu0 %v1113
      %v1798 = vpop.f32.mrb[0].mxu0
      %v1799 = vadd.f32 0.0, %v1798
      %v1800 = vpop.f32.mrb[0].mxu0
      %v1801 = vpop.f32.mrb[0].mxu0
      %v1802 = vadd.f32 0.0, %v1801
      %v1803 = vpop.f32.mrb[0].mxu0
      %1804 = vmatprep.mubr.bf16.mxu0 0
      %1805 = vmatmul.mubr.bf16.gmra.mrb[0].mxu0 %v1116
      %v1806 = vpop.f32.mrb[0].mxu0
      %v1807 = vadd.f32 0.0, %v1806
      %v1808 = vpop.f32.mrb[0].mxu0
      %v1809 = vpop.f32.mrb[0].mxu0
      %v1810 = vadd.f32 0.0, %v1809
      %v1811 = vpop.f32.mrb[0].mxu0
      %1812 = vmatprep.mubr.bf16.mxu0 0
      %1813 = vmatmul.mubr.bf16.gmra.mrb[0].mxu0 %v1119
      %v1814 = vpop.f32.mrb[0].mxu0
      %v1815 = vadd.f32 0.0, %v1814
      %v1816 = vpop.f32.mrb[0].mxu0
      %v1817 = vpop.f32.mrb[0].mxu0
      %v1818 = vadd.f32 0.0, %v1817
      %v1819 = vpop.f32.mrb[0].mxu0
      %1820 = vmatprep.mubr.bf16.mxu0 0
      %1821 = vmatmul.mubr.bf16.gmra.mrb[0].mxu0 %v1122
      %v1822 = vpop.f32.mrb[0].mxu0
      %v1823 = vadd.f32 0.0, %v1822
      %v1824 = vpop.f32.mrb[0].mxu0
      %v1825 = vpop.f32.mrb[0].mxu0
      %v1826 = vadd.f32 0.0, %v1825
      %v1827 = vpop.f32.mrb[0].mxu0
      %1828 = vmatprep.mubr.bf16.mxu0 0
      %1829 = vmatmul.mubr.bf16.gmra.mrb[0].mxu0 %v1125
      %v1830 = vpop.f32.mrb[0].mxu0
      %v1831 = vadd.f32 0.0, %v1830
      %v1832 = vpop.f32.mrb[0].mxu0
      %v1833 = vpop.f32.mrb[0].mxu0
      %v1834 = vadd.f32 0.0, %v1833
      %v1835 = vpop.f32.mrb[0].mxu0
      %1836 = vmatprep.mubr.bf16.mxu0 0
      %1837 = vmatmul.mubr.bf16.gmra.mrb[0].mxu0 %v1128
      %v1838 = vpop.f32.mrb[0].mxu0
      %v1839 = vadd.f32 0.0, %v1838
      %v1840 = vpop.f32.mrb[0].mxu0
      %v1841 = vpop.f32.mrb[0].mxu0
      %v1842 = vadd.f32 0.0, %v1841
      %v1843 = vpop.f32.mrb[0].mxu0
      %1844 = vmatprep.mubr.bf16.mxu0 0
      %1845 = vmatmul.mubr.bf16.gmra.mrb[0].mxu0 %v1131
      %v1846 = vpop.f32.mrb[0].mxu0
      %v1847 = vadd.f32 0.0, %v1846
      %v1848 = vpop.f32.mrb[0].mxu0
      %v1849 = vpop.f32.mrb[0].mxu0
      %v1850 = vadd.f32 0.0, %v1849
      %v1851 = vpop.f32.mrb[0].mxu0
      %1852 = vmatprep.mubr.bf16.mxu0 0
      %1853 = vmatmul.mubr.bf16.gmra.mrb[0].mxu0 %v1134
      %v1854 = vpop.f32.mrb[0].mxu0
      %v1855 = vadd.f32 0.0, %v1854
      %v1856 = vpop.f32.mrb[0].mxu0
      %v1857 = vpop.f32.mrb[0].mxu0
      %v1858 = vadd.f32 0.0, %v1857
      %v1859 = vpop.f32.mrb[0].mxu0
      %1860 = vmatprep.mubr.bf16.mxu0 0
      %1861 = vmatmul.mubr.bf16.gmra.mrb[0].mxu0 %v1137
      %v1862 = vpop.f32.mrb[0].mxu0
      %v1863 = vadd.f32 0.0, %v1862
      %v1864 = vpop.f32.mrb[0].mxu0
      %v1865 = vpop.f32.mrb[0].mxu0
      %v1866 = vadd.f32 0.0, %v1865
      %v1867 = vpop.f32.mrb[0].mxu0
      %1868 = vmatprep.mubr.bf16.mxu0 0
      %1869 = vmatmul.mubr.bf16.gmra.mrb[0].mxu0 %v1140
      %v1870 = vpop.f32.mrb[0].mxu0
      %v1871 = vadd.f32 0.0, %v1870
      %v1872 = vpop.f32.mrb[0].mxu0
      %v1873 = vpop.f32.mrb[0].mxu0
      %v1874 = vadd.f32 0.0, %v1873
      %v1875 = vpop.f32.mrb[0].mxu0
      %1876 = vmatprep.mubr.bf16.mxu0 0
      %1877 = vmatmul.mubr.bf16.gmra.mrb[0].mxu0 %v1143
      %v1878 = vpop.f32.mrb[0].mxu0
      %v1879 = vadd.f32 0.0, %v1878
      %v1880 = vpop.f32.mrb[0].mxu0
      %v1881 = vpop.f32.mrb[0].mxu0
      %v1882 = vadd.f32 0.0, %v1881
      %v1883 = vpop.f32.mrb[0].mxu0
      %1884 = vmatprep.mubr.bf16.mxu0 0
      %1885 = vmatmul.mubr.bf16.gmra.mrb[0].mxu0 %v1146
      %v1886 = vpop.f32.mrb[0].mxu0
      %v1887 = vadd.f32 0.0, %v1886
      %v1888 = vpop.f32.mrb[0].mxu0
      %v1889 = vpop.f32.mrb[0].mxu0
      %v1890 = vadd.f32 0.0, %v1889
      %v1891 = vpop.f32.mrb[0].mxu0
      %1892 = vmatprep.mubr.bf16.mxu0 0
      %1893 = vmatmul.mubr.bf16.gmra.mrb[0].mxu0 %v1149
      %v1894 = vpop.f32.mrb[0].mxu0
      %v1895 = vadd.f32 0.0, %v1894
      %v1896 = vpop.f32.mrb[0].mxu0
      %v1897 = vpop.f32.mrb[0].mxu0
      %v1898 = vadd.f32 0.0, %v1897
      %v1899 = vpop.f32.mrb[0].mxu0
      %1900 = vmatprep.mubr.bf16.mxu0 0
      %1901 = vmatmul.mubr.bf16.gmra.mrb[0].mxu0 %v1152
      %v1902 = vpop.f32.mrb[0].mxu0
      %v1903 = vadd.f32 0.0, %v1902
      %v1904 = vpop.f32.mrb[0].mxu0
      %v1905 = vpop.f32.mrb[0].mxu0
      %v1906 = vadd.f32 0.0, %v1905
      %v1907 = vpop.f32.mrb[0].mxu0
      %1908 = vmatprep.mubr.bf16.mxu0 0
      %1909 = vmatmul.mubr.bf16.gmra.mrb[0].mxu0 %v1751
      %v1910 = vpop.f32.mrb[0].mxu0
      %v1911 = vadd.f32 0.0, %v1910
      %v1912 = vpop.f32.mrb[0].mxu0
      %v1913 = vpop.f32.mrb[0].mxu0
      %v1914 = vadd.f32 0.0, %v1913
      %v1915 = vpop.f32.mrb[0].mxu0
      %1916 = vdwg.mxu0
      %v1917 = vadd.f32 %v1711, %v1791
      %v1918 = vadd.f32 %v1712, %v1794
      %v1919 = vadd.f32 %v1713, %v1799
      %v1920 = vadd.f32 %v1714, %v1802
      %v1921 = vadd.f32 %v1715, %v1807
      %v1922 = vadd.f32 %v1716, %v1810
      %v1923 = vadd.f32 %v1717, %v1815
      %v1924 = vadd.f32 %v1718, %v1818
      %v1925 = vadd.f32 %v1719, %v1823
      %v1926 = vadd.f32 %v1720, %v1826
      %v1927 = vadd.f32 %v1721, %v1831
      %v1928 = vadd.f32 %v1722, %v1834
      %v1929 = vadd.f32 %v1723, %v1839
      %v1930 = vadd.f32 %v1724, %v1842
      %v1931 = vadd.f32 %v1725, %v1847
      %v1932 = vadd.f32 %v1726, %v1850
      %v1933 = vadd.f32 %v1727, %v1855
      %v1934 = vadd.f32 %v1728, %v1858
      %v1935 = vadd.f32 %v1729, %v1863
      %v1936 = vadd.f32 %v1730, %v1866
      %v1937 = vadd.f32 %v1731, %v1871
      %v1938 = vadd.f32 %v1732, %v1874
      %v1939 = vadd.f32 %v1733, %v1879
      %v1940 = vadd.f32 %v1734, %v1882
      %v1941 = vadd.f32 %v1735, %v1887
      %v1942 = vadd.f32 %v1736, %v1890
      %v1943 = vadd.f32 %v1737, %v1895
      %v1944 = vadd.f32 %v1738, %v1898
      %v1945 = vadd.f32 %v1739, %v1903
      %v1946 = vadd.f32 %v1740, %v1906
      %v1947 = vadd.f32 %v1741, %v1911
      %v1948 = vadd.f32 %v1742, %v1914
      %v1950 = vshrl.u32 %v368, 16
      %v1952 = vrot.slane %v1950, 4
      %v1953 = vshll.u32 %v368, 16
      %v1955 = vrot.slane %v1953, 5
      %v1956 = vor.u32 %v1952, %v1955
      %v1957 = vrot.slane %v1956, 4
      %v1959 = vshll.u32 %v369, 16
      %v1961 = vrot.slane %v1959, 5
      %v1962 = vsel %vm377, %v1957, %v1961
      %v1963 = vshrl.u32 %v369, 16
      %v1965 = vrot.slane %v1963, 4
      %v1966 = vor.u32 %v1965, %v1961
      %v1967 = vrot.slane %v1966, 4
      %v1969 = vshll.u32 %v370, 16
      %v1971 = vrot.slane %v1969, 5
      %v1972 = vsel %vm377, %v1967, %v1971
      %s1973 = scalar_lea.vmem %s1, 8
      %v1974 = vld [vmem:[%s1973] sm:$0x3]
      %v1975 = vunpack.c.l.b16 %v1962
      %v1976 = vunpack.c.l.b16 %v1972
      %v1977 = vpack.c.b16 %v1976, %v1975
      %v1979 = vsel %vm812, %v1977, 0
      %v1982 = vsel %vm861, %v1974, 0
      %1984 = vmatprep.subr.bf16.mxu0 0
      %1985 = vmatpush1.bf16.msra.mxu0 %v1982
      %1986 = vmatprep.subr.bf16.mxu0 0
      %1987 = vmatpush1.bf16.msra.mxu0 0
      %1988 = vmatprep.subr.bf16.mxu0 0
      %1989 = vmatpush1.bf16.msra.mxu0 0
      %1990 = vmatprep.subr.bf16.mxu0 0
      %1991 = vmatpush1.bf16.msra.mxu0 0
      %1992 = vmatprep.subr.bf16.mxu0 0
      %1993 = vmatpush1.bf16.msra.mxu0 0
      %1994 = vmatprep.subr.bf16.mxu0 0
      %1995 = vmatpush1.bf16.msra.mxu0 0
      %1996 = vmatprep.subr.bf16.mxu0 0
      %1997 = vmatpush1.bf16.msra.mxu0 0
      %1998 = vmatprep.subr.bf16.mxu0 0
      %1999 = vmatpush1.bf16.msra.mxu0 0
      %2000 = vmatprep.subr.bf16.mxu0 0
      %2001 = vmatpush1.bf16.msra.mxu0 0
      %2002 = vmatprep.subr.bf16.mxu0 0
      %2003 = vmatpush1.bf16.msra.mxu0 0
      %2004 = vmatprep.subr.bf16.mxu0 0
      %2005 = vmatpush1.bf16.msra.mxu0 0
      %2006 = vmatprep.subr.bf16.mxu0 0
      %2007 = vmatpush1.bf16.msra.mxu0 0
      %2008 = vmatprep.subr.bf16.mxu0 0
      %2009 = vmatpush1.bf16.msra.mxu0 0
      %2010 = vmatprep.subr.bf16.mxu0 0
      %2011 = vmatpush1.bf16.msra.mxu0 0
      %2012 = vmatprep.subr.bf16.mxu0 0
      %2013 = vmatpush1.bf16.msra.mxu0 0
      %2014 = vmatprep.subr.bf16.mxu0 0
      %2015 = vmatpush1.bf16.msra.mxu0 0
      %2016 = vmatprep.mubr.bf16.mxu0 0
      %2017 = vmatmul.mubr.bf16.gmra.mrb[0].mxu0 %v817
      %v2018 = vpop.f32.mrb[0].mxu0
      %v2019 = vadd.f32 0.0, %v2018
      %v2020 = vpop.f32.mrb[0].mxu0
      %v2021 = vpop.f32.mrb[0].mxu0
      %v2022 = vadd.f32 0.0, %v2021
      %v2023 = vpop.f32.mrb[0].mxu0
      %2024 = vmatprep.mubr.bf16.mxu0 0
      %2025 = vmatmul.mubr.bf16.gmra.mrb[0].mxu0 %v820
      %v2026 = vpop.f32.mrb[0].mxu0
      %v2027 = vadd.f32 0.0, %v2026
      %v2028 = vpop.f32.mrb[0].mxu0
      %v2029 = vpop.f32.mrb[0].mxu0
      %v2030 = vadd.f32 0.0, %v2029
      %v2031 = vpop.f32.mrb[0].mxu0
      %2032 = vmatprep.mubr.bf16.mxu0 0
      %2033 = vmatmul.mubr.bf16.gmra.mrb[0].mxu0 %v823
      %v2034 = vpop.f32.mrb[0].mxu0
      %v2035 = vadd.f32 0.0, %v2034
      %v2036 = vpop.f32.mrb[0].mxu0
      %v2037 = vpop.f32.mrb[0].mxu0
      %v2038 = vadd.f32 0.0, %v2037
      %v2039 = vpop.f32.mrb[0].mxu0
      %2040 = vmatprep.mubr.bf16.mxu0 0
      %2041 = vmatmul.mubr.bf16.gmra.mrb[0].mxu0 %v826
      %v2042 = vpop.f32.mrb[0].mxu0
      %v2043 = vadd.f32 0.0, %v2042
      %v2044 = vpop.f32.mrb[0].mxu0
      %v2045 = vpop.f32.mrb[0].mxu0
      %v2046 = vadd.f32 0.0, %v2045
      %v2047 = vpop.f32.mrb[0].mxu0
      %2048 = vmatprep.mubr.bf16.mxu0 0
      %2049 = vmatmul.mubr.bf16.gmra.mrb[0].mxu0 %v829
      %v2050 = vpop.f32.mrb[0].mxu0
      %v2051 = vadd.f32 0.0, %v2050
      %v2052 = vpop.f32.mrb[0].mxu0
      %v2053 = vpop.f32.mrb[0].mxu0
      %v2054 = vadd.f32 0.0, %v2053
      %v2055 = vpop.f32.mrb[0].mxu0
      %2056 = vmatprep.mubr.bf16.mxu0 0
      %2057 = vmatmul.mubr.bf16.gmra.mrb[0].mxu0 %v832
      %v2058 = vpop.f32.mrb[0].mxu0
      %v2059 = vadd.f32 0.0, %v2058
      %v2060 = vpop.f32.mrb[0].mxu0
      %v2061 = vpop.f32.mrb[0].mxu0
      %v2062 = vadd.f32 0.0, %v2061
      %v2063 = vpop.f32.mrb[0].mxu0
      %2064 = vmatprep.mubr.bf16.mxu0 0
      %2065 = vmatmul.mubr.bf16.gmra.mrb[0].mxu0 %v835
      %v2066 = vpop.f32.mrb[0].mxu0
      %v2067 = vadd.f32 0.0, %v2066
      %v2068 = vpop.f32.mrb[0].mxu0
      %v2069 = vpop.f32.mrb[0].mxu0
      %v2070 = vadd.f32 0.0, %v2069
      %v2071 = vpop.f32.mrb[0].mxu0
      %2072 = vmatprep.mubr.bf16.mxu0 0
      %2073 = vmatmul.mubr.bf16.gmra.mrb[0].mxu0 %v838
      %v2074 = vpop.f32.mrb[0].mxu0
      %v2075 = vadd.f32 0.0, %v2074
      %v2076 = vpop.f32.mrb[0].mxu0
      %v2077 = vpop.f32.mrb[0].mxu0
      %v2078 = vadd.f32 0.0, %v2077
      %v2079 = vpop.f32.mrb[0].mxu0
      %2080 = vmatprep.mubr.bf16.mxu0 0
      %2081 = vmatmul.mubr.bf16.gmra.mrb[0].mxu0 %v841
      %v2082 = vpop.f32.mrb[0].mxu0
      %v2083 = vadd.f32 0.0, %v2082
      %v2084 = vpop.f32.mrb[0].mxu0
      %v2085 = vpop.f32.mrb[0].mxu0
      %v2086 = vadd.f32 0.0, %v2085
      %v2087 = vpop.f32.mrb[0].mxu0
      %2088 = vmatprep.mubr.bf16.mxu0 0
      %2089 = vmatmul.mubr.bf16.gmra.mrb[0].mxu0 %v844
      %v2090 = vpop.f32.mrb[0].mxu0
      %v2091 = vadd.f32 0.0, %v2090
      %v2092 = vpop.f32.mrb[0].mxu0
      %v2093 = vpop.f32.mrb[0].mxu0
      %v2094 = vadd.f32 0.0, %v2093
      %v2095 = vpop.f32.mrb[0].mxu0
      %2096 = vmatprep.mubr.bf16.mxu0 0
      %2097 = vmatmul.mubr.bf16.gmra.mrb[0].mxu0 %v847
      %v2098 = vpop.f32.mrb[0].mxu0
      %v2099 = vadd.f32 0.0, %v2098
      %v2100 = vpop.f32.mrb[0].mxu0
      %v2101 = vpop.f32.mrb[0].mxu0
      %v2102 = vadd.f32 0.0, %v2101
      %v2103 = vpop.f32.mrb[0].mxu0
      %2104 = vmatprep.mubr.bf16.mxu0 0
      %2105 = vmatmul.mubr.bf16.gmra.mrb[0].mxu0 %v850
      %v2106 = vpop.f32.mrb[0].mxu0
      %v2107 = vadd.f32 0.0, %v2106
      %v2108 = vpop.f32.mrb[0].mxu0
      %v2109 = vpop.f32.mrb[0].mxu0
      %v2110 = vadd.f32 0.0, %v2109
      %v2111 = vpop.f32.mrb[0].mxu0
      %2112 = vmatprep.mubr.bf16.mxu0 0
      %2113 = vmatmul.mubr.bf16.gmra.mrb[0].mxu0 %v853
      %v2114 = vpop.f32.mrb[0].mxu0
      %v2115 = vadd.f32 0.0, %v2114
      %v2116 = vpop.f32.mrb[0].mxu0
      %v2117 = vpop.f32.mrb[0].mxu0
      %v2118 = vadd.f32 0.0, %v2117
      %v2119 = vpop.f32.mrb[0].mxu0
      %2120 = vmatprep.mubr.bf16.mxu0 0
      %2121 = vmatmul.mubr.bf16.gmra.mrb[0].mxu0 %v856
      %v2122 = vpop.f32.mrb[0].mxu0
      %v2123 = vadd.f32 0.0, %v2122
      %v2124 = vpop.f32.mrb[0].mxu0
      %v2125 = vpop.f32.mrb[0].mxu0
      %v2126 = vadd.f32 0.0, %v2125
      %v2127 = vpop.f32.mrb[0].mxu0
      %2128 = vmatprep.mubr.bf16.mxu0 0
      %2129 = vmatmul.mubr.bf16.gmra.mrb[0].mxu0 %v859
      %v2130 = vpop.f32.mrb[0].mxu0
      %v2131 = vadd.f32 0.0, %v2130
      %v2132 = vpop.f32.mrb[0].mxu0
      %v2133 = vpop.f32.mrb[0].mxu0
      %v2134 = vadd.f32 0.0, %v2133
      %v2135 = vpop.f32.mrb[0].mxu0
      %2136 = vmatprep.mubr.bf16.mxu0 0
      %2137 = vmatmul.mubr.bf16.gmra.mrb[0].mxu0 %v1979
      %v2138 = vpop.f32.mrb[0].mxu0
      %v2139 = vadd.f32 0.0, %v2138
      %v2140 = vpop.f32.mrb[0].mxu0
      %v2141 = vpop.f32.mrb[0].mxu0
      %v2142 = vadd.f32 0.0, %v2141
      %v2143 = vpop.f32.mrb[0].mxu0
      %2144 = vdwg.mxu0
      %v2145 = vadd.f32 %v1917, %v2019
      %v2146 = vadd.f32 %v1918, %v2022
      %v2147 = vadd.f32 %v1919, %v2027
      %v2148 = vadd.f32 %v1920, %v2030
      %v2149 = vadd.f32 %v1921, %v2035
      %v2150 = vadd.f32 %v1922, %v2038
      %v2151 = vadd.f32 %v1923, %v2043
      %v2152 = vadd.f32 %v1924, %v2046
      %v2153 = vadd.f32 %v1925, %v2051
      %v2154 = vadd.f32 %v1926, %v2054
      %v2155 = vadd.f32 %v1927, %v2059
      %v2156 = vadd.f32 %v1928, %v2062
      %v2157 = vadd.f32 %v1929, %v2067
      %v2158 = vadd.f32 %v1930, %v2070
      %v2159 = vadd.f32 %v1931, %v2075
      %v2160 = vadd.f32 %v1932, %v2078
      %v2161 = vadd.f32 %v1933, %v2083
      %v2162 = vadd.f32 %v1934, %v2086
      %v2163 = vadd.f32 %v1935, %v2091
      %v2164 = vadd.f32 %v1936, %v2094
      %v2165 = vadd.f32 %v1937, %v2099
      %v2166 = vadd.f32 %v1938, %v2102
      %v2167 = vadd.f32 %v1939, %v2107
      %v2168 = vadd.f32 %v1940, %v2110
      %v2169 = vadd.f32 %v1941, %v2115
      %v2170 = vadd.f32 %v1942, %v2118
      %v2171 = vadd.f32 %v1943, %v2123
      %v2172 = vadd.f32 %v1944, %v2126
      %v2173 = vadd.f32 %v1945, %v2131
      %v2174 = vadd.f32 %v1946, %v2134
      %v2175 = vadd.f32 %v1947, %v2139
      %v2176 = vadd.f32 %v1948, %v2142
      %v2178 = vrot.slane %v368, 5
      %v2179 = vrot.slane %v2178, 4
      %v2180 = vrot.slane %v369, 5
      %v2181 = vsel %vm1336, %v2179, %v2180
      %v2182 = vrot.slane %v2180, 4
      %v2183 = vrot.slane %v370, 5
      %v2184 = vsel %vm1336, %v2182, %v2183
      %s2185 = scalar_lea.vmem %s1, 10
      %v2186 = vld [vmem:[%s2185] sm:$0x3]
      %v2187 = vunpack.c.l.b16 %v2181
      %v2188 = vunpack.c.l.b16 %v2184
      %v2189 = vpack.c.b16 %v2188, %v2187
      %v2191 = vsel %vm812, %v2189, 0
      %v2194 = vsel %vm861, %v2186, 0
      %2196 = vmatprep.subr.bf16.mxu0 0
      %2197 = vmatpush1.bf16.msra.mxu0 %v2194
      %2198 = vmatprep.subr.bf16.mxu0 0
      %2199 = vmatpush1.bf16.msra.mxu0 0
      %2200 = vmatprep.subr.bf16.mxu0 0
      %2201 = vmatpush1.bf16.msra.mxu0 0
      %2202 = vmatprep.subr.bf16.mxu0 0
      %2203 = vmatpush1.bf16.msra.mxu0 0
      %2204 = vmatprep.subr.bf16.mxu0 0
      %2205 = vmatpush1.bf16.msra.mxu0 0
      %2206 = vmatprep.subr.bf16.mxu0 0
      %2207 = vmatpush1.bf16.msra.mxu0 0
      %2208 = vmatprep.subr.bf16.mxu0 0
      %2209 = vmatpush1.bf16.msra.mxu0 0
      %2210 = vmatprep.subr.bf16.mxu0 0
      %2211 = vmatpush1.bf16.msra.mxu0 0
      %2212 = vmatprep.subr.bf16.mxu0 0
      %2213 = vmatpush1.bf16.msra.mxu0 0
      %2214 = vmatprep.subr.bf16.mxu0 0
      %2215 = vmatpush1.bf16.msra.mxu0 0
      %2216 = vmatprep.subr.bf16.mxu0 0
      %2217 = vmatpush1.bf16.msra.mxu0 0
      %2218 = vmatprep.subr.bf16.mxu0 0
      %2219 = vmatpush1.bf16.msra.mxu0 0
      %2220 = vmatprep.subr.bf16.mxu0 0
      %2221 = vmatpush1.bf16.msra.mxu0 0
      %2222 = vmatprep.subr.bf16.mxu0 0
      %2223 = vmatpush1.bf16.msra.mxu0 0
      %2224 = vmatprep.subr.bf16.mxu0 0
      %2225 = vmatpush1.bf16.msra.mxu0 0
      %2226 = vmatprep.subr.bf16.mxu0 0
      %2227 = vmatpush1.bf16.msra.mxu0 0
      %2228 = vmatprep.mubr.bf16.mxu0 0
      %2229 = vmatmul.mubr.bf16.gmra.mrb[0].mxu0 %v1503
      %v2230 = vpop.f32.mrb[0].mxu0
      %v2231 = vadd.f32 0.0, %v2230
      %v2232 = vpop.f32.mrb[0].mxu0
      %v2233 = vpop.f32.mrb[0].mxu0
      %v2234 = vadd.f32 0.0, %v2233
      %v2235 = vpop.f32.mrb[0].mxu0
      %2236 = vmatprep.mubr.bf16.mxu0 0
      %2237 = vmatmul.mubr.bf16.gmra.mrb[0].mxu0 %v1506
      %v2238 = vpop.f32.mrb[0].mxu0
      %v2239 = vadd.f32 0.0, %v2238
      %v2240 = vpop.f32.mrb[0].mxu0
      %v2241 = vpop.f32.mrb[0].mxu0
      %v2242 = vadd.f32 0.0, %v2241
      %v2243 = vpop.f32.mrb[0].mxu0
      %2244 = vmatprep.mubr.bf16.mxu0 0
      %2245 = vmatmul.mubr.bf16.gmra.mrb[0].mxu0 %v1509
      %v2246 = vpop.f32.mrb[0].mxu0
      %v2247 = vadd.f32 0.0, %v2246
      %v2248 = vpop.f32.mrb[0].mxu0
      %v2249 = vpop.f32.mrb[0].mxu0
      %v2250 = vadd.f32 0.0, %v2249
      %v2251 = vpop.f32.mrb[0].mxu0
      %2252 = vmatprep.mubr.bf16.mxu0 0
      %2253 = vmatmul.mubr.bf16.gmra.mrb[0].mxu0 %v1512
      %v2254 = vpop.f32.mrb[0].mxu0
      %v2255 = vadd.f32 0.0, %v2254
      %v2256 = vpop.f32.mrb[0].mxu0
      %v2257 = vpop.f32.mrb[0].mxu0
      %v2258 = vadd.f32 0.0, %v2257
      %v2259 = vpop.f32.mrb[0].mxu0
      %2260 = vmatprep.mubr.bf16.mxu0 0
      %2261 = vmatmul.mubr.bf16.gmra.mrb[0].mxu0 %v1515
      %v2262 = vpop.f32.mrb[0].mxu0
      %v2263 = vadd.f32 0.0, %v2262
      %v2264 = vpop.f32.mrb[0].mxu0
      %v2265 = vpop.f32.mrb[0].mxu0
      %v2266 = vadd.f32 0.0, %v2265
      %v2267 = vpop.f32.mrb[0].mxu0
      %2268 = vmatprep.mubr.bf16.mxu0 0
      %2269 = vmatmul.mubr.bf16.gmra.mrb[0].mxu0 %v1518
      %v2270 = vpop.f32.mrb[0].mxu0
      %v2271 = vadd.f32 0.0, %v2270
      %v2272 = vpop.f32.mrb[0].mxu0
      %v2273 = vpop.f32.mrb[0].mxu0
      %v2274 = vadd.f32 0.0, %v2273
      %v2275 = vpop.f32.mrb[0].mxu0
      %2276 = vmatprep.mubr.bf16.mxu0 0
      %2277 = vmatmul.mubr.bf16.gmra.mrb[0].mxu0 %v1521
      %v2278 = vpop.f32.mrb[0].mxu0
      %v2279 = vadd.f32 0.0, %v2278
      %v2280 = vpop.f32.mrb[0].mxu0
      %v2281 = vpop.f32.mrb[0].mxu0
      %v2282 = vadd.f32 0.0, %v2281
      %v2283 = vpop.f32.mrb[0].mxu0
      %2284 = vmatprep.mubr.bf16.mxu0 0
      %2285 = vmatmul.mubr.bf16.gmra.mrb[0].mxu0 %v1524
      %v2286 = vpop.f32.mrb[0].mxu0
      %v2287 = vadd.f32 0.0, %v2286
      %v2288 = vpop.f32.mrb[0].mxu0
      %v2289 = vpop.f32.mrb[0].mxu0
      %v2290 = vadd.f32 0.0, %v2289
      %v2291 = vpop.f32.mrb[0].mxu0
      %2292 = vmatprep.mubr.bf16.mxu0 0
      %2293 = vmatmul.mubr.bf16.gmra.mrb[0].mxu0 %v1527
      %v2294 = vpop.f32.mrb[0].mxu0
      %v2295 = vadd.f32 0.0, %v2294
      %v2296 = vpop.f32.mrb[0].mxu0
      %v2297 = vpop.f32.mrb[0].mxu0
      %v2298 = vadd.f32 0.0, %v2297
      %v2299 = vpop.f32.mrb[0].mxu0
      %2300 = vmatprep.mubr.bf16.mxu0 0
      %2301 = vmatmul.mubr.bf16.gmra.mrb[0].mxu0 %v1530
      %v2302 = vpop.f32.mrb[0].mxu0
      %v2303 = vadd.f32 0.0, %v2302
      %v2304 = vpop.f32.mrb[0].mxu0
      %v2305 = vpop.f32.mrb[0].mxu0
      %v2306 = vadd.f32 0.0, %v2305
      %v2307 = vpop.f32.mrb[0].mxu0
      %2308 = vmatprep.mubr.bf16.mxu0 0
      %2309 = vmatmul.mubr.bf16.gmra.mrb[0].mxu0 %v1533
      %v2310 = vpop.f32.mrb[0].mxu0
      %v2311 = vadd.f32 0.0, %v2310
      %v2312 = vpop.f32.mrb[0].mxu0
      %v2313 = vpop.f32.mrb[0].mxu0
      %v2314 = vadd.f32 0.0, %v2313
      %v2315 = vpop.f32.mrb[0].mxu0
      %2316 = vmatprep.mubr.bf16.mxu0 0
      %2317 = vmatmul.mubr.bf16.gmra.mrb[0].mxu0 %v1536
      %v2318 = vpop.f32.mrb[0].mxu0
      %v2319 = vadd.f32 0.0, %v2318
      %v2320 = vpop.f32.mrb[0].mxu0
      %v2321 = vpop.f32.mrb[0].mxu0
      %v2322 = vadd.f32 0.0, %v2321
      %v2323 = vpop.f32.mrb[0].mxu0
      %2324 = vmatprep.mubr.bf16.mxu0 0
      %2325 = vmatmul.mubr.bf16.gmra.mrb[0].mxu0 %v1539
      %v2326 = vpop.f32.mrb[0].mxu0
      %v2327 = vadd.f32 0.0, %v2326
      %v2328 = vpop.f32.mrb[0].mxu0
      %v2329 = vpop.f32.mrb[0].mxu0
      %v2330 = vadd.f32 0.0, %v2329
      %v2331 = vpop.f32.mrb[0].mxu0
      %2332 = vmatprep.mubr.bf16.mxu0 0
      %2333 = vmatmul.mubr.bf16.gmra.mrb[0].mxu0 %v1542
      %v2334 = vpop.f32.mrb[0].mxu0
      %v2335 = vadd.f32 0.0, %v2334
      %v2336 = vpop.f32.mrb[0].mxu0
      %v2337 = vpop.f32.mrb[0].mxu0
      %v2338 = vadd.f32 0.0, %v2337
      %v2339 = vpop.f32.mrb[0].mxu0
      %2340 = vmatprep.mubr.bf16.mxu0 0
      %2341 = vmatmul.mubr.bf16.gmra.mrb[0].mxu0 %v1545
      %v2342 = vpop.f32.mrb[0].mxu0
      %v2343 = vadd.f32 0.0, %v2342
      %v2344 = vpop.f32.mrb[0].mxu0
      %v2345 = vpop.f32.mrb[0].mxu0
      %v2346 = vadd.f32 0.0, %v2345
      %v2347 = vpop.f32.mrb[0].mxu0
      %2348 = vmatprep.mubr.bf16.mxu0 0
      %2349 = vmatmul.mubr.bf16.gmra.mrb[0].mxu0 %v2191
      %v2350 = vpop.f32.mrb[0].mxu0
      %v2351 = vadd.f32 0.0, %v2350
      %v2352 = vpop.f32.mrb[0].mxu0
      %v2353 = vpop.f32.mrb[0].mxu0
      %v2354 = vadd.f32 0.0, %v2353
      %v2355 = vpop.f32.mrb[0].mxu0
      %2356 = vdwg.mxu0
      %v2357 = vadd.f32 %v2145, %v2231
      %v2358 = vadd.f32 %v2146, %v2234
      %v2359 = vadd.f32 %v2147, %v2239
      %v2360 = vadd.f32 %v2148, %v2242
      %v2361 = vadd.f32 %v2149, %v2247
      %v2362 = vadd.f32 %v2150, %v2250
      %v2363 = vadd.f32 %v2151, %v2255
      %v2364 = vadd.f32 %v2152, %v2258
      %v2365 = vadd.f32 %v2153, %v2263
      %v2366 = vadd.f32 %v2154, %v2266
      %v2367 = vadd.f32 %v2155, %v2271
      %v2368 = vadd.f32 %v2156, %v2274
      %v2369 = vadd.f32 %v2157, %v2279
      %v2370 = vadd.f32 %v2158, %v2282
      %v2371 = vadd.f32 %v2159, %v2287
      %v2372 = vadd.f32 %v2160, %v2290
      %v2373 = vadd.f32 %v2161, %v2295
      %v2374 = vadd.f32 %v2162, %v2298
      %v2375 = vadd.f32 %v2163, %v2303
      %v2376 = vadd.f32 %v2164, %v2306
      %v2377 = vadd.f32 %v2165, %v2311
      %v2378 = vadd.f32 %v2166, %v2314
      %v2379 = vadd.f32 %v2167, %v2319
      %v2380 = vadd.f32 %v2168, %v2322
      %v2381 = vadd.f32 %v2169, %v2327
      %v2382 = vadd.f32 %v2170, %v2330
      %v2383 = vadd.f32 %v2171, %v2335
      %v2384 = vadd.f32 %v2172, %v2338
      %v2385 = vadd.f32 %v2173, %v2343
      %v2386 = vadd.f32 %v2174, %v2346
      %v2387 = vadd.f32 %v2175, %v2351
      %v2388 = vadd.f32 %v2176, %v2354
      %s2389 = scalar_lea.vmem %s1, 12
      %v2390 = vld [vmem:[%s2389] sm:$0x3]
      %v2393 = vunpack.c.l.b16 %v371
      %v2394 = vunpack.c.l.b16 %v372
      %v2395 = vpack.c.b16 %v2394, %v2393
      %v2397 = vsel %vm812, %v2395, 0
      %v2400 = vsel %vm861, %v2390, 0
      %2402 = vmatprep.subr.bf16.mxu0 0
      %2403 = vmatpush1.bf16.msra.mxu0 %v2400
      %2404 = vmatprep.subr.bf16.mxu0 0
      %2405 = vmatpush1.bf16.msra.mxu0 0
      %2406 = vmatprep.subr.bf16.mxu0 0
      %2407 = vmatpush1.bf16.msra.mxu0 0
      %2408 = vmatprep.subr.bf16.mxu0 0
      %2409 = vmatpush1.bf16.msra.mxu0 0
      %2410 = vmatprep.subr.bf16.mxu0 0
      %2411 = vmatpush1.bf16.msra.mxu0 0
      %2412 = vmatprep.subr.bf16.mxu0 0
      %2413 = vmatpush1.bf16.msra.mxu0 0
      %2414 = vmatprep.subr.bf16.mxu0 0
      %2415 = vmatpush1.bf16.msra.mxu0 0
      %2416 = vmatprep.subr.bf16.mxu0 0
      %2417 = vmatpush1.bf16.msra.mxu0 0
      %2418 = vmatprep.subr.bf16.mxu0 0
      %2419 = vmatpush1.bf16.msra.mxu0 0
      %2420 = vmatprep.subr.bf16.mxu0 0
      %2421 = vmatpush1.bf16.msra.mxu0 0
      %2422 = vmatprep.subr.bf16.mxu0 0
      %2423 = vmatpush1.bf16.msra.mxu0 0
      %2424 = vmatprep.subr.bf16.mxu0 0
      %2425 = vmatpush1.bf16.msra.mxu0 0
      %2426 = vmatprep.subr.bf16.mxu0 0
      %2427 = vmatpush1.bf16.msra.mxu0 0
      %2428 = vmatprep.subr.bf16.mxu0 0
      %2429 = vmatpush1.bf16.msra.mxu0 0
      %2430 = vmatprep.subr.bf16.mxu0 0
      %2431 = vmatpush1.bf16.msra.mxu0 0
      %2432 = vmatprep.subr.bf16.mxu0 0
      %2433 = vmatpush1.bf16.msra.mxu0 0
      %2434 = vmatprep.mubr.bf16.mxu0 0
      %2435 = vmatmul.mubr.bf16.gmra.mrb[0].mxu0 %v1113
      %v2436 = vpop.f32.mrb[0].mxu0
      %v2437 = vadd.f32 0.0, %v2436
      %v2438 = vpop.f32.mrb[0].mxu0
      %v2439 = vpop.f32.mrb[0].mxu0
      %v2440 = vadd.f32 0.0, %v2439
      %v2441 = vpop.f32.mrb[0].mxu0
      %2442 = vmatprep.mubr.bf16.mxu0 0
      %2443 = vmatmul.mubr.bf16.gmra.mrb[0].mxu0 %v1116
      %v2444 = vpop.f32.mrb[0].mxu0
      %v2445 = vadd.f32 0.0, %v2444
      %v2446 = vpop.f32.mrb[0].mxu0
      %v2447 = vpop.f32.mrb[0].mxu0
      %v2448 = vadd.f32 0.0, %v2447
      %v2449 = vpop.f32.mrb[0].mxu0
      %2450 = vmatprep.mubr.bf16.mxu0 0
      %2451 = vmatmul.mubr.bf16.gmra.mrb[0].mxu0 %v1119
      %v2452 = vpop.f32.mrb[0].mxu0
      %v2453 = vadd.f32 0.0, %v2452
      %v2454 = vpop.f32.mrb[0].mxu0
      %v2455 = vpop.f32.mrb[0].mxu0
      %v2456 = vadd.f32 0.0, %v2455
      %v2457 = vpop.f32.mrb[0].mxu0
      %2458 = vmatprep.mubr.bf16.mxu0 0
      %2459 = vmatmul.mubr.bf16.gmra.mrb[0].mxu0 %v1122
      %v2460 = vpop.f32.mrb[0].mxu0
      %v2461 = vadd.f32 0.0, %v2460
      %v2462 = vpop.f32.mrb[0].mxu0
      %v2463 = vpop.f32.mrb[0].mxu0
      %v2464 = vadd.f32 0.0, %v2463
      %v2465 = vpop.f32.mrb[0].mxu0
      %2466 = vmatprep.mubr.bf16.mxu0 0
      %2467 = vmatmul.mubr.bf16.gmra.mrb[0].mxu0 %v1125
      %v2468 = vpop.f32.mrb[0].mxu0
      %v2469 = vadd.f32 0.0, %v2468
      %v2470 = vpop.f32.mrb[0].mxu0
      %v2471 = vpop.f32.mrb[0].mxu0
      %v2472 = vadd.f32 0.0, %v2471
      %v2473 = vpop.f32.mrb[0].mxu0
      %2474 = vmatprep.mubr.bf16.mxu0 0
      %2475 = vmatmul.mubr.bf16.gmra.mrb[0].mxu0 %v1128
      %v2476 = vpop.f32.mrb[0].mxu0
      %v2477 = vadd.f32 0.0, %v2476
      %v2478 = vpop.f32.mrb[0].mxu0
      %v2479 = vpop.f32.mrb[0].mxu0
      %v2480 = vadd.f32 0.0, %v2479
      %v2481 = vpop.f32.mrb[0].mxu0
      %2482 = vmatprep.mubr.bf16.mxu0 0
      %2483 = vmatmul.mubr.bf16.gmra.mrb[0].mxu0 %v1131
      %v2484 = vpop.f32.mrb[0].mxu0
      %v2485 = vadd.f32 0.0, %v2484
      %v2486 = vpop.f32.mrb[0].mxu0
      %v2487 = vpop.f32.mrb[0].mxu0
      %v2488 = vadd.f32 0.0, %v2487
      %v2489 = vpop.f32.mrb[0].mxu0
      %2490 = vmatprep.mubr.bf16.mxu0 0
      %2491 = vmatmul.mubr.bf16.gmra.mrb[0].mxu0 %v1134
      %v2492 = vpop.f32.mrb[0].mxu0
      %v2493 = vadd.f32 0.0, %v2492
      %v2494 = vpop.f32.mrb[0].mxu0
      %v2495 = vpop.f32.mrb[0].mxu0
      %v2496 = vadd.f32 0.0, %v2495
      %v2497 = vpop.f32.mrb[0].mxu0
      %2498 = vmatprep.mubr.bf16.mxu0 0
      %2499 = vmatmul.mubr.bf16.gmra.mrb[0].mxu0 %v1137
      %v2500 = vpop.f32.mrb[0].mxu0
      %v2501 = vadd.f32 0.0, %v2500
      %v2502 = vpop.f32.mrb[0].mxu0
      %v2503 = vpop.f32.mrb[0].mxu0
      %v2504 = vadd.f32 0.0, %v2503
      %v2505 = vpop.f32.mrb[0].mxu0
      %2506 = vmatprep.mubr.bf16.mxu0 0
      %2507 = vmatmul.mubr.bf16.gmra.mrb[0].mxu0 %v1140
      %v2508 = vpop.f32.mrb[0].mxu0
      %v2509 = vadd.f32 0.0, %v2508
      %v2510 = vpop.f32.mrb[0].mxu0
      %v2511 = vpop.f32.mrb[0].mxu0
      %v2512 = vadd.f32 0.0, %v2511
      %v2513 = vpop.f32.mrb[0].mxu0
      %2514 = vmatprep.mubr.bf16.mxu0 0
      %2515 = vmatmul.mubr.bf16.gmra.mrb[0].mxu0 %v1143
      %v2516 = vpop.f32.mrb[0].mxu0
      %v2517 = vadd.f32 0.0, %v2516
      %v2518 = vpop.f32.mrb[0].mxu0
      %v2519 = vpop.f32.mrb[0].mxu0
      %v2520 = vadd.f32 0.0, %v2519
      %v2521 = vpop.f32.mrb[0].mxu0
      %2522 = vmatprep.mubr.bf16.mxu0 0
      %2523 = vmatmul.mubr.bf16.gmra.mrb[0].mxu0 %v1146
      %v2524 = vpop.f32.mrb[0].mxu0
      %v2525 = vadd.f32 0.0, %v2524
      %v2526 = vpop.f32.mrb[0].mxu0
      %v2527 = vpop.f32.mrb[0].mxu0
      %v2528 = vadd.f32 0.0, %v2527
      %v2529 = vpop.f32.mrb[0].mxu0
      %2530 = vmatprep.mubr.bf16.mxu0 0
      %2531 = vmatmul.mubr.bf16.gmra.mrb[0].mxu0 %v1149
      %v2532 = vpop.f32.mrb[0].mxu0
      %v2533 = vadd.f32 0.0, %v2532
      %v2534 = vpop.f32.mrb[0].mxu0
      %v2535 = vpop.f32.mrb[0].mxu0
      %v2536 = vadd.f32 0.0, %v2535
      %v2537 = vpop.f32.mrb[0].mxu0
      %2538 = vmatprep.mubr.bf16.mxu0 0
      %2539 = vmatmul.mubr.bf16.gmra.mrb[0].mxu0 %v1152
      %v2540 = vpop.f32.mrb[0].mxu0
      %v2541 = vadd.f32 0.0, %v2540
      %v2542 = vpop.f32.mrb[0].mxu0
      %v2543 = vpop.f32.mrb[0].mxu0
      %v2544 = vadd.f32 0.0, %v2543
      %v2545 = vpop.f32.mrb[0].mxu0
      %2546 = vmatprep.mubr.bf16.mxu0 0
      %2547 = vmatmul.mubr.bf16.gmra.mrb[0].mxu0 %v1751
      %v2548 = vpop.f32.mrb[0].mxu0
      %v2549 = vadd.f32 0.0, %v2548
      %v2550 = vpop.f32.mrb[0].mxu0
      %v2551 = vpop.f32.mrb[0].mxu0
      %v2552 = vadd.f32 0.0, %v2551
      %v2553 = vpop.f32.mrb[0].mxu0
      %2554 = vmatprep.mubr.bf16.mxu0 0
      %2555 = vmatmul.mubr.bf16.gmra.mrb[0].mxu0 %v2397
      %v2556 = vpop.f32.mrb[0].mxu0
      %v2557 = vadd.f32 0.0, %v2556
      %v2558 = vpop.f32.mrb[0].mxu0
      %v2559 = vpop.f32.mrb[0].mxu0
      %v2560 = vadd.f32 0.0, %v2559
      %v2561 = vpop.f32.mrb[0].mxu0
      %2562 = vdwg.mxu0
      %v2563 = vadd.f32 %v2357, %v2437
      %v2564 = vadd.f32 %v2358, %v2440
      %v2565 = vadd.f32 %v2359, %v2445
      %v2566 = vadd.f32 %v2360, %v2448
      %v2567 = vadd.f32 %v2361, %v2453
      %v2568 = vadd.f32 %v2362, %v2456
      %v2569 = vadd.f32 %v2363, %v2461
      %v2570 = vadd.f32 %v2364, %v2464
      %v2571 = vadd.f32 %v2365, %v2469
      %v2572 = vadd.f32 %v2366, %v2472
      %v2573 = vadd.f32 %v2367, %v2477
      %v2574 = vadd.f32 %v2368, %v2480
      %v2575 = vadd.f32 %v2369, %v2485
      %v2576 = vadd.f32 %v2370, %v2488
      %v2577 = vadd.f32 %v2371, %v2493
      %v2578 = vadd.f32 %v2372, %v2496
      %v2579 = vadd.f32 %v2373, %v2501
      %v2580 = vadd.f32 %v2374, %v2504
      %v2581 = vadd.f32 %v2375, %v2509
      %v2582 = vadd.f32 %v2376, %v2512
      %v2583 = vadd.f32 %v2377, %v2517
      %v2584 = vadd.f32 %v2378, %v2520
      %v2585 = vadd.f32 %v2379, %v2525
      %v2586 = vadd.f32 %v2380, %v2528
      %v2587 = vadd.f32 %v2381, %v2533
      %v2588 = vadd.f32 %v2382, %v2536
      %v2589 = vadd.f32 %v2383, %v2541
      %v2590 = vadd.f32 %v2384, %v2544
      %v2591 = vadd.f32 %v2385, %v2549
      %v2592 = vadd.f32 %v2386, %v2552
      %v2593 = vadd.f32 %v2387, %v2557
      %v2594 = vadd.f32 %v2388, %v2560
      %v2596 = vshrl.u32 %v371, 16
      %v2598 = vrot.slane %v2596, 4
      %v2599 = vshll.u32 %v371, 16
      %v2601 = vrot.slane %v2599, 5
      %v2602 = vor.u32 %v2598, %v2601
      %v2603 = vrot.slane %v2602, 4
      %v2605 = vshll.u32 %v372, 16
      %v2607 = vrot.slane %v2605, 5
      %v2608 = vsel %vm377, %v2603, %v2607
      %v2609 = vshrl.u32 %v372, 16
      %v2611 = vrot.slane %v2609, 4
      %v2612 = vor.u32 %v2611, %v2607
      %v2613 = vrot.slane %v2612, 4
      %v2615 = vshll.u32 %v373, 16
      %v2617 = vrot.slane %v2615, 5
      %v2618 = vsel %vm377, %v2613, %v2617
      %s2619 = scalar_lea.vmem %s1, 14
      %v2620 = vld [vmem:[%s2619] sm:$0x3]
      %v2621 = vunpack.c.l.b16 %v2608
      %v2622 = vunpack.c.l.b16 %v2618
      %v2623 = vpack.c.b16 %v2622, %v2621
      %v2625 = vsel %vm812, %v2623, 0
      %v2628 = vsel %vm861, %v2620, 0
      %2630 = vmatprep.subr.bf16.mxu0 0
      %2631 = vmatpush1.bf16.msra.mxu0 %v2628
      %2632 = vmatprep.subr.bf16.mxu0 0
      %2633 = vmatpush1.bf16.msra.mxu0 0
      %2634 = vmatprep.subr.bf16.mxu0 0
      %2635 = vmatpush1.bf16.msra.mxu0 0
      %2636 = vmatprep.subr.bf16.mxu0 0
      %2637 = vmatpush1.bf16.msra.mxu0 0
      %2638 = vmatprep.subr.bf16.mxu0 0
      %2639 = vmatpush1.bf16.msra.mxu0 0
      %2640 = vmatprep.subr.bf16.mxu0 0
      %2641 = vmatpush1.bf16.msra.mxu0 0
      %2642 = vmatprep.subr.bf16.mxu0 0
      %2643 = vmatpush1.bf16.msra.mxu0 0
      %2644 = vmatprep.subr.bf16.mxu0 0
      %2645 = vmatpush1.bf16.msra.mxu0 0
      %2646 = vmatprep.subr.bf16.mxu0 0
      %2647 = vmatpush1.bf16.msra.mxu0 0
      %2648 = vmatprep.subr.bf16.mxu0 0
      %2649 = vmatpush1.bf16.msra.mxu0 0
      %2650 = vmatprep.subr.bf16.mxu0 0
      %2651 = vmatpush1.bf16.msra.mxu0 0
      %2652 = vmatprep.subr.bf16.mxu0 0
      %2653 = vmatpush1.bf16.msra.mxu0 0
      %2654 = vmatprep.subr.bf16.mxu0 0
      %2655 = vmatpush1.bf16.msra.mxu0 0
      %2656 = vmatprep.subr.bf16.mxu0 0
      %2657 = vmatpush1.bf16.msra.mxu0 0
      %2658 = vmatprep.subr.bf16.mxu0 0
      %2659 = vmatpush1.bf16.msra.mxu0 0
      %2660 = vmatprep.subr.bf16.mxu0 0
      %2661 = vmatpush1.bf16.msra.mxu0 0
      %2662 = vmatprep.mubr.bf16.mxu0 0
      %2663 = vmatmul.mubr.bf16.gmra.mrb[0].mxu0 %v820
      %v2664 = vpop.f32.mrb[0].mxu0
      %v2665 = vadd.f32 0.0, %v2664
      %v2666 = vpop.f32.mrb[0].mxu0
      %v2667 = vpop.f32.mrb[0].mxu0
      %v2668 = vadd.f32 0.0, %v2667
      %v2669 = vpop.f32.mrb[0].mxu0
      %2670 = vmatprep.mubr.bf16.mxu0 0
      %2671 = vmatmul.mubr.bf16.gmra.mrb[0].mxu0 %v823
      %v2672 = vpop.f32.mrb[0].mxu0
      %v2673 = vadd.f32 0.0, %v2672
      %v2674 = vpop.f32.mrb[0].mxu0
      %v2675 = vpop.f32.mrb[0].mxu0
      %v2676 = vadd.f32 0.0, %v2675
      %v2677 = vpop.f32.mrb[0].mxu0
      %2678 = vmatprep.mubr.bf16.mxu0 0
      %2679 = vmatmul.mubr.bf16.gmra.mrb[0].mxu0 %v826
      %v2680 = vpop.f32.mrb[0].mxu0
      %v2681 = vadd.f32 0.0, %v2680
      %v2682 = vpop.f32.mrb[0].mxu0
      %v2683 = vpop.f32.mrb[0].mxu0
      %v2684 = vadd.f32 0.0, %v2683
      %v2685 = vpop.f32.mrb[0].mxu0
      %2686 = vmatprep.mubr.bf16.mxu0 0
      %2687 = vmatmul.mubr.bf16.gmra.mrb[0].mxu0 %v829
      %v2688 = vpop.f32.mrb[0].mxu0
      %v2689 = vadd.f32 0.0, %v2688
      %v2690 = vpop.f32.mrb[0].mxu0
      %v2691 = vpop.f32.mrb[0].mxu0
      %v2692 = vadd.f32 0.0, %v2691
      %v2693 = vpop.f32.mrb[0].mxu0
      %2694 = vmatprep.mubr.bf16.mxu0 0
      %2695 = vmatmul.mubr.bf16.gmra.mrb[0].mxu0 %v832
      %v2696 = vpop.f32.mrb[0].mxu0
      %v2697 = vadd.f32 0.0, %v2696
      %v2698 = vpop.f32.mrb[0].mxu0
      %v2699 = vpop.f32.mrb[0].mxu0
      %v2700 = vadd.f32 0.0, %v2699
      %v2701 = vpop.f32.mrb[0].mxu0
      %2702 = vmatprep.mubr.bf16.mxu0 0
      %2703 = vmatmul.mubr.bf16.gmra.mrb[0].mxu0 %v835
      %v2704 = vpop.f32.mrb[0].mxu0
      %v2705 = vadd.f32 0.0, %v2704
      %v2706 = vpop.f32.mrb[0].mxu0
      %v2707 = vpop.f32.mrb[0].mxu0
      %v2708 = vadd.f32 0.0, %v2707
      %v2709 = vpop.f32.mrb[0].mxu0
      %2710 = vmatprep.mubr.bf16.mxu0 0
      %2711 = vmatmul.mubr.bf16.gmra.mrb[0].mxu0 %v838
      %v2712 = vpop.f32.mrb[0].mxu0
      %v2713 = vadd.f32 0.0, %v2712
      %v2714 = vpop.f32.mrb[0].mxu0
      %v2715 = vpop.f32.mrb[0].mxu0
      %v2716 = vadd.f32 0.0, %v2715
      %v2717 = vpop.f32.mrb[0].mxu0
      %2718 = vmatprep.mubr.bf16.mxu0 0
      %2719 = vmatmul.mubr.bf16.gmra.mrb[0].mxu0 %v841
      %v2720 = vpop.f32.mrb[0].mxu0
      %v2721 = vadd.f32 0.0, %v2720
      %v2722 = vpop.f32.mrb[0].mxu0
      %v2723 = vpop.f32.mrb[0].mxu0
      %v2724 = vadd.f32 0.0, %v2723
      %v2725 = vpop.f32.mrb[0].mxu0
      %2726 = vmatprep.mubr.bf16.mxu0 0
      %2727 = vmatmul.mubr.bf16.gmra.mrb[0].mxu0 %v844
      %v2728 = vpop.f32.mrb[0].mxu0
      %v2729 = vadd.f32 0.0, %v2728
      %v2730 = vpop.f32.mrb[0].mxu0
      %v2731 = vpop.f32.mrb[0].mxu0
      %v2732 = vadd.f32 0.0, %v2731
      %v2733 = vpop.f32.mrb[0].mxu0
      %2734 = vmatprep.mubr.bf16.mxu0 0
      %2735 = vmatmul.mubr.bf16.gmra.mrb[0].mxu0 %v847
      %v2736 = vpop.f32.mrb[0].mxu0
      %v2737 = vadd.f32 0.0, %v2736
      %v2738 = vpop.f32.mrb[0].mxu0
      %v2739 = vpop.f32.mrb[0].mxu0
      %v2740 = vadd.f32 0.0, %v2739
      %v2741 = vpop.f32.mrb[0].mxu0
      %2742 = vmatprep.mubr.bf16.mxu0 0
      %2743 = vmatmul.mubr.bf16.gmra.mrb[0].mxu0 %v850
      %v2744 = vpop.f32.mrb[0].mxu0
      %v2745 = vadd.f32 0.0, %v2744
      %v2746 = vpop.f32.mrb[0].mxu0
      %v2747 = vpop.f32.mrb[0].mxu0
      %v2748 = vadd.f32 0.0, %v2747
      %v2749 = vpop.f32.mrb[0].mxu0
      %2750 = vmatprep.mubr.bf16.mxu0 0
      %2751 = vmatmul.mubr.bf16.gmra.mrb[0].mxu0 %v853
      %v2752 = vpop.f32.mrb[0].mxu0
      %v2753 = vadd.f32 0.0, %v2752
      %v2754 = vpop.f32.mrb[0].mxu0
      %v2755 = vpop.f32.mrb[0].mxu0
      %v2756 = vadd.f32 0.0, %v2755
      %v2757 = vpop.f32.mrb[0].mxu0
      %2758 = vmatprep.mubr.bf16.mxu0 0
      %2759 = vmatmul.mubr.bf16.gmra.mrb[0].mxu0 %v856
      %v2760 = vpop.f32.mrb[0].mxu0
      %v2761 = vadd.f32 0.0, %v2760
      %v2762 = vpop.f32.mrb[0].mxu0
      %v2763 = vpop.f32.mrb[0].mxu0
      %v2764 = vadd.f32 0.0, %v2763
      %v2765 = vpop.f32.mrb[0].mxu0
      %2766 = vmatprep.mubr.bf16.mxu0 0
      %2767 = vmatmul.mubr.bf16.gmra.mrb[0].mxu0 %v859
      %v2768 = vpop.f32.mrb[0].mxu0
      %v2769 = vadd.f32 0.0, %v2768
      %v2770 = vpop.f32.mrb[0].mxu0
      %v2771 = vpop.f32.mrb[0].mxu0
      %v2772 = vadd.f32 0.0, %v2771
      %v2773 = vpop.f32.mrb[0].mxu0
      %2774 = vmatprep.mubr.bf16.mxu0 0
      %2775 = vmatmul.mubr.bf16.gmra.mrb[0].mxu0 %v1979
      %v2776 = vpop.f32.mrb[0].mxu0
      %v2777 = vadd.f32 0.0, %v2776
      %v2778 = vpop.f32.mrb[0].mxu0
      %v2779 = vpop.f32.mrb[0].mxu0
      %v2780 = vadd.f32 0.0, %v2779
      %v2781 = vpop.f32.mrb[0].mxu0
      %2782 = vmatprep.mubr.bf16.mxu0 0
      %2783 = vmatmul.mubr.bf16.gmra.mrb[0].mxu0 %v2625
      %v2784 = vpop.f32.mrb[0].mxu0
      %v2785 = vadd.f32 0.0, %v2784
      %v2786 = vpop.f32.mrb[0].mxu0
      %v2787 = vpop.f32.mrb[0].mxu0
      %v2788 = vadd.f32 0.0, %v2787
      %v2789 = vpop.f32.mrb[0].mxu0
      %2790 = vdwg.mxu0
      %v2791 = vadd.f32 %v2563, %v2665
      %v2792 = vadd.f32 %v2564, %v2668
      %v2793 = vadd.f32 %v2565, %v2673
      %v2794 = vadd.f32 %v2566, %v2676
      %v2795 = vadd.f32 %v2567, %v2681
      %v2796 = vadd.f32 %v2568, %v2684
      %v2797 = vadd.f32 %v2569, %v2689
      %v2798 = vadd.f32 %v2570, %v2692
      %v2799 = vadd.f32 %v2571, %v2697
      %v2800 = vadd.f32 %v2572, %v2700
      %v2801 = vadd.f32 %v2573, %v2705
      %v2802 = vadd.f32 %v2574, %v2708
      %v2803 = vadd.f32 %v2575, %v2713
      %v2804 = vadd.f32 %v2576, %v2716
      %v2805 = vadd.f32 %v2577, %v2721
      %v2806 = vadd.f32 %v2578, %v2724
      %v2807 = vadd.f32 %v2579, %v2729
      %v2808 = vadd.f32 %v2580, %v2732
      %v2809 = vadd.f32 %v2581, %v2737
      %v2810 = vadd.f32 %v2582, %v2740
      %v2811 = vadd.f32 %v2583, %v2745
      %v2812 = vadd.f32 %v2584, %v2748
      %v2813 = vadd.f32 %v2585, %v2753
      %v2814 = vadd.f32 %v2586, %v2756
      %v2815 = vadd.f32 %v2587, %v2761
      %v2816 = vadd.f32 %v2588, %v2764
      %v2817 = vadd.f32 %v2589, %v2769
      %v2818 = vadd.f32 %v2590, %v2772
      %v2819 = vadd.f32 %v2591, %v2777
      %v2820 = vadd.f32 %v2592, %v2780
      %v2821 = vadd.f32 %v2593, %v2785
      %v2822 = vadd.f32 %v2594, %v2788
      %v2824 = vrot.slane %v371, 5
      %v2825 = vrot.slane %v2824, 4
      %v2826 = vrot.slane %v372, 5
      %v2827 = vsel %vm1336, %v2825, %v2826
      %v2828 = vrot.slane %v2826, 4
      %v2829 = vrot.slane %v373, 5
      %v2830 = vsel %vm1336, %v2828, %v2829
      %s2831 = scalar_lea.vmem %s1, 16
      %v2832 = vld [vmem:[%s2831] sm:$0x3]
      %v2833 = vunpack.c.l.b16 %v2827
      %v2834 = vunpack.c.l.b16 %v2830
      %v2835 = vpack.c.b16 %v2834, %v2833
      %v2837 = vsel %vm812, %v2835, 0
      %v2840 = vsel %vm861, %v2832, 0
      %2842 = vmatprep.subr.bf16.mxu0 0
      %2843 = vmatpush1.bf16.msra.mxu0 %v2840
      %2844 = vmatprep.subr.bf16.mxu0 0
      %2845 = vmatpush1.bf16.msra.mxu0 0
      %2846 = vmatprep.subr.bf16.mxu0 0
      %2847 = vmatpush1.bf16.msra.mxu0 0
      %2848 = vmatprep.subr.bf16.mxu0 0
      %2849 = vmatpush1.bf16.msra.mxu0 0
      %2850 = vmatprep.subr.bf16.mxu0 0
      %2851 = vmatpush1.bf16.msra.mxu0 0
      %2852 = vmatprep.subr.bf16.mxu0 0
      %2853 = vmatpush1.bf16.msra.mxu0 0
      %2854 = vmatprep.subr.bf16.mxu0 0
      %2855 = vmatpush1.bf16.msra.mxu0 0
      %2856 = vmatprep.subr.bf16.mxu0 0
      %2857 = vmatpush1.bf16.msra.mxu0 0
      %2858 = vmatprep.subr.bf16.mxu0 0
      %2859 = vmatpush1.bf16.msra.mxu0 0
      %2860 = vmatprep.subr.bf16.mxu0 0
      %2861 = vmatpush1.bf16.msra.mxu0 0
      %2862 = vmatprep.subr.bf16.mxu0 0
      %2863 = vmatpush1.bf16.msra.mxu0 0
      %2864 = vmatprep.subr.bf16.mxu0 0
      %2865 = vmatpush1.bf16.msra.mxu0 0
      %2866 = vmatprep.subr.bf16.mxu0 0
      %2867 = vmatpush1.bf16.msra.mxu0 0
      %2868 = vmatprep.subr.bf16.mxu0 0
      %2869 = vmatpush1.bf16.msra.mxu0 0
      %2870 = vmatprep.subr.bf16.mxu0 0
      %2871 = vmatpush1.bf16.msra.mxu0 0
      %2872 = vmatprep.subr.bf16.mxu0 0
      %2873 = vmatpush1.bf16.msra.mxu0 0
      %2874 = vmatprep.mubr.bf16.mxu0 0
      %2875 = vmatmul.mubr.bf16.gmra.mrb[0].mxu0 %v1506
      %v2876 = vpop.f32.mrb[0].mxu0
      %v2877 = vadd.f32 0.0, %v2876
      %v2878 = vpop.f32.mrb[0].mxu0
      %v2879 = vpop.f32.mrb[0].mxu0
      %v2880 = vadd.f32 0.0, %v2879
      %v2881 = vpop.f32.mrb[0].mxu0
      %2882 = vmatprep.mubr.bf16.mxu0 0
      %2883 = vmatmul.mubr.bf16.gmra.mrb[0].mxu0 %v1509
      %v2884 = vpop.f32.mrb[0].mxu0
      %v2885 = vadd.f32 0.0, %v2884
      %v2886 = vpop.f32.mrb[0].mxu0
      %v2887 = vpop.f32.mrb[0].mxu0
      %v2888 = vadd.f32 0.0, %v2887
      %v2889 = vpop.f32.mrb[0].mxu0
      %2890 = vmatprep.mubr.bf16.mxu0 0
      %2891 = vmatmul.mubr.bf16.gmra.mrb[0].mxu0 %v1512
      %v2892 = vpop.f32.mrb[0].mxu0
      %v2893 = vadd.f32 0.0, %v2892
      %v2894 = vpop.f32.mrb[0].mxu0
      %v2895 = vpop.f32.mrb[0].mxu0
      %v2896 = vadd.f32 0.0, %v2895
      %v2897 = vpop.f32.mrb[0].mxu0
      %2898 = vmatprep.mubr.bf16.mxu0 0
      %2899 = vmatmul.mubr.bf16.gmra.mrb[0].mxu0 %v1515
      %v2900 = vpop.f32.mrb[0].mxu0
      %v2901 = vadd.f32 0.0, %v2900
      %v2902 = vpop.f32.mrb[0].mxu0
      %v2903 = vpop.f32.mrb[0].mxu0
      %v2904 = vadd.f32 0.0, %v2903
      %v2905 = vpop.f32.mrb[0].mxu0
      %2906 = vmatprep.mubr.bf16.mxu0 0
      %2907 = vmatmul.mubr.bf16.gmra.mrb[0].mxu0 %v1518
      %v2908 = vpop.f32.mrb[0].mxu0
      %v2909 = vadd.f32 0.0, %v2908
      %v2910 = vpop.f32.mrb[0].mxu0
      %v2911 = vpop.f32.mrb[0].mxu0
      %v2912 = vadd.f32 0.0, %v2911
      %v2913 = vpop.f32.mrb[0].mxu0
      %2914 = vmatprep.mubr.bf16.mxu0 0
      %2915 = vmatmul.mubr.bf16.gmra.mrb[0].mxu0 %v1521
      %v2916 = vpop.f32.mrb[0].mxu0
      %v2917 = vadd.f32 0.0, %v2916
      %v2918 = vpop.f32.mrb[0].mxu0
      %v2919 = vpop.f32.mrb[0].mxu0
      %v2920 = vadd.f32 0.0, %v2919
      %v2921 = vpop.f32.mrb[0].mxu0
      %2922 = vmatprep.mubr.bf16.mxu0 0
      %2923 = vmatmul.mubr.bf16.gmra.mrb[0].mxu0 %v1524
      %v2924 = vpop.f32.mrb[0].mxu0
      %v2925 = vadd.f32 0.0, %v2924
      %v2926 = vpop.f32.mrb[0].mxu0
      %v2927 = vpop.f32.mrb[0].mxu0
      %v2928 = vadd.f32 0.0, %v2927
      %v2929 = vpop.f32.mrb[0].mxu0
      %2930 = vmatprep.mubr.bf16.mxu0 0
      %2931 = vmatmul.mubr.bf16.gmra.mrb[0].mxu0 %v1527
      %v2932 = vpop.f32.mrb[0].mxu0
      %v2933 = vadd.f32 0.0, %v2932
      %v2934 = vpop.f32.mrb[0].mxu0
      %v2935 = vpop.f32.mrb[0].mxu0
      %v2936 = vadd.f32 0.0, %v2935
      %v2937 = vpop.f32.mrb[0].mxu0
      %2938 = vmatprep.mubr.bf16.mxu0 0
      %2939 = vmatmul.mubr.bf16.gmra.mrb[0].mxu0 %v1530
      %v2940 = vpop.f32.mrb[0].mxu0
      %v2941 = vadd.f32 0.0, %v2940
      %v2942 = vpop.f32.mrb[0].mxu0
      %v2943 = vpop.f32.mrb[0].mxu0
      %v2944 = vadd.f32 0.0, %v2943
      %v2945 = vpop.f32.mrb[0].mxu0
      %2946 = vmatprep.mubr.bf16.mxu0 0
      %2947 = vmatmul.mubr.bf16.gmra.mrb[0].mxu0 %v1533
      %v2948 = vpop.f32.mrb[0].mxu0
      %v2949 = vadd.f32 0.0, %v2948
      %v2950 = vpop.f32.mrb[0].mxu0
      %v2951 = vpop.f32.mrb[0].mxu0
      %v2952 = vadd.f32 0.0, %v2951
      %v2953 = vpop.f32.mrb[0].mxu0
      %2954 = vmatprep.mubr.bf16.mxu0 0
      %2955 = vmatmul.mubr.bf16.gmra.mrb[0].mxu0 %v1536
      %v2956 = vpop.f32.mrb[0].mxu0
      %v2957 = vadd.f32 0.0, %v2956
      %v2958 = vpop.f32.mrb[0].mxu0
      %v2959 = vpop.f32.mrb[0].mxu0
      %v2960 = vadd.f32 0.0, %v2959
      %v2961 = vpop.f32.mrb[0].mxu0
      %2962 = vmatprep.mubr.bf16.mxu0 0
      %2963 = vmatmul.mubr.bf16.gmra.mrb[0].mxu0 %v1539
      %v2964 = vpop.f32.mrb[0].mxu0
      %v2965 = vadd.f32 0.0, %v2964
      %v2966 = vpop.f32.mrb[0].mxu0
      %v2967 = vpop.f32.mrb[0].mxu0
      %v2968 = vadd.f32 0.0, %v2967
      %v2969 = vpop.f32.mrb[0].mxu0
      %2970 = vmatprep.mubr.bf16.mxu0 0
      %2971 = vmatmul.mubr.bf16.gmra.mrb[0].mxu0 %v1542
      %v2972 = vpop.f32.mrb[0].mxu0
      %v2973 = vadd.f32 0.0, %v2972
      %v2974 = vpop.f32.mrb[0].mxu0
      %v2975 = vpop.f32.mrb[0].mxu0
      %v2976 = vadd.f32 0.0, %v2975
      %v2977 = vpop.f32.mrb[0].mxu0
      %2978 = vmatprep.mubr.bf16.mxu0 0
      %2979 = vmatmul.mubr.bf16.gmra.mrb[0].mxu0 %v1545
      %v2980 = vpop.f32.mrb[0].mxu0
      %v2981 = vadd.f32 0.0, %v2980
      %v2982 = vpop.f32.mrb[0].mxu0
      %v2983 = vpop.f32.mrb[0].mxu0
      %v2984 = vadd.f32 0.0, %v2983
      %v2985 = vpop.f32.mrb[0].mxu0
      %2986 = vmatprep.mubr.bf16.mxu0 0
      %2987 = vmatmul.mubr.bf16.gmra.mrb[0].mxu0 %v2191
      %v2988 = vpop.f32.mrb[0].mxu0
      %v2989 = vadd.f32 0.0, %v2988
      %v2990 = vpop.f32.mrb[0].mxu0
      %v2991 = vpop.f32.mrb[0].mxu0
      %v2992 = vadd.f32 0.0, %v2991
      %v2993 = vpop.f32.mrb[0].mxu0
      %2994 = vmatprep.mubr.bf16.mxu0 0
      %2995 = vmatmul.mubr.bf16.gmra.mrb[0].mxu0 %v2837
      %v2996 = vpop.f32.mrb[0].mxu0
      %v2997 = vadd.f32 0.0, %v2996
      %v2998 = vpop.f32.mrb[0].mxu0
      %v2999 = vpop.f32.mrb[0].mxu0
      %v3000 = vadd.f32 0.0, %v2999
      %v3001 = vpop.f32.mrb[0].mxu0
      %3002 = vdwg.mxu0
      %v3003 = vadd.f32 %v2791, %v2877
      %v3004 = vadd.f32 %v2792, %v2880
      %v3005 = vadd.f32 %v2793, %v2885
      %v3006 = vadd.f32 %v2794, %v2888
      %v3007 = vadd.f32 %v2795, %v2893
      %v3008 = vadd.f32 %v2796, %v2896
      %v3009 = vadd.f32 %v2797, %v2901
      %v3010 = vadd.f32 %v2798, %v2904
      %v3011 = vadd.f32 %v2799, %v2909
      %v3012 = vadd.f32 %v2800, %v2912
      %v3013 = vadd.f32 %v2801, %v2917
      %v3014 = vadd.f32 %v2802, %v2920
      %v3015 = vadd.f32 %v2803, %v2925
      %v3016 = vadd.f32 %v2804, %v2928
      %v3017 = vadd.f32 %v2805, %v2933
      %v3018 = vadd.f32 %v2806, %v2936
      %v3019 = vadd.f32 %v2807, %v2941
      %v3020 = vadd.f32 %v2808, %v2944
      %v3021 = vadd.f32 %v2809, %v2949
      %v3022 = vadd.f32 %v2810, %v2952
      %v3023 = vadd.f32 %v2811, %v2957
      %v3024 = vadd.f32 %v2812, %v2960
      %v3025 = vadd.f32 %v2813, %v2965
      %v3026 = vadd.f32 %v2814, %v2968
      %v3027 = vadd.f32 %v2815, %v2973
      %v3028 = vadd.f32 %v2816, %v2976
      %v3029 = vadd.f32 %v2817, %v2981
      %v3030 = vadd.f32 %v2818, %v2984
      %v3031 = vadd.f32 %v2819, %v2989
      %v3032 = vadd.f32 %v2820, %v2992
      %v3033 = vadd.f32 %v2821, %v2997
      %v3034 = vadd.f32 %v2822, %v3000
      %v3035 = vld [vmem:[%s2] sm:$0x1]
      %v3037 = vlaneseq
      %v3038 = vshrl.u32 %v3037, 7
      %v3039 = vsub.s32 0, %v3038
      %v3040 = vrot.slane %v3035, %v3039
      %v3042 = vadd.f32 %v3003, %v3040
      %v3043 = vadd.f32 %v3004, %v3040
      %v3044 = vadd.f32 %v3005, %v3040
      %v3045 = vadd.f32 %v3006, %v3040
      %v3046 = vadd.f32 %v3007, %v3040
      %v3047 = vadd.f32 %v3008, %v3040
      %v3048 = vadd.f32 %v3009, %v3040
      %v3049 = vadd.f32 %v3010, %v3040
      %v3050 = vadd.f32 %v3011, %v3040
      %v3051 = vadd.f32 %v3012, %v3040
      %v3052 = vadd.f32 %v3013, %v3040
      %v3053 = vadd.f32 %v3014, %v3040
      %v3054 = vadd.f32 %v3015, %v3040
      %v3055 = vadd.f32 %v3016, %v3040
      %v3056 = vadd.f32 %v3017, %v3040
      %v3057 = vadd.f32 %v3018, %v3040
      %v3058 = vadd.f32 %v3019, %v3040
      %v3059 = vadd.f32 %v3020, %v3040
      %v3060 = vadd.f32 %v3021, %v3040
      %v3061 = vadd.f32 %v3022, %v3040
      %v3062 = vadd.f32 %v3023, %v3040
      %v3063 = vadd.f32 %v3024, %v3040
      %v3064 = vadd.f32 %v3025, %v3040
      %v3065 = vadd.f32 %v3026, %v3040
      %v3066 = vadd.f32 %v3027, %v3040
      %v3067 = vadd.f32 %v3028, %v3040
      %v3068 = vadd.f32 %v3029, %v3040
      %v3069 = vadd.f32 %v3030, %v3040
      %v3070 = vadd.f32 %v3031, %v3040
      %v3071 = vadd.f32 %v3032, %v3040
      %v3072 = vadd.f32 %v3033, %v3040
      %v3073 = vadd.f32 %v3034, %v3040
      %v3074 = vmax.f32 %v3042, 0.0
      %v3075 = vmax.f32 %v3043, 0.0
      %v3076 = vmax.f32 %v3044, 0.0
      %v3077 = vmax.f32 %v3045, 0.0
      %v3078 = vmax.f32 %v3046, 0.0
      %v3079 = vmax.f32 %v3047, 0.0
      %v3080 = vmax.f32 %v3048, 0.0
      %v3081 = vmax.f32 %v3049, 0.0
      %v3082 = vmax.f32 %v3050, 0.0
      %v3083 = vmax.f32 %v3051, 0.0
      %v3084 = vmax.f32 %v3052, 0.0
      %v3085 = vmax.f32 %v3053, 0.0
      %v3086 = vmax.f32 %v3054, 0.0
      %v3087 = vmax.f32 %v3055, 0.0
      %v3088 = vmax.f32 %v3056, 0.0
      %v3089 = vmax.f32 %v3057, 0.0
      %v3090 = vmax.f32 %v3058, 0.0
      %v3091 = vmax.f32 %v3059, 0.0
      %v3092 = vmax.f32 %v3060, 0.0
      %v3093 = vmax.f32 %v3061, 0.0
      %v3094 = vmax.f32 %v3062, 0.0
      %v3095 = vmax.f32 %v3063, 0.0
      %v3096 = vmax.f32 %v3064, 0.0
      %v3097 = vmax.f32 %v3065, 0.0
      %v3098 = vmax.f32 %v3066, 0.0
      %v3099 = vmax.f32 %v3067, 0.0
      %v3100 = vmax.f32 %v3068, 0.0
      %v3101 = vmax.f32 %v3069, 0.0
      %v3102 = vmax.f32 %v3070, 0.0
      %v3103 = vmax.f32 %v3071, 0.0
      %v3104 = vmax.f32 %v3072, 0.0
      %v3105 = vmax.f32 %v3073, 0.0
      %v3106 = vpack.c.bf16 %v3075, %v3074
      %v3107 = vpack.c.bf16 %v3077, %v3076
      %v3108 = vpack.c.bf16 %v3079, %v3078
      %v3109 = vpack.c.bf16 %v3081, %v3080
      %v3110 = vpack.c.bf16 %v3083, %v3082
      %v3111 = vpack.c.bf16 %v3085, %v3084
      %v3112 = vpack.c.bf16 %v3087, %v3086
      %v3113 = vpack.c.bf16 %v3089, %v3088
      %v3114 = vpack.c.bf16 %v3091, %v3090
      %v3115 = vpack.c.bf16 %v3093, %v3092
      %v3116 = vpack.c.bf16 %v3095, %v3094
      %v3117 = vpack.c.bf16 %v3097, %v3096
      %v3118 = vpack.c.bf16 %v3099, %v3098
      %v3119 = vpack.c.bf16 %v3101, %v3100
      %v3120 = vpack.c.bf16 %v3103, %v3102
      %v3121 = vpack.c.bf16 %v3105, %v3104
      %v3138 = vunpack.c.l.b16 %v3106
      %v3139 = vunpack.c.h.b16 %v3106
      %v3140 = vunpack.c.l.b16 %v3107
      %v3141 = vunpack.c.h.b16 %v3107
      %v3142 = vunpack.c.l.b16 %v3108
      %v3143 = vunpack.c.h.b16 %v3108
      %v3144 = vunpack.c.l.b16 %v3109
      %v3145 = vunpack.c.h.b16 %v3109
      %v3146 = vunpack.c.l.b16 %v3110
      %v3147 = vunpack.c.h.b16 %v3110
      %v3148 = vunpack.c.l.b16 %v3111
      %v3149 = vunpack.c.h.b16 %v3111
      %v3150 = vunpack.c.l.b16 %v3112
      %v3151 = vunpack.c.h.b16 %v3112
      %v3152 = vunpack.c.l.b16 %v3113
      %v3153 = vunpack.c.h.b16 %v3113
      %v3154 = vunpack.c.l.b16 %v3114
      %v3155 = vunpack.c.h.b16 %v3114
      %v3156 = vunpack.c.l.b16 %v3115
      %v3157 = vunpack.c.h.b16 %v3115
      %v3158 = vunpack.c.l.b16 %v3116
      %v3159 = vunpack.c.h.b16 %v3116
      %v3160 = vunpack.c.l.b16 %v3117
      %v3161 = vunpack.c.h.b16 %v3117
      %v3162 = vunpack.c.l.b16 %v3118
      %v3163 = vunpack.c.h.b16 %v3118
      %v3164 = vunpack.c.l.b16 %v3119
      %v3165 = vunpack.c.h.b16 %v3119
      %v3166 = vunpack.c.l.b16 %v3120
      %v3167 = vunpack.c.h.b16 %v3120
      %v3168 = vunpack.c.l.b16 %v3121
      %v3169 = vunpack.c.h.b16 %v3121
      %v3170 = vpack.c.b16 %v3138, %v3138
      %v3171 = vpack.c.b16 %v3139, %v3139
      %v3172 = vpack.c.b16 %v3140, %v3140
      %v3173 = vpack.c.b16 %v3141, %v3141
      %v3174 = vpack.c.b16 %v3142, %v3142
      %v3175 = vpack.c.b16 %v3143, %v3143
      %v3176 = vpack.c.b16 %v3144, %v3144
      %v3177 = vpack.c.b16 %v3145, %v3145
      %v3178 = vpack.c.b16 %v3146, %v3146
      %v3179 = vpack.c.b16 %v3147, %v3147
      %v3180 = vpack.c.b16 %v3148, %v3148
      %v3181 = vpack.c.b16 %v3149, %v3149
      %v3182 = vpack.c.b16 %v3150, %v3150
      %v3183 = vpack.c.b16 %v3151, %v3151
      %v3184 = vpack.c.b16 %v3152, %v3152
      %v3185 = vpack.c.b16 %v3153, %v3153
      %v3186 = vpack.c.b16 %v3154, %v3154
      %v3187 = vpack.c.b16 %v3155, %v3155
      %v3188 = vpack.c.b16 %v3156, %v3156
      %v3189 = vpack.c.b16 %v3157, %v3157
      %v3190 = vpack.c.b16 %v3158, %v3158
      %v3191 = vpack.c.b16 %v3159, %v3159
      %v3192 = vpack.c.b16 %v3160, %v3160
      %v3193 = vpack.c.b16 %v3161, %v3161
      %v3194 = vpack.c.b16 %v3162, %v3162
      %v3195 = vpack.c.b16 %v3163, %v3163
      %v3196 = vpack.c.b16 %v3164, %v3164
      %v3197 = vpack.c.b16 %v3165, %v3165
      %v3198 = vpack.c.b16 %v3166, %v3166
      %v3199 = vpack.c.b16 %v3167, %v3167
      %v3200 = vpack.c.b16 %v3168, %v3168
      %v3201 = vpack.c.b16 %v3169, %v3169
      %vm3234 = vcmask 257024
      %3235 = vst.msk [vmem:[%s313] sm:$0xf] %vm3234, %v3170
      %3236 = vst.msk [vmem:[%s313 + $0x4] sm:$0xf] %vm3234, %v3171
      %3237 = vst.msk [vmem:[%s313 + $0x8] sm:$0xf] %vm3234, %v3172
      %3238 = vst.msk [vmem:[%s313 + $0xc] sm:$0xf] %vm3234, %v3173
      %3239 = vst.msk [vmem:[%s313 + $0x10] sm:$0xf] %vm3234, %v3174
      %3240 = vst.msk [vmem:[%s313 + $0x14] sm:$0xf] %vm3234, %v3175
      %3241 = vst.msk [vmem:[%s313 + $0x18] sm:$0xf] %vm3234, %v3176
      %3242 = vst.msk [vmem:[%s313 + $0x1c] sm:$0xf] %vm3234, %v3177
      %3243 = vst.msk [vmem:[%s313 + $0x20] sm:$0xf] %vm3234, %v3178
      %3244 = vst.msk [vmem:[%s313 + $0x24] sm:$0xf] %vm3234, %v3179
      %3245 = vst.msk [vmem:[%s313 + $0x28] sm:$0xf] %vm3234, %v3180
      %3246 = vst.msk [vmem:[%s313 + $0x2c] sm:$0xf] %vm3234, %v3181
      %3247 = vst.msk [vmem:[%s313 + $0x30] sm:$0xf] %vm3234, %v3182
      %3248 = vst.msk [vmem:[%s313 + $0x34] sm:$0xf] %vm3234, %v3183
      %3249 = vst.msk [vmem:[%s313 + $0x38] sm:$0xf] %vm3234, %v3184
      %3250 = vst.msk [vmem:[%s313 + $0x3c] sm:$0xf] %vm3234, %v3185
      %3251 = vst.msk [vmem:[%s313 + $0x40] sm:$0xf] %vm3234, %v3186
      %3252 = vst.msk [vmem:[%s313 + $0x44] sm:$0xf] %vm3234, %v3187
      %3253 = vst.msk [vmem:[%s313 + $0x48] sm:$0xf] %vm3234, %v3188
      %3254 = vst.msk [vmem:[%s313 + $0x4c] sm:$0xf] %vm3234, %v3189
      %3255 = vst.msk [vmem:[%s313 + $0x50] sm:$0xf] %vm3234, %v3190
      %3256 = vst.msk [vmem:[%s313 + $0x54] sm:$0xf] %vm3234, %v3191
      %3257 = vst.msk [vmem:[%s313 + $0x58] sm:$0xf] %vm3234, %v3192
      %3258 = vst.msk [vmem:[%s313 + $0x5c] sm:$0xf] %vm3234, %v3193
      %3259 = vst.msk [vmem:[%s313 + $0x60] sm:$0xf] %vm3234, %v3194
      %3260 = vst.msk [vmem:[%s313 + $0x64] sm:$0xf] %vm3234, %v3195
      %3261 = vst.msk [vmem:[%s313 + $0x68] sm:$0xf] %vm3234, %v3196
      %3262 = vst.msk [vmem:[%s313 + $0x6c] sm:$0xf] %vm3234, %v3197
      %3263 = vst.msk [vmem:[%s313 + $0x70] sm:$0xf] %vm3234, %v3198
      %3264 = vst.msk [vmem:[%s313 + $0x74] sm:$0xf] %vm3234, %v3199
      %3265 = vst.msk [vmem:[%s313 + $0x78] sm:$0xf] %vm3234, %v3200
      %3266 = vst.msk [vmem:[%s313 + $0x7c] sm:$0xf] %vm3234, %v3201
      %3267 = vst.msk [vmem:[#allocation2] sm:$0xf] %vm3234, 0
      %3268 = vst.msk [vmem:[#allocation2 + $0x4] sm:$0xf] %vm3234, 0
      %vm3269 = vcmask 253952
      %3270 = vst.msk [vmem:[#allocation2 + $0x8] sm:$0x1] %vm3269, 0
      %3271 = vst.msk [vmem:[#allocation2 + $0xc] sm:$0xf] %vm3234, 0
      %3272 = vst.msk [vmem:[#allocation2 + $0x10] sm:$0xf] %vm3234, 0
      %3273 = vst.msk [vmem:[#allocation2 + $0x14] sm:$0x1] %vm3269, 0
      %3274 = vst.msk [vmem:[#allocation2 + $0x18] sm:$0xf] %vm3234, 0
      %3275 = vst.msk [vmem:[#allocation2 + $0x1c] sm:$0xf] %vm3234, 0
      %3276 = vst.msk [vmem:[#allocation2 + $0x20] sm:$0x1] %vm3269, 0
      %3277 = vst.msk [vmem:[#allocation2 + $0x24] sm:$0xf] %vm3234, 0
      %3278 = vst.msk [vmem:[#allocation2 + $0x28] sm:$0xf] %vm3234, 0
      %3279 = vst.msk [vmem:[#allocation2 + $0x2c] sm:$0x1] %vm3269, 0
      %3280 = vst.msk [vmem:[#allocation2 + $0x30] sm:$0xf] %vm3234, 0
      %3281 = vst.msk [vmem:[#allocation2 + $0x34] sm:$0xf] %vm3234, 0
      %3282 = vst.msk [vmem:[#allocation2 + $0x38] sm:$0x1] %vm3269, 0
      %3283 = vst.msk [vmem:[#allocation2 + $0x3c] sm:$0xf] %vm3234, 0
      %3284 = vst.msk [vmem:[#allocation2 + $0x40] sm:$0xf] %vm3234, 0
      %3285 = vst.msk [vmem:[#allocation2 + $0x44] sm:$0x1] %vm3269, 0
      %3286 = vst.msk [vmem:[#allocation2 + $0x48] sm:$0xf] %vm3234, 0
      %3287 = vst.msk [vmem:[#allocation2 + $0x4c] sm:$0xf] %vm3234, 0
      %3288 = vst.msk [vmem:[#allocation2 + $0x50] sm:$0x1] %vm3269, 0
      %3289 = vst.msk [vmem:[#allocation2 + $0x54] sm:$0xf] %vm3234, 0
      %3290 = vst.msk [vmem:[#allocation2 + $0x58] sm:$0xf] %vm3234, 0
      %3291 = vst.msk [vmem:[#allocation2 + $0x5c] sm:$0x1] %vm3269, 0
      %3292 = vst.msk [vmem:[#allocation2 + $0x60] sm:$0xf] %vm3234, 0
      %3293 = vst.msk [vmem:[#allocation2 + $0x64] sm:$0xf] %vm3234, 0
      %3294 = vst.msk [vmem:[#allocation2 + $0x68] sm:$0x1] %vm3269, 0
      %3295 = vst.msk [vmem:[#allocation2 + $0x6c] sm:$0xf] %vm3234, 0
      %3296 = vst.msk [vmem:[#allocation2 + $0x70] sm:$0xf] %vm3234, 0
      %3297 = vst.msk [vmem:[#allocation2 + $0x74] sm:$0x1] %vm3269, 0
      %3298 = vst.msk [vmem:[#allocation2 + $0x78] sm:$0xf] %vm3234, 0
      %3299 = vst.msk [vmem:[#allocation2 + $0x7c] sm:$0xf] %vm3234, 0
      %3300 = vst.msk [vmem:[#allocation2 + $0x80] sm:$0x1] %vm3269, 0
      %3301 = vst.msk [vmem:[#allocation2 + $0x84] sm:$0xf] %vm3234, 0
      %3302 = vst.msk [vmem:[#allocation2 + $0x88] sm:$0xf] %vm3234, 0
      %3303 = vst.msk [vmem:[#allocation2 + $0x8c] sm:$0x1] %vm3269, 0
      %3304 = vst.msk [vmem:[#allocation2 + $0x90] sm:$0xf] %vm3234, 0
      %3305 = vst.msk [vmem:[#allocation2 + $0x94] sm:$0xf] %vm3234, 0
      %3306 = vst.msk [vmem:[#allocation2 + $0x98] sm:$0x1] %vm3269, 0
      %3307 = vst.msk [vmem:[#allocation2 + $0x9c] sm:$0xf] %vm3234, 0
      %3308 = vst.msk [vmem:[#allocation2 + $0xa0] sm:$0xf] %vm3234, 0
      %3309 = vst.msk [vmem:[#allocation2 + $0xa4] sm:$0x1] %vm3269, 0
      %3310 = vst.msk [vmem:[#allocation2 + $0xa8] sm:$0xf] %vm3234, 0
      %3311 = vst.msk [vmem:[#allocation2 + $0xac] sm:$0xf] %vm3234, 0
      %3312 = vst.msk [vmem:[#allocation2 + $0xb0] sm:$0x1] %vm3269, 0
      %3313 = vst.msk [vmem:[#allocation2 + $0xb4] sm:$0xf] %vm3234, 0
      %3314 = vst.msk [vmem:[#allocation2 + $0xb8] sm:$0xf] %vm3234, 0
      %3315 = vst.msk [vmem:[#allocation2 + $0xbc] sm:$0x1] %vm3269, 0
      %3316 = vst.msk [vmem:[#allocation2 + $0xc0] sm:$0xf] %vm3234, 0
      %3317 = vst.msk [vmem:[#allocation2 + $0xc4] sm:$0xf] %vm3234, 0
      %3318 = vst.msk [vmem:[#allocation2 + $0xc8] sm:$0x1] %vm3269, 0
      %3319 = vst.msk [vmem:[#allocation2 + $0xcc] sm:$0xf] %vm3234, 0
      %3320 = vst.msk [vmem:[#allocation2 + $0xd0] sm:$0xf] %vm3234, 0
      %3321 = vst.msk [vmem:[#allocation2 + $0xd4] sm:$0x1] %vm3269, 0
      %vm3322 = vsmask.f32 256
      %vm3323 = vsmask.f32 4368
      %vm3324 = vmor %vm3322, %vm3323
      %v3326 = vshrl.u32 %v3170, 16
      %v3328 = vrot.slane %v3326, 7
      %v3329 = vshll.u32 %v3170, 16
      %v3331 = vor.u32 %v3328, %v3329
      %v3332 = vrot.slane %v3328, 4
      %v3334 = vshrl.u32 %v3171, 16
      %v3336 = vrot.slane %v3334, 7
      %v3337 = vshll.u32 %v3171, 16
      %v3339 = vor.u32 %v3336, %v3337
      %v3340 = vsel %vm3324, %v3332, %v3339
      %v3341 = vrot.slane %v3336, 4
      %v3343 = vshrl.u32 %v3172, 16
      %v3345 = vrot.slane %v3343, 7
      %v3346 = vshll.u32 %v3172, 16
      %v3348 = vor.u32 %v3345, %v3346
      %v3349 = vrot.slane %v3345, 4
      %v3351 = vshrl.u32 %v3173, 16
      %v3353 = vrot.slane %v3351, 7
      %v3354 = vshll.u32 %v3173, 16
      %v3356 = vor.u32 %v3353, %v3354
      %v3357 = vsel %vm3324, %v3349, %v3356
      %v3358 = vrot.slane %v3353, 4
      %v3360 = vshrl.u32 %v3174, 16
      %v3362 = vrot.slane %v3360, 7
      %v3363 = vshll.u32 %v3174, 16
      %v3365 = vor.u32 %v3362, %v3363
      %v3366 = vrot.slane %v3362, 4
      %v3368 = vshrl.u32 %v3175, 16
      %v3370 = vrot.slane %v3368, 7
      %v3371 = vshll.u32 %v3175, 16
      %v3373 = vor.u32 %v3370, %v3371
      %v3374 = vsel %vm3324, %v3366, %v3373
      %v3375 = vrot.slane %v3370, 4
      %v3377 = vshrl.u32 %v3176, 16
      %v3379 = vrot.slane %v3377, 7
      %v3380 = vshll.u32 %v3176, 16
      %v3382 = vor.u32 %v3379, %v3380
      %v3383 = vrot.slane %v3379, 4
      %v3385 = vshrl.u32 %v3177, 16
      %v3387 = vrot.slane %v3385, 7
      %v3388 = vshll.u32 %v3177, 16
      %v3390 = vor.u32 %v3387, %v3388
      %v3391 = vsel %vm3324, %v3383, %v3390
      %v3392 = vrot.slane %v3387, 4
      %v3394 = vshrl.u32 %v3178, 16
      %v3396 = vrot.slane %v3394, 7
      %v3397 = vshll.u32 %v3178, 16
      %v3399 = vor.u32 %v3396, %v3397
      %v3400 = vrot.slane %v3396, 4
      %v3402 = vshrl.u32 %v3179, 16
      %v3404 = vrot.slane %v3402, 7
      %v3405 = vshll.u32 %v3179, 16
      %v3407 = vor.u32 %v3404, %v3405
      %v3408 = vsel %vm3324, %v3400, %v3407
      %v3409 = vrot.slane %v3404, 4
      %v3411 = vshrl.u32 %v3180, 16
      %v3413 = vrot.slane %v3411, 7
      %v3414 = vshll.u32 %v3180, 16
      %v3416 = vor.u32 %v3413, %v3414
      %v3417 = vrot.slane %v3413, 4
      %v3419 = vshrl.u32 %v3181, 16
      %v3421 = vrot.slane %v3419, 7
      %v3422 = vshll.u32 %v3181, 16
      %v3424 = vor.u32 %v3421, %v3422
      %v3425 = vsel %vm3324, %v3417, %v3424
      %v3426 = vrot.slane %v3421, 4
      %v3428 = vshrl.u32 %v3182, 16
      %v3430 = vrot.slane %v3428, 7
      %v3431 = vshll.u32 %v3182, 16
      %v3433 = vor.u32 %v3430, %v3431
      %v3434 = vrot.slane %v3430, 4
      %v3436 = vshrl.u32 %v3183, 16
      %v3438 = vrot.slane %v3436, 7
      %v3439 = vshll.u32 %v3183, 16
      %v3441 = vor.u32 %v3438, %v3439
      %v3442 = vsel %vm3324, %v3434, %v3441
      %v3443 = vrot.slane %v3438, 4
      %v3445 = vshrl.u32 %v3184, 16
      %v3447 = vrot.slane %v3445, 7
      %v3448 = vshll.u32 %v3184, 16
      %v3450 = vor.u32 %v3447, %v3448
      %v3451 = vrot.slane %v3447, 4
      %v3453 = vshrl.u32 %v3185, 16
      %v3455 = vrot.slane %v3453, 7
      %v3456 = vshll.u32 %v3185, 16
      %v3458 = vor.u32 %v3455, %v3456
      %v3459 = vsel %vm3324, %v3451, %v3458
      %v3460 = vrot.slane %v3455, 4
      %v3462 = vshrl.u32 %v3186, 16
      %v3464 = vrot.slane %v3462, 7
      %v3465 = vshll.u32 %v3186, 16
      %v3467 = vor.u32 %v3464, %v3465
      %v3468 = vrot.slane %v3464, 4
      %v3470 = vshrl.u32 %v3187, 16
      %v3472 = vrot.slane %v3470, 7
      %v3473 = vshll.u32 %v3187, 16
      %v3475 = vor.u32 %v3472, %v3473
      %v3476 = vsel %vm3324, %v3468, %v3475
      %v3477 = vrot.slane %v3472, 4
      %v3479 = vshrl.u32 %v3188, 16
      %v3481 = vrot.slane %v3479, 7
      %v3482 = vshll.u32 %v3188, 16
      %v3484 = vor.u32 %v3481, %v3482
      %v3485 = vrot.slane %v3481, 4
      %v3487 = vshrl.u32 %v3189, 16
      %v3489 = vrot.slane %v3487, 7
      %v3490 = vshll.u32 %v3189, 16
      %v3492 = vor.u32 %v3489, %v3490
      %v3493 = vsel %vm3324, %v3485, %v3492
      %v3494 = vrot.slane %v3489, 4
      %v3496 = vshrl.u32 %v3190, 16
      %v3498 = vrot.slane %v3496, 7
      %v3499 = vshll.u32 %v3190, 16
      %v3501 = vor.u32 %v3498, %v3499
      %v3502 = vrot.slane %v3498, 4
      %v3504 = vshrl.u32 %v3191, 16
      %v3506 = vrot.slane %v3504, 7
      %v3507 = vshll.u32 %v3191, 16
      %v3509 = vor.u32 %v3506, %v3507
      %v3510 = vsel %vm3324, %v3502, %v3509
      %v3511 = vrot.slane %v3506, 4
      %v3513 = vshrl.u32 %v3192, 16
      %v3515 = vrot.slane %v3513, 7
      %v3516 = vshll.u32 %v3192, 16
      %v3518 = vor.u32 %v3515, %v3516
      %v3519 = vrot.slane %v3515, 4
      %v3521 = vshrl.u32 %v3193, 16
      %v3523 = vrot.slane %v3521, 7
      %v3524 = vshll.u32 %v3193, 16
      %v3526 = vor.u32 %v3523, %v3524
      %v3527 = vsel %vm3324, %v3519, %v3526
      %v3528 = vrot.slane %v3523, 4
      %v3530 = vshrl.u32 %v3194, 16
      %v3532 = vrot.slane %v3530, 7
      %v3533 = vshll.u32 %v3194, 16
      %v3535 = vor.u32 %v3532, %v3533
      %v3536 = vrot.slane %v3532, 4
      %v3538 = vshrl.u32 %v3195, 16
      %v3540 = vrot.slane %v3538, 7
      %v3541 = vshll.u32 %v3195, 16
      %v3543 = vor.u32 %v3540, %v3541
      %v3544 = vsel %vm3324, %v3536, %v3543
      %v3545 = vrot.slane %v3540, 4
      %v3547 = vshrl.u32 %v3196, 16
      %v3549 = vrot.slane %v3547, 7
      %v3550 = vshll.u32 %v3196, 16
      %v3552 = vor.u32 %v3549, %v3550
      %v3553 = vrot.slane %v3549, 4
      %v3555 = vshrl.u32 %v3197, 16
      %v3557 = vrot.slane %v3555, 7
      %v3558 = vshll.u32 %v3197, 16
      %v3560 = vor.u32 %v3557, %v3558
      %v3561 = vsel %vm3324, %v3553, %v3560
      %v3562 = vrot.slane %v3557, 4
      %v3564 = vshrl.u32 %v3198, 16
      %v3566 = vrot.slane %v3564, 7
      %v3567 = vshll.u32 %v3198, 16
      %v3569 = vor.u32 %v3566, %v3567
      %v3570 = vrot.slane %v3566, 4
      %v3572 = vshrl.u32 %v3199, 16
      %v3574 = vrot.slane %v3572, 7
      %v3575 = vshll.u32 %v3199, 16
      %v3577 = vor.u32 %v3574, %v3575
      %v3578 = vsel %vm3324, %v3570, %v3577
      %v3579 = vrot.slane %v3574, 4
      %v3581 = vshrl.u32 %v3200, 16
      %v3583 = vrot.slane %v3581, 7
      %v3584 = vshll.u32 %v3200, 16
      %v3586 = vor.u32 %v3583, %v3584
      %v3587 = vrot.slane %v3583, 4
      %v3589 = vshrl.u32 %v3201, 16
      %v3591 = vrot.slane %v3589, 7
      %v3592 = vshll.u32 %v3201, 16
      %v3594 = vor.u32 %v3591, %v3592
      %v3595 = vsel %vm3324, %v3587, %v3594
      %v3596 = vrot.slane %v3591, 4
      %s3645 = scalar_lea.vmem [#allocation2], 12
      %vm3646 = vcmask 257024
      %vm3647 = vsmask.f32 7938
      %vm3648 = vmand %vm3646, %vm3647
      %v3649 = vld [vmem:[%s3645] sm:$0xf]
      %v3650 = vsel %vm3648, %v3331, %v3649
      %3651 = vst [vmem:[%s3645] sm:$0xf] %v3650
      %3652 = vst.msk [vmem:[%s3645 + $0x4] sm:$0xf] %vm3234, %v3340
      %vm3653 = vcmask 253952
      %vm3654 = vmand %vm3653, %vm3322
      %v3655 = vld [vmem:[%s3645 + $0x8] sm:$0x1]
      %v3656 = vsel %vm3654, %v3341, %v3655
      %3657 = vst [vmem:[%s3645 + $0x8] sm:$0x1] %v3656
      %v3658 = vld [vmem:[%s3645 + $0xc] sm:$0xf]
      %v3659 = vsel %vm3648, %v3348, %v3658
      %3660 = vst [vmem:[%s3645 + $0xc] sm:$0xf] %v3659
      %3661 = vst.msk [vmem:[%s3645 + $0x10] sm:$0xf] %vm3234, %v3357
      %v3662 = vld [vmem:[%s3645 + $0x14] sm:$0x1]
      %v3663 = vsel %vm3654, %v3358, %v3662
      %3664 = vst [vmem:[%s3645 + $0x14] sm:$0x1] %v3663
      %v3665 = vld [vmem:[%s3645 + $0x18] sm:$0xf]
      %v3666 = vsel %vm3648, %v3365, %v3665
      %3667 = vst [vmem:[%s3645 + $0x18] sm:$0xf] %v3666
      %3668 = vst.msk [vmem:[%s3645 + $0x1c] sm:$0xf] %vm3234, %v3374
      %v3669 = vld [vmem:[%s3645 + $0x20] sm:$0x1]
      %v3670 = vsel %vm3654, %v3375, %v3669
      %3671 = vst [vmem:[%s3645 + $0x20] sm:$0x1] %v3670
      %v3672 = vld [vmem:[%s3645 + $0x24] sm:$0xf]
      %v3673 = vsel %vm3648, %v3382, %v3672
      %3674 = vst [vmem:[%s3645 + $0x24] sm:$0xf] %v3673
      %3675 = vst.msk [vmem:[%s3645 + $0x28] sm:$0xf] %vm3234, %v3391
      %v3676 = vld [vmem:[%s3645 + $0x2c] sm:$0x1]
      %v3677 = vsel %vm3654, %v3392, %v3676
      %3678 = vst [vmem:[%s3645 + $0x2c] sm:$0x1] %v3677
      %v3679 = vld [vmem:[%s3645 + $0x30] sm:$0xf]
      %v3680 = vsel %vm3648, %v3399, %v3679
      %3681 = vst [vmem:[%s3645 + $0x30] sm:$0xf] %v3680
      %3682 = vst.msk [vmem:[%s3645 + $0x34] sm:$0xf] %vm3234, %v3408
      %v3683 = vld [vmem:[%s3645 + $0x38] sm:$0x1]
      %v3684 = vsel %vm3654, %v3409, %v3683
      %3685 = vst [vmem:[%s3645 + $0x38] sm:$0x1] %v3684
      %v3686 = vld [vmem:[%s3645 + $0x3c] sm:$0xf]
      %v3687 = vsel %vm3648, %v3416, %v3686
      %3688 = vst [vmem:[%s3645 + $0x3c] sm:$0xf] %v3687
      %3689 = vst.msk [vmem:[%s3645 + $0x40] sm:$0xf] %vm3234, %v3425
      %v3690 = vld [vmem:[%s3645 + $0x44] sm:$0x1]
      %v3691 = vsel %vm3654, %v3426, %v3690
      %3692 = vst [vmem:[%s3645 + $0x44] sm:$0x1] %v3691
      %v3693 = vld [vmem:[%s3645 + $0x48] sm:$0xf]
      %v3694 = vsel %vm3648, %v3433, %v3693
      %3695 = vst [vmem:[%s3645 + $0x48] sm:$0xf] %v3694
      %3696 = vst.msk [vmem:[%s3645 + $0x4c] sm:$0xf] %vm3234, %v3442
      %v3697 = vld [vmem:[%s3645 + $0x50] sm:$0x1]
      %v3698 = vsel %vm3654, %v3443, %v3697
      %3699 = vst [vmem:[%s3645 + $0x50] sm:$0x1] %v3698
      %v3700 = vld [vmem:[%s3645 + $0x54] sm:$0xf]
      %v3701 = vsel %vm3648, %v3450, %v3700
      %3702 = vst [vmem:[%s3645 + $0x54] sm:$0xf] %v3701
      %3703 = vst.msk [vmem:[%s3645 + $0x58] sm:$0xf] %vm3234, %v3459
      %v3704 = vld [vmem:[%s3645 + $0x5c] sm:$0x1]
      %v3705 = vsel %vm3654, %v3460, %v3704
      %3706 = vst [vmem:[%s3645 + $0x5c] sm:$0x1] %v3705
      %v3707 = vld [vmem:[%s3645 + $0x60] sm:$0xf]
      %v3708 = vsel %vm3648, %v3467, %v3707
      %3709 = vst [vmem:[%s3645 + $0x60] sm:$0xf] %v3708
      %3710 = vst.msk [vmem:[%s3645 + $0x64] sm:$0xf] %vm3234, %v3476
      %v3711 = vld [vmem:[%s3645 + $0x68] sm:$0x1]
      %v3712 = vsel %vm3654, %v3477, %v3711
      %3713 = vst [vmem:[%s3645 + $0x68] sm:$0x1] %v3712
      %v3714 = vld [vmem:[%s3645 + $0x6c] sm:$0xf]
      %v3715 = vsel %vm3648, %v3484, %v3714
      %3716 = vst [vmem:[%s3645 + $0x6c] sm:$0xf] %v3715
      %3717 = vst.msk [vmem:[%s3645 + $0x70] sm:$0xf] %vm3234, %v3493
      %v3718 = vld [vmem:[%s3645 + $0x74] sm:$0x1]
      %v3719 = vsel %vm3654, %v3494, %v3718
      %3720 = vst [vmem:[%s3645 + $0x74] sm:$0x1] %v3719
      %v3721 = vld [vmem:[%s3645 + $0x78] sm:$0xf]
      %v3722 = vsel %vm3648, %v3501, %v3721
      %3723 = vst [vmem:[%s3645 + $0x78] sm:$0xf] %v3722
      %3724 = vst.msk [vmem:[%s3645 + $0x7c] sm:$0xf] %vm3234, %v3510
      %v3725 = vld [vmem:[%s3645 + $0x80] sm:$0x1]
      %v3726 = vsel %vm3654, %v3511, %v3725
      %3727 = vst [vmem:[%s3645 + $0x80] sm:$0x1] %v3726
      %v3728 = vld [vmem:[%s3645 + $0x84] sm:$0xf]
      %v3729 = vsel %vm3648, %v3518, %v3728
      %3730 = vst [vmem:[%s3645 + $0x84] sm:$0xf] %v3729
      %3731 = vst.msk [vmem:[%s3645 + $0x88] sm:$0xf] %vm3234, %v3527
      %v3732 = vld [vmem:[%s3645 + $0x8c] sm:$0x1]
      %v3733 = vsel %vm3654, %v3528, %v3732
      %3734 = vst [vmem:[%s3645 + $0x8c] sm:$0x1] %v3733
      %v3735 = vld [vmem:[%s3645 + $0x90] sm:$0xf]
      %v3736 = vsel %vm3648, %v3535, %v3735
      %3737 = vst [vmem:[%s3645 + $0x90] sm:$0xf] %v3736
      %3738 = vst.msk [vmem:[%s3645 + $0x94] sm:$0xf] %vm3234, %v3544
      %v3739 = vld [vmem:[%s3645 + $0x98] sm:$0x1]
      %v3740 = vsel %vm3654, %v3545, %v3739
      %3741 = vst [vmem:[%s3645 + $0x98] sm:$0x1] %v3740
      %v3742 = vld [vmem:[%s3645 + $0x9c] sm:$0xf]
      %v3743 = vsel %vm3648, %v3552, %v3742
      %3744 = vst [vmem:[%s3645 + $0x9c] sm:$0xf] %v3743
      %3745 = vst.msk [vmem:[%s3645 + $0xa0] sm:$0xf] %vm3234, %v3561
      %v3746 = vld [vmem:[%s3645 + $0xa4] sm:$0x1]
      %v3747 = vsel %vm3654, %v3562, %v3746
      %3748 = vst [vmem:[%s3645 + $0xa4] sm:$0x1] %v3747
      %v3749 = vld [vmem:[%s3645 + $0xa8] sm:$0xf]
      %v3750 = vsel %vm3648, %v3569, %v3749
      %3751 = vst [vmem:[%s3645 + $0xa8] sm:$0xf] %v3750
      %3752 = vst.msk [vmem:[%s3645 + $0xac] sm:$0xf] %vm3234, %v3578
      %v3753 = vld [vmem:[%s3645 + $0xb0] sm:$0x1]
      %v3754 = vsel %vm3654, %v3579, %v3753
      %3755 = vst [vmem:[%s3645 + $0xb0] sm:$0x1] %v3754
      %v3756 = vld [vmem:[%s3645 + $0xb4] sm:$0xf]
      %v3757 = vsel %vm3648, %v3586, %v3756
      %3758 = vst [vmem:[%s3645 + $0xb4] sm:$0xf] %v3757
      %3759 = vst.msk [vmem:[%s3645 + $0xb8] sm:$0xf] %vm3234, %v3595
      %v3760 = vld [vmem:[%s3645 + $0xbc] sm:$0x1]
      %v3761 = vsel %vm3654, %v3596, %v3760
      %3762 = vst [vmem:[%s3645 + $0xbc] sm:$0x1] %v3761
      %v3763 = vld [vmem:[#allocation2] sm:$0xf]
      %v3764 = vld [vmem:[#allocation2 + $0x4] sm:$0xf]
      %v3765 = vld [vmem:[#allocation2 + $0xc] sm:$0xf]
      %v3766 = vld [vmem:[#allocation2 + $0x10] sm:$0xf]
      %v3767 = vld [vmem:[#allocation2 + $0x18] sm:$0xf]
      %v3768 = vld [vmem:[#allocation2 + $0x1c] sm:$0xf]
      %v3769 = vld [vmem:[#allocation2 + $0x24] sm:$0xf]
      %v3770 = vld [vmem:[#allocation2 + $0x28] sm:$0xf]
      %v3771 = vld [vmem:[#allocation2 + $0x30] sm:$0xf]
      %v3772 = vld [vmem:[#allocation2 + $0x34] sm:$0xf]
      %v3773 = vld [vmem:[#allocation2 + $0x3c] sm:$0xf]
      %v3774 = vld [vmem:[#allocation2 + $0x40] sm:$0xf]
      %v3775 = vld [vmem:[#allocation2 + $0x48] sm:$0xf]
      %v3776 = vld [vmem:[#allocation2 + $0x4c] sm:$0xf]
      %v3777 = vld [vmem:[#allocation2 + $0x54] sm:$0xf]
      %v3778 = vld [vmem:[#allocation2 + $0x58] sm:$0xf]
      %v3779 = vld [vmem:[#allocation2 + $0x60] sm:$0xf]
      %v3780 = vld [vmem:[#allocation2 + $0x64] sm:$0xf]
      %v3781 = vld [vmem:[#allocation2 + $0x6c] sm:$0xf]
      %v3782 = vld [vmem:[#allocation2 + $0x70] sm:$0xf]
      %v3783 = vld [vmem:[#allocation2 + $0x78] sm:$0xf]
      %v3784 = vld [vmem:[#allocation2 + $0x7c] sm:$0xf]
      %v3785 = vld [vmem:[#allocation2 + $0x84] sm:$0xf]
      %v3786 = vld [vmem:[#allocation2 + $0x88] sm:$0xf]
      %v3787 = vld [vmem:[#allocation2 + $0x90] sm:$0xf]
      %v3788 = vld [vmem:[#allocation2 + $0x94] sm:$0xf]
      %v3789 = vld [vmem:[#allocation2 + $0x9c] sm:$0xf]
      %v3790 = vld [vmem:[#allocation2 + $0xa0] sm:$0xf]
      %v3791 = vld [vmem:[#allocation2 + $0xa8] sm:$0xf]
      %v3792 = vld [vmem:[#allocation2 + $0xac] sm:$0xf]
      %v3793 = vld [vmem:[#allocation2 + $0xb4] sm:$0xf]
      %v3794 = vld [vmem:[#allocation2 + $0xb8] sm:$0xf]
      %v3795 = vld [vmem:[%s3] sm:$0xf]
      %v3796 = vld [vmem:[%s3 + $0x4] sm:$0xf]
      %v3797 = vld [vmem:[%s3 + $0x8] sm:$0xf]
      %v3798 = vld [vmem:[%s3 + $0xc] sm:$0xf]
      %v3799 = vld [vmem:[#allocation2 + $0x8] sm:$0x1]
      %v3800 = vld [vmem:[#allocation2 + $0x14] sm:$0x1]
      %v3801 = vld [vmem:[#allocation2 + $0x20] sm:$0x1]
      %v3802 = vld [vmem:[#allocation2 + $0x2c] sm:$0x1]
      %v3803 = vld [vmem:[#allocation2 + $0x38] sm:$0x1]
      %v3804 = vld [vmem:[#allocation2 + $0x44] sm:$0x1]
      %v3805 = vld [vmem:[#allocation2 + $0x50] sm:$0x1]
      %v3806 = vld [vmem:[#allocation2 + $0x5c] sm:$0x1]
      %v3807 = vld [vmem:[#allocation2 + $0x68] sm:$0x1]
      %v3808 = vld [vmem:[#allocation2 + $0x74] sm:$0x1]
      %v3809 = vld [vmem:[#allocation2 + $0x80] sm:$0x1]
      %v3810 = vld [vmem:[#allocation2 + $0x8c] sm:$0x1]
      %v3811 = vld [vmem:[#allocation2 + $0x98] sm:$0x1]
      %v3812 = vld [vmem:[#allocation2 + $0xa4] sm:$0x1]
      %v3813 = vld [vmem:[#allocation2 + $0xb0] sm:$0x1]
      %v3814 = vld [vmem:[#allocation2 + $0xbc] sm:$0x1]
      %v3816 = vshrl.u32 %v3763, 16
      %v3818 = vrot.slane %v3816, 4
      %v3819 = vshll.u32 %v3763, 16
      %v3821 = vrot.slane %v3819, 5
      %v3822 = vor.u32 %v3818, %v3821
      %v3823 = vrot.slane %v3822, 4
      %v3825 = vshll.u32 %v3764, 16
      %v3827 = vrot.slane %v3825, 5
      %v3828 = vsel %vm377, %v3823, %v3827
      %v3829 = vshrl.u32 %v3764, 16
      %v3831 = vrot.slane %v3829, 4
      %v3832 = vor.u32 %v3831, %v3827
      %v3833 = vrot.slane %v3832, 4
      %v3835 = vshll.u32 %v3799, 16
      %v3837 = vrot.slane %v3835, 5
      %v3838 = vsel %vm377, %v3833, %v3837
      %v3840 = vshrl.u32 %v3765, 16
      %v3842 = vrot.slane %v3840, 4
      %v3843 = vshll.u32 %v3765, 16
      %v3845 = vrot.slane %v3843, 5
      %v3846 = vor.u32 %v3842, %v3845
      %v3847 = vrot.slane %v3846, 4
      %v3849 = vshll.u32 %v3766, 16
      %v3851 = vrot.slane %v3849, 5
      %v3852 = vsel %vm377, %v3847, %v3851
      %v3853 = vshrl.u32 %v3766, 16
      %v3855 = vrot.slane %v3853, 4
      %v3856 = vor.u32 %v3855, %v3851
      %v3857 = vrot.slane %v3856, 4
      %v3859 = vshll.u32 %v3800, 16
      %v3861 = vrot.slane %v3859, 5
      %v3862 = vsel %vm377, %v3857, %v3861
      %v3864 = vshrl.u32 %v3767, 16
      %v3866 = vrot.slane %v3864, 4
      %v3867 = vshll.u32 %v3767, 16
      %v3869 = vrot.slane %v3867, 5
      %v3870 = vor.u32 %v3866, %v3869
      %v3871 = vrot.slane %v3870, 4
      %v3873 = vshll.u32 %v3768, 16
      %v3875 = vrot.slane %v3873, 5
      %v3876 = vsel %vm377, %v3871, %v3875
      %v3877 = vshrl.u32 %v3768, 16
      %v3879 = vrot.slane %v3877, 4
      %v3880 = vor.u32 %v3879, %v3875
      %v3881 = vrot.slane %v3880, 4
      %v3883 = vshll.u32 %v3801, 16
      %v3885 = vrot.slane %v3883, 5
      %v3886 = vsel %vm377, %v3881, %v3885
      %v3888 = vshrl.u32 %v3769, 16
      %v3890 = vrot.slane %v3888, 4
      %v3891 = vshll.u32 %v3769, 16
      %v3893 = vrot.slane %v3891, 5
      %v3894 = vor.u32 %v3890, %v3893
      %v3895 = vrot.slane %v3894, 4
      %v3897 = vshll.u32 %v3770, 16
      %v3899 = vrot.slane %v3897, 5
      %v3900 = vsel %vm377, %v3895, %v3899
      %v3901 = vshrl.u32 %v3770, 16
      %v3903 = vrot.slane %v3901, 4
      %v3904 = vor.u32 %v3903, %v3899
      %v3905 = vrot.slane %v3904, 4
      %v3907 = vshll.u32 %v3802, 16
      %v3909 = vrot.slane %v3907, 5
      %v3910 = vsel %vm377, %v3905, %v3909
      %v3912 = vshrl.u32 %v3771, 16
      %v3914 = vrot.slane %v3912, 4
      %v3915 = vshll.u32 %v3771, 16
      %v3917 = vrot.slane %v3915, 5
      %v3918 = vor.u32 %v3914, %v3917
      %v3919 = vrot.slane %v3918, 4
      %v3921 = vshll.u32 %v3772, 16
      %v3923 = vrot.slane %v3921, 5
      %v3924 = vsel %vm377, %v3919, %v3923
      %v3925 = vshrl.u32 %v3772, 16
      %v3927 = vrot.slane %v3925, 4
      %v3928 = vor.u32 %v3927, %v3923
      %v3929 = vrot.slane %v3928, 4
      %v3931 = vshll.u32 %v3803, 16
      %v3933 = vrot.slane %v3931, 5
      %v3934 = vsel %vm377, %v3929, %v3933
      %v3936 = vshrl.u32 %v3773, 16
      %v3938 = vrot.slane %v3936, 4
      %v3939 = vshll.u32 %v3773, 16
      %v3941 = vrot.slane %v3939, 5
      %v3942 = vor.u32 %v3938, %v3941
      %v3943 = vrot.slane %v3942, 4
      %v3945 = vshll.u32 %v3774, 16
      %v3947 = vrot.slane %v3945, 5
      %v3948 = vsel %vm377, %v3943, %v3947
      %v3949 = vshrl.u32 %v3774, 16
      %v3951 = vrot.slane %v3949, 4
      %v3952 = vor.u32 %v3951, %v3947
      %v3953 = vrot.slane %v3952, 4
      %v3955 = vshll.u32 %v3804, 16
      %v3957 = vrot.slane %v3955, 5
      %v3958 = vsel %vm377, %v3953, %v3957
      %v3960 = vshrl.u32 %v3775, 16
      %v3962 = vrot.slane %v3960, 4
      %v3963 = vshll.u32 %v3775, 16
      %v3965 = vrot.slane %v3963, 5
      %v3966 = vor.u32 %v3962, %v3965
      %v3967 = vrot.slane %v3966, 4
      %v3969 = vshll.u32 %v3776, 16
      %v3971 = vrot.slane %v3969, 5
      %v3972 = vsel %vm377, %v3967, %v3971
      %v3973 = vshrl.u32 %v3776, 16
      %v3975 = vrot.slane %v3973, 4
      %v3976 = vor.u32 %v3975, %v3971
      %v3977 = vrot.slane %v3976, 4
      %v3979 = vshll.u32 %v3805, 16
      %v3981 = vrot.slane %v3979, 5
      %v3982 = vsel %vm377, %v3977, %v3981
      %v3984 = vshrl.u32 %v3777, 16
      %v3986 = vrot.slane %v3984, 4
      %v3987 = vshll.u32 %v3777, 16
      %v3989 = vrot.slane %v3987, 5
      %v3990 = vor.u32 %v3986, %v3989
      %v3991 = vrot.slane %v3990, 4
      %v3993 = vshll.u32 %v3778, 16
      %v3995 = vrot.slane %v3993, 5
      %v3996 = vsel %vm377, %v3991, %v3995
      %v3997 = vshrl.u32 %v3778, 16
      %v3999 = vrot.slane %v3997, 4
      %v4000 = vor.u32 %v3999, %v3995
      %v4001 = vrot.slane %v4000, 4
      %v4003 = vshll.u32 %v3806, 16
      %v4005 = vrot.slane %v4003, 5
      %v4006 = vsel %vm377, %v4001, %v4005
      %v4008 = vshrl.u32 %v3779, 16
      %v4010 = vrot.slane %v4008, 4
      %v4011 = vshll.u32 %v3779, 16
      %v4013 = vrot.slane %v4011, 5
      %v4014 = vor.u32 %v4010, %v4013
      %v4015 = vrot.slane %v4014, 4
      %v4017 = vshll.u32 %v3780, 16
      %v4019 = vrot.slane %v4017, 5
      %v4020 = vsel %vm377, %v4015, %v4019
      %v4021 = vshrl.u32 %v3780, 16
      %v4023 = vrot.slane %v4021, 4
      %v4024 = vor.u32 %v4023, %v4019
      %v4025 = vrot.slane %v4024, 4
      %v4027 = vshll.u32 %v3807, 16
      %v4029 = vrot.slane %v4027, 5
      %v4030 = vsel %vm377, %v4025, %v4029
      %v4032 = vshrl.u32 %v3781, 16
      %v4034 = vrot.slane %v4032, 4
      %v4035 = vshll.u32 %v3781, 16
      %v4037 = vrot.slane %v4035, 5
      %v4038 = vor.u32 %v4034, %v4037
      %v4039 = vrot.slane %v4038, 4
      %v4041 = vshll.u32 %v3782, 16
      %v4043 = vrot.slane %v4041, 5
      %v4044 = vsel %vm377, %v4039, %v4043
      %v4045 = vshrl.u32 %v3782, 16
      %v4047 = vrot.slane %v4045, 4
      %v4048 = vor.u32 %v4047, %v4043
      %v4049 = vrot.slane %v4048, 4
      %v4051 = vshll.u32 %v3808, 16
      %v4053 = vrot.slane %v4051, 5
      %v4054 = vsel %vm377, %v4049, %v4053
      %v4056 = vshrl.u32 %v3783, 16
      %v4058 = vrot.slane %v4056, 4
      %v4059 = vshll.u32 %v3783, 16
      %v4061 = vrot.slane %v4059, 5
      %v4062 = vor.u32 %v4058, %v4061
      %v4063 = vrot.slane %v4062, 4
      %v4065 = vshll.u32 %v3784, 16
      %v4067 = vrot.slane %v4065, 5
      %v4068 = vsel %vm377, %v4063, %v4067
      %v4069 = vshrl.u32 %v3784, 16
      %v4071 = vrot.slane %v4069, 4
      %v4072 = vor.u32 %v4071, %v4067
      %v4073 = vrot.slane %v4072, 4
      %v4075 = vshll.u32 %v3809, 16
      %v4077 = vrot.slane %v4075, 5
      %v4078 = vsel %vm377, %v4073, %v4077
      %v4080 = vshrl.u32 %v3785, 16
      %v4082 = vrot.slane %v4080, 4
      %v4083 = vshll.u32 %v3785, 16
      %v4085 = vrot.slane %v4083, 5
      %v4086 = vor.u32 %v4082, %v4085
      %v4087 = vrot.slane %v4086, 4
      %v4089 = vshll.u32 %v3786, 16
      %v4091 = vrot.slane %v4089, 5
      %v4092 = vsel %vm377, %v4087, %v4091
      %v4093 = vshrl.u32 %v3786, 16
      %v4095 = vrot.slane %v4093, 4
      %v4096 = vor.u32 %v4095, %v4091
      %v4097 = vrot.slane %v4096, 4
      %v4099 = vshll.u32 %v3810, 16
      %v4101 = vrot.slane %v4099, 5
      %v4102 = vsel %vm377, %v4097, %v4101
      %v4104 = vshrl.u32 %v3787, 16
      %v4106 = vrot.slane %v4104, 4
      %v4107 = vshll.u32 %v3787, 16
      %v4109 = vrot.slane %v4107, 5
      %v4110 = vor.u32 %v4106, %v4109
      %v4111 = vrot.slane %v4110, 4
      %v4113 = vshll.u32 %v3788, 16
      %v4115 = vrot.slane %v4113, 5
      %v4116 = vsel %vm377, %v4111, %v4115
      %v4117 = vshrl.u32 %v3788, 16
      %v4119 = vrot.slane %v4117, 4
      %v4120 = vor.u32 %v4119, %v4115
      %v4121 = vrot.slane %v4120, 4
      %v4123 = vshll.u32 %v3811, 16
      %v4125 = vrot.slane %v4123, 5
      %v4126 = vsel %vm377, %v4121, %v4125
      %v4128 = vshrl.u32 %v3789, 16
      %v4130 = vrot.slane %v4128, 4
      %v4131 = vshll.u32 %v3789, 16
      %v4133 = vrot.slane %v4131, 5
      %v4134 = vor.u32 %v4130, %v4133
      %v4135 = vrot.slane %v4134, 4
      %v4137 = vshll.u32 %v3790, 16
      %v4139 = vrot.slane %v4137, 5
      %v4140 = vsel %vm377, %v4135, %v4139
      %v4141 = vshrl.u32 %v3790, 16
      %v4143 = vrot.slane %v4141, 4
      %v4144 = vor.u32 %v4143, %v4139
      %v4145 = vrot.slane %v4144, 4
      %v4147 = vshll.u32 %v3812, 16
      %v4149 = vrot.slane %v4147, 5
      %v4150 = vsel %vm377, %v4145, %v4149
      %v4152 = vshrl.u32 %v3791, 16
      %v4154 = vrot.slane %v4152, 4
      %v4155 = vshll.u32 %v3791, 16
      %v4157 = vrot.slane %v4155, 5
      %v4158 = vor.u32 %v4154, %v4157
      %v4159 = vrot.slane %v4158, 4
      %v4161 = vshll.u32 %v3792, 16
      %v4163 = vrot.slane %v4161, 5
      %v4164 = vsel %vm377, %v4159, %v4163
      %v4165 = vshrl.u32 %v3792, 16
      %v4167 = vrot.slane %v4165, 4
      %v4168 = vor.u32 %v4167, %v4163
      %v4169 = vrot.slane %v4168, 4
      %v4171 = vshll.u32 %v3813, 16
      %v4173 = vrot.slane %v4171, 5
      %v4174 = vsel %vm377, %v4169, %v4173
      %v4176 = vshrl.u32 %v3793, 16
      %v4178 = vrot.slane %v4176, 4
      %v4179 = vshll.u32 %v3793, 16
      %v4181 = vrot.slane %v4179, 5
      %v4182 = vor.u32 %v4178, %v4181
      %v4183 = vrot.slane %v4182, 4
      %v4185 = vshll.u32 %v3794, 16
      %v4187 = vrot.slane %v4185, 5
      %v4188 = vsel %vm377, %v4183, %v4187
      %v4189 = vshrl.u32 %v3794, 16
      %v4191 = vrot.slane %v4189, 4
      %v4192 = vor.u32 %v4191, %v4187
      %v4193 = vrot.slane %v4192, 4
      %v4195 = vshll.u32 %v3814, 16
      %v4197 = vrot.slane %v4195, 5
      %v4198 = vsel %vm377, %v4193, %v4197
      %s4199 = scalar_lea.vmem %s3, 16
      %v4200 = vld [vmem:[%s4199] sm:$0xf]
      %v4201 = vld [vmem:[%s4199 + $0x4] sm:$0xf]
      %v4202 = vld [vmem:[%s4199 + $0x8] sm:$0xf]
      %v4203 = vld [vmem:[%s4199 + $0xc] sm:$0xf]
      %v4204 = vunpack.c.l.b16 %v3828
      %v4205 = vunpack.c.l.b16 %v3838
      %v4206 = vunpack.c.l.b16 %v3852
      %v4207 = vunpack.c.l.b16 %v3862
      %v4208 = vunpack.c.l.b16 %v3876
      %v4209 = vunpack.c.l.b16 %v3886
      %v4210 = vunpack.c.l.b16 %v3900
      %v4211 = vunpack.c.l.b16 %v3910
      %v4212 = vunpack.c.l.b16 %v3924
      %v4213 = vunpack.c.l.b16 %v3934
      %v4214 = vunpack.c.l.b16 %v3948
      %v4215 = vunpack.c.l.b16 %v3958
      %v4216 = vunpack.c.l.b16 %v3972
      %v4217 = vunpack.c.l.b16 %v3982
      %v4218 = vunpack.c.l.b16 %v3996
      %v4219 = vunpack.c.l.b16 %v4006
      %v4220 = vunpack.c.l.b16 %v4020
      %v4221 = vunpack.c.l.b16 %v4030
      %v4222 = vunpack.c.l.b16 %v4044
      %v4223 = vunpack.c.l.b16 %v4054
      %v4224 = vunpack.c.l.b16 %v4068
      %v4225 = vunpack.c.l.b16 %v4078
      %v4226 = vunpack.c.l.b16 %v4092
      %v4227 = vunpack.c.l.b16 %v4102
      %v4228 = vunpack.c.l.b16 %v4116
      %v4229 = vunpack.c.l.b16 %v4126
      %v4230 = vunpack.c.l.b16 %v4140
      %v4231 = vunpack.c.l.b16 %v4150
      %v4232 = vunpack.c.l.b16 %v4164
      %v4233 = vunpack.c.l.b16 %v4174
      %v4234 = vunpack.c.l.b16 %v4188
      %v4235 = vunpack.c.l.b16 %v4198
      %v4236 = vpack.c.b16 %v4205, %v4204
      %v4237 = vpack.c.b16 %v4207, %v4206
      %v4238 = vpack.c.b16 %v4209, %v4208
      %v4239 = vpack.c.b16 %v4211, %v4210
      %v4240 = vpack.c.b16 %v4213, %v4212
      %v4241 = vpack.c.b16 %v4215, %v4214
      %v4242 = vpack.c.b16 %v4217, %v4216
      %v4243 = vpack.c.b16 %v4219, %v4218
      %v4244 = vpack.c.b16 %v4221, %v4220
      %v4245 = vpack.c.b16 %v4223, %v4222
      %v4246 = vpack.c.b16 %v4225, %v4224
      %v4247 = vpack.c.b16 %v4227, %v4226
      %v4248 = vpack.c.b16 %v4229, %v4228
      %v4249 = vpack.c.b16 %v4231, %v4230
      %v4250 = vpack.c.b16 %v4233, %v4232
      %v4251 = vpack.c.b16 %v4235, %v4234
      %v4256 = vunpack.c.l.b16 %v4200
      %v4257 = vunpack.c.l.b16 %v4201
      %v4258 = vunpack.c.l.b16 %v4202
      %v4259 = vunpack.c.l.b16 %v4203
      %v4260 = vpack.c.b16 %v4257, %v4256
      %v4261 = vpack.c.b16 %v4259, %v4258
      %vm4264 = vcmask 261120
      %v4266 = vsel %vm4264, %v4236, 0
      %v4269 = vsel %vm4264, %v4237, 0
      %v4272 = vsel %vm4264, %v4238, 0
      %v4275 = vsel %vm4264, %v4239, 0
      %v4278 = vsel %vm4264, %v4240, 0
      %v4281 = vsel %vm4264, %v4241, 0
      %v4284 = vsel %vm4264, %v4242, 0
      %v4287 = vsel %vm4264, %v4243, 0
      %v4290 = vsel %vm4264, %v4244, 0
      %v4293 = vsel %vm4264, %v4245, 0
      %v4296 = vsel %vm4264, %v4246, 0
      %v4299 = vsel %vm4264, %v4247, 0
      %v4302 = vsel %vm4264, %v4248, 0
      %v4305 = vsel %vm4264, %v4249, 0
      %v4308 = vsel %vm4264, %v4250, 0
      %v4311 = vsel %vm4264, %v4251, 0
      %4313 = vmatprep.subr.bf16.mxu0 0
      %4314 = vmatpush1.bf16.msra.mxu0 %v4260
      %4315 = vmatprep.subr.bf16.mxu0 0
      %4316 = vmatpush1.bf16.msra.mxu0 %v4261
      %4317 = vmatprep.subr.bf16.mxu0 0
      %4318 = vmatpush1.bf16.msra.mxu0 0
      %4319 = vmatprep.subr.bf16.mxu0 0
      %4320 = vmatpush1.bf16.msra.mxu0 0
      %4321 = vmatprep.subr.bf16.mxu0 0
      %4322 = vmatpush1.bf16.msra.mxu0 0
      %4323 = vmatprep.subr.bf16.mxu0 0
      %4324 = vmatpush1.bf16.msra.mxu0 0
      %4325 = vmatprep.subr.bf16.mxu0 0
      %4326 = vmatpush1.bf16.msra.mxu0 0
      %4327 = vmatprep.subr.bf16.mxu0 0
      %4328 = vmatpush1.bf16.msra.mxu0 0
      %4329 = vmatprep.subr.bf16.mxu0 0
      %4330 = vmatpush1.bf16.msra.mxu0 0
      %4331 = vmatprep.subr.bf16.mxu0 0
      %4332 = vmatpush1.bf16.msra.mxu0 0
      %4333 = vmatprep.subr.bf16.mxu0 0
      %4334 = vmatpush1.bf16.msra.mxu0 0
      %4335 = vmatprep.subr.bf16.mxu0 0
      %4336 = vmatpush1.bf16.msra.mxu0 0
      %4337 = vmatprep.subr.bf16.mxu0 0
      %4338 = vmatpush1.bf16.msra.mxu0 0
      %4339 = vmatprep.subr.bf16.mxu0 0
      %4340 = vmatpush1.bf16.msra.mxu0 0
      %4341 = vmatprep.subr.bf16.mxu0 0
      %4342 = vmatpush1.bf16.msra.mxu0 0
      %4343 = vmatprep.subr.bf16.mxu0 0
      %4344 = vmatpush1.bf16.msra.mxu0 0
      %4345 = vmatprep.mubr.bf16.mxu0 0
      %4346 = vmatmul.mubr.bf16.gmra.mrb[0].mxu0 %v4266
      %v4347 = vpop.f32.mrb[0].mxu0
      %v4348 = vadd.f32 0.0, %v4347
      %v4349 = vpop.f32.mrb[0].mxu0
      %v4350 = vpop.f32.mrb[0].mxu0
      %v4351 = vadd.f32 0.0, %v4350
      %v4352 = vpop.f32.mrb[0].mxu0
      %4353 = vmatprep.mubr.bf16.mxu0 0
      %4354 = vmatmul.mubr.bf16.gmra.mrb[0].mxu0 %v4269
      %v4355 = vpop.f32.mrb[0].mxu0
      %v4356 = vadd.f32 0.0, %v4355
      %v4357 = vpop.f32.mrb[0].mxu0
      %v4358 = vpop.f32.mrb[0].mxu0
      %v4359 = vadd.f32 0.0, %v4358
      %v4360 = vpop.f32.mrb[0].mxu0
      %4361 = vmatprep.mubr.bf16.mxu0 0
      %4362 = vmatmul.mubr.bf16.gmra.mrb[0].mxu0 %v4272
      %v4363 = vpop.f32.mrb[0].mxu0
      %v4364 = vadd.f32 0.0, %v4363
      %v4365 = vpop.f32.mrb[0].mxu0
      %v4366 = vpop.f32.mrb[0].mxu0
      %v4367 = vadd.f32 0.0, %v4366
      %v4368 = vpop.f32.mrb[0].mxu0
      %4369 = vmatprep.mubr.bf16.mxu0 0
      %4370 = vmatmul.mubr.bf16.gmra.mrb[0].mxu0 %v4275
      %v4371 = vpop.f32.mrb[0].mxu0
      %v4372 = vadd.f32 0.0, %v4371
      %v4373 = vpop.f32.mrb[0].mxu0
      %v4374 = vpop.f32.mrb[0].mxu0
      %v4375 = vadd.f32 0.0, %v4374
      %v4376 = vpop.f32.mrb[0].mxu0
      %4377 = vmatprep.mubr.bf16.mxu0 0
      %4378 = vmatmul.mubr.bf16.gmra.mrb[0].mxu0 %v4278
      %v4379 = vpop.f32.mrb[0].mxu0
      %v4380 = vadd.f32 0.0, %v4379
      %v4381 = vpop.f32.mrb[0].mxu0
      %v4382 = vpop.f32.mrb[0].mxu0
      %v4383 = vadd.f32 0.0, %v4382
      %v4384 = vpop.f32.mrb[0].mxu0
      %4385 = vmatprep.mubr.bf16.mxu0 0
      %4386 = vmatmul.mubr.bf16.gmra.mrb[0].mxu0 %v4281
      %v4387 = vpop.f32.mrb[0].mxu0
      %v4388 = vadd.f32 0.0, %v4387
      %v4389 = vpop.f32.mrb[0].mxu0
      %v4390 = vpop.f32.mrb[0].mxu0
      %v4391 = vadd.f32 0.0, %v4390
      %v4392 = vpop.f32.mrb[0].mxu0
      %4393 = vmatprep.mubr.bf16.mxu0 0
      %4394 = vmatmul.mubr.bf16.gmra.mrb[0].mxu0 %v4284
      %v4395 = vpop.f32.mrb[0].mxu0
      %v4396 = vadd.f32 0.0, %v4395
      %v4397 = vpop.f32.mrb[0].mxu0
      %v4398 = vpop.f32.mrb[0].mxu0
      %v4399 = vadd.f32 0.0, %v4398
      %v4400 = vpop.f32.mrb[0].mxu0
      %4401 = vmatprep.mubr.bf16.mxu0 0
      %4402 = vmatmul.mubr.bf16.gmra.mrb[0].mxu0 %v4287
      %v4403 = vpop.f32.mrb[0].mxu0
      %v4404 = vadd.f32 0.0, %v4403
      %v4405 = vpop.f32.mrb[0].mxu0
      %v4406 = vpop.f32.mrb[0].mxu0
      %v4407 = vadd.f32 0.0, %v4406
      %v4408 = vpop.f32.mrb[0].mxu0
      %4409 = vmatprep.mubr.bf16.mxu0 0
      %4410 = vmatmul.mubr.bf16.gmra.mrb[0].mxu0 %v4290
      %v4411 = vpop.f32.mrb[0].mxu0
      %v4412 = vadd.f32 0.0, %v4411
      %v4413 = vpop.f32.mrb[0].mxu0
      %v4414 = vpop.f32.mrb[0].mxu0
      %v4415 = vadd.f32 0.0, %v4414
      %v4416 = vpop.f32.mrb[0].mxu0
      %4417 = vmatprep.mubr.bf16.mxu0 0
      %4418 = vmatmul.mubr.bf16.gmra.mrb[0].mxu0 %v4293
      %v4419 = vpop.f32.mrb[0].mxu0
      %v4420 = vadd.f32 0.0, %v4419
      %v4421 = vpop.f32.mrb[0].mxu0
      %v4422 = vpop.f32.mrb[0].mxu0
      %v4423 = vadd.f32 0.0, %v4422
      %v4424 = vpop.f32.mrb[0].mxu0
      %4425 = vmatprep.mubr.bf16.mxu0 0
      %4426 = vmatmul.mubr.bf16.gmra.mrb[0].mxu0 %v4296
      %v4427 = vpop.f32.mrb[0].mxu0
      %v4428 = vadd.f32 0.0, %v4427
      %v4429 = vpop.f32.mrb[0].mxu0
      %v4430 = vpop.f32.mrb[0].mxu0
      %v4431 = vadd.f32 0.0, %v4430
      %v4432 = vpop.f32.mrb[0].mxu0
      %4433 = vmatprep.mubr.bf16.mxu0 0
      %4434 = vmatmul.mubr.bf16.gmra.mrb[0].mxu0 %v4299
      %v4435 = vpop.f32.mrb[0].mxu0
      %v4436 = vadd.f32 0.0, %v4435
      %v4437 = vpop.f32.mrb[0].mxu0
      %v4438 = vpop.f32.mrb[0].mxu0
      %v4439 = vadd.f32 0.0, %v4438
      %v4440 = vpop.f32.mrb[0].mxu0
      %4441 = vmatprep.mubr.bf16.mxu0 0
      %4442 = vmatmul.mubr.bf16.gmra.mrb[0].mxu0 %v4302
      %v4443 = vpop.f32.mrb[0].mxu0
      %v4444 = vadd.f32 0.0, %v4443
      %v4445 = vpop.f32.mrb[0].mxu0
      %v4446 = vpop.f32.mrb[0].mxu0
      %v4447 = vadd.f32 0.0, %v4446
      %v4448 = vpop.f32.mrb[0].mxu0
      %4449 = vmatprep.mubr.bf16.mxu0 0
      %4450 = vmatmul.mubr.bf16.gmra.mrb[0].mxu0 %v4305
      %v4451 = vpop.f32.mrb[0].mxu0
      %v4452 = vadd.f32 0.0, %v4451
      %v4453 = vpop.f32.mrb[0].mxu0
      %v4454 = vpop.f32.mrb[0].mxu0
      %v4455 = vadd.f32 0.0, %v4454
      %v4456 = vpop.f32.mrb[0].mxu0
      %4457 = vmatprep.mubr.bf16.mxu0 0
      %4458 = vmatmul.mubr.bf16.gmra.mrb[0].mxu0 %v4308
      %v4459 = vpop.f32.mrb[0].mxu0
      %v4460 = vadd.f32 0.0, %v4459
      %v4461 = vpop.f32.mrb[0].mxu0
      %v4462 = vpop.f32.mrb[0].mxu0
      %v4463 = vadd.f32 0.0, %v4462
      %v4464 = vpop.f32.mrb[0].mxu0
      %4465 = vmatprep.mubr.bf16.mxu0 0
      %4466 = vmatmul.mubr.bf16.gmra.mrb[0].mxu0 %v4311
      %v4467 = vpop.f32.mrb[0].mxu0
      %v4468 = vadd.f32 0.0, %v4467
      %v4469 = vpop.f32.mrb[0].mxu0
      %v4470 = vpop.f32.mrb[0].mxu0
      %v4471 = vadd.f32 0.0, %v4470
      %v4472 = vpop.f32.mrb[0].mxu0
      %4473 = vdwg.mxu0
      %v4506 = vunpack.c.l.b16 %v3763
      %v4507 = vunpack.c.l.b16 %v3764
      %v4508 = vunpack.c.l.b16 %v3765
      %v4509 = vunpack.c.l.b16 %v3766
      %v4510 = vunpack.c.l.b16 %v3767
      %v4511 = vunpack.c.l.b16 %v3768
      %v4512 = vunpack.c.l.b16 %v3769
      %v4513 = vunpack.c.l.b16 %v3770
      %v4514 = vunpack.c.l.b16 %v3771
      %v4515 = vunpack.c.l.b16 %v3772
      %v4516 = vunpack.c.l.b16 %v3773
      %v4517 = vunpack.c.l.b16 %v3774
      %v4518 = vunpack.c.l.b16 %v3775
      %v4519 = vunpack.c.l.b16 %v3776
      %v4520 = vunpack.c.l.b16 %v3777
      %v4521 = vunpack.c.l.b16 %v3778
      %v4522 = vunpack.c.l.b16 %v3779
      %v4523 = vunpack.c.l.b16 %v3780
      %v4524 = vunpack.c.l.b16 %v3781
      %v4525 = vunpack.c.l.b16 %v3782
      %v4526 = vunpack.c.l.b16 %v3783
      %v4527 = vunpack.c.l.b16 %v3784
      %v4528 = vunpack.c.l.b16 %v3785
      %v4529 = vunpack.c.l.b16 %v3786
      %v4530 = vunpack.c.l.b16 %v3787
      %v4531 = vunpack.c.l.b16 %v3788
      %v4532 = vunpack.c.l.b16 %v3789
      %v4533 = vunpack.c.l.b16 %v3790
      %v4534 = vunpack.c.l.b16 %v3791
      %v4535 = vunpack.c.l.b16 %v3792
      %v4536 = vunpack.c.l.b16 %v3793
      %v4537 = vunpack.c.l.b16 %v3794
      %v4538 = vpack.c.b16 %v4507, %v4506
      %v4539 = vpack.c.b16 %v4509, %v4508
      %v4540 = vpack.c.b16 %v4511, %v4510
      %v4541 = vpack.c.b16 %v4513, %v4512
      %v4542 = vpack.c.b16 %v4515, %v4514
      %v4543 = vpack.c.b16 %v4517, %v4516
      %v4544 = vpack.c.b16 %v4519, %v4518
      %v4545 = vpack.c.b16 %v4521, %v4520
      %v4546 = vpack.c.b16 %v4523, %v4522
      %v4547 = vpack.c.b16 %v4525, %v4524
      %v4548 = vpack.c.b16 %v4527, %v4526
      %v4549 = vpack.c.b16 %v4529, %v4528
      %v4550 = vpack.c.b16 %v4531, %v4530
      %v4551 = vpack.c.b16 %v4533, %v4532
      %v4552 = vpack.c.b16 %v4535, %v4534
      %v4553 = vpack.c.b16 %v4537, %v4536
      %v4558 = vunpack.c.l.b16 %v3795
      %v4559 = vunpack.c.l.b16 %v3796
      %v4560 = vunpack.c.l.b16 %v3797
      %v4561 = vunpack.c.l.b16 %v3798
      %v4562 = vpack.c.b16 %v4559, %v4558
      %v4563 = vpack.c.b16 %v4561, %v4560
      %v4567 = vsel %vm4264, %v4538, 0
      %v4570 = vsel %vm4264, %v4539, 0
      %v4573 = vsel %vm4264, %v4540, 0
      %v4576 = vsel %vm4264, %v4541, 0
      %v4579 = vsel %vm4264, %v4542, 0
      %v4582 = vsel %vm4264, %v4543, 0
      %v4585 = vsel %vm4264, %v4544, 0
      %v4588 = vsel %vm4264, %v4545, 0
      %v4591 = vsel %vm4264, %v4546, 0
      %v4594 = vsel %vm4264, %v4547, 0
      %v4597 = vsel %vm4264, %v4548, 0
      %v4600 = vsel %vm4264, %v4549, 0
      %v4603 = vsel %vm4264, %v4550, 0
      %v4606 = vsel %vm4264, %v4551, 0
      %v4609 = vsel %vm4264, %v4552, 0
      %v4612 = vsel %vm4264, %v4553, 0
      %4614 = vmatprep.subr.bf16.mxu0 0
      %4615 = vmatpush1.bf16.msra.mxu0 %v4562
      %4616 = vmatprep.subr.bf16.mxu0 0
      %4617 = vmatpush1.bf16.msra.mxu0 %v4563
      %4618 = vmatprep.subr.bf16.mxu0 0
      %4619 = vmatpush1.bf16.msra.mxu0 0
      %4620 = vmatprep.subr.bf16.mxu0 0
      %4621 = vmatpush1.bf16.msra.mxu0 0
      %4622 = vmatprep.subr.bf16.mxu0 0
      %4623 = vmatpush1.bf16.msra.mxu0 0
      %4624 = vmatprep.subr.bf16.mxu0 0
      %4625 = vmatpush1.bf16.msra.mxu0 0
      %4626 = vmatprep.subr.bf16.mxu0 0
      %4627 = vmatpush1.bf16.msra.mxu0 0
      %4628 = vmatprep.subr.bf16.mxu0 0
      %4629 = vmatpush1.bf16.msra.mxu0 0
      %4630 = vmatprep.subr.bf16.mxu0 0
      %4631 = vmatpush1.bf16.msra.mxu0 0
      %4632 = vmatprep.subr.bf16.mxu0 0
      %4633 = vmatpush1.bf16.msra.mxu0 0
      %4634 = vmatprep.subr.bf16.mxu0 0
      %4635 = vmatpush1.bf16.msra.mxu0 0
      %4636 = vmatprep.subr.bf16.mxu0 0
      %4637 = vmatpush1.bf16.msra.mxu0 0
      %4638 = vmatprep.subr.bf16.mxu0 0
      %4639 = vmatpush1.bf16.msra.mxu0 0
      %4640 = vmatprep.subr.bf16.mxu0 0
      %4641 = vmatpush1.bf16.msra.mxu0 0
      %4642 = vmatprep.subr.bf16.mxu0 0
      %4643 = vmatpush1.bf16.msra.mxu0 0
      %4644 = vmatprep.subr.bf16.mxu0 0
      %4645 = vmatpush1.bf16.msra.mxu0 0
      %4646 = vmatprep.mubr.bf16.mxu0 0
      %4647 = vmatmul.mubr.bf16.gmra.mrb[0].mxu0 %v4567
      %v4648 = vpop.f32.mrb[0].mxu0
      %v4649 = vadd.f32 %v4348, %v4648
      %v4650 = vpop.f32.mrb[0].mxu0
      %v4651 = vpop.f32.mrb[0].mxu0
      %v4652 = vadd.f32 %v4351, %v4651
      %v4653 = vpop.f32.mrb[0].mxu0
      %4654 = vmatprep.mubr.bf16.mxu0 0
      %4655 = vmatmul.mubr.bf16.gmra.mrb[0].mxu0 %v4570
      %v4656 = vpop.f32.mrb[0].mxu0
      %v4657 = vadd.f32 %v4356, %v4656
      %v4658 = vpop.f32.mrb[0].mxu0
      %v4659 = vpop.f32.mrb[0].mxu0
      %v4660 = vadd.f32 %v4359, %v4659
      %v4661 = vpop.f32.mrb[0].mxu0
      %4662 = vmatprep.mubr.bf16.mxu0 0
      %4663 = vmatmul.mubr.bf16.gmra.mrb[0].mxu0 %v4573
      %v4664 = vpop.f32.mrb[0].mxu0
      %v4665 = vadd.f32 %v4364, %v4664
      %v4666 = vpop.f32.mrb[0].mxu0
      %v4667 = vpop.f32.mrb[0].mxu0
      %v4668 = vadd.f32 %v4367, %v4667
      %v4669 = vpop.f32.mrb[0].mxu0
      %4670 = vmatprep.mubr.bf16.mxu0 0
      %4671 = vmatmul.mubr.bf16.gmra.mrb[0].mxu0 %v4576
      %v4672 = vpop.f32.mrb[0].mxu0
      %v4673 = vadd.f32 %v4372, %v4672
      %v4674 = vpop.f32.mrb[0].mxu0
      %v4675 = vpop.f32.mrb[0].mxu0
      %v4676 = vadd.f32 %v4375, %v4675
      %v4677 = vpop.f32.mrb[0].mxu0
      %4678 = vmatprep.mubr.bf16.mxu0 0
      %4679 = vmatmul.mubr.bf16.gmra.mrb[0].mxu0 %v4579
      %v4680 = vpop.f32.mrb[0].mxu0
      %v4681 = vadd.f32 %v4380, %v4680
      %v4682 = vpop.f32.mrb[0].mxu0
      %v4683 = vpop.f32.mrb[0].mxu0
      %v4684 = vadd.f32 %v4383, %v4683
      %v4685 = vpop.f32.mrb[0].mxu0
      %4686 = vmatprep.mubr.bf16.mxu0 0
      %4687 = vmatmul.mubr.bf16.gmra.mrb[0].mxu0 %v4582
      %v4688 = vpop.f32.mrb[0].mxu0
      %v4689 = vadd.f32 %v4388, %v4688
      %v4690 = vpop.f32.mrb[0].mxu0
      %v4691 = vpop.f32.mrb[0].mxu0
      %v4692 = vadd.f32 %v4391, %v4691
      %v4693 = vpop.f32.mrb[0].mxu0
      %4694 = vmatprep.mubr.bf16.mxu0 0
      %4695 = vmatmul.mubr.bf16.gmra.mrb[0].mxu0 %v4585
      %v4696 = vpop.f32.mrb[0].mxu0
      %v4697 = vadd.f32 %v4396, %v4696
      %v4698 = vpop.f32.mrb[0].mxu0
      %v4699 = vpop.f32.mrb[0].mxu0
      %v4700 = vadd.f32 %v4399, %v4699
      %v4701 = vpop.f32.mrb[0].mxu0
      %4702 = vmatprep.mubr.bf16.mxu0 0
      %4703 = vmatmul.mubr.bf16.gmra.mrb[0].mxu0 %v4588
      %v4704 = vpop.f32.mrb[0].mxu0
      %v4705 = vadd.f32 %v4404, %v4704
      %v4706 = vpop.f32.mrb[0].mxu0
      %v4707 = vpop.f32.mrb[0].mxu0
      %v4708 = vadd.f32 %v4407, %v4707
      %v4709 = vpop.f32.mrb[0].mxu0
      %4710 = vmatprep.mubr.bf16.mxu0 0
      %4711 = vmatmul.mubr.bf16.gmra.mrb[0].mxu0 %v4591
      %v4712 = vpop.f32.mrb[0].mxu0
      %v4713 = vadd.f32 %v4412, %v4712
      %v4714 = vpop.f32.mrb[0].mxu0
      %v4715 = vpop.f32.mrb[0].mxu0
      %v4716 = vadd.f32 %v4415, %v4715
      %v4717 = vpop.f32.mrb[0].mxu0
      %4718 = vmatprep.mubr.bf16.mxu0 0
      %4719 = vmatmul.mubr.bf16.gmra.mrb[0].mxu0 %v4594
      %v4720 = vpop.f32.mrb[0].mxu0
      %v4721 = vadd.f32 %v4420, %v4720
      %v4722 = vpop.f32.mrb[0].mxu0
      %v4723 = vpop.f32.mrb[0].mxu0
      %v4724 = vadd.f32 %v4423, %v4723
      %v4725 = vpop.f32.mrb[0].mxu0
      %4726 = vmatprep.mubr.bf16.mxu0 0
      %4727 = vmatmul.mubr.bf16.gmra.mrb[0].mxu0 %v4597
      %v4728 = vpop.f32.mrb[0].mxu0
      %v4729 = vadd.f32 %v4428, %v4728
      %v4730 = vpop.f32.mrb[0].mxu0
      %v4731 = vpop.f32.mrb[0].mxu0
      %v4732 = vadd.f32 %v4431, %v4731
      %v4733 = vpop.f32.mrb[0].mxu0
      %4734 = vmatprep.mubr.bf16.mxu0 0
      %4735 = vmatmul.mubr.bf16.gmra.mrb[0].mxu0 %v4600
      %v4736 = vpop.f32.mrb[0].mxu0
      %v4737 = vadd.f32 %v4436, %v4736
      %v4738 = vpop.f32.mrb[0].mxu0
      %v4739 = vpop.f32.mrb[0].mxu0
      %v4740 = vadd.f32 %v4439, %v4739
      %v4741 = vpop.f32.mrb[0].mxu0
      %4742 = vmatprep.mubr.bf16.mxu0 0
      %4743 = vmatmul.mubr.bf16.gmra.mrb[0].mxu0 %v4603
      %v4744 = vpop.f32.mrb[0].mxu0
      %v4745 = vadd.f32 %v4444, %v4744
      %v4746 = vpop.f32.mrb[0].mxu0
      %v4747 = vpop.f32.mrb[0].mxu0
      %v4748 = vadd.f32 %v4447, %v4747
      %v4749 = vpop.f32.mrb[0].mxu0
      %4750 = vmatprep.mubr.bf16.mxu0 0
      %4751 = vmatmul.mubr.bf16.gmra.mrb[0].mxu0 %v4606
      %v4752 = vpop.f32.mrb[0].mxu0
      %v4753 = vadd.f32 %v4452, %v4752
      %v4754 = vpop.f32.mrb[0].mxu0
      %v4755 = vpop.f32.mrb[0].mxu0
      %v4756 = vadd.f32 %v4455, %v4755
      %v4757 = vpop.f32.mrb[0].mxu0
      %4758 = vmatprep.mubr.bf16.mxu0 0
      %4759 = vmatmul.mubr.bf16.gmra.mrb[0].mxu0 %v4609
      %v4760 = vpop.f32.mrb[0].mxu0
      %v4761 = vadd.f32 %v4460, %v4760
      %v4762 = vpop.f32.mrb[0].mxu0
      %v4763 = vpop.f32.mrb[0].mxu0
      %v4764 = vadd.f32 %v4463, %v4763
      %v4765 = vpop.f32.mrb[0].mxu0
      %4766 = vmatprep.mubr.bf16.mxu0 0
      %4767 = vmatmul.mubr.bf16.gmra.mrb[0].mxu0 %v4612
      %v4768 = vpop.f32.mrb[0].mxu0
      %v4769 = vadd.f32 %v4468, %v4768
      %v4770 = vpop.f32.mrb[0].mxu0
      %v4771 = vpop.f32.mrb[0].mxu0
      %v4772 = vadd.f32 %v4471, %v4771
      %v4773 = vpop.f32.mrb[0].mxu0
      %4774 = vdwg.mxu0
      %v4775 = vld [vmem:[#allocation2] sm:$0xe]
      %v4776 = vld [vmem:[#allocation2 + $0xc] sm:$0xe]
      %v4777 = vld [vmem:[#allocation2 + $0x18] sm:$0xe]
      %v4778 = vld [vmem:[#allocation2 + $0x24] sm:$0xe]
      %v4779 = vld [vmem:[#allocation2 + $0x30] sm:$0xe]
      %v4780 = vld [vmem:[#allocation2 + $0x3c] sm:$0xe]
      %v4781 = vld [vmem:[#allocation2 + $0x48] sm:$0xe]
      %v4782 = vld [vmem:[#allocation2 + $0x54] sm:$0xe]
      %v4783 = vld [vmem:[#allocation2 + $0x60] sm:$0xe]
      %v4784 = vld [vmem:[#allocation2 + $0x6c] sm:$0xe]
      %v4785 = vld [vmem:[#allocation2 + $0x78] sm:$0xe]
      %v4786 = vld [vmem:[#allocation2 + $0x84] sm:$0xe]
      %v4787 = vld [vmem:[#allocation2 + $0x90] sm:$0xe]
      %v4788 = vld [vmem:[#allocation2 + $0x9c] sm:$0xe]
      %v4789 = vld [vmem:[#allocation2 + $0xa8] sm:$0xe]
      %v4790 = vld [vmem:[#allocation2 + $0xb4] sm:$0xe]
      %v4823 = vrot.slane %v4775, 5
      %v4824 = vrot.slane %v4823, 4
      %v4825 = vrot.slane %v3764, 5
      %v4826 = vsel %vm1336, %v4824, %v4825
      %v4827 = vrot.slane %v4825, 4
      %v4828 = vrot.slane %v3799, 5
      %v4829 = vsel %vm1336, %v4827, %v4828
      %v4830 = vrot.slane %v4776, 5
      %v4831 = vrot.slane %v4830, 4
      %v4832 = vrot.slane %v3766, 5
      %v4833 = vsel %vm1336, %v4831, %v4832
      %v4834 = vrot.slane %v4832, 4
      %v4835 = vrot.slane %v3800, 5
      %v4836 = vsel %vm1336, %v4834, %v4835
      %v4837 = vrot.slane %v4777, 5
      %v4838 = vrot.slane %v4837, 4
      %v4839 = vrot.slane %v3768, 5
      %v4840 = vsel %vm1336, %v4838, %v4839
      %v4841 = vrot.slane %v4839, 4
      %v4842 = vrot.slane %v3801, 5
      %v4843 = vsel %vm1336, %v4841, %v4842
      %v4844 = vrot.slane %v4778, 5
      %v4845 = vrot.slane %v4844, 4
      %v4846 = vrot.slane %v3770, 5
      %v4847 = vsel %vm1336, %v4845, %v4846
      %v4848 = vrot.slane %v4846, 4
      %v4849 = vrot.slane %v3802, 5
      %v4850 = vsel %vm1336, %v4848, %v4849
      %v4851 = vrot.slane %v4779, 5
      %v4852 = vrot.slane %v4851, 4
      %v4853 = vrot.slane %v3772, 5
      %v4854 = vsel %vm1336, %v4852, %v4853
      %v4855 = vrot.slane %v4853, 4
      %v4856 = vrot.slane %v3803, 5
      %v4857 = vsel %vm1336, %v4855, %v4856
      %v4858 = vrot.slane %v4780, 5
      %v4859 = vrot.slane %v4858, 4
      %v4860 = vrot.slane %v3774, 5
      %v4861 = vsel %vm1336, %v4859, %v4860
      %v4862 = vrot.slane %v4860, 4
      %v4863 = vrot.slane %v3804, 5
      %v4864 = vsel %vm1336, %v4862, %v4863
      %v4865 = vrot.slane %v4781, 5
      %v4866 = vrot.slane %v4865, 4
      %v4867 = vrot.slane %v3776, 5
      %v4868 = vsel %vm1336, %v4866, %v4867
      %v4869 = vrot.slane %v4867, 4
      %v4870 = vrot.slane %v3805, 5
      %v4871 = vsel %vm1336, %v4869, %v4870
      %v4872 = vrot.slane %v4782, 5
      %v4873 = vrot.slane %v4872, 4
      %v4874 = vrot.slane %v3778, 5
      %v4875 = vsel %vm1336, %v4873, %v4874
      %v4876 = vrot.slane %v4874, 4
      %v4877 = vrot.slane %v3806, 5
      %v4878 = vsel %vm1336, %v4876, %v4877
      %v4879 = vrot.slane %v4783, 5
      %v4880 = vrot.slane %v4879, 4
      %v4881 = vrot.slane %v3780, 5
      %v4882 = vsel %vm1336, %v4880, %v4881
      %v4883 = vrot.slane %v4881, 4
      %v4884 = vrot.slane %v3807, 5
      %v4885 = vsel %vm1336, %v4883, %v4884
      %v4886 = vrot.slane %v4784, 5
      %v4887 = vrot.slane %v4886, 4
      %v4888 = vrot.slane %v3782, 5
      %v4889 = vsel %vm1336, %v4887, %v4888
      %v4890 = vrot.slane %v4888, 4
      %v4891 = vrot.slane %v3808, 5
      %v4892 = vsel %vm1336, %v4890, %v4891
      %v4893 = vrot.slane %v4785, 5
      %v4894 = vrot.slane %v4893, 4
      %v4895 = vrot.slane %v3784, 5
      %v4896 = vsel %vm1336, %v4894, %v4895
      %v4897 = vrot.slane %v4895, 4
      %v4898 = vrot.slane %v3809, 5
      %v4899 = vsel %vm1336, %v4897, %v4898
      %v4900 = vrot.slane %v4786, 5
      %v4901 = vrot.slane %v4900, 4
      %v4902 = vrot.slane %v3786, 5
      %v4903 = vsel %vm1336, %v4901, %v4902
      %v4904 = vrot.slane %v4902, 4
      %v4905 = vrot.slane %v3810, 5
      %v4906 = vsel %vm1336, %v4904, %v4905
      %v4907 = vrot.slane %v4787, 5
      %v4908 = vrot.slane %v4907, 4
      %v4909 = vrot.slane %v3788, 5
      %v4910 = vsel %vm1336, %v4908, %v4909
      %v4911 = vrot.slane %v4909, 4
      %v4912 = vrot.slane %v3811, 5
      %v4913 = vsel %vm1336, %v4911, %v4912
      %v4914 = vrot.slane %v4788, 5
      %v4915 = vrot.slane %v4914, 4
      %v4916 = vrot.slane %v3790, 5
      %v4917 = vsel %vm1336, %v4915, %v4916
      %v4918 = vrot.slane %v4916, 4
      %v4919 = vrot.slane %v3812, 5
      %v4920 = vsel %vm1336, %v4918, %v4919
      %v4921 = vrot.slane %v4789, 5
      %v4922 = vrot.slane %v4921, 4
      %v4923 = vrot.slane %v3792, 5
      %v4924 = vsel %vm1336, %v4922, %v4923
      %v4925 = vrot.slane %v4923, 4
      %v4926 = vrot.slane %v3813, 5
      %v4927 = vsel %vm1336, %v4925, %v4926
      %v4928 = vrot.slane %v4790, 5
      %v4929 = vrot.slane %v4928, 4
      %v4930 = vrot.slane %v3794, 5
      %v4931 = vsel %vm1336, %v4929, %v4930
      %v4932 = vrot.slane %v4930, 4
      %v4933 = vrot.slane %v3814, 5
      %v4934 = vsel %vm1336, %v4932, %v4933
      %s4935 = scalar_lea.vmem %s3, 32
      %v4936 = vld [vmem:[%s4935] sm:$0xf]
      %v4937 = vld [vmem:[%s4935 + $0x4] sm:$0xf]
      %v4938 = vld [vmem:[%s4935 + $0x8] sm:$0xf]
      %v4939 = vld [vmem:[%s4935 + $0xc] sm:$0xf]
      %v4940 = vunpack.c.l.b16 %v4826
      %v4941 = vunpack.c.l.b16 %v4829
      %v4942 = vunpack.c.l.b16 %v4833
      %v4943 = vunpack.c.l.b16 %v4836
      %v4944 = vunpack.c.l.b16 %v4840
      %v4945 = vunpack.c.l.b16 %v4843
      %v4946 = vunpack.c.l.b16 %v4847
      %v4947 = vunpack.c.l.b16 %v4850
      %v4948 = vunpack.c.l.b16 %v4854
      %v4949 = vunpack.c.l.b16 %v4857
      %v4950 = vunpack.c.l.b16 %v4861
      %v4951 = vunpack.c.l.b16 %v4864
      %v4952 = vunpack.c.l.b16 %v4868
      %v4953 = vunpack.c.l.b16 %v4871
      %v4954 = vunpack.c.l.b16 %v4875
      %v4955 = vunpack.c.l.b16 %v4878
      %v4956 = vunpack.c.l.b16 %v4882
      %v4957 = vunpack.c.l.b16 %v4885
      %v4958 = vunpack.c.l.b16 %v4889
      %v4959 = vunpack.c.l.b16 %v4892
      %v4960 = vunpack.c.l.b16 %v4896
      %v4961 = vunpack.c.l.b16 %v4899
      %v4962 = vunpack.c.l.b16 %v4903
      %v4963 = vunpack.c.l.b16 %v4906
      %v4964 = vunpack.c.l.b16 %v4910
      %v4965 = vunpack.c.l.b16 %v4913
      %v4966 = vunpack.c.l.b16 %v4917
      %v4967 = vunpack.c.l.b16 %v4920
      %v4968 = vunpack.c.l.b16 %v4924
      %v4969 = vunpack.c.l.b16 %v4927
      %v4970 = vunpack.c.l.b16 %v4931
      %v4971 = vunpack.c.l.b16 %v4934
      %v4972 = vpack.c.b16 %v4941, %v4940
      %v4973 = vpack.c.b16 %v4943, %v4942
      %v4974 = vpack.c.b16 %v4945, %v4944
      %v4975 = vpack.c.b16 %v4947, %v4946
      %v4976 = vpack.c.b16 %v4949, %v4948
      %v4977 = vpack.c.b16 %v4951, %v4950
      %v4978 = vpack.c.b16 %v4953, %v4952
      %v4979 = vpack.c.b16 %v4955, %v4954
      %v4980 = vpack.c.b16 %v4957, %v4956
      %v4981 = vpack.c.b16 %v4959, %v4958
      %v4982 = vpack.c.b16 %v4961, %v4960
      %v4983 = vpack.c.b16 %v4963, %v4962
      %v4984 = vpack.c.b16 %v4965, %v4964
      %v4985 = vpack.c.b16 %v4967, %v4966
      %v4986 = vpack.c.b16 %v4969, %v4968
      %v4987 = vpack.c.b16 %v4971, %v4970
      %v4992 = vunpack.c.l.b16 %v4936
      %v4993 = vunpack.c.l.b16 %v4937
      %v4994 = vunpack.c.l.b16 %v4938
      %v4995 = vunpack.c.l.b16 %v4939
      %v4996 = vpack.c.b16 %v4993, %v4992
      %v4997 = vpack.c.b16 %v4995, %v4994
      %v5001 = vsel %vm4264, %v4972, 0
      %v5004 = vsel %vm4264, %v4973, 0
      %v5007 = vsel %vm4264, %v4974, 0
      %v5010 = vsel %vm4264, %v4975, 0
      %v5013 = vsel %vm4264, %v4976, 0
      %v5016 = vsel %vm4264, %v4977, 0
      %v5019 = vsel %vm4264, %v4978, 0
      %v5022 = vsel %vm4264, %v4979, 0
      %v5025 = vsel %vm4264, %v4980, 0
      %v5028 = vsel %vm4264, %v4981, 0
      %v5031 = vsel %vm4264, %v4982, 0
      %v5034 = vsel %vm4264, %v4983, 0
      %v5037 = vsel %vm4264, %v4984, 0
      %v5040 = vsel %vm4264, %v4985, 0
      %v5043 = vsel %vm4264, %v4986, 0
      %v5046 = vsel %vm4264, %v4987, 0
      %5048 = vmatprep.subr.bf16.mxu0 0
      %5049 = vmatpush1.bf16.msra.mxu0 %v4996
      %5050 = vmatprep.subr.bf16.mxu0 0
      %5051 = vmatpush1.bf16.msra.mxu0 %v4997
      %5052 = vmatprep.subr.bf16.mxu0 0
      %5053 = vmatpush1.bf16.msra.mxu0 0
      %5054 = vmatprep.subr.bf16.mxu0 0
      %5055 = vmatpush1.bf16.msra.mxu0 0
      %5056 = vmatprep.subr.bf16.mxu0 0
      %5057 = vmatpush1.bf16.msra.mxu0 0
      %5058 = vmatprep.subr.bf16.mxu0 0
      %5059 = vmatpush1.bf16.msra.mxu0 0
      %5060 = vmatprep.subr.bf16.mxu0 0
      %5061 = vmatpush1.bf16.msra.mxu0 0
      %5062 = vmatprep.subr.bf16.mxu0 0
      %5063 = vmatpush1.bf16.msra.mxu0 0
      %5064 = vmatprep.subr.bf16.mxu0 0
      %5065 = vmatpush1.bf16.msra.mxu0 0
      %5066 = vmatprep.subr.bf16.mxu0 0
      %5067 = vmatpush1.bf16.msra.mxu0 0
      %5068 = vmatprep.subr.bf16.mxu0 0
      %5069 = vmatpush1.bf16.msra.mxu0 0
      %5070 = vmatprep.subr.bf16.mxu0 0
      %5071 = vmatpush1.bf16.msra.mxu0 0
      %5072 = vmatprep.subr.bf16.mxu0 0
      %5073 = vmatpush1.bf16.msra.mxu0 0
      %5074 = vmatprep.subr.bf16.mxu0 0
      %5075 = vmatpush1.bf16.msra.mxu0 0
      %5076 = vmatprep.subr.bf16.mxu0 0
      %5077 = vmatpush1.bf16.msra.mxu0 0
      %5078 = vmatprep.subr.bf16.mxu0 0
      %5079 = vmatpush1.bf16.msra.mxu0 0
      %5080 = vmatprep.mubr.bf16.mxu0 0
      %5081 = vmatmul.mubr.bf16.gmra.mrb[0].mxu0 %v5001
      %v5082 = vpop.f32.mrb[0].mxu0
      %v5083 = vadd.f32 0.0, %v5082
      %v5084 = vpop.f32.mrb[0].mxu0
      %v5085 = vpop.f32.mrb[0].mxu0
      %v5086 = vadd.f32 0.0, %v5085
      %v5087 = vpop.f32.mrb[0].mxu0
      %5088 = vmatprep.mubr.bf16.mxu0 0
      %5089 = vmatmul.mubr.bf16.gmra.mrb[0].mxu0 %v5004
      %v5090 = vpop.f32.mrb[0].mxu0
      %v5091 = vadd.f32 0.0, %v5090
      %v5092 = vpop.f32.mrb[0].mxu0
      %v5093 = vpop.f32.mrb[0].mxu0
      %v5094 = vadd.f32 0.0, %v5093
      %v5095 = vpop.f32.mrb[0].mxu0
      %5096 = vmatprep.mubr.bf16.mxu0 0
      %5097 = vmatmul.mubr.bf16.gmra.mrb[0].mxu0 %v5007
      %v5098 = vpop.f32.mrb[0].mxu0
      %v5099 = vadd.f32 0.0, %v5098
      %v5100 = vpop.f32.mrb[0].mxu0
      %v5101 = vpop.f32.mrb[0].mxu0
      %v5102 = vadd.f32 0.0, %v5101
      %v5103 = vpop.f32.mrb[0].mxu0
      %5104 = vmatprep.mubr.bf16.mxu0 0
      %5105 = vmatmul.mubr.bf16.gmra.mrb[0].mxu0 %v5010
      %v5106 = vpop.f32.mrb[0].mxu0
      %v5107 = vadd.f32 0.0, %v5106
      %v5108 = vpop.f32.mrb[0].mxu0
      %v5109 = vpop.f32.mrb[0].mxu0
      %v5110 = vadd.f32 0.0, %v5109
      %v5111 = vpop.f32.mrb[0].mxu0
      %5112 = vmatprep.mubr.bf16.mxu0 0
      %5113 = vmatmul.mubr.bf16.gmra.mrb[0].mxu0 %v5013
      %v5114 = vpop.f32.mrb[0].mxu0
      %v5115 = vadd.f32 0.0, %v5114
      %v5116 = vpop.f32.mrb[0].mxu0
      %v5117 = vpop.f32.mrb[0].mxu0
      %v5118 = vadd.f32 0.0, %v5117
      %v5119 = vpop.f32.mrb[0].mxu0
      %5120 = vmatprep.mubr.bf16.mxu0 0
      %5121 = vmatmul.mubr.bf16.gmra.mrb[0].mxu0 %v5016
      %v5122 = vpop.f32.mrb[0].mxu0
      %v5123 = vadd.f32 0.0, %v5122
      %v5124 = vpop.f32.mrb[0].mxu0
      %v5125 = vpop.f32.mrb[0].mxu0
      %v5126 = vadd.f32 0.0, %v5125
      %v5127 = vpop.f32.mrb[0].mxu0
      %5128 = vmatprep.mubr.bf16.mxu0 0
      %5129 = vmatmul.mubr.bf16.gmra.mrb[0].mxu0 %v5019
      %v5130 = vpop.f32.mrb[0].mxu0
      %v5131 = vadd.f32 0.0, %v5130
      %v5132 = vpop.f32.mrb[0].mxu0
      %v5133 = vpop.f32.mrb[0].mxu0
      %v5134 = vadd.f32 0.0, %v5133
      %v5135 = vpop.f32.mrb[0].mxu0
      %5136 = vmatprep.mubr.bf16.mxu0 0
      %5137 = vmatmul.mubr.bf16.gmra.mrb[0].mxu0 %v5022
      %v5138 = vpop.f32.mrb[0].mxu0
      %v5139 = vadd.f32 0.0, %v5138
      %v5140 = vpop.f32.mrb[0].mxu0
      %v5141 = vpop.f32.mrb[0].mxu0
      %v5142 = vadd.f32 0.0, %v5141
      %v5143 = vpop.f32.mrb[0].mxu0
      %5144 = vmatprep.mubr.bf16.mxu0 0
      %5145 = vmatmul.mubr.bf16.gmra.mrb[0].mxu0 %v5025
      %v5146 = vpop.f32.mrb[0].mxu0
      %v5147 = vadd.f32 0.0, %v5146
      %v5148 = vpop.f32.mrb[0].mxu0
      %v5149 = vpop.f32.mrb[0].mxu0
      %v5150 = vadd.f32 0.0, %v5149
      %v5151 = vpop.f32.mrb[0].mxu0
      %5152 = vmatprep.mubr.bf16.mxu0 0
      %5153 = vmatmul.mubr.bf16.gmra.mrb[0].mxu0 %v5028
      %v5154 = vpop.f32.mrb[0].mxu0
      %v5155 = vadd.f32 0.0, %v5154
      %v5156 = vpop.f32.mrb[0].mxu0
      %v5157 = vpop.f32.mrb[0].mxu0
      %v5158 = vadd.f32 0.0, %v5157
      %v5159 = vpop.f32.mrb[0].mxu0
      %5160 = vmatprep.mubr.bf16.mxu0 0
      %5161 = vmatmul.mubr.bf16.gmra.mrb[0].mxu0 %v5031
      %v5162 = vpop.f32.mrb[0].mxu0
      %v5163 = vadd.f32 0.0, %v5162
      %v5164 = vpop.f32.mrb[0].mxu0
      %v5165 = vpop.f32.mrb[0].mxu0
      %v5166 = vadd.f32 0.0, %v5165
      %v5167 = vpop.f32.mrb[0].mxu0
      %5168 = vmatprep.mubr.bf16.mxu0 0
      %5169 = vmatmul.mubr.bf16.gmra.mrb[0].mxu0 %v5034
      %v5170 = vpop.f32.mrb[0].mxu0
      %v5171 = vadd.f32 0.0, %v5170
      %v5172 = vpop.f32.mrb[0].mxu0
      %v5173 = vpop.f32.mrb[0].mxu0
      %v5174 = vadd.f32 0.0, %v5173
      %v5175 = vpop.f32.mrb[0].mxu0
      %5176 = vmatprep.mubr.bf16.mxu0 0
      %5177 = vmatmul.mubr.bf16.gmra.mrb[0].mxu0 %v5037
      %v5178 = vpop.f32.mrb[0].mxu0
      %v5179 = vadd.f32 0.0, %v5178
      %v5180 = vpop.f32.mrb[0].mxu0
      %v5181 = vpop.f32.mrb[0].mxu0
      %v5182 = vadd.f32 0.0, %v5181
      %v5183 = vpop.f32.mrb[0].mxu0
      %5184 = vmatprep.mubr.bf16.mxu0 0
      %5185 = vmatmul.mubr.bf16.gmra.mrb[0].mxu0 %v5040
      %v5186 = vpop.f32.mrb[0].mxu0
      %v5187 = vadd.f32 0.0, %v5186
      %v5188 = vpop.f32.mrb[0].mxu0
      %v5189 = vpop.f32.mrb[0].mxu0
      %v5190 = vadd.f32 0.0, %v5189
      %v5191 = vpop.f32.mrb[0].mxu0
      %5192 = vmatprep.mubr.bf16.mxu0 0
      %5193 = vmatmul.mubr.bf16.gmra.mrb[0].mxu0 %v5043
      %v5194 = vpop.f32.mrb[0].mxu0
      %v5195 = vadd.f32 0.0, %v5194
      %v5196 = vpop.f32.mrb[0].mxu0
      %v5197 = vpop.f32.mrb[0].mxu0
      %v5198 = vadd.f32 0.0, %v5197
      %v5199 = vpop.f32.mrb[0].mxu0
      %5200 = vmatprep.mubr.bf16.mxu0 0
      %5201 = vmatmul.mubr.bf16.gmra.mrb[0].mxu0 %v5046
      %v5202 = vpop.f32.mrb[0].mxu0
      %v5203 = vadd.f32 0.0, %v5202
      %v5204 = vpop.f32.mrb[0].mxu0
      %v5205 = vpop.f32.mrb[0].mxu0
      %v5206 = vadd.f32 0.0, %v5205
      %v5207 = vpop.f32.mrb[0].mxu0
      %5208 = vdwg.mxu0
      %v5209 = vadd.f32 %v4649, %v5083
      %v5210 = vadd.f32 %v4652, %v5086
      %v5211 = vadd.f32 %v4657, %v5091
      %v5212 = vadd.f32 %v4660, %v5094
      %v5213 = vadd.f32 %v4665, %v5099
      %v5214 = vadd.f32 %v4668, %v5102
      %v5215 = vadd.f32 %v4673, %v5107
      %v5216 = vadd.f32 %v4676, %v5110
      %v5217 = vadd.f32 %v4681, %v5115
      %v5218 = vadd.f32 %v4684, %v5118
      %v5219 = vadd.f32 %v4689, %v5123
      %v5220 = vadd.f32 %v4692, %v5126
      %v5221 = vadd.f32 %v4697, %v5131
      %v5222 = vadd.f32 %v4700, %v5134
      %v5223 = vadd.f32 %v4705, %v5139
      %v5224 = vadd.f32 %v4708, %v5142
      %v5225 = vadd.f32 %v4713, %v5147
      %v5226 = vadd.f32 %v4716, %v5150
      %v5227 = vadd.f32 %v4721, %v5155
      %v5228 = vadd.f32 %v4724, %v5158
      %v5229 = vadd.f32 %v4729, %v5163
      %v5230 = vadd.f32 %v4732, %v5166
      %v5231 = vadd.f32 %v4737, %v5171
      %v5232 = vadd.f32 %v4740, %v5174
      %v5233 = vadd.f32 %v4745, %v5179
      %v5234 = vadd.f32 %v4748, %v5182
      %v5235 = vadd.f32 %v4753, %v5187
      %v5236 = vadd.f32 %v4756, %v5190
      %v5237 = vadd.f32 %v4761, %v5195
      %v5238 = vadd.f32 %v4764, %v5198
      %v5239 = vadd.f32 %v4769, %v5203
      %v5240 = vadd.f32 %v4772, %v5206
      %v5241 = vld [vmem:[%s3645] sm:$0xf]
      %v5242 = vld [vmem:[%s3645 + $0x4] sm:$0xf]
      %v5243 = vld [vmem:[%s3645 + $0xc] sm:$0xf]
      %v5244 = vld [vmem:[%s3645 + $0x10] sm:$0xf]
      %v5245 = vld [vmem:[%s3645 + $0x18] sm:$0xf]
      %v5246 = vld [vmem:[%s3645 + $0x1c] sm:$0xf]
      %v5247 = vld [vmem:[%s3645 + $0x24] sm:$0xf]
      %v5248 = vld [vmem:[%s3645 + $0x28] sm:$0xf]
      %v5249 = vld [vmem:[%s3645 + $0x30] sm:$0xf]
      %v5250 = vld [vmem:[%s3645 + $0x34] sm:$0xf]
      %v5251 = vld [vmem:[%s3645 + $0x3c] sm:$0xf]
      %v5252 = vld [vmem:[%s3645 + $0x40] sm:$0xf]
      %v5253 = vld [vmem:[%s3645 + $0x48] sm:$0xf]
      %v5254 = vld [vmem:[%s3645 + $0x4c] sm:$0xf]
      %v5255 = vld [vmem:[%s3645 + $0x54] sm:$0xf]
      %v5256 = vld [vmem:[%s3645 + $0x58] sm:$0xf]
      %v5257 = vld [vmem:[%s3645 + $0x60] sm:$0xf]
      %v5258 = vld [vmem:[%s3645 + $0x64] sm:$0xf]
      %v5259 = vld [vmem:[%s3645 + $0x6c] sm:$0xf]
      %v5260 = vld [vmem:[%s3645 + $0x70] sm:$0xf]
      %v5261 = vld [vmem:[%s3645 + $0x78] sm:$0xf]
      %v5262 = vld [vmem:[%s3645 + $0x7c] sm:$0xf]
      %v5263 = vld [vmem:[%s3645 + $0x84] sm:$0xf]
      %v5264 = vld [vmem:[%s3645 + $0x88] sm:$0xf]
      %v5265 = vld [vmem:[%s3645 + $0x90] sm:$0xf]
      %v5266 = vld [vmem:[%s3645 + $0x94] sm:$0xf]
      %v5267 = vld [vmem:[%s3645 + $0x9c] sm:$0xf]
      %v5268 = vld [vmem:[%s3645 + $0xa0] sm:$0xf]
      %v5269 = vld [vmem:[%s3645 + $0xa8] sm:$0xf]
      %v5270 = vld [vmem:[%s3645 + $0xac] sm:$0xf]
      %v5271 = vld [vmem:[%s3645 + $0xb4] sm:$0xf]
      %v5272 = vld [vmem:[%s3645 + $0xb8] sm:$0xf]
      %s5273 = scalar_lea.vmem %s3, 48
      %v5274 = vld [vmem:[%s5273] sm:$0xf]
      %v5275 = vld [vmem:[%s5273 + $0x4] sm:$0xf]
      %v5276 = vld [vmem:[%s5273 + $0x8] sm:$0xf]
      %v5277 = vld [vmem:[%s5273 + $0xc] sm:$0xf]
      %v5310 = vunpack.c.l.b16 %v5241
      %v5311 = vunpack.c.l.b16 %v5242
      %v5312 = vunpack.c.l.b16 %v5243
      %v5313 = vunpack.c.l.b16 %v5244
      %v5314 = vunpack.c.l.b16 %v5245
      %v5315 = vunpack.c.l.b16 %v5246
      %v5316 = vunpack.c.l.b16 %v5247
      %v5317 = vunpack.c.l.b16 %v5248
      %v5318 = vunpack.c.l.b16 %v5249
      %v5319 = vunpack.c.l.b16 %v5250
      %v5320 = vunpack.c.l.b16 %v5251
      %v5321 = vunpack.c.l.b16 %v5252
      %v5322 = vunpack.c.l.b16 %v5253
      %v5323 = vunpack.c.l.b16 %v5254
      %v5324 = vunpack.c.l.b16 %v5255
      %v5325 = vunpack.c.l.b16 %v5256
      %v5326 = vunpack.c.l.b16 %v5257
      %v5327 = vunpack.c.l.b16 %v5258
      %v5328 = vunpack.c.l.b16 %v5259
      %v5329 = vunpack.c.l.b16 %v5260
      %v5330 = vunpack.c.l.b16 %v5261
      %v5331 = vunpack.c.l.b16 %v5262
      %v5332 = vunpack.c.l.b16 %v5263
      %v5333 = vunpack.c.l.b16 %v5264
      %v5334 = vunpack.c.l.b16 %v5265
      %v5335 = vunpack.c.l.b16 %v5266
      %v5336 = vunpack.c.l.b16 %v5267
      %v5337 = vunpack.c.l.b16 %v5268
      %v5338 = vunpack.c.l.b16 %v5269
      %v5339 = vunpack.c.l.b16 %v5270
      %v5340 = vunpack.c.l.b16 %v5271
      %v5341 = vunpack.c.l.b16 %v5272
      %v5342 = vpack.c.b16 %v5311, %v5310
      %v5343 = vpack.c.b16 %v5313, %v5312
      %v5344 = vpack.c.b16 %v5315, %v5314
      %v5345 = vpack.c.b16 %v5317, %v5316
      %v5346 = vpack.c.b16 %v5319, %v5318
      %v5347 = vpack.c.b16 %v5321, %v5320
      %v5348 = vpack.c.b16 %v5323, %v5322
      %v5349 = vpack.c.b16 %v5325, %v5324
      %v5350 = vpack.c.b16 %v5327, %v5326
      %v5351 = vpack.c.b16 %v5329, %v5328
      %v5352 = vpack.c.b16 %v5331, %v5330
      %v5353 = vpack.c.b16 %v5333, %v5332
      %v5354 = vpack.c.b16 %v5335, %v5334
      %v5355 = vpack.c.b16 %v5337, %v5336
      %v5356 = vpack.c.b16 %v5339, %v5338
      %v5357 = vpack.c.b16 %v5341, %v5340
      %v5362 = vunpack.c.l.b16 %v5274
      %v5363 = vunpack.c.l.b16 %v5275
      %v5364 = vunpack.c.l.b16 %v5276
      %v5365 = vunpack.c.l.b16 %v5277
      %v5366 = vpack.c.b16 %v5363, %v5362
      %v5367 = vpack.c.b16 %v5365, %v5364
      %v5371 = vsel %vm4264, %v5342, 0
      %v5374 = vsel %vm4264, %v5343, 0
      %v5377 = vsel %vm4264, %v5344, 0
      %v5380 = vsel %vm4264, %v5345, 0
      %v5383 = vsel %vm4264, %v5346, 0
      %v5386 = vsel %vm4264, %v5347, 0
      %v5389 = vsel %vm4264, %v5348, 0
      %v5392 = vsel %vm4264, %v5349, 0
      %v5395 = vsel %vm4264, %v5350, 0
      %v5398 = vsel %vm4264, %v5351, 0
      %v5401 = vsel %vm4264, %v5352, 0
      %v5404 = vsel %vm4264, %v5353, 0
      %v5407 = vsel %vm4264, %v5354, 0
      %v5410 = vsel %vm4264, %v5355, 0
      %v5413 = vsel %vm4264, %v5356, 0
      %v5416 = vsel %vm4264, %v5357, 0
      %5418 = vmatprep.subr.bf16.mxu0 0
      %5419 = vmatpush1.bf16.msra.mxu0 %v5366
      %5420 = vmatprep.subr.bf16.mxu0 0
      %5421 = vmatpush1.bf16.msra.mxu0 %v5367
      %5422 = vmatprep.subr.bf16.mxu0 0
      %5423 = vmatpush1.bf16.msra.mxu0 0
      %5424 = vmatprep.subr.bf16.mxu0 0
      %5425 = vmatpush1.bf16.msra.mxu0 0
      %5426 = vmatprep.subr.bf16.mxu0 0
      %5427 = vmatpush1.bf16.msra.mxu0 0
      %5428 = vmatprep.subr.bf16.mxu0 0
      %5429 = vmatpush1.bf16.msra.mxu0 0
      %5430 = vmatprep.subr.bf16.mxu0 0
      %5431 = vmatpush1.bf16.msra.mxu0 0
      %5432 = vmatprep.subr.bf16.mxu0 0
      %5433 = vmatpush1.bf16.msra.mxu0 0
      %5434 = vmatprep.subr.bf16.mxu0 0
      %5435 = vmatpush1.bf16.msra.mxu0 0
      %5436 = vmatprep.subr.bf16.mxu0 0
      %5437 = vmatpush1.bf16.msra.mxu0 0
      %5438 = vmatprep.subr.bf16.mxu0 0
      %5439 = vmatpush1.bf16.msra.mxu0 0
      %5440 = vmatprep.subr.bf16.mxu0 0
      %5441 = vmatpush1.bf16.msra.mxu0 0
      %5442 = vmatprep.subr.bf16.mxu0 0
      %5443 = vmatpush1.bf16.msra.mxu0 0
      %5444 = vmatprep.subr.bf16.mxu0 0
      %5445 = vmatpush1.bf16.msra.mxu0 0
      %5446 = vmatprep.subr.bf16.mxu0 0
      %5447 = vmatpush1.bf16.msra.mxu0 0
      %5448 = vmatprep.subr.bf16.mxu0 0
      %5449 = vmatpush1.bf16.msra.mxu0 0
      %5450 = vmatprep.mubr.bf16.mxu0 0
      %5451 = vmatmul.mubr.bf16.gmra.mrb[0].mxu0 %v5371
      %v5452 = vpop.f32.mrb[0].mxu0
      %v5453 = vadd.f32 0.0, %v5452
      %v5454 = vpop.f32.mrb[0].mxu0
      %v5455 = vpop.f32.mrb[0].mxu0
      %v5456 = vadd.f32 0.0, %v5455
      %v5457 = vpop.f32.mrb[0].mxu0
      %5458 = vmatprep.mubr.bf16.mxu0 0
      %5459 = vmatmul.mubr.bf16.gmra.mrb[0].mxu0 %v5374
      %v5460 = vpop.f32.mrb[0].mxu0
      %v5461 = vadd.f32 0.0, %v5460
      %v5462 = vpop.f32.mrb[0].mxu0
      %v5463 = vpop.f32.mrb[0].mxu0
      %v5464 = vadd.f32 0.0, %v5463
      %v5465 = vpop.f32.mrb[0].mxu0
      %5466 = vmatprep.mubr.bf16.mxu0 0
      %5467 = vmatmul.mubr.bf16.gmra.mrb[0].mxu0 %v5377
      %v5468 = vpop.f32.mrb[0].mxu0
      %v5469 = vadd.f32 0.0, %v5468
      %v5470 = vpop.f32.mrb[0].mxu0
      %v5471 = vpop.f32.mrb[0].mxu0
      %v5472 = vadd.f32 0.0, %v5471
      %v5473 = vpop.f32.mrb[0].mxu0
      %5474 = vmatprep.mubr.bf16.mxu0 0
      %5475 = vmatmul.mubr.bf16.gmra.mrb[0].mxu0 %v5380
      %v5476 = vpop.f32.mrb[0].mxu0
      %v5477 = vadd.f32 0.0, %v5476
      %v5478 = vpop.f32.mrb[0].mxu0
      %v5479 = vpop.f32.mrb[0].mxu0
      %v5480 = vadd.f32 0.0, %v5479
      %v5481 = vpop.f32.mrb[0].mxu0
      %5482 = vmatprep.mubr.bf16.mxu0 0
      %5483 = vmatmul.mubr.bf16.gmra.mrb[0].mxu0 %v5383
      %v5484 = vpop.f32.mrb[0].mxu0
      %v5485 = vadd.f32 0.0, %v5484
      %v5486 = vpop.f32.mrb[0].mxu0
      %v5487 = vpop.f32.mrb[0].mxu0
      %v5488 = vadd.f32 0.0, %v5487
      %v5489 = vpop.f32.mrb[0].mxu0
      %5490 = vmatprep.mubr.bf16.mxu0 0
      %5491 = vmatmul.mubr.bf16.gmra.mrb[0].mxu0 %v5386
      %v5492 = vpop.f32.mrb[0].mxu0
      %v5493 = vadd.f32 0.0, %v5492
      %v5494 = vpop.f32.mrb[0].mxu0
      %v5495 = vpop.f32.mrb[0].mxu0
      %v5496 = vadd.f32 0.0, %v5495
      %v5497 = vpop.f32.mrb[0].mxu0
      %5498 = vmatprep.mubr.bf16.mxu0 0
      %5499 = vmatmul.mubr.bf16.gmra.mrb[0].mxu0 %v5389
      %v5500 = vpop.f32.mrb[0].mxu0
      %v5501 = vadd.f32 0.0, %v5500
      %v5502 = vpop.f32.mrb[0].mxu0
      %v5503 = vpop.f32.mrb[0].mxu0
      %v5504 = vadd.f32 0.0, %v5503
      %v5505 = vpop.f32.mrb[0].mxu0
      %5506 = vmatprep.mubr.bf16.mxu0 0
      %5507 = vmatmul.mubr.bf16.gmra.mrb[0].mxu0 %v5392
      %v5508 = vpop.f32.mrb[0].mxu0
      %v5509 = vadd.f32 0.0, %v5508
      %v5510 = vpop.f32.mrb[0].mxu0
      %v5511 = vpop.f32.mrb[0].mxu0
      %v5512 = vadd.f32 0.0, %v5511
      %v5513 = vpop.f32.mrb[0].mxu0
      %5514 = vmatprep.mubr.bf16.mxu0 0
      %5515 = vmatmul.mubr.bf16.gmra.mrb[0].mxu0 %v5395
      %v5516 = vpop.f32.mrb[0].mxu0
      %v5517 = vadd.f32 0.0, %v5516
      %v5518 = vpop.f32.mrb[0].mxu0
      %v5519 = vpop.f32.mrb[0].mxu0
      %v5520 = vadd.f32 0.0, %v5519
      %v5521 = vpop.f32.mrb[0].mxu0
      %5522 = vmatprep.mubr.bf16.mxu0 0
      %5523 = vmatmul.mubr.bf16.gmra.mrb[0].mxu0 %v5398
      %v5524 = vpop.f32.mrb[0].mxu0
      %v5525 = vadd.f32 0.0, %v5524
      %v5526 = vpop.f32.mrb[0].mxu0
      %v5527 = vpop.f32.mrb[0].mxu0
      %v5528 = vadd.f32 0.0, %v5527
      %v5529 = vpop.f32.mrb[0].mxu0
      %5530 = vmatprep.mubr.bf16.mxu0 0
      %5531 = vmatmul.mubr.bf16.gmra.mrb[0].mxu0 %v5401
      %v5532 = vpop.f32.mrb[0].mxu0
      %v5533 = vadd.f32 0.0, %v5532
      %v5534 = vpop.f32.mrb[0].mxu0
      %v5535 = vpop.f32.mrb[0].mxu0
      %v5536 = vadd.f32 0.0, %v5535
      %v5537 = vpop.f32.mrb[0].mxu0
      %5538 = vmatprep.mubr.bf16.mxu0 0
      %5539 = vmatmul.mubr.bf16.gmra.mrb[0].mxu0 %v5404
      %v5540 = vpop.f32.mrb[0].mxu0
      %v5541 = vadd.f32 0.0, %v5540
      %v5542 = vpop.f32.mrb[0].mxu0
      %v5543 = vpop.f32.mrb[0].mxu0
      %v5544 = vadd.f32 0.0, %v5543
      %v5545 = vpop.f32.mrb[0].mxu0
      %5546 = vmatprep.mubr.bf16.mxu0 0
      %5547 = vmatmul.mubr.bf16.gmra.mrb[0].mxu0 %v5407
      %v5548 = vpop.f32.mrb[0].mxu0
      %v5549 = vadd.f32 0.0, %v5548
      %v5550 = vpop.f32.mrb[0].mxu0
      %v5551 = vpop.f32.mrb[0].mxu0
      %v5552 = vadd.f32 0.0, %v5551
      %v5553 = vpop.f32.mrb[0].mxu0
      %5554 = vmatprep.mubr.bf16.mxu0 0
      %5555 = vmatmul.mubr.bf16.gmra.mrb[0].mxu0 %v5410
      %v5556 = vpop.f32.mrb[0].mxu0
      %v5557 = vadd.f32 0.0, %v5556
      %v5558 = vpop.f32.mrb[0].mxu0
      %v5559 = vpop.f32.mrb[0].mxu0
      %v5560 = vadd.f32 0.0, %v5559
      %v5561 = vpop.f32.mrb[0].mxu0
      %5562 = vmatprep.mubr.bf16.mxu0 0
      %5563 = vmatmul.mubr.bf16.gmra.mrb[0].mxu0 %v5413
      %v5564 = vpop.f32.mrb[0].mxu0
      %v5565 = vadd.f32 0.0, %v5564
      %v5566 = vpop.f32.mrb[0].mxu0
      %v5567 = vpop.f32.mrb[0].mxu0
      %v5568 = vadd.f32 0.0, %v5567
      %v5569 = vpop.f32.mrb[0].mxu0
      %5570 = vmatprep.mubr.bf16.mxu0 0
      %5571 = vmatmul.mubr.bf16.gmra.mrb[0].mxu0 %v5416
      %v5572 = vpop.f32.mrb[0].mxu0
      %v5573 = vadd.f32 0.0, %v5572
      %v5574 = vpop.f32.mrb[0].mxu0
      %v5575 = vpop.f32.mrb[0].mxu0
      %v5576 = vadd.f32 0.0, %v5575
      %v5577 = vpop.f32.mrb[0].mxu0
      %5578 = vdwg.mxu0
      %v5579 = vadd.f32 %v5209, %v5453
      %v5580 = vadd.f32 %v5210, %v5456
      %v5581 = vadd.f32 %v5211, %v5461
      %v5582 = vadd.f32 %v5212, %v5464
      %v5583 = vadd.f32 %v5213, %v5469
      %v5584 = vadd.f32 %v5214, %v5472
      %v5585 = vadd.f32 %v5215, %v5477
      %v5586 = vadd.f32 %v5216, %v5480
      %v5587 = vadd.f32 %v5217, %v5485
      %v5588 = vadd.f32 %v5218, %v5488
      %v5589 = vadd.f32 %v5219, %v5493
      %v5590 = vadd.f32 %v5220, %v5496
      %v5591 = vadd.f32 %v5221, %v5501
      %v5592 = vadd.f32 %v5222, %v5504
      %v5593 = vadd.f32 %v5223, %v5509
      %v5594 = vadd.f32 %v5224, %v5512
      %v5595 = vadd.f32 %v5225, %v5517
      %v5596 = vadd.f32 %v5226, %v5520
      %v5597 = vadd.f32 %v5227, %v5525
      %v5598 = vadd.f32 %v5228, %v5528
      %v5599 = vadd.f32 %v5229, %v5533
      %v5600 = vadd.f32 %v5230, %v5536
      %v5601 = vadd.f32 %v5231, %v5541
      %v5602 = vadd.f32 %v5232, %v5544
      %v5603 = vadd.f32 %v5233, %v5549
      %v5604 = vadd.f32 %v5234, %v5552
      %v5605 = vadd.f32 %v5235, %v5557
      %v5606 = vadd.f32 %v5236, %v5560
      %v5607 = vadd.f32 %v5237, %v5565
      %v5608 = vadd.f32 %v5238, %v5568
      %v5609 = vadd.f32 %v5239, %v5573
      %v5610 = vadd.f32 %v5240, %v5576
      %v5611 = vld [vmem:[%s3645] sm:$0xf]
      %v5612 = vld [vmem:[%s3645 + $0x4] sm:$0xf]
      %v5613 = vld [vmem:[%s3645 + $0x8] sm:$0x1]
      %v5614 = vld [vmem:[%s3645 + $0xc] sm:$0xf]
      %v5615 = vld [vmem:[%s3645 + $0x10] sm:$0xf]
      %v5616 = vld [vmem:[%s3645 + $0x14] sm:$0x1]
      %v5617 = vld [vmem:[%s3645 + $0x18] sm:$0xf]
      %v5618 = vld [vmem:[%s3645 + $0x1c] sm:$0xf]
      %v5619 = vld [vmem:[%s3645 + $0x20] sm:$0x1]
      %v5620 = vld [vmem:[%s3645 + $0x24] sm:$0xf]
      %v5621 = vld [vmem:[%s3645 + $0x28] sm:$0xf]
      %v5622 = vld [vmem:[%s3645 + $0x2c] sm:$0x1]
      %v5623 = vld [vmem:[%s3645 + $0x30] sm:$0xf]
      %v5624 = vld [vmem:[%s3645 + $0x34] sm:$0xf]
      %v5625 = vld [vmem:[%s3645 + $0x38] sm:$0x1]
      %v5626 = vld [vmem:[%s3645 + $0x3c] sm:$0xf]
      %v5627 = vld [vmem:[%s3645 + $0x40] sm:$0xf]
      %v5628 = vld [vmem:[%s3645 + $0x44] sm:$0x1]
      %v5629 = vld [vmem:[%s3645 + $0x48] sm:$0xf]
      %v5630 = vld [vmem:[%s3645 + $0x4c] sm:$0xf]
      %v5631 = vld [vmem:[%s3645 + $0x50] sm:$0x1]
      %v5632 = vld [vmem:[%s3645 + $0x54] sm:$0xf]
      %v5633 = vld [vmem:[%s3645 + $0x58] sm:$0xf]
      %v5634 = vld [vmem:[%s3645 + $0x5c] sm:$0x1]
      %v5635 = vld [vmem:[%s3645 + $0x60] sm:$0xf]
      %v5636 = vld [vmem:[%s3645 + $0x64] sm:$0xf]
      %v5637 = vld [vmem:[%s3645 + $0x68] sm:$0x1]
      %v5638 = vld [vmem:[%s3645 + $0x6c] sm:$0xf]
      %v5639 = vld [vmem:[%s3645 + $0x70] sm:$0xf]
      %v5640 = vld [vmem:[%s3645 + $0x74] sm:$0x1]
      %v5641 = vld [vmem:[%s3645 + $0x78] sm:$0xf]
      %v5642 = vld [vmem:[%s3645 + $0x7c] sm:$0xf]
      %v5643 = vld [vmem:[%s3645 + $0x80] sm:$0x1]
      %v5644 = vld [vmem:[%s3645 + $0x84] sm:$0xf]
      %v5645 = vld [vmem:[%s3645 + $0x88] sm:$0xf]
      %v5646 = vld [vmem:[%s3645 + $0x8c] sm:$0x1]
      %v5647 = vld [vmem:[%s3645 + $0x90] sm:$0xf]
      %v5648 = vld [vmem:[%s3645 + $0x94] sm:$0xf]
      %v5649 = vld [vmem:[%s3645 + $0x98] sm:$0x1]
      %v5650 = vld [vmem:[%s3645 + $0x9c] sm:$0xf]
      %v5651 = vld [vmem:[%s3645 + $0xa0] sm:$0xf]
      %v5652 = vld [vmem:[%s3645 + $0xa4] sm:$0x1]
      %v5653 = vld [vmem:[%s3645 + $0xa8] sm:$0xf]
      %v5654 = vld [vmem:[%s3645 + $0xac] sm:$0xf]
      %v5655 = vld [vmem:[%s3645 + $0xb0] sm:$0x1]
      %v5656 = vld [vmem:[%s3645 + $0xb4] sm:$0xf]
      %v5657 = vld [vmem:[%s3645 + $0xb8] sm:$0xf]
      %v5658 = vld [vmem:[%s3645 + $0xbc] sm:$0x1]
      %v5660 = vshrl.u32 %v5611, 16
      %v5662 = vrot.slane %v5660, 4
      %v5663 = vshll.u32 %v5611, 16
      %v5665 = vrot.slane %v5663, 5
      %v5666 = vor.u32 %v5662, %v5665
      %v5667 = vrot.slane %v5666, 4
      %v5669 = vshll.u32 %v5612, 16
      %v5671 = vrot.slane %v5669, 5
      %v5672 = vsel %vm377, %v5667, %v5671
      %v5673 = vshrl.u32 %v5612, 16
      %v5675 = vrot.slane %v5673, 4
      %v5676 = vor.u32 %v5675, %v5671
      %v5677 = vrot.slane %v5676, 4
      %v5679 = vshll.u32 %v5613, 16
      %v5681 = vrot.slane %v5679, 5
      %v5682 = vsel %vm377, %v5677, %v5681
      %v5684 = vshrl.u32 %v5614, 16
      %v5686 = vrot.slane %v5684, 4
      %v5687 = vshll.u32 %v5614, 16
      %v5689 = vrot.slane %v5687, 5
      %v5690 = vor.u32 %v5686, %v5689
      %v5691 = vrot.slane %v5690, 4
      %v5693 = vshll.u32 %v5615, 16
      %v5695 = vrot.slane %v5693, 5
      %v5696 = vsel %vm377, %v5691, %v5695
      %v5697 = vshrl.u32 %v5615, 16
      %v5699 = vrot.slane %v5697, 4
      %v5700 = vor.u32 %v5699, %v5695
      %v5701 = vrot.slane %v5700, 4
      %v5703 = vshll.u32 %v5616, 16
      %v5705 = vrot.slane %v5703, 5
      %v5706 = vsel %vm377, %v5701, %v5705
      %v5708 = vshrl.u32 %v5617, 16
      %v5710 = vrot.slane %v5708, 4
      %v5711 = vshll.u32 %v5617, 16
      %v5713 = vrot.slane %v5711, 5
      %v5714 = vor.u32 %v5710, %v5713
      %v5715 = vrot.slane %v5714, 4
      %v5717 = vshll.u32 %v5618, 16
      %v5719 = vrot.slane %v5717, 5
      %v5720 = vsel %vm377, %v5715, %v5719
      %v5721 = vshrl.u32 %v5618, 16
      %v5723 = vrot.slane %v5721, 4
      %v5724 = vor.u32 %v5723, %v5719
      %v5725 = vrot.slane %v5724, 4
      %v5727 = vshll.u32 %v5619, 16
      %v5729 = vrot.slane %v5727, 5
      %v5730 = vsel %vm377, %v5725, %v5729
      %v5732 = vshrl.u32 %v5620, 16
      %v5734 = vrot.slane %v5732, 4
      %v5735 = vshll.u32 %v5620, 16
      %v5737 = vrot.slane %v5735, 5
      %v5738 = vor.u32 %v5734, %v5737
      %v5739 = vrot.slane %v5738, 4
      %v5741 = vshll.u32 %v5621, 16
      %v5743 = vrot.slane %v5741, 5
      %v5744 = vsel %vm377, %v5739, %v5743
      %v5745 = vshrl.u32 %v5621, 16
      %v5747 = vrot.slane %v5745, 4
      %v5748 = vor.u32 %v5747, %v5743
      %v5749 = vrot.slane %v5748, 4
      %v5751 = vshll.u32 %v5622, 16
      %v5753 = vrot.slane %v5751, 5
      %v5754 = vsel %vm377, %v5749, %v5753
      %v5756 = vshrl.u32 %v5623, 16
      %v5758 = vrot.slane %v5756, 4
      %v5759 = vshll.u32 %v5623, 16
      %v5761 = vrot.slane %v5759, 5
      %v5762 = vor.u32 %v5758, %v5761
      %v5763 = vrot.slane %v5762, 4
      %v5765 = vshll.u32 %v5624, 16
      %v5767 = vrot.slane %v5765, 5
      %v5768 = vsel %vm377, %v5763, %v5767
      %v5769 = vshrl.u32 %v5624, 16
      %v5771 = vrot.slane %v5769, 4
      %v5772 = vor.u32 %v5771, %v5767
      %v5773 = vrot.slane %v5772, 4
      %v5775 = vshll.u32 %v5625, 16
      %v5777 = vrot.slane %v5775, 5
      %v5778 = vsel %vm377, %v5773, %v5777
      %v5780 = vshrl.u32 %v5626, 16
      %v5782 = vrot.slane %v5780, 4
      %v5783 = vshll.u32 %v5626, 16
      %v5785 = vrot.slane %v5783, 5
      %v5786 = vor.u32 %v5782, %v5785
      %v5787 = vrot.slane %v5786, 4
      %v5789 = vshll.u32 %v5627, 16
      %v5791 = vrot.slane %v5789, 5
      %v5792 = vsel %vm377, %v5787, %v5791
      %v5793 = vshrl.u32 %v5627, 16
      %v5795 = vrot.slane %v5793, 4
      %v5796 = vor.u32 %v5795, %v5791
      %v5797 = vrot.slane %v5796, 4
      %v5799 = vshll.u32 %v5628, 16
      %v5801 = vrot.slane %v5799, 5
      %v5802 = vsel %vm377, %v5797, %v5801
      %v5804 = vshrl.u32 %v5629, 16
      %v5806 = vrot.slane %v5804, 4
      %v5807 = vshll.u32 %v5629, 16
      %v5809 = vrot.slane %v5807, 5
      %v5810 = vor.u32 %v5806, %v5809
      %v5811 = vrot.slane %v5810, 4
      %v5813 = vshll.u32 %v5630, 16
      %v5815 = vrot.slane %v5813, 5
      %v5816 = vsel %vm377, %v5811, %v5815
      %v5817 = vshrl.u32 %v5630, 16
      %v5819 = vrot.slane %v5817, 4
      %v5820 = vor.u32 %v5819, %v5815
      %v5821 = vrot.slane %v5820, 4
      %v5823 = vshll.u32 %v5631, 16
      %v5825 = vrot.slane %v5823, 5
      %v5826 = vsel %vm377, %v5821, %v5825
      %v5828 = vshrl.u32 %v5632, 16
      %v5830 = vrot.slane %v5828, 4
      %v5831 = vshll.u32 %v5632, 16
      %v5833 = vrot.slane %v5831, 5
      %v5834 = vor.u32 %v5830, %v5833
      %v5835 = vrot.slane %v5834, 4
      %v5837 = vshll.u32 %v5633, 16
      %v5839 = vrot.slane %v5837, 5
      %v5840 = vsel %vm377, %v5835, %v5839
      %v5841 = vshrl.u32 %v5633, 16
      %v5843 = vrot.slane %v5841, 4
      %v5844 = vor.u32 %v5843, %v5839
      %v5845 = vrot.slane %v5844, 4
      %v5847 = vshll.u32 %v5634, 16
      %v5849 = vrot.slane %v5847, 5
      %v5850 = vsel %vm377, %v5845, %v5849
      %v5852 = vshrl.u32 %v5635, 16
      %v5854 = vrot.slane %v5852, 4
      %v5855 = vshll.u32 %v5635, 16
      %v5857 = vrot.slane %v5855, 5
      %v5858 = vor.u32 %v5854, %v5857
      %v5859 = vrot.slane %v5858, 4
      %v5861 = vshll.u32 %v5636, 16
      %v5863 = vrot.slane %v5861, 5
      %v5864 = vsel %vm377, %v5859, %v5863
      %v5865 = vshrl.u32 %v5636, 16
      %v5867 = vrot.slane %v5865, 4
      %v5868 = vor.u32 %v5867, %v5863
      %v5869 = vrot.slane %v5868, 4
      %v5871 = vshll.u32 %v5637, 16
      %v5873 = vrot.slane %v5871, 5
      %v5874 = vsel %vm377, %v5869, %v5873
      %v5876 = vshrl.u32 %v5638, 16
      %v5878 = vrot.slane %v5876, 4
      %v5879 = vshll.u32 %v5638, 16
      %v5881 = vrot.slane %v5879, 5
      %v5882 = vor.u32 %v5878, %v5881
      %v5883 = vrot.slane %v5882, 4
      %v5885 = vshll.u32 %v5639, 16
      %v5887 = vrot.slane %v5885, 5
      %v5888 = vsel %vm377, %v5883, %v5887
      %v5889 = vshrl.u32 %v5639, 16
      %v5891 = vrot.slane %v5889, 4
      %v5892 = vor.u32 %v5891, %v5887
      %v5893 = vrot.slane %v5892, 4
      %v5895 = vshll.u32 %v5640, 16
      %v5897 = vrot.slane %v5895, 5
      %v5898 = vsel %vm377, %v5893, %v5897
      %v5900 = vshrl.u32 %v5641, 16
      %v5902 = vrot.slane %v5900, 4
      %v5903 = vshll.u32 %v5641, 16
      %v5905 = vrot.slane %v5903, 5
      %v5906 = vor.u32 %v5902, %v5905
      %v5907 = vrot.slane %v5906, 4
      %v5909 = vshll.u32 %v5642, 16
      %v5911 = vrot.slane %v5909, 5
      %v5912 = vsel %vm377, %v5907, %v5911
      %v5913 = vshrl.u32 %v5642, 16
      %v5915 = vrot.slane %v5913, 4
      %v5916 = vor.u32 %v5915, %v5911
      %v5917 = vrot.slane %v5916, 4
      %v5919 = vshll.u32 %v5643, 16
      %v5921 = vrot.slane %v5919, 5
      %v5922 = vsel %vm377, %v5917, %v5921
      %v5924 = vshrl.u32 %v5644, 16
      %v5926 = vrot.slane %v5924, 4
      %v5927 = vshll.u32 %v5644, 16
      %v5929 = vrot.slane %v5927, 5
      %v5930 = vor.u32 %v5926, %v5929
      %v5931 = vrot.slane %v5930, 4
      %v5933 = vshll.u32 %v5645, 16
      %v5935 = vrot.slane %v5933, 5
      %v5936 = vsel %vm377, %v5931, %v5935
      %v5937 = vshrl.u32 %v5645, 16
      %v5939 = vrot.slane %v5937, 4
      %v5940 = vor.u32 %v5939, %v5935
      %v5941 = vrot.slane %v5940, 4
      %v5943 = vshll.u32 %v5646, 16
      %v5945 = vrot.slane %v5943, 5
      %v5946 = vsel %vm377, %v5941, %v5945
      %v5948 = vshrl.u32 %v5647, 16
      %v5950 = vrot.slane %v5948, 4
      %v5951 = vshll.u32 %v5647, 16
      %v5953 = vrot.slane %v5951, 5
      %v5954 = vor.u32 %v5950, %v5953
      %v5955 = vrot.slane %v5954, 4
      %v5957 = vshll.u32 %v5648, 16
      %v5959 = vrot.slane %v5957, 5
      %v5960 = vsel %vm377, %v5955, %v5959
      %v5961 = vshrl.u32 %v5648, 16
      %v5963 = vrot.slane %v5961, 4
      %v5964 = vor.u32 %v5963, %v5959
      %v5965 = vrot.slane %v5964, 4
      %v5967 = vshll.u32 %v5649, 16
      %v5969 = vrot.slane %v5967, 5
      %v5970 = vsel %vm377, %v5965, %v5969
      %v5972 = vshrl.u32 %v5650, 16
      %v5974 = vrot.slane %v5972, 4
      %v5975 = vshll.u32 %v5650, 16
      %v5977 = vrot.slane %v5975, 5
      %v5978 = vor.u32 %v5974, %v5977
      %v5979 = vrot.slane %v5978, 4
      %v5981 = vshll.u32 %v5651, 16
      %v5983 = vrot.slane %v5981, 5
      %v5984 = vsel %vm377, %v5979, %v5983
      %v5985 = vshrl.u32 %v5651, 16
      %v5987 = vrot.slane %v5985, 4
      %v5988 = vor.u32 %v5987, %v5983
      %v5989 = vrot.slane %v5988, 4
      %v5991 = vshll.u32 %v5652, 16
      %v5993 = vrot.slane %v5991, 5
      %v5994 = vsel %vm377, %v5989, %v5993
      %v5996 = vshrl.u32 %v5653, 16
      %v5998 = vrot.slane %v5996, 4
      %v5999 = vshll.u32 %v5653, 16
      %v6001 = vrot.slane %v5999, 5
      %v6002 = vor.u32 %v5998, %v6001
      %v6003 = vrot.slane %v6002, 4
      %v6005 = vshll.u32 %v5654, 16
      %v6007 = vrot.slane %v6005, 5
      %v6008 = vsel %vm377, %v6003, %v6007
      %v6009 = vshrl.u32 %v5654, 16
      %v6011 = vrot.slane %v6009, 4
      %v6012 = vor.u32 %v6011, %v6007
      %v6013 = vrot.slane %v6012, 4
      %v6015 = vshll.u32 %v5655, 16
      %v6017 = vrot.slane %v6015, 5
      %v6018 = vsel %vm377, %v6013, %v6017
      %v6020 = vshrl.u32 %v5656, 16
      %v6022 = vrot.slane %v6020, 4
      %v6023 = vshll.u32 %v5656, 16
      %v6025 = vrot.slane %v6023, 5
      %v6026 = vor.u32 %v6022, %v6025
      %v6027 = vrot.slane %v6026, 4
      %v6029 = vshll.u32 %v5657, 16
      %v6031 = vrot.slane %v6029, 5
      %v6032 = vsel %vm377, %v6027, %v6031
      %v6033 = vshrl.u32 %v5657, 16
      %v6035 = vrot.slane %v6033, 4
      %v6036 = vor.u32 %v6035, %v6031
      %v6037 = vrot.slane %v6036, 4
      %v6039 = vshll.u32 %v5658, 16
      %v6041 = vrot.slane %v6039, 5
      %v6042 = vsel %vm377, %v6037, %v6041
      %s6043 = scalar_lea.vmem %s3, 64
      %v6044 = vld [vmem:[%s6043] sm:$0xf]
      %v6045 = vld [vmem:[%s6043 + $0x4] sm:$0xf]
      %v6046 = vld [vmem:[%s6043 + $0x8] sm:$0xf]
      %v6047 = vld [vmem:[%s6043 + $0xc] sm:$0xf]
      %v6048 = vunpack.c.l.b16 %v5672
      %v6049 = vunpack.c.l.b16 %v5682
      %v6050 = vunpack.c.l.b16 %v5696
      %v6051 = vunpack.c.l.b16 %v5706
      %v6052 = vunpack.c.l.b16 %v5720
      %v6053 = vunpack.c.l.b16 %v5730
      %v6054 = vunpack.c.l.b16 %v5744
      %v6055 = vunpack.c.l.b16 %v5754
      %v6056 = vunpack.c.l.b16 %v5768
      %v6057 = vunpack.c.l.b16 %v5778
      %v6058 = vunpack.c.l.b16 %v5792
      %v6059 = vunpack.c.l.b16 %v5802
      %v6060 = vunpack.c.l.b16 %v5816
      %v6061 = vunpack.c.l.b16 %v5826
      %v6062 = vunpack.c.l.b16 %v5840
      %v6063 = vunpack.c.l.b16 %v5850
      %v6064 = vunpack.c.l.b16 %v5864
      %v6065 = vunpack.c.l.b16 %v5874
      %v6066 = vunpack.c.l.b16 %v5888
      %v6067 = vunpack.c.l.b16 %v5898
      %v6068 = vunpack.c.l.b16 %v5912
      %v6069 = vunpack.c.l.b16 %v5922
      %v6070 = vunpack.c.l.b16 %v5936
      %v6071 = vunpack.c.l.b16 %v5946
      %v6072 = vunpack.c.l.b16 %v5960
      %v6073 = vunpack.c.l.b16 %v5970
      %v6074 = vunpack.c.l.b16 %v5984
      %v6075 = vunpack.c.l.b16 %v5994
      %v6076 = vunpack.c.l.b16 %v6008
      %v6077 = vunpack.c.l.b16 %v6018
      %v6078 = vunpack.c.l.b16 %v6032
      %v6079 = vunpack.c.l.b16 %v6042
      %v6080 = vpack.c.b16 %v6049, %v6048
      %v6081 = vpack.c.b16 %v6051, %v6050
      %v6082 = vpack.c.b16 %v6053, %v6052
      %v6083 = vpack.c.b16 %v6055, %v6054
      %v6084 = vpack.c.b16 %v6057, %v6056
      %v6085 = vpack.c.b16 %v6059, %v6058
      %v6086 = vpack.c.b16 %v6061, %v6060
      %v6087 = vpack.c.b16 %v6063, %v6062
      %v6088 = vpack.c.b16 %v6065, %v6064
      %v6089 = vpack.c.b16 %v6067, %v6066
      %v6090 = vpack.c.b16 %v6069, %v6068
      %v6091 = vpack.c.b16 %v6071, %v6070
      %v6092 = vpack.c.b16 %v6073, %v6072
      %v6093 = vpack.c.b16 %v6075, %v6074
      %v6094 = vpack.c.b16 %v6077, %v6076
      %v6095 = vpack.c.b16 %v6079, %v6078
      %v6100 = vunpack.c.l.b16 %v6044
      %v6101 = vunpack.c.l.b16 %v6045
      %v6102 = vunpack.c.l.b16 %v6046
      %v6103 = vunpack.c.l.b16 %v6047
      %v6104 = vpack.c.b16 %v6101, %v6100
      %v6105 = vpack.c.b16 %v6103, %v6102
      %v6109 = vsel %vm4264, %v6080, 0
      %v6112 = vsel %vm4264, %v6081, 0
      %v6115 = vsel %vm4264, %v6082, 0
      %v6118 = vsel %vm4264, %v6083, 0
      %v6121 = vsel %vm4264, %v6084, 0
      %v6124 = vsel %vm4264, %v6085, 0
      %v6127 = vsel %vm4264, %v6086, 0
      %v6130 = vsel %vm4264, %v6087, 0
      %v6133 = vsel %vm4264, %v6088, 0
      %v6136 = vsel %vm4264, %v6089, 0
      %v6139 = vsel %vm4264, %v6090, 0
      %v6142 = vsel %vm4264, %v6091, 0
      %v6145 = vsel %vm4264, %v6092, 0
      %v6148 = vsel %vm4264, %v6093, 0
      %v6151 = vsel %vm4264, %v6094, 0
      %v6154 = vsel %vm4264, %v6095, 0
      %6156 = vmatprep.subr.bf16.mxu0 0
      %6157 = vmatpush1.bf16.msra.mxu0 %v6104
      %6158 = vmatprep.subr.bf16.mxu0 0
      %6159 = vmatpush1.bf16.msra.mxu0 %v6105
      %6160 = vmatprep.subr.bf16.mxu0 0
      %6161 = vmatpush1.bf16.msra.mxu0 0
      %6162 = vmatprep.subr.bf16.mxu0 0
      %6163 = vmatpush1.bf16.msra.mxu0 0
      %6164 = vmatprep.subr.bf16.mxu0 0
      %6165 = vmatpush1.bf16.msra.mxu0 0
      %6166 = vmatprep.subr.bf16.mxu0 0
      %6167 = vmatpush1.bf16.msra.mxu0 0
      %6168 = vmatprep.subr.bf16.mxu0 0
      %6169 = vmatpush1.bf16.msra.mxu0 0
      %6170 = vmatprep.subr.bf16.mxu0 0
      %6171 = vmatpush1.bf16.msra.mxu0 0
      %6172 = vmatprep.subr.bf16.mxu0 0
      %6173 = vmatpush1.bf16.msra.mxu0 0
      %6174 = vmatprep.subr.bf16.mxu0 0
      %6175 = vmatpush1.bf16.msra.mxu0 0
      %6176 = vmatprep.subr.bf16.mxu0 0
      %6177 = vmatpush1.bf16.msra.mxu0 0
      %6178 = vmatprep.subr.bf16.mxu0 0
      %6179 = vmatpush1.bf16.msra.mxu0 0
      %6180 = vmatprep.subr.bf16.mxu0 0
      %6181 = vmatpush1.bf16.msra.mxu0 0
      %6182 = vmatprep.subr.bf16.mxu0 0
      %6183 = vmatpush1.bf16.msra.mxu0 0
      %6184 = vmatprep.subr.bf16.mxu0 0
      %6185 = vmatpush1.bf16.msra.mxu0 0
      %6186 = vmatprep.subr.bf16.mxu0 0
      %6187 = vmatpush1.bf16.msra.mxu0 0
      %6188 = vmatprep.mubr.bf16.mxu0 0
      %6189 = vmatmul.mubr.bf16.gmra.mrb[0].mxu0 %v6109
      %v6190 = vpop.f32.mrb[0].mxu0
      %v6191 = vadd.f32 0.0, %v6190
      %v6192 = vpop.f32.mrb[0].mxu0
      %v6193 = vpop.f32.mrb[0].mxu0
      %v6194 = vadd.f32 0.0, %v6193
      %v6195 = vpop.f32.mrb[0].mxu0
      %6196 = vmatprep.mubr.bf16.mxu0 0
      %6197 = vmatmul.mubr.bf16.gmra.mrb[0].mxu0 %v6112
      %v6198 = vpop.f32.mrb[0].mxu0
      %v6199 = vadd.f32 0.0, %v6198
      %v6200 = vpop.f32.mrb[0].mxu0
      %v6201 = vpop.f32.mrb[0].mxu0
      %v6202 = vadd.f32 0.0, %v6201
      %v6203 = vpop.f32.mrb[0].mxu0
      %6204 = vmatprep.mubr.bf16.mxu0 0
      %6205 = vmatmul.mubr.bf16.gmra.mrb[0].mxu0 %v6115
      %v6206 = vpop.f32.mrb[0].mxu0
      %v6207 = vadd.f32 0.0, %v6206
      %v6208 = vpop.f32.mrb[0].mxu0
      %v6209 = vpop.f32.mrb[0].mxu0
      %v6210 = vadd.f32 0.0, %v6209
      %v6211 = vpop.f32.mrb[0].mxu0
      %6212 = vmatprep.mubr.bf16.mxu0 0
      %6213 = vmatmul.mubr.bf16.gmra.mrb[0].mxu0 %v6118
      %v6214 = vpop.f32.mrb[0].mxu0
      %v6215 = vadd.f32 0.0, %v6214
      %v6216 = vpop.f32.mrb[0].mxu0
      %v6217 = vpop.f32.mrb[0].mxu0
      %v6218 = vadd.f32 0.0, %v6217
      %v6219 = vpop.f32.mrb[0].mxu0
      %6220 = vmatprep.mubr.bf16.mxu0 0
      %6221 = vmatmul.mubr.bf16.gmra.mrb[0].mxu0 %v6121
      %v6222 = vpop.f32.mrb[0].mxu0
      %v6223 = vadd.f32 0.0, %v6222
      %v6224 = vpop.f32.mrb[0].mxu0
      %v6225 = vpop.f32.mrb[0].mxu0
      %v6226 = vadd.f32 0.0, %v6225
      %v6227 = vpop.f32.mrb[0].mxu0
      %6228 = vmatprep.mubr.bf16.mxu0 0
      %6229 = vmatmul.mubr.bf16.gmra.mrb[0].mxu0 %v6124
      %v6230 = vpop.f32.mrb[0].mxu0
      %v6231 = vadd.f32 0.0, %v6230
      %v6232 = vpop.f32.mrb[0].mxu0
      %v6233 = vpop.f32.mrb[0].mxu0
      %v6234 = vadd.f32 0.0, %v6233
      %v6235 = vpop.f32.mrb[0].mxu0
      %6236 = vmatprep.mubr.bf16.mxu0 0
      %6237 = vmatmul.mubr.bf16.gmra.mrb[0].mxu0 %v6127
      %v6238 = vpop.f32.mrb[0].mxu0
      %v6239 = vadd.f32 0.0, %v6238
      %v6240 = vpop.f32.mrb[0].mxu0
      %v6241 = vpop.f32.mrb[0].mxu0
      %v6242 = vadd.f32 0.0, %v6241
      %v6243 = vpop.f32.mrb[0].mxu0
      %6244 = vmatprep.mubr.bf16.mxu0 0
      %6245 = vmatmul.mubr.bf16.gmra.mrb[0].mxu0 %v6130
      %v6246 = vpop.f32.mrb[0].mxu0
      %v6247 = vadd.f32 0.0, %v6246
      %v6248 = vpop.f32.mrb[0].mxu0
      %v6249 = vpop.f32.mrb[0].mxu0
      %v6250 = vadd.f32 0.0, %v6249
      %v6251 = vpop.f32.mrb[0].mxu0
      %6252 = vmatprep.mubr.bf16.mxu0 0
      %6253 = vmatmul.mubr.bf16.gmra.mrb[0].mxu0 %v6133
      %v6254 = vpop.f32.mrb[0].mxu0
      %v6255 = vadd.f32 0.0, %v6254
      %v6256 = vpop.f32.mrb[0].mxu0
      %v6257 = vpop.f32.mrb[0].mxu0
      %v6258 = vadd.f32 0.0, %v6257
      %v6259 = vpop.f32.mrb[0].mxu0
      %6260 = vmatprep.mubr.bf16.mxu0 0
      %6261 = vmatmul.mubr.bf16.gmra.mrb[0].mxu0 %v6136
      %v6262 = vpop.f32.mrb[0].mxu0
      %v6263 = vadd.f32 0.0, %v6262
      %v6264 = vpop.f32.mrb[0].mxu0
      %v6265 = vpop.f32.mrb[0].mxu0
      %v6266 = vadd.f32 0.0, %v6265
      %v6267 = vpop.f32.mrb[0].mxu0
      %6268 = vmatprep.mubr.bf16.mxu0 0
      %6269 = vmatmul.mubr.bf16.gmra.mrb[0].mxu0 %v6139
      %v6270 = vpop.f32.mrb[0].mxu0
      %v6271 = vadd.f32 0.0, %v6270
      %v6272 = vpop.f32.mrb[0].mxu0
      %v6273 = vpop.f32.mrb[0].mxu0
      %v6274 = vadd.f32 0.0, %v6273
      %v6275 = vpop.f32.mrb[0].mxu0
      %6276 = vmatprep.mubr.bf16.mxu0 0
      %6277 = vmatmul.mubr.bf16.gmra.mrb[0].mxu0 %v6142
      %v6278 = vpop.f32.mrb[0].mxu0
      %v6279 = vadd.f32 0.0, %v6278
      %v6280 = vpop.f32.mrb[0].mxu0
      %v6281 = vpop.f32.mrb[0].mxu0
      %v6282 = vadd.f32 0.0, %v6281
      %v6283 = vpop.f32.mrb[0].mxu0
      %6284 = vmatprep.mubr.bf16.mxu0 0
      %6285 = vmatmul.mubr.bf16.gmra.mrb[0].mxu0 %v6145
      %v6286 = vpop.f32.mrb[0].mxu0
      %v6287 = vadd.f32 0.0, %v6286
      %v6288 = vpop.f32.mrb[0].mxu0
      %v6289 = vpop.f32.mrb[0].mxu0
      %v6290 = vadd.f32 0.0, %v6289
      %v6291 = vpop.f32.mrb[0].mxu0
      %6292 = vmatprep.mubr.bf16.mxu0 0
      %6293 = vmatmul.mubr.bf16.gmra.mrb[0].mxu0 %v6148
      %v6294 = vpop.f32.mrb[0].mxu0
      %v6295 = vadd.f32 0.0, %v6294
      %v6296 = vpop.f32.mrb[0].mxu0
      %v6297 = vpop.f32.mrb[0].mxu0
      %v6298 = vadd.f32 0.0, %v6297
      %v6299 = vpop.f32.mrb[0].mxu0
      %6300 = vmatprep.mubr.bf16.mxu0 0
      %6301 = vmatmul.mubr.bf16.gmra.mrb[0].mxu0 %v6151
      %v6302 = vpop.f32.mrb[0].mxu0
      %v6303 = vadd.f32 0.0, %v6302
      %v6304 = vpop.f32.mrb[0].mxu0
      %v6305 = vpop.f32.mrb[0].mxu0
      %v6306 = vadd.f32 0.0, %v6305
      %v6307 = vpop.f32.mrb[0].mxu0
      %6308 = vmatprep.mubr.bf16.mxu0 0
      %6309 = vmatmul.mubr.bf16.gmra.mrb[0].mxu0 %v6154
      %v6310 = vpop.f32.mrb[0].mxu0
      %v6311 = vadd.f32 0.0, %v6310
      %v6312 = vpop.f32.mrb[0].mxu0
      %v6313 = vpop.f32.mrb[0].mxu0
      %v6314 = vadd.f32 0.0, %v6313
      %v6315 = vpop.f32.mrb[0].mxu0
      %6316 = vdwg.mxu0
      %v6317 = vadd.f32 %v5579, %v6191
      %v6318 = vadd.f32 %v5580, %v6194
      %v6319 = vadd.f32 %v5581, %v6199
      %v6320 = vadd.f32 %v5582, %v6202
      %v6321 = vadd.f32 %v5583, %v6207
      %v6322 = vadd.f32 %v5584, %v6210
      %v6323 = vadd.f32 %v5585, %v6215
      %v6324 = vadd.f32 %v5586, %v6218
      %v6325 = vadd.f32 %v5587, %v6223
      %v6326 = vadd.f32 %v5588, %v6226
      %v6327 = vadd.f32 %v5589, %v6231
      %v6328 = vadd.f32 %v5590, %v6234
      %v6329 = vadd.f32 %v5591, %v6239
      %v6330 = vadd.f32 %v5592, %v6242
      %v6331 = vadd.f32 %v5593, %v6247
      %v6332 = vadd.f32 %v5594, %v6250
      %v6333 = vadd.f32 %v5595, %v6255
      %v6334 = vadd.f32 %v5596, %v6258
      %v6335 = vadd.f32 %v5597, %v6263
      %v6336 = vadd.f32 %v5598, %v6266
      %v6337 = vadd.f32 %v5599, %v6271
      %v6338 = vadd.f32 %v5600, %v6274
      %v6339 = vadd.f32 %v5601, %v6279
      %v6340 = vadd.f32 %v5602, %v6282
      %v6341 = vadd.f32 %v5603, %v6287
      %v6342 = vadd.f32 %v5604, %v6290
      %v6343 = vadd.f32 %v5605, %v6295
      %v6344 = vadd.f32 %v5606, %v6298
      %v6345 = vadd.f32 %v5607, %v6303
      %v6346 = vadd.f32 %v5608, %v6306
      %v6347 = vadd.f32 %v5609, %v6311
      %v6348 = vadd.f32 %v5610, %v6314
      %v6349 = vld [vmem:[%s3645] sm:$0xe]
      %v6350 = vld [vmem:[%s3645 + $0xc] sm:$0xe]
      %v6351 = vld [vmem:[%s3645 + $0x18] sm:$0xe]
      %v6352 = vld [vmem:[%s3645 + $0x24] sm:$0xe]
      %v6353 = vld [vmem:[%s3645 + $0x30] sm:$0xe]
      %v6354 = vld [vmem:[%s3645 + $0x3c] sm:$0xe]
      %v6355 = vld [vmem:[%s3645 + $0x48] sm:$0xe]
      %v6356 = vld [vmem:[%s3645 + $0x54] sm:$0xe]
      %v6357 = vld [vmem:[%s3645 + $0x60] sm:$0xe]
      %v6358 = vld [vmem:[%s3645 + $0x6c] sm:$0xe]
      %v6359 = vld [vmem:[%s3645 + $0x78] sm:$0xe]
      %v6360 = vld [vmem:[%s3645 + $0x84] sm:$0xe]
      %v6361 = vld [vmem:[%s3645 + $0x90] sm:$0xe]
      %v6362 = vld [vmem:[%s3645 + $0x9c] sm:$0xe]
      %v6363 = vld [vmem:[%s3645 + $0xa8] sm:$0xe]
      %v6364 = vld [vmem:[%s3645 + $0xb4] sm:$0xe]
      %v6413 = vrot.slane %v6349, 5
      %v6414 = vrot.slane %v6413, 4
      %v6415 = vrot.slane %v5612, 5
      %v6416 = vsel %vm1336, %v6414, %v6415
      %v6417 = vrot.slane %v6415, 4
      %v6418 = vrot.slane %v5613, 5
      %v6419 = vsel %vm1336, %v6417, %v6418
      %v6420 = vrot.slane %v6350, 5
      %v6421 = vrot.slane %v6420, 4
      %v6422 = vrot.slane %v5615, 5
      %v6423 = vsel %vm1336, %v6421, %v6422
      %v6424 = vrot.slane %v6422, 4
      %v6425 = vrot.slane %v5616, 5
      %v6426 = vsel %vm1336, %v6424, %v6425
      %v6427 = vrot.slane %v6351, 5
      %v6428 = vrot.slane %v6427, 4
      %v6429 = vrot.slane %v5618, 5
      %v6430 = vsel %vm1336, %v6428, %v6429
      %v6431 = vrot.slane %v6429, 4
      %v6432 = vrot.slane %v5619, 5
      %v6433 = vsel %vm1336, %v6431, %v6432
      %v6434 = vrot.slane %v6352, 5
      %v6435 = vrot.slane %v6434, 4
      %v6436 = vrot.slane %v5621, 5
      %v6437 = vsel %vm1336, %v6435, %v6436
      %v6438 = vrot.slane %v6436, 4
      %v6439 = vrot.slane %v5622, 5
      %v6440 = vsel %vm1336, %v6438, %v6439
      %v6441 = vrot.slane %v6353, 5
      %v6442 = vrot.slane %v6441, 4
      %v6443 = vrot.slane %v5624, 5
      %v6444 = vsel %vm1336, %v6442, %v6443
      %v6445 = vrot.slane %v6443, 4
      %v6446 = vrot.slane %v5625, 5
      %v6447 = vsel %vm1336, %v6445, %v6446
      %v6448 = vrot.slane %v6354, 5
      %v6449 = vrot.slane %v6448, 4
      %v6450 = vrot.slane %v5627, 5
      %v6451 = vsel %vm1336, %v6449, %v6450
      %v6452 = vrot.slane %v6450, 4
      %v6453 = vrot.slane %v5628, 5
      %v6454 = vsel %vm1336, %v6452, %v6453
      %v6455 = vrot.slane %v6355, 5
      %v6456 = vrot.slane %v6455, 4
      %v6457 = vrot.slane %v5630, 5
      %v6458 = vsel %vm1336, %v6456, %v6457
      %v6459 = vrot.slane %v6457, 4
      %v6460 = vrot.slane %v5631, 5
      %v6461 = vsel %vm1336, %v6459, %v6460
      %v6462 = vrot.slane %v6356, 5
      %v6463 = vrot.slane %v6462, 4
      %v6464 = vrot.slane %v5633, 5
      %v6465 = vsel %vm1336, %v6463, %v6464
      %v6466 = vrot.slane %v6464, 4
      %v6467 = vrot.slane %v5634, 5
      %v6468 = vsel %vm1336, %v6466, %v6467
      %v6469 = vrot.slane %v6357, 5
      %v6470 = vrot.slane %v6469, 4
      %v6471 = vrot.slane %v5636, 5
      %v6472 = vsel %vm1336, %v6470, %v6471
      %v6473 = vrot.slane %v6471, 4
      %v6474 = vrot.slane %v5637, 5
      %v6475 = vsel %vm1336, %v6473, %v6474
      %v6476 = vrot.slane %v6358, 5
      %v6477 = vrot.slane %v6476, 4
      %v6478 = vrot.slane %v5639, 5
      %v6479 = vsel %vm1336, %v6477, %v6478
      %v6480 = vrot.slane %v6478, 4
      %v6481 = vrot.slane %v5640, 5
      %v6482 = vsel %vm1336, %v6480, %v6481
      %v6483 = vrot.slane %v6359, 5
      %v6484 = vrot.slane %v6483, 4
      %v6485 = vrot.slane %v5642, 5
      %v6486 = vsel %vm1336, %v6484, %v6485
      %v6487 = vrot.slane %v6485, 4
      %v6488 = vrot.slane %v5643, 5
      %v6489 = vsel %vm1336, %v6487, %v6488
      %v6490 = vrot.slane %v6360, 5
      %v6491 = vrot.slane %v6490, 4
      %v6492 = vrot.slane %v5645, 5
      %v6493 = vsel %vm1336, %v6491, %v6492
      %v6494 = vrot.slane %v6492, 4
      %v6495 = vrot.slane %v5646, 5
      %v6496 = vsel %vm1336, %v6494, %v6495
      %v6497 = vrot.slane %v6361, 5
      %v6498 = vrot.slane %v6497, 4
      %v6499 = vrot.slane %v5648, 5
      %v6500 = vsel %vm1336, %v6498, %v6499
      %v6501 = vrot.slane %v6499, 4
      %v6502 = vrot.slane %v5649, 5
      %v6503 = vsel %vm1336, %v6501, %v6502
      %v6504 = vrot.slane %v6362, 5
      %v6505 = vrot.slane %v6504, 4
      %v6506 = vrot.slane %v5651, 5
      %v6507 = vsel %vm1336, %v6505, %v6506
      %v6508 = vrot.slane %v6506, 4
      %v6509 = vrot.slane %v5652, 5
      %v6510 = vsel %vm1336, %v6508, %v6509
      %v6511 = vrot.slane %v6363, 5
      %v6512 = vrot.slane %v6511, 4
      %v6513 = vrot.slane %v5654, 5
      %v6514 = vsel %vm1336, %v6512, %v6513
      %v6515 = vrot.slane %v6513, 4
      %v6516 = vrot.slane %v5655, 5
      %v6517 = vsel %vm1336, %v6515, %v6516
      %v6518 = vrot.slane %v6364, 5
      %v6519 = vrot.slane %v6518, 4
      %v6520 = vrot.slane %v5657, 5
      %v6521 = vsel %vm1336, %v6519, %v6520
      %v6522 = vrot.slane %v6520, 4
      %v6523 = vrot.slane %v5658, 5
      %v6524 = vsel %vm1336, %v6522, %v6523
      %s6525 = scalar_lea.vmem %s3, 80
      %v6526 = vld [vmem:[%s6525] sm:$0xf]
      %v6527 = vld [vmem:[%s6525 + $0x4] sm:$0xf]
      %v6528 = vld [vmem:[%s6525 + $0x8] sm:$0xf]
      %v6529 = vld [vmem:[%s6525 + $0xc] sm:$0xf]
      %v6530 = vunpack.c.l.b16 %v6416
      %v6531 = vunpack.c.l.b16 %v6419
      %v6532 = vunpack.c.l.b16 %v6423
      %v6533 = vunpack.c.l.b16 %v6426
      %v6534 = vunpack.c.l.b16 %v6430
      %v6535 = vunpack.c.l.b16 %v6433
      %v6536 = vunpack.c.l.b16 %v6437
      %v6537 = vunpack.c.l.b16 %v6440
      %v6538 = vunpack.c.l.b16 %v6444
      %v6539 = vunpack.c.l.b16 %v6447
      %v6540 = vunpack.c.l.b16 %v6451
      %v6541 = vunpack.c.l.b16 %v6454
      %v6542 = vunpack.c.l.b16 %v6458
      %v6543 = vunpack.c.l.b16 %v6461
      %v6544 = vunpack.c.l.b16 %v6465
      %v6545 = vunpack.c.l.b16 %v6468
      %v6546 = vunpack.c.l.b16 %v6472
      %v6547 = vunpack.c.l.b16 %v6475
      %v6548 = vunpack.c.l.b16 %v6479
      %v6549 = vunpack.c.l.b16 %v6482
      %v6550 = vunpack.c.l.b16 %v6486
      %v6551 = vunpack.c.l.b16 %v6489
      %v6552 = vunpack.c.l.b16 %v6493
      %v6553 = vunpack.c.l.b16 %v6496
      %v6554 = vunpack.c.l.b16 %v6500
      %v6555 = vunpack.c.l.b16 %v6503
      %v6556 = vunpack.c.l.b16 %v6507
      %v6557 = vunpack.c.l.b16 %v6510
      %v6558 = vunpack.c.l.b16 %v6514
      %v6559 = vunpack.c.l.b16 %v6517
      %v6560 = vunpack.c.l.b16 %v6521
      %v6561 = vunpack.c.l.b16 %v6524
      %v6562 = vpack.c.b16 %v6531, %v6530
      %v6563 = vpack.c.b16 %v6533, %v6532
      %v6564 = vpack.c.b16 %v6535, %v6534
      %v6565 = vpack.c.b16 %v6537, %v6536
      %v6566 = vpack.c.b16 %v6539, %v6538
      %v6567 = vpack.c.b16 %v6541, %v6540
      %v6568 = vpack.c.b16 %v6543, %v6542
      %v6569 = vpack.c.b16 %v6545, %v6544
      %v6570 = vpack.c.b16 %v6547, %v6546
      %v6571 = vpack.c.b16 %v6549, %v6548
      %v6572 = vpack.c.b16 %v6551, %v6550
      %v6573 = vpack.c.b16 %v6553, %v6552
      %v6574 = vpack.c.b16 %v6555, %v6554
      %v6575 = vpack.c.b16 %v6557, %v6556
      %v6576 = vpack.c.b16 %v6559, %v6558
      %v6577 = vpack.c.b16 %v6561, %v6560
      %v6582 = vunpack.c.l.b16 %v6526
      %v6583 = vunpack.c.l.b16 %v6527
      %v6584 = vunpack.c.l.b16 %v6528
      %v6585 = vunpack.c.l.b16 %v6529
      %v6586 = vpack.c.b16 %v6583, %v6582
      %v6587 = vpack.c.b16 %v6585, %v6584
      %v6591 = vsel %vm4264, %v6562, 0
      %v6594 = vsel %vm4264, %v6563, 0
      %v6597 = vsel %vm4264, %v6564, 0
      %v6600 = vsel %vm4264, %v6565, 0
      %v6603 = vsel %vm4264, %v6566, 0
      %v6606 = vsel %vm4264, %v6567, 0
      %v6609 = vsel %vm4264, %v6568, 0
      %v6612 = vsel %vm4264, %v6569, 0
      %v6615 = vsel %vm4264, %v6570, 0
      %v6618 = vsel %vm4264, %v6571, 0
      %v6621 = vsel %vm4264, %v6572, 0
      %v6624 = vsel %vm4264, %v6573, 0
      %v6627 = vsel %vm4264, %v6574, 0
      %v6630 = vsel %vm4264, %v6575, 0
      %v6633 = vsel %vm4264, %v6576, 0
      %v6636 = vsel %vm4264, %v6577, 0
      %6638 = vmatprep.subr.bf16.mxu0 0
      %6639 = vmatpush1.bf16.msra.mxu0 %v6586
      %6640 = vmatprep.subr.bf16.mxu0 0
      %6641 = vmatpush1.bf16.msra.mxu0 %v6587
      %6642 = vmatprep.subr.bf16.mxu0 0
      %6643 = vmatpush1.bf16.msra.mxu0 0
      %6644 = vmatprep.subr.bf16.mxu0 0
      %6645 = vmatpush1.bf16.msra.mxu0 0
      %6646 = vmatprep.subr.bf16.mxu0 0
      %6647 = vmatpush1.bf16.msra.mxu0 0
      %6648 = vmatprep.subr.bf16.mxu0 0
      %6649 = vmatpush1.bf16.msra.mxu0 0
      %6650 = vmatprep.subr.bf16.mxu0 0
      %6651 = vmatpush1.bf16.msra.mxu0 0
      %6652 = vmatprep.subr.bf16.mxu0 0
      %6653 = vmatpush1.bf16.msra.mxu0 0
      %6654 = vmatprep.subr.bf16.mxu0 0
      %6655 = vmatpush1.bf16.msra.mxu0 0
      %6656 = vmatprep.subr.bf16.mxu0 0
      %6657 = vmatpush1.bf16.msra.mxu0 0
      %6658 = vmatprep.subr.bf16.mxu0 0
      %6659 = vmatpush1.bf16.msra.mxu0 0
      %6660 = vmatprep.subr.bf16.mxu0 0
      %6661 = vmatpush1.bf16.msra.mxu0 0
      %6662 = vmatprep.subr.bf16.mxu0 0
      %6663 = vmatpush1.bf16.msra.mxu0 0
      %6664 = vmatprep.subr.bf16.mxu0 0
      %6665 = vmatpush1.bf16.msra.mxu0 0
      %6666 = vmatprep.subr.bf16.mxu0 0
      %6667 = vmatpush1.bf16.msra.mxu0 0
      %6668 = vmatprep.subr.bf16.mxu0 0
      %6669 = vmatpush1.bf16.msra.mxu0 0
      %6670 = vmatprep.mubr.bf16.mxu0 0
      %6671 = vmatmul.mubr.bf16.gmra.mrb[0].mxu0 %v6591
      %v6672 = vpop.f32.mrb[0].mxu0
      %v6673 = vadd.f32 0.0, %v6672
      %v6674 = vpop.f32.mrb[0].mxu0
      %v6675 = vpop.f32.mrb[0].mxu0
      %v6676 = vadd.f32 0.0, %v6675
      %v6677 = vpop.f32.mrb[0].mxu0
      %6678 = vmatprep.mubr.bf16.mxu0 0
      %6679 = vmatmul.mubr.bf16.gmra.mrb[0].mxu0 %v6594
      %v6680 = vpop.f32.mrb[0].mxu0
      %v6681 = vadd.f32 0.0, %v6680
      %v6682 = vpop.f32.mrb[0].mxu0
      %v6683 = vpop.f32.mrb[0].mxu0
      %v6684 = vadd.f32 0.0, %v6683
      %v6685 = vpop.f32.mrb[0].mxu0
      %6686 = vmatprep.mubr.bf16.mxu0 0
      %6687 = vmatmul.mubr.bf16.gmra.mrb[0].mxu0 %v6597
      %v6688 = vpop.f32.mrb[0].mxu0
      %v6689 = vadd.f32 0.0, %v6688
      %v6690 = vpop.f32.mrb[0].mxu0
      %v6691 = vpop.f32.mrb[0].mxu0
      %v6692 = vadd.f32 0.0, %v6691
      %v6693 = vpop.f32.mrb[0].mxu0
      %6694 = vmatprep.mubr.bf16.mxu0 0
      %6695 = vmatmul.mubr.bf16.gmra.mrb[0].mxu0 %v6600
      %v6696 = vpop.f32.mrb[0].mxu0
      %v6697 = vadd.f32 0.0, %v6696
      %v6698 = vpop.f32.mrb[0].mxu0
      %v6699 = vpop.f32.mrb[0].mxu0
      %v6700 = vadd.f32 0.0, %v6699
      %v6701 = vpop.f32.mrb[0].mxu0
      %6702 = vmatprep.mubr.bf16.mxu0 0
      %6703 = vmatmul.mubr.bf16.gmra.mrb[0].mxu0 %v6603
      %v6704 = vpop.f32.mrb[0].mxu0
      %v6705 = vadd.f32 0.0, %v6704
      %v6706 = vpop.f32.mrb[0].mxu0
      %v6707 = vpop.f32.mrb[0].mxu0
      %v6708 = vadd.f32 0.0, %v6707
      %v6709 = vpop.f32.mrb[0].mxu0
      %6710 = vmatprep.mubr.bf16.mxu0 0
      %6711 = vmatmul.mubr.bf16.gmra.mrb[0].mxu0 %v6606
      %v6712 = vpop.f32.mrb[0].mxu0
      %v6713 = vadd.f32 0.0, %v6712
      %v6714 = vpop.f32.mrb[0].mxu0
      %v6715 = vpop.f32.mrb[0].mxu0
      %v6716 = vadd.f32 0.0, %v6715
      %v6717 = vpop.f32.mrb[0].mxu0
      %6718 = vmatprep.mubr.bf16.mxu0 0
      %6719 = vmatmul.mubr.bf16.gmra.mrb[0].mxu0 %v6609
      %v6720 = vpop.f32.mrb[0].mxu0
      %v6721 = vadd.f32 0.0, %v6720
      %v6722 = vpop.f32.mrb[0].mxu0
      %v6723 = vpop.f32.mrb[0].mxu0
      %v6724 = vadd.f32 0.0, %v6723
      %v6725 = vpop.f32.mrb[0].mxu0
      %6726 = vmatprep.mubr.bf16.mxu0 0
      %6727 = vmatmul.mubr.bf16.gmra.mrb[0].mxu0 %v6612
      %v6728 = vpop.f32.mrb[0].mxu0
      %v6729 = vadd.f32 0.0, %v6728
      %v6730 = vpop.f32.mrb[0].mxu0
      %v6731 = vpop.f32.mrb[0].mxu0
      %v6732 = vadd.f32 0.0, %v6731
      %v6733 = vpop.f32.mrb[0].mxu0
      %6734 = vmatprep.mubr.bf16.mxu0 0
      %6735 = vmatmul.mubr.bf16.gmra.mrb[0].mxu0 %v6615
      %v6736 = vpop.f32.mrb[0].mxu0
      %v6737 = vadd.f32 0.0, %v6736
      %v6738 = vpop.f32.mrb[0].mxu0
      %v6739 = vpop.f32.mrb[0].mxu0
      %v6740 = vadd.f32 0.0, %v6739
      %v6741 = vpop.f32.mrb[0].mxu0
      %6742 = vmatprep.mubr.bf16.mxu0 0
      %6743 = vmatmul.mubr.bf16.gmra.mrb[0].mxu0 %v6618
      %v6744 = vpop.f32.mrb[0].mxu0
      %v6745 = vadd.f32 0.0, %v6744
      %v6746 = vpop.f32.mrb[0].mxu0
      %v6747 = vpop.f32.mrb[0].mxu0
      %v6748 = vadd.f32 0.0, %v6747
      %v6749 = vpop.f32.mrb[0].mxu0
      %6750 = vmatprep.mubr.bf16.mxu0 0
      %6751 = vmatmul.mubr.bf16.gmra.mrb[0].mxu0 %v6621
      %v6752 = vpop.f32.mrb[0].mxu0
      %v6753 = vadd.f32 0.0, %v6752
      %v6754 = vpop.f32.mrb[0].mxu0
      %v6755 = vpop.f32.mrb[0].mxu0
      %v6756 = vadd.f32 0.0, %v6755
      %v6757 = vpop.f32.mrb[0].mxu0
      %6758 = vmatprep.mubr.bf16.mxu0 0
      %6759 = vmatmul.mubr.bf16.gmra.mrb[0].mxu0 %v6624
      %v6760 = vpop.f32.mrb[0].mxu0
      %v6761 = vadd.f32 0.0, %v6760
      %v6762 = vpop.f32.mrb[0].mxu0
      %v6763 = vpop.f32.mrb[0].mxu0
      %v6764 = vadd.f32 0.0, %v6763
      %v6765 = vpop.f32.mrb[0].mxu0
      %6766 = vmatprep.mubr.bf16.mxu0 0
      %6767 = vmatmul.mubr.bf16.gmra.mrb[0].mxu0 %v6627
      %v6768 = vpop.f32.mrb[0].mxu0
      %v6769 = vadd.f32 0.0, %v6768
      %v6770 = vpop.f32.mrb[0].mxu0
      %v6771 = vpop.f32.mrb[0].mxu0
      %v6772 = vadd.f32 0.0, %v6771
      %v6773 = vpop.f32.mrb[0].mxu0
      %6774 = vmatprep.mubr.bf16.mxu0 0
      %6775 = vmatmul.mubr.bf16.gmra.mrb[0].mxu0 %v6630
      %v6776 = vpop.f32.mrb[0].mxu0
      %v6777 = vadd.f32 0.0, %v6776
      %v6778 = vpop.f32.mrb[0].mxu0
      %v6779 = vpop.f32.mrb[0].mxu0
      %v6780 = vadd.f32 0.0, %v6779
      %v6781 = vpop.f32.mrb[0].mxu0
      %6782 = vmatprep.mubr.bf16.mxu0 0
      %6783 = vmatmul.mubr.bf16.gmra.mrb[0].mxu0 %v6633
      %v6784 = vpop.f32.mrb[0].mxu0
      %v6785 = vadd.f32 0.0, %v6784
      %v6786 = vpop.f32.mrb[0].mxu0
      %v6787 = vpop.f32.mrb[0].mxu0
      %v6788 = vadd.f32 0.0, %v6787
      %v6789 = vpop.f32.mrb[0].mxu0
      %6790 = vmatprep.mubr.bf16.mxu0 0
      %6791 = vmatmul.mubr.bf16.gmra.mrb[0].mxu0 %v6636
      %v6792 = vpop.f32.mrb[0].mxu0
      %v6793 = vadd.f32 0.0, %v6792
      %v6794 = vpop.f32.mrb[0].mxu0
      %v6795 = vpop.f32.mrb[0].mxu0
      %v6796 = vadd.f32 0.0, %v6795
      %v6797 = vpop.f32.mrb[0].mxu0
      %6798 = vdwg.mxu0
      %v6799 = vadd.f32 %v6317, %v6673
      %v6800 = vadd.f32 %v6318, %v6676
      %v6801 = vadd.f32 %v6319, %v6681
      %v6802 = vadd.f32 %v6320, %v6684
      %v6803 = vadd.f32 %v6321, %v6689
      %v6804 = vadd.f32 %v6322, %v6692
      %v6805 = vadd.f32 %v6323, %v6697
      %v6806 = vadd.f32 %v6324, %v6700
      %v6807 = vadd.f32 %v6325, %v6705
      %v6808 = vadd.f32 %v6326, %v6708
      %v6809 = vadd.f32 %v6327, %v6713
      %v6810 = vadd.f32 %v6328, %v6716
      %v6811 = vadd.f32 %v6329, %v6721
      %v6812 = vadd.f32 %v6330, %v6724
      %v6813 = vadd.f32 %v6331, %v6729
      %v6814 = vadd.f32 %v6332, %v6732
      %v6815 = vadd.f32 %v6333, %v6737
      %v6816 = vadd.f32 %v6334, %v6740
      %v6817 = vadd.f32 %v6335, %v6745
      %v6818 = vadd.f32 %v6336, %v6748
      %v6819 = vadd.f32 %v6337, %v6753
      %v6820 = vadd.f32 %v6338, %v6756
      %v6821 = vadd.f32 %v6339, %v6761
      %v6822 = vadd.f32 %v6340, %v6764
      %v6823 = vadd.f32 %v6341, %v6769
      %v6824 = vadd.f32 %v6342, %v6772
      %v6825 = vadd.f32 %v6343, %v6777
      %v6826 = vadd.f32 %v6344, %v6780
      %v6827 = vadd.f32 %v6345, %v6785
      %v6828 = vadd.f32 %v6346, %v6788
      %v6829 = vadd.f32 %v6347, %v6793
      %v6830 = vadd.f32 %v6348, %v6796
      %s6831 = scalar_lea.vmem [#allocation2], 24
      %v6832 = vld [vmem:[%s6831] sm:$0xf]
      %v6833 = vld [vmem:[%s6831 + $0x4] sm:$0xf]
      %v6834 = vld [vmem:[%s6831 + $0xc] sm:$0xf]
      %v6835 = vld [vmem:[%s6831 + $0x10] sm:$0xf]
      %v6836 = vld [vmem:[%s6831 + $0x18] sm:$0xf]
      %v6837 = vld [vmem:[%s6831 + $0x1c] sm:$0xf]
      %v6838 = vld [vmem:[%s6831 + $0x24] sm:$0xf]
      %v6839 = vld [vmem:[%s6831 + $0x28] sm:$0xf]
      %v6840 = vld [vmem:[%s6831 + $0x30] sm:$0xf]
      %v6841 = vld [vmem:[%s6831 + $0x34] sm:$0xf]
      %v6842 = vld [vmem:[%s6831 + $0x3c] sm:$0xf]
      %v6843 = vld [vmem:[%s6831 + $0x40] sm:$0xf]
      %v6844 = vld [vmem:[%s6831 + $0x48] sm:$0xf]
      %v6845 = vld [vmem:[%s6831 + $0x4c] sm:$0xf]
      %v6846 = vld [vmem:[%s6831 + $0x54] sm:$0xf]
      %v6847 = vld [vmem:[%s6831 + $0x58] sm:$0xf]
      %v6848 = vld [vmem:[%s6831 + $0x60] sm:$0xf]
      %v6849 = vld [vmem:[%s6831 + $0x64] sm:$0xf]
      %v6850 = vld [vmem:[%s6831 + $0x6c] sm:$0xf]
      %v6851 = vld [vmem:[%s6831 + $0x70] sm:$0xf]
      %v6852 = vld [vmem:[%s6831 + $0x78] sm:$0xf]
      %v6853 = vld [vmem:[%s6831 + $0x7c] sm:$0xf]
      %v6854 = vld [vmem:[%s6831 + $0x84] sm:$0xf]
      %v6855 = vld [vmem:[%s6831 + $0x88] sm:$0xf]
      %v6856 = vld [vmem:[%s6831 + $0x90] sm:$0xf]
      %v6857 = vld [vmem:[%s6831 + $0x94] sm:$0xf]
      %v6858 = vld [vmem:[%s6831 + $0x9c] sm:$0xf]
      %v6859 = vld [vmem:[%s6831 + $0xa0] sm:$0xf]
      %v6860 = vld [vmem:[%s6831 + $0xa8] sm:$0xf]
      %v6861 = vld [vmem:[%s6831 + $0xac] sm:$0xf]
      %v6862 = vld [vmem:[%s6831 + $0xb4] sm:$0xf]
      %v6863 = vld [vmem:[%s6831 + $0xb8] sm:$0xf]
      %s6864 = scalar_lea.vmem %s3, 96
      %v6865 = vld [vmem:[%s6864] sm:$0xf]
      %v6866 = vld [vmem:[%s6864 + $0x4] sm:$0xf]
      %v6867 = vld [vmem:[%s6864 + $0x8] sm:$0xf]
      %v6868 = vld [vmem:[%s6864 + $0xc] sm:$0xf]
      %v6901 = vunpack.c.l.b16 %v6832
      %v6902 = vunpack.c.l.b16 %v6833
      %v6903 = vunpack.c.l.b16 %v6834
      %v6904 = vunpack.c.l.b16 %v6835
      %v6905 = vunpack.c.l.b16 %v6836
      %v6906 = vunpack.c.l.b16 %v6837
      %v6907 = vunpack.c.l.b16 %v6838
      %v6908 = vunpack.c.l.b16 %v6839
      %v6909 = vunpack.c.l.b16 %v6840
      %v6910 = vunpack.c.l.b16 %v6841
      %v6911 = vunpack.c.l.b16 %v6842
      %v6912 = vunpack.c.l.b16 %v6843
      %v6913 = vunpack.c.l.b16 %v6844
      %v6914 = vunpack.c.l.b16 %v6845
      %v6915 = vunpack.c.l.b16 %v6846
      %v6916 = vunpack.c.l.b16 %v6847
      %v6917 = vunpack.c.l.b16 %v6848
      %v6918 = vunpack.c.l.b16 %v6849
      %v6919 = vunpack.c.l.b16 %v6850
      %v6920 = vunpack.c.l.b16 %v6851
      %v6921 = vunpack.c.l.b16 %v6852
      %v6922 = vunpack.c.l.b16 %v6853
      %v6923 = vunpack.c.l.b16 %v6854
      %v6924 = vunpack.c.l.b16 %v6855
      %v6925 = vunpack.c.l.b16 %v6856
      %v6926 = vunpack.c.l.b16 %v6857
      %v6927 = vunpack.c.l.b16 %v6858
      %v6928 = vunpack.c.l.b16 %v6859
      %v6929 = vunpack.c.l.b16 %v6860
      %v6930 = vunpack.c.l.b16 %v6861
      %v6931 = vunpack.c.l.b16 %v6862
      %v6932 = vunpack.c.l.b16 %v6863
      %v6933 = vpack.c.b16 %v6902, %v6901
      %v6934 = vpack.c.b16 %v6904, %v6903
      %v6935 = vpack.c.b16 %v6906, %v6905
      %v6936 = vpack.c.b16 %v6908, %v6907
      %v6937 = vpack.c.b16 %v6910, %v6909
      %v6938 = vpack.c.b16 %v6912, %v6911
      %v6939 = vpack.c.b16 %v6914, %v6913
      %v6940 = vpack.c.b16 %v6916, %v6915
      %v6941 = vpack.c.b16 %v6918, %v6917
      %v6942 = vpack.c.b16 %v6920, %v6919
      %v6943 = vpack.c.b16 %v6922, %v6921
      %v6944 = vpack.c.b16 %v6924, %v6923
      %v6945 = vpack.c.b16 %v6926, %v6925
      %v6946 = vpack.c.b16 %v6928, %v6927
      %v6947 = vpack.c.b16 %v6930, %v6929
      %v6948 = vpack.c.b16 %v6932, %v6931
      %v6953 = vunpack.c.l.b16 %v6865
      %v6954 = vunpack.c.l.b16 %v6866
      %v6955 = vunpack.c.l.b16 %v6867
      %v6956 = vunpack.c.l.b16 %v6868
      %v6957 = vpack.c.b16 %v6954, %v6953
      %v6958 = vpack.c.b16 %v6956, %v6955
      %v6962 = vsel %vm4264, %v6933, 0
      %v6965 = vsel %vm4264, %v6934, 0
      %v6968 = vsel %vm4264, %v6935, 0
      %v6971 = vsel %vm4264, %v6936, 0
      %v6974 = vsel %vm4264, %v6937, 0
      %v6977 = vsel %vm4264, %v6938, 0
      %v6980 = vsel %vm4264, %v6939, 0
      %v6983 = vsel %vm4264, %v6940, 0
      %v6986 = vsel %vm4264, %v6941, 0
      %v6989 = vsel %vm4264, %v6942, 0
      %v6992 = vsel %vm4264, %v6943, 0
      %v6995 = vsel %vm4264, %v6944, 0
      %v6998 = vsel %vm4264, %v6945, 0
      %v7001 = vsel %vm4264, %v6946, 0
      %v7004 = vsel %vm4264, %v6947, 0
      %v7007 = vsel %vm4264, %v6948, 0
      %7009 = vmatprep.subr.bf16.mxu0 0
      %7010 = vmatpush1.bf16.msra.mxu0 %v6957
      %7011 = vmatprep.subr.bf16.mxu0 0
      %7012 = vmatpush1.bf16.msra.mxu0 %v6958
      %7013 = vmatprep.subr.bf16.mxu0 0
      %7014 = vmatpush1.bf16.msra.mxu0 0
      %7015 = vmatprep.subr.bf16.mxu0 0
      %7016 = vmatpush1.bf16.msra.mxu0 0
      %7017 = vmatprep.subr.bf16.mxu0 0
      %7018 = vmatpush1.bf16.msra.mxu0 0
      %7019 = vmatprep.subr.bf16.mxu0 0
      %7020 = vmatpush1.bf16.msra.mxu0 0
      %7021 = vmatprep.subr.bf16.mxu0 0
      %7022 = vmatpush1.bf16.msra.mxu0 0
      %7023 = vmatprep.subr.bf16.mxu0 0
      %7024 = vmatpush1.bf16.msra.mxu0 0
      %7025 = vmatprep.subr.bf16.mxu0 0
      %7026 = vmatpush1.bf16.msra.mxu0 0
      %7027 = vmatprep.subr.bf16.mxu0 0
      %7028 = vmatpush1.bf16.msra.mxu0 0
      %7029 = vmatprep.subr.bf16.mxu0 0
      %7030 = vmatpush1.bf16.msra.mxu0 0
      %7031 = vmatprep.subr.bf16.mxu0 0
      %7032 = vmatpush1.bf16.msra.mxu0 0
      %7033 = vmatprep.subr.bf16.mxu0 0
      %7034 = vmatpush1.bf16.msra.mxu0 0
      %7035 = vmatprep.subr.bf16.mxu0 0
      %7036 = vmatpush1.bf16.msra.mxu0 0
      %7037 = vmatprep.subr.bf16.mxu0 0
      %7038 = vmatpush1.bf16.msra.mxu0 0
      %7039 = vmatprep.subr.bf16.mxu0 0
      %7040 = vmatpush1.bf16.msra.mxu0 0
      %7041 = vmatprep.mubr.bf16.mxu0 0
      %7042 = vmatmul.mubr.bf16.gmra.mrb[0].mxu0 %v6962
      %v7043 = vpop.f32.mrb[0].mxu0
      %v7044 = vadd.f32 0.0, %v7043
      %v7045 = vpop.f32.mrb[0].mxu0
      %v7046 = vpop.f32.mrb[0].mxu0
      %v7047 = vadd.f32 0.0, %v7046
      %v7048 = vpop.f32.mrb[0].mxu0
      %7049 = vmatprep.mubr.bf16.mxu0 0
      %7050 = vmatmul.mubr.bf16.gmra.mrb[0].mxu0 %v6965
      %v7051 = vpop.f32.mrb[0].mxu0
      %v7052 = vadd.f32 0.0, %v7051
      %v7053 = vpop.f32.mrb[0].mxu0
      %v7054 = vpop.f32.mrb[0].mxu0
      %v7055 = vadd.f32 0.0, %v7054
      %v7056 = vpop.f32.mrb[0].mxu0
      %7057 = vmatprep.mubr.bf16.mxu0 0
      %7058 = vmatmul.mubr.bf16.gmra.mrb[0].mxu0 %v6968
      %v7059 = vpop.f32.mrb[0].mxu0
      %v7060 = vadd.f32 0.0, %v7059
      %v7061 = vpop.f32.mrb[0].mxu0
      %v7062 = vpop.f32.mrb[0].mxu0
      %v7063 = vadd.f32 0.0, %v7062
      %v7064 = vpop.f32.mrb[0].mxu0
      %7065 = vmatprep.mubr.bf16.mxu0 0
      %7066 = vmatmul.mubr.bf16.gmra.mrb[0].mxu0 %v6971
      %v7067 = vpop.f32.mrb[0].mxu0
      %v7068 = vadd.f32 0.0, %v7067
      %v7069 = vpop.f32.mrb[0].mxu0
      %v7070 = vpop.f32.mrb[0].mxu0
      %v7071 = vadd.f32 0.0, %v7070
      %v7072 = vpop.f32.mrb[0].mxu0
      %7073 = vmatprep.mubr.bf16.mxu0 0
      %7074 = vmatmul.mubr.bf16.gmra.mrb[0].mxu0 %v6974
      %v7075 = vpop.f32.mrb[0].mxu0
      %v7076 = vadd.f32 0.0, %v7075
      %v7077 = vpop.f32.mrb[0].mxu0
      %v7078 = vpop.f32.mrb[0].mxu0
      %v7079 = vadd.f32 0.0, %v7078
      %v7080 = vpop.f32.mrb[0].mxu0
      %7081 = vmatprep.mubr.bf16.mxu0 0
      %7082 = vmatmul.mubr.bf16.gmra.mrb[0].mxu0 %v6977
      %v7083 = vpop.f32.mrb[0].mxu0
      %v7084 = vadd.f32 0.0, %v7083
      %v7085 = vpop.f32.mrb[0].mxu0
      %v7086 = vpop.f32.mrb[0].mxu0
      %v7087 = vadd.f32 0.0, %v7086
      %v7088 = vpop.f32.mrb[0].mxu0
      %7089 = vmatprep.mubr.bf16.mxu0 0
      %7090 = vmatmul.mubr.bf16.gmra.mrb[0].mxu0 %v6980
      %v7091 = vpop.f32.mrb[0].mxu0
      %v7092 = vadd.f32 0.0, %v7091
      %v7093 = vpop.f32.mrb[0].mxu0
      %v7094 = vpop.f32.mrb[0].mxu0
      %v7095 = vadd.f32 0.0, %v7094
      %v7096 = vpop.f32.mrb[0].mxu0
      %7097 = vmatprep.mubr.bf16.mxu0 0
      %7098 = vmatmul.mubr.bf16.gmra.mrb[0].mxu0 %v6983
      %v7099 = vpop.f32.mrb[0].mxu0
      %v7100 = vadd.f32 0.0, %v7099
      %v7101 = vpop.f32.mrb[0].mxu0
      %v7102 = vpop.f32.mrb[0].mxu0
      %v7103 = vadd.f32 0.0, %v7102
      %v7104 = vpop.f32.mrb[0].mxu0
      %7105 = vmatprep.mubr.bf16.mxu0 0
      %7106 = vmatmul.mubr.bf16.gmra.mrb[0].mxu0 %v6986
      %v7107 = vpop.f32.mrb[0].mxu0
      %v7108 = vadd.f32 0.0, %v7107
      %v7109 = vpop.f32.mrb[0].mxu0
      %v7110 = vpop.f32.mrb[0].mxu0
      %v7111 = vadd.f32 0.0, %v7110
      %v7112 = vpop.f32.mrb[0].mxu0
      %7113 = vmatprep.mubr.bf16.mxu0 0
      %7114 = vmatmul.mubr.bf16.gmra.mrb[0].mxu0 %v6989
      %v7115 = vpop.f32.mrb[0].mxu0
      %v7116 = vadd.f32 0.0, %v7115
      %v7117 = vpop.f32.mrb[0].mxu0
      %v7118 = vpop.f32.mrb[0].mxu0
      %v7119 = vadd.f32 0.0, %v7118
      %v7120 = vpop.f32.mrb[0].mxu0
      %7121 = vmatprep.mubr.bf16.mxu0 0
      %7122 = vmatmul.mubr.bf16.gmra.mrb[0].mxu0 %v6992
      %v7123 = vpop.f32.mrb[0].mxu0
      %v7124 = vadd.f32 0.0, %v7123
      %v7125 = vpop.f32.mrb[0].mxu0
      %v7126 = vpop.f32.mrb[0].mxu0
      %v7127 = vadd.f32 0.0, %v7126
      %v7128 = vpop.f32.mrb[0].mxu0
      %7129 = vmatprep.mubr.bf16.mxu0 0
      %7130 = vmatmul.mubr.bf16.gmra.mrb[0].mxu0 %v6995
      %v7131 = vpop.f32.mrb[0].mxu0
      %v7132 = vadd.f32 0.0, %v7131
      %v7133 = vpop.f32.mrb[0].mxu0
      %v7134 = vpop.f32.mrb[0].mxu0
      %v7135 = vadd.f32 0.0, %v7134
      %v7136 = vpop.f32.mrb[0].mxu0
      %7137 = vmatprep.mubr.bf16.mxu0 0
      %7138 = vmatmul.mubr.bf16.gmra.mrb[0].mxu0 %v6998
      %v7139 = vpop.f32.mrb[0].mxu0
      %v7140 = vadd.f32 0.0, %v7139
      %v7141 = vpop.f32.mrb[0].mxu0
      %v7142 = vpop.f32.mrb[0].mxu0
      %v7143 = vadd.f32 0.0, %v7142
      %v7144 = vpop.f32.mrb[0].mxu0
      %7145 = vmatprep.mubr.bf16.mxu0 0
      %7146 = vmatmul.mubr.bf16.gmra.mrb[0].mxu0 %v7001
      %v7147 = vpop.f32.mrb[0].mxu0
      %v7148 = vadd.f32 0.0, %v7147
      %v7149 = vpop.f32.mrb[0].mxu0
      %v7150 = vpop.f32.mrb[0].mxu0
      %v7151 = vadd.f32 0.0, %v7150
      %v7152 = vpop.f32.mrb[0].mxu0
      %7153 = vmatprep.mubr.bf16.mxu0 0
      %7154 = vmatmul.mubr.bf16.gmra.mrb[0].mxu0 %v7004
      %v7155 = vpop.f32.mrb[0].mxu0
      %v7156 = vadd.f32 0.0, %v7155
      %v7157 = vpop.f32.mrb[0].mxu0
      %v7158 = vpop.f32.mrb[0].mxu0
      %v7159 = vadd.f32 0.0, %v7158
      %v7160 = vpop.f32.mrb[0].mxu0
      %7161 = vmatprep.mubr.bf16.mxu0 0
      %7162 = vmatmul.mubr.bf16.gmra.mrb[0].mxu0 %v7007
      %v7163 = vpop.f32.mrb[0].mxu0
      %v7164 = vadd.f32 0.0, %v7163
      %v7165 = vpop.f32.mrb[0].mxu0
      %v7166 = vpop.f32.mrb[0].mxu0
      %v7167 = vadd.f32 0.0, %v7166
      %v7168 = vpop.f32.mrb[0].mxu0
      %7169 = vdwg.mxu0
      %v7170 = vadd.f32 %v6799, %v7044
      %v7171 = vadd.f32 %v6800, %v7047
      %v7172 = vadd.f32 %v6801, %v7052
      %v7173 = vadd.f32 %v6802, %v7055
      %v7174 = vadd.f32 %v6803, %v7060
      %v7175 = vadd.f32 %v6804, %v7063
      %v7176 = vadd.f32 %v6805, %v7068
      %v7177 = vadd.f32 %v6806, %v7071
      %v7178 = vadd.f32 %v6807, %v7076
      %v7179 = vadd.f32 %v6808, %v7079
      %v7180 = vadd.f32 %v6809, %v7084
      %v7181 = vadd.f32 %v6810, %v7087
      %v7182 = vadd.f32 %v6811, %v7092
      %v7183 = vadd.f32 %v6812, %v7095
      %v7184 = vadd.f32 %v6813, %v7100
      %v7185 = vadd.f32 %v6814, %v7103
      %v7186 = vadd.f32 %v6815, %v7108
      %v7187 = vadd.f32 %v6816, %v7111
      %v7188 = vadd.f32 %v6817, %v7116
      %v7189 = vadd.f32 %v6818, %v7119
      %v7190 = vadd.f32 %v6819, %v7124
      %v7191 = vadd.f32 %v6820, %v7127
      %v7192 = vadd.f32 %v6821, %v7132
      %v7193 = vadd.f32 %v6822, %v7135
      %v7194 = vadd.f32 %v6823, %v7140
      %v7195 = vadd.f32 %v6824, %v7143
      %v7196 = vadd.f32 %v6825, %v7148
      %v7197 = vadd.f32 %v6826, %v7151
      %v7198 = vadd.f32 %v6827, %v7156
      %v7199 = vadd.f32 %v6828, %v7159
      %v7200 = vadd.f32 %v6829, %v7164
      %v7201 = vadd.f32 %v6830, %v7167
      %v7202 = vld [vmem:[%s6831] sm:$0xf]
      %v7203 = vld [vmem:[%s6831 + $0x4] sm:$0xf]
      %v7204 = vld [vmem:[%s6831 + $0x8] sm:$0x1]
      %v7205 = vld [vmem:[%s6831 + $0xc] sm:$0xf]
      %v7206 = vld [vmem:[%s6831 + $0x10] sm:$0xf]
      %v7207 = vld [vmem:[%s6831 + $0x14] sm:$0x1]
      %v7208 = vld [vmem:[%s6831 + $0x18] sm:$0xf]
      %v7209 = vld [vmem:[%s6831 + $0x1c] sm:$0xf]
      %v7210 = vld [vmem:[%s6831 + $0x20] sm:$0x1]
      %v7211 = vld [vmem:[%s6831 + $0x24] sm:$0xf]
      %v7212 = vld [vmem:[%s6831 + $0x28] sm:$0xf]
      %v7213 = vld [vmem:[%s6831 + $0x2c] sm:$0x1]
      %v7214 = vld [vmem:[%s6831 + $0x30] sm:$0xf]
      %v7215 = vld [vmem:[%s6831 + $0x34] sm:$0xf]
      %v7216 = vld [vmem:[%s6831 + $0x38] sm:$0x1]
      %v7217 = vld [vmem:[%s6831 + $0x3c] sm:$0xf]
      %v7218 = vld [vmem:[%s6831 + $0x40] sm:$0xf]
      %v7219 = vld [vmem:[%s6831 + $0x44] sm:$0x1]
      %v7220 = vld [vmem:[%s6831 + $0x48] sm:$0xf]
      %v7221 = vld [vmem:[%s6831 + $0x4c] sm:$0xf]
      %v7222 = vld [vmem:[%s6831 + $0x50] sm:$0x1]
      %v7223 = vld [vmem:[%s6831 + $0x54] sm:$0xf]
      %v7224 = vld [vmem:[%s6831 + $0x58] sm:$0xf]
      %v7225 = vld [vmem:[%s6831 + $0x5c] sm:$0x1]
      %v7226 = vld [vmem:[%s6831 + $0x60] sm:$0xf]
      %v7227 = vld [vmem:[%s6831 + $0x64] sm:$0xf]
      %v7228 = vld [vmem:[%s6831 + $0x68] sm:$0x1]
      %v7229 = vld [vmem:[%s6831 + $0x6c] sm:$0xf]
      %v7230 = vld [vmem:[%s6831 + $0x70] sm:$0xf]
      %v7231 = vld [vmem:[%s6831 + $0x74] sm:$0x1]
      %v7232 = vld [vmem:[%s6831 + $0x78] sm:$0xf]
      %v7233 = vld [vmem:[%s6831 + $0x7c] sm:$0xf]
      %v7234 = vld [vmem:[%s6831 + $0x80] sm:$0x1]
      %v7235 = vld [vmem:[%s6831 + $0x84] sm:$0xf]
      %v7236 = vld [vmem:[%s6831 + $0x88] sm:$0xf]
      %v7237 = vld [vmem:[%s6831 + $0x8c] sm:$0x1]
      %v7238 = vld [vmem:[%s6831 + $0x90] sm:$0xf]
      %v7239 = vld [vmem:[%s6831 + $0x94] sm:$0xf]
      %v7240 = vld [vmem:[%s6831 + $0x98] sm:$0x1]
      %v7241 = vld [vmem:[%s6831 + $0x9c] sm:$0xf]
      %v7242 = vld [vmem:[%s6831 + $0xa0] sm:$0xf]
      %v7243 = vld [vmem:[%s6831 + $0xa4] sm:$0x1]
      %v7244 = vld [vmem:[%s6831 + $0xa8] sm:$0xf]
      %v7245 = vld [vmem:[%s6831 + $0xac] sm:$0xf]
      %v7246 = vld [vmem:[%s6831 + $0xb0] sm:$0x1]
      %v7247 = vld [vmem:[%s6831 + $0xb4] sm:$0xf]
      %v7248 = vld [vmem:[%s6831 + $0xb8] sm:$0xf]
      %v7249 = vld [vmem:[%s6831 + $0xbc] sm:$0x1]
      %v7251 = vshrl.u32 %v7202, 16
      %v7253 = vrot.slane %v7251, 4
      %v7254 = vshll.u32 %v7202, 16
      %v7256 = vrot.slane %v7254, 5
      %v7257 = vor.u32 %v7253, %v7256
      %v7258 = vrot.slane %v7257, 4
      %v7260 = vshll.u32 %v7203, 16
      %v7262 = vrot.slane %v7260, 5
      %v7263 = vsel %vm377, %v7258, %v7262
      %v7264 = vshrl.u32 %v7203, 16
      %v7266 = vrot.slane %v7264, 4
      %v7267 = vor.u32 %v7266, %v7262
      %v7268 = vrot.slane %v7267, 4
      %v7270 = vshll.u32 %v7204, 16
      %v7272 = vrot.slane %v7270, 5
      %v7273 = vsel %vm377, %v7268, %v7272
      %v7275 = vshrl.u32 %v7205, 16
      %v7277 = vrot.slane %v7275, 4
      %v7278 = vshll.u32 %v7205, 16
      %v7280 = vrot.slane %v7278, 5
      %v7281 = vor.u32 %v7277, %v7280
      %v7282 = vrot.slane %v7281, 4
      %v7284 = vshll.u32 %v7206, 16
      %v7286 = vrot.slane %v7284, 5
      %v7287 = vsel %vm377, %v7282, %v7286
      %v7288 = vshrl.u32 %v7206, 16
      %v7290 = vrot.slane %v7288, 4
      %v7291 = vor.u32 %v7290, %v7286
      %v7292 = vrot.slane %v7291, 4
      %v7294 = vshll.u32 %v7207, 16
      %v7296 = vrot.slane %v7294, 5
      %v7297 = vsel %vm377, %v7292, %v7296
      %v7299 = vshrl.u32 %v7208, 16
      %v7301 = vrot.slane %v7299, 4
      %v7302 = vshll.u32 %v7208, 16
      %v7304 = vrot.slane %v7302, 5
      %v7305 = vor.u32 %v7301, %v7304
      %v7306 = vrot.slane %v7305, 4
      %v7308 = vshll.u32 %v7209, 16
      %v7310 = vrot.slane %v7308, 5
      %v7311 = vsel %vm377, %v7306, %v7310
      %v7312 = vshrl.u32 %v7209, 16
      %v7314 = vrot.slane %v7312, 4
      %v7315 = vor.u32 %v7314, %v7310
      %v7316 = vrot.slane %v7315, 4
      %v7318 = vshll.u32 %v7210, 16
      %v7320 = vrot.slane %v7318, 5
      %v7321 = vsel %vm377, %v7316, %v7320
      %v7323 = vshrl.u32 %v7211, 16
      %v7325 = vrot.slane %v7323, 4
      %v7326 = vshll.u32 %v7211, 16
      %v7328 = vrot.slane %v7326, 5
      %v7329 = vor.u32 %v7325, %v7328
      %v7330 = vrot.slane %v7329, 4
      %v7332 = vshll.u32 %v7212, 16
      %v7334 = vrot.slane %v7332, 5
      %v7335 = vsel %vm377, %v7330, %v7334
      %v7336 = vshrl.u32 %v7212, 16
      %v7338 = vrot.slane %v7336, 4
      %v7339 = vor.u32 %v7338, %v7334
      %v7340 = vrot.slane %v7339, 4
      %v7342 = vshll.u32 %v7213, 16
      %v7344 = vrot.slane %v7342, 5
      %v7345 = vsel %vm377, %v7340, %v7344
      %v7347 = vshrl.u32 %v7214, 16
      %v7349 = vrot.slane %v7347, 4
      %v7350 = vshll.u32 %v7214, 16
      %v7352 = vrot.slane %v7350, 5
      %v7353 = vor.u32 %v7349, %v7352
      %v7354 = vrot.slane %v7353, 4
      %v7356 = vshll.u32 %v7215, 16
      %v7358 = vrot.slane %v7356, 5
      %v7359 = vsel %vm377, %v7354, %v7358
      %v7360 = vshrl.u32 %v7215, 16
      %v7362 = vrot.slane %v7360, 4
      %v7363 = vor.u32 %v7362, %v7358
      %v7364 = vrot.slane %v7363, 4
      %v7366 = vshll.u32 %v7216, 16
      %v7368 = vrot.slane %v7366, 5
      %v7369 = vsel %vm377, %v7364, %v7368
      %v7371 = vshrl.u32 %v7217, 16
      %v7373 = vrot.slane %v7371, 4
      %v7374 = vshll.u32 %v7217, 16
      %v7376 = vrot.slane %v7374, 5
      %v7377 = vor.u32 %v7373, %v7376
      %v7378 = vrot.slane %v7377, 4
      %v7380 = vshll.u32 %v7218, 16
      %v7382 = vrot.slane %v7380, 5
      %v7383 = vsel %vm377, %v7378, %v7382
      %v7384 = vshrl.u32 %v7218, 16
      %v7386 = vrot.slane %v7384, 4
      %v7387 = vor.u32 %v7386, %v7382
      %v7388 = vrot.slane %v7387, 4
      %v7390 = vshll.u32 %v7219, 16
      %v7392 = vrot.slane %v7390, 5
      %v7393 = vsel %vm377, %v7388, %v7392
      %v7395 = vshrl.u32 %v7220, 16
      %v7397 = vrot.slane %v7395, 4
      %v7398 = vshll.u32 %v7220, 16
      %v7400 = vrot.slane %v7398, 5
      %v7401 = vor.u32 %v7397, %v7400
      %v7402 = vrot.slane %v7401, 4
      %v7404 = vshll.u32 %v7221, 16
      %v7406 = vrot.slane %v7404, 5
      %v7407 = vsel %vm377, %v7402, %v7406
      %v7408 = vshrl.u32 %v7221, 16
      %v7410 = vrot.slane %v7408, 4
      %v7411 = vor.u32 %v7410, %v7406
      %v7412 = vrot.slane %v7411, 4
      %v7414 = vshll.u32 %v7222, 16
      %v7416 = vrot.slane %v7414, 5
      %v7417 = vsel %vm377, %v7412, %v7416
      %v7419 = vshrl.u32 %v7223, 16
      %v7421 = vrot.slane %v7419, 4
      %v7422 = vshll.u32 %v7223, 16
      %v7424 = vrot.slane %v7422, 5
      %v7425 = vor.u32 %v7421, %v7424
      %v7426 = vrot.slane %v7425, 4
      %v7428 = vshll.u32 %v7224, 16
      %v7430 = vrot.slane %v7428, 5
      %v7431 = vsel %vm377, %v7426, %v7430
      %v7432 = vshrl.u32 %v7224, 16
      %v7434 = vrot.slane %v7432, 4
      %v7435 = vor.u32 %v7434, %v7430
      %v7436 = vrot.slane %v7435, 4
      %v7438 = vshll.u32 %v7225, 16
      %v7440 = vrot.slane %v7438, 5
      %v7441 = vsel %vm377, %v7436, %v7440
      %v7443 = vshrl.u32 %v7226, 16
      %v7445 = vrot.slane %v7443, 4
      %v7446 = vshll.u32 %v7226, 16
      %v7448 = vrot.slane %v7446, 5
      %v7449 = vor.u32 %v7445, %v7448
      %v7450 = vrot.slane %v7449, 4
      %v7452 = vshll.u32 %v7227, 16
      %v7454 = vrot.slane %v7452, 5
      %v7455 = vsel %vm377, %v7450, %v7454
      %v7456 = vshrl.u32 %v7227, 16
      %v7458 = vrot.slane %v7456, 4
      %v7459 = vor.u32 %v7458, %v7454
      %v7460 = vrot.slane %v7459, 4
      %v7462 = vshll.u32 %v7228, 16
      %v7464 = vrot.slane %v7462, 5
      %v7465 = vsel %vm377, %v7460, %v7464
      %v7467 = vshrl.u32 %v7229, 16
      %v7469 = vrot.slane %v7467, 4
      %v7470 = vshll.u32 %v7229, 16
      %v7472 = vrot.slane %v7470, 5
      %v7473 = vor.u32 %v7469, %v7472
      %v7474 = vrot.slane %v7473, 4
      %v7476 = vshll.u32 %v7230, 16
      %v7478 = vrot.slane %v7476, 5
      %v7479 = vsel %vm377, %v7474, %v7478
      %v7480 = vshrl.u32 %v7230, 16
      %v7482 = vrot.slane %v7480, 4
      %v7483 = vor.u32 %v7482, %v7478
      %v7484 = vrot.slane %v7483, 4
      %v7486 = vshll.u32 %v7231, 16
      %v7488 = vrot.slane %v7486, 5
      %v7489 = vsel %vm377, %v7484, %v7488
      %v7491 = vshrl.u32 %v7232, 16
      %v7493 = vrot.slane %v7491, 4
      %v7494 = vshll.u32 %v7232, 16
      %v7496 = vrot.slane %v7494, 5
      %v7497 = vor.u32 %v7493, %v7496
      %v7498 = vrot.slane %v7497, 4
      %v7500 = vshll.u32 %v7233, 16
      %v7502 = vrot.slane %v7500, 5
      %v7503 = vsel %vm377, %v7498, %v7502
      %v7504 = vshrl.u32 %v7233, 16
      %v7506 = vrot.slane %v7504, 4
      %v7507 = vor.u32 %v7506, %v7502
      %v7508 = vrot.slane %v7507, 4
      %v7510 = vshll.u32 %v7234, 16
      %v7512 = vrot.slane %v7510, 5
      %v7513 = vsel %vm377, %v7508, %v7512
      %v7515 = vshrl.u32 %v7235, 16
      %v7517 = vrot.slane %v7515, 4
      %v7518 = vshll.u32 %v7235, 16
      %v7520 = vrot.slane %v7518, 5
      %v7521 = vor.u32 %v7517, %v7520
      %v7522 = vrot.slane %v7521, 4
      %v7524 = vshll.u32 %v7236, 16
      %v7526 = vrot.slane %v7524, 5
      %v7527 = vsel %vm377, %v7522, %v7526
      %v7528 = vshrl.u32 %v7236, 16
      %v7530 = vrot.slane %v7528, 4
      %v7531 = vor.u32 %v7530, %v7526
      %v7532 = vrot.slane %v7531, 4
      %v7534 = vshll.u32 %v7237, 16
      %v7536 = vrot.slane %v7534, 5
      %v7537 = vsel %vm377, %v7532, %v7536
      %v7539 = vshrl.u32 %v7238, 16
      %v7541 = vrot.slane %v7539, 4
      %v7542 = vshll.u32 %v7238, 16
      %v7544 = vrot.slane %v7542, 5
      %v7545 = vor.u32 %v7541, %v7544
      %v7546 = vrot.slane %v7545, 4
      %v7548 = vshll.u32 %v7239, 16
      %v7550 = vrot.slane %v7548, 5
      %v7551 = vsel %vm377, %v7546, %v7550
      %v7552 = vshrl.u32 %v7239, 16
      %v7554 = vrot.slane %v7552, 4
      %v7555 = vor.u32 %v7554, %v7550
      %v7556 = vrot.slane %v7555, 4
      %v7558 = vshll.u32 %v7240, 16
      %v7560 = vrot.slane %v7558, 5
      %v7561 = vsel %vm377, %v7556, %v7560
      %v7563 = vshrl.u32 %v7241, 16
      %v7565 = vrot.slane %v7563, 4
      %v7566 = vshll.u32 %v7241, 16
      %v7568 = vrot.slane %v7566, 5
      %v7569 = vor.u32 %v7565, %v7568
      %v7570 = vrot.slane %v7569, 4
      %v7572 = vshll.u32 %v7242, 16
      %v7574 = vrot.slane %v7572, 5
      %v7575 = vsel %vm377, %v7570, %v7574
      %v7576 = vshrl.u32 %v7242, 16
      %v7578 = vrot.slane %v7576, 4
      %v7579 = vor.u32 %v7578, %v7574
      %v7580 = vrot.slane %v7579, 4
      %v7582 = vshll.u32 %v7243, 16
      %v7584 = vrot.slane %v7582, 5
      %v7585 = vsel %vm377, %v7580, %v7584
      %v7587 = vshrl.u32 %v7244, 16
      %v7589 = vrot.slane %v7587, 4
      %v7590 = vshll.u32 %v7244, 16
      %v7592 = vrot.slane %v7590, 5
      %v7593 = vor.u32 %v7589, %v7592
      %v7594 = vrot.slane %v7593, 4
      %v7596 = vshll.u32 %v7245, 16
      %v7598 = vrot.slane %v7596, 5
      %v7599 = vsel %vm377, %v7594, %v7598
      %v7600 = vshrl.u32 %v7245, 16
      %v7602 = vrot.slane %v7600, 4
      %v7603 = vor.u32 %v7602, %v7598
      %v7604 = vrot.slane %v7603, 4
      %v7606 = vshll.u32 %v7246, 16
      %v7608 = vrot.slane %v7606, 5
      %v7609 = vsel %vm377, %v7604, %v7608
      %v7611 = vshrl.u32 %v7247, 16
      %v7613 = vrot.slane %v7611, 4
      %v7614 = vshll.u32 %v7247, 16
      %v7616 = vrot.slane %v7614, 5
      %v7617 = vor.u32 %v7613, %v7616
      %v7618 = vrot.slane %v7617, 4
      %v7620 = vshll.u32 %v7248, 16
      %v7622 = vrot.slane %v7620, 5
      %v7623 = vsel %vm377, %v7618, %v7622
      %v7624 = vshrl.u32 %v7248, 16
      %v7626 = vrot.slane %v7624, 4
      %v7627 = vor.u32 %v7626, %v7622
      %v7628 = vrot.slane %v7627, 4
      %v7630 = vshll.u32 %v7249, 16
      %v7632 = vrot.slane %v7630, 5
      %v7633 = vsel %vm377, %v7628, %v7632
      %s7634 = scalar_lea.vmem %s3, 112
      %v7635 = vld [vmem:[%s7634] sm:$0xf]
      %v7636 = vld [vmem:[%s7634 + $0x4] sm:$0xf]
      %v7637 = vld [vmem:[%s7634 + $0x8] sm:$0xf]
      %v7638 = vld [vmem:[%s7634 + $0xc] sm:$0xf]
      %v7639 = vunpack.c.l.b16 %v7263
      %v7640 = vunpack.c.l.b16 %v7273
      %v7641 = vunpack.c.l.b16 %v7287
      %v7642 = vunpack.c.l.b16 %v7297
      %v7643 = vunpack.c.l.b16 %v7311
      %v7644 = vunpack.c.l.b16 %v7321
      %v7645 = vunpack.c.l.b16 %v7335
      %v7646 = vunpack.c.l.b16 %v7345
      %v7647 = vunpack.c.l.b16 %v7359
      %v7648 = vunpack.c.l.b16 %v7369
      %v7649 = vunpack.c.l.b16 %v7383
      %v7650 = vunpack.c.l.b16 %v7393
      %v7651 = vunpack.c.l.b16 %v7407
      %v7652 = vunpack.c.l.b16 %v7417
      %v7653 = vunpack.c.l.b16 %v7431
      %v7654 = vunpack.c.l.b16 %v7441
      %v7655 = vunpack.c.l.b16 %v7455
      %v7656 = vunpack.c.l.b16 %v7465
      %v7657 = vunpack.c.l.b16 %v7479
      %v7658 = vunpack.c.l.b16 %v7489
      %v7659 = vunpack.c.l.b16 %v7503
      %v7660 = vunpack.c.l.b16 %v7513
      %v7661 = vunpack.c.l.b16 %v7527
      %v7662 = vunpack.c.l.b16 %v7537
      %v7663 = vunpack.c.l.b16 %v7551
      %v7664 = vunpack.c.l.b16 %v7561
      %v7665 = vunpack.c.l.b16 %v7575
      %v7666 = vunpack.c.l.b16 %v7585
      %v7667 = vunpack.c.l.b16 %v7599
      %v7668 = vunpack.c.l.b16 %v7609
      %v7669 = vunpack.c.l.b16 %v7623
      %v7670 = vunpack.c.l.b16 %v7633
      %v7671 = vpack.c.b16 %v7640, %v7639
      %v7672 = vpack.c.b16 %v7642, %v7641
      %v7673 = vpack.c.b16 %v7644, %v7643
      %v7674 = vpack.c.b16 %v7646, %v7645
      %v7675 = vpack.c.b16 %v7648, %v7647
      %v7676 = vpack.c.b16 %v7650, %v7649
      %v7677 = vpack.c.b16 %v7652, %v7651
      %v7678 = vpack.c.b16 %v7654, %v7653
      %v7679 = vpack.c.b16 %v7656, %v7655
      %v7680 = vpack.c.b16 %v7658, %v7657
      %v7681 = vpack.c.b16 %v7660, %v7659
      %v7682 = vpack.c.b16 %v7662, %v7661
      %v7683 = vpack.c.b16 %v7664, %v7663
      %v7684 = vpack.c.b16 %v7666, %v7665
      %v7685 = vpack.c.b16 %v7668, %v7667
      %v7686 = vpack.c.b16 %v7670, %v7669
      %v7691 = vunpack.c.l.b16 %v7635
      %v7692 = vunpack.c.l.b16 %v7636
      %v7693 = vunpack.c.l.b16 %v7637
      %v7694 = vunpack.c.l.b16 %v7638
      %v7695 = vpack.c.b16 %v7692, %v7691
      %v7696 = vpack.c.b16 %v7694, %v7693
      %v7700 = vsel %vm4264, %v7671, 0
      %v7703 = vsel %vm4264, %v7672, 0
      %v7706 = vsel %vm4264, %v7673, 0
      %v7709 = vsel %vm4264, %v7674, 0
      %v7712 = vsel %vm4264, %v7675, 0
      %v7715 = vsel %vm4264, %v7676, 0
      %v7718 = vsel %vm4264, %v7677, 0
      %v7721 = vsel %vm4264, %v7678, 0
      %v7724 = vsel %vm4264, %v7679, 0
      %v7727 = vsel %vm4264, %v7680, 0
      %v7730 = vsel %vm4264, %v7681, 0
      %v7733 = vsel %vm4264, %v7682, 0
      %v7736 = vsel %vm4264, %v7683, 0
      %v7739 = vsel %vm4264, %v7684, 0
      %v7742 = vsel %vm4264, %v7685, 0
      %v7745 = vsel %vm4264, %v7686, 0
      %7747 = vmatprep.subr.bf16.mxu0 0
      %7748 = vmatpush1.bf16.msra.mxu0 %v7695
      %7749 = vmatprep.subr.bf16.mxu0 0
      %7750 = vmatpush1.bf16.msra.mxu0 %v7696
      %7751 = vmatprep.subr.bf16.mxu0 0
      %7752 = vmatpush1.bf16.msra.mxu0 0
      %7753 = vmatprep.subr.bf16.mxu0 0
      %7754 = vmatpush1.bf16.msra.mxu0 0
      %7755 = vmatprep.subr.bf16.mxu0 0
      %7756 = vmatpush1.bf16.msra.mxu0 0
      %7757 = vmatprep.subr.bf16.mxu0 0
      %7758 = vmatpush1.bf16.msra.mxu0 0
      %7759 = vmatprep.subr.bf16.mxu0 0
      %7760 = vmatpush1.bf16.msra.mxu0 0
      %7761 = vmatprep.subr.bf16.mxu0 0
      %7762 = vmatpush1.bf16.msra.mxu0 0
      %7763 = vmatprep.subr.bf16.mxu0 0
      %7764 = vmatpush1.bf16.msra.mxu0 0
      %7765 = vmatprep.subr.bf16.mxu0 0
      %7766 = vmatpush1.bf16.msra.mxu0 0
      %7767 = vmatprep.subr.bf16.mxu0 0
      %7768 = vmatpush1.bf16.msra.mxu0 0
      %7769 = vmatprep.subr.bf16.mxu0 0
      %7770 = vmatpush1.bf16.msra.mxu0 0
      %7771 = vmatprep.subr.bf16.mxu0 0
      %7772 = vmatpush1.bf16.msra.mxu0 0
      %7773 = vmatprep.subr.bf16.mxu0 0
      %7774 = vmatpush1.bf16.msra.mxu0 0
      %7775 = vmatprep.subr.bf16.mxu0 0
      %7776 = vmatpush1.bf16.msra.mxu0 0
      %7777 = vmatprep.subr.bf16.mxu0 0
      %7778 = vmatpush1.bf16.msra.mxu0 0
      %7779 = vmatprep.mubr.bf16.mxu0 0
      %7780 = vmatmul.mubr.bf16.gmra.mrb[0].mxu0 %v7700
      %v7781 = vpop.f32.mrb[0].mxu0
      %v7782 = vadd.f32 0.0, %v7781
      %v7783 = vpop.f32.mrb[0].mxu0
      %v7784 = vpop.f32.mrb[0].mxu0
      %v7785 = vadd.f32 0.0, %v7784
      %v7786 = vpop.f32.mrb[0].mxu0
      %7787 = vmatprep.mubr.bf16.mxu0 0
      %7788 = vmatmul.mubr.bf16.gmra.mrb[0].mxu0 %v7703
      %v7789 = vpop.f32.mrb[0].mxu0
      %v7790 = vadd.f32 0.0, %v7789
      %v7791 = vpop.f32.mrb[0].mxu0
      %v7792 = vpop.f32.mrb[0].mxu0
      %v7793 = vadd.f32 0.0, %v7792
      %v7794 = vpop.f32.mrb[0].mxu0
      %7795 = vmatprep.mubr.bf16.mxu0 0
      %7796 = vmatmul.mubr.bf16.gmra.mrb[0].mxu0 %v7706
      %v7797 = vpop.f32.mrb[0].mxu0
      %v7798 = vadd.f32 0.0, %v7797
      %v7799 = vpop.f32.mrb[0].mxu0
      %v7800 = vpop.f32.mrb[0].mxu0
      %v7801 = vadd.f32 0.0, %v7800
      %v7802 = vpop.f32.mrb[0].mxu0
      %7803 = vmatprep.mubr.bf16.mxu0 0
      %7804 = vmatmul.mubr.bf16.gmra.mrb[0].mxu0 %v7709
      %v7805 = vpop.f32.mrb[0].mxu0
      %v7806 = vadd.f32 0.0, %v7805
      %v7807 = vpop.f32.mrb[0].mxu0
      %v7808 = vpop.f32.mrb[0].mxu0
      %v7809 = vadd.f32 0.0, %v7808
      %v7810 = vpop.f32.mrb[0].mxu0
      %7811 = vmatprep.mubr.bf16.mxu0 0
      %7812 = vmatmul.mubr.bf16.gmra.mrb[0].mxu0 %v7712
      %v7813 = vpop.f32.mrb[0].mxu0
      %v7814 = vadd.f32 0.0, %v7813
      %v7815 = vpop.f32.mrb[0].mxu0
      %v7816 = vpop.f32.mrb[0].mxu0
      %v7817 = vadd.f32 0.0, %v7816
      %v7818 = vpop.f32.mrb[0].mxu0
      %7819 = vmatprep.mubr.bf16.mxu0 0
      %7820 = vmatmul.mubr.bf16.gmra.mrb[0].mxu0 %v7715
      %v7821 = vpop.f32.mrb[0].mxu0
      %v7822 = vadd.f32 0.0, %v7821
      %v7823 = vpop.f32.mrb[0].mxu0
      %v7824 = vpop.f32.mrb[0].mxu0
      %v7825 = vadd.f32 0.0, %v7824
      %v7826 = vpop.f32.mrb[0].mxu0
      %7827 = vmatprep.mubr.bf16.mxu0 0
      %7828 = vmatmul.mubr.bf16.gmra.mrb[0].mxu0 %v7718
      %v7829 = vpop.f32.mrb[0].mxu0
      %v7830 = vadd.f32 0.0, %v7829
      %v7831 = vpop.f32.mrb[0].mxu0
      %v7832 = vpop.f32.mrb[0].mxu0
      %v7833 = vadd.f32 0.0, %v7832
      %v7834 = vpop.f32.mrb[0].mxu0
      %7835 = vmatprep.mubr.bf16.mxu0 0
      %7836 = vmatmul.mubr.bf16.gmra.mrb[0].mxu0 %v7721
      %v7837 = vpop.f32.mrb[0].mxu0
      %v7838 = vadd.f32 0.0, %v7837
      %v7839 = vpop.f32.mrb[0].mxu0
      %v7840 = vpop.f32.mrb[0].mxu0
      %v7841 = vadd.f32 0.0, %v7840
      %v7842 = vpop.f32.mrb[0].mxu0
      %7843 = vmatprep.mubr.bf16.mxu0 0
      %7844 = vmatmul.mubr.bf16.gmra.mrb[0].mxu0 %v7724
      %v7845 = vpop.f32.mrb[0].mxu0
      %v7846 = vadd.f32 0.0, %v7845
      %v7847 = vpop.f32.mrb[0].mxu0
      %v7848 = vpop.f32.mrb[0].mxu0
      %v7849 = vadd.f32 0.0, %v7848
      %v7850 = vpop.f32.mrb[0].mxu0
      %7851 = vmatprep.mubr.bf16.mxu0 0
      %7852 = vmatmul.mubr.bf16.gmra.mrb[0].mxu0 %v7727
      %v7853 = vpop.f32.mrb[0].mxu0
      %v7854 = vadd.f32 0.0, %v7853
      %v7855 = vpop.f32.mrb[0].mxu0
      %v7856 = vpop.f32.mrb[0].mxu0
      %v7857 = vadd.f32 0.0, %v7856
      %v7858 = vpop.f32.mrb[0].mxu0
      %7859 = vmatprep.mubr.bf16.mxu0 0
      %7860 = vmatmul.mubr.bf16.gmra.mrb[0].mxu0 %v7730
      %v7861 = vpop.f32.mrb[0].mxu0
      %v7862 = vadd.f32 0.0, %v7861
      %v7863 = vpop.f32.mrb[0].mxu0
      %v7864 = vpop.f32.mrb[0].mxu0
      %v7865 = vadd.f32 0.0, %v7864
      %v7866 = vpop.f32.mrb[0].mxu0
      %7867 = vmatprep.mubr.bf16.mxu0 0
      %7868 = vmatmul.mubr.bf16.gmra.mrb[0].mxu0 %v7733
      %v7869 = vpop.f32.mrb[0].mxu0
      %v7870 = vadd.f32 0.0, %v7869
      %v7871 = vpop.f32.mrb[0].mxu0
      %v7872 = vpop.f32.mrb[0].mxu0
      %v7873 = vadd.f32 0.0, %v7872
      %v7874 = vpop.f32.mrb[0].mxu0
      %7875 = vmatprep.mubr.bf16.mxu0 0
      %7876 = vmatmul.mubr.bf16.gmra.mrb[0].mxu0 %v7736
      %v7877 = vpop.f32.mrb[0].mxu0
      %v7878 = vadd.f32 0.0, %v7877
      %v7879 = vpop.f32.mrb[0].mxu0
      %v7880 = vpop.f32.mrb[0].mxu0
      %v7881 = vadd.f32 0.0, %v7880
      %v7882 = vpop.f32.mrb[0].mxu0
      %7883 = vmatprep.mubr.bf16.mxu0 0
      %7884 = vmatmul.mubr.bf16.gmra.mrb[0].mxu0 %v7739
      %v7885 = vpop.f32.mrb[0].mxu0
      %v7886 = vadd.f32 0.0, %v7885
      %v7887 = vpop.f32.mrb[0].mxu0
      %v7888 = vpop.f32.mrb[0].mxu0
      %v7889 = vadd.f32 0.0, %v7888
      %v7890 = vpop.f32.mrb[0].mxu0
      %7891 = vmatprep.mubr.bf16.mxu0 0
      %7892 = vmatmul.mubr.bf16.gmra.mrb[0].mxu0 %v7742
      %v7893 = vpop.f32.mrb[0].mxu0
      %v7894 = vadd.f32 0.0, %v7893
      %v7895 = vpop.f32.mrb[0].mxu0
      %v7896 = vpop.f32.mrb[0].mxu0
      %v7897 = vadd.f32 0.0, %v7896
      %v7898 = vpop.f32.mrb[0].mxu0
      %7899 = vmatprep.mubr.bf16.mxu0 0
      %7900 = vmatmul.mubr.bf16.gmra.mrb[0].mxu0 %v7745
      %v7901 = vpop.f32.mrb[0].mxu0
      %v7902 = vadd.f32 0.0, %v7901
      %v7903 = vpop.f32.mrb[0].mxu0
      %v7904 = vpop.f32.mrb[0].mxu0
      %v7905 = vadd.f32 0.0, %v7904
      %v7906 = vpop.f32.mrb[0].mxu0
      %7907 = vdwg.mxu0
      %v7908 = vadd.f32 %v7170, %v7782
      %v7909 = vadd.f32 %v7171, %v7785
      %v7910 = vadd.f32 %v7172, %v7790
      %v7911 = vadd.f32 %v7173, %v7793
      %v7912 = vadd.f32 %v7174, %v7798
      %v7913 = vadd.f32 %v7175, %v7801
      %v7914 = vadd.f32 %v7176, %v7806
      %v7915 = vadd.f32 %v7177, %v7809
      %v7916 = vadd.f32 %v7178, %v7814
      %v7917 = vadd.f32 %v7179, %v7817
      %v7918 = vadd.f32 %v7180, %v7822
      %v7919 = vadd.f32 %v7181, %v7825
      %v7920 = vadd.f32 %v7182, %v7830
      %v7921 = vadd.f32 %v7183, %v7833
      %v7922 = vadd.f32 %v7184, %v7838
      %v7923 = vadd.f32 %v7185, %v7841
      %v7924 = vadd.f32 %v7186, %v7846
      %v7925 = vadd.f32 %v7187, %v7849
      %v7926 = vadd.f32 %v7188, %v7854
      %v7927 = vadd.f32 %v7189, %v7857
      %v7928 = vadd.f32 %v7190, %v7862
      %v7929 = vadd.f32 %v7191, %v7865
      %v7930 = vadd.f32 %v7192, %v7870
      %v7931 = vadd.f32 %v7193, %v7873
      %v7932 = vadd.f32 %v7194, %v7878
      %v7933 = vadd.f32 %v7195, %v7881
      %v7934 = vadd.f32 %v7196, %v7886
      %v7935 = vadd.f32 %v7197, %v7889
      %v7936 = vadd.f32 %v7198, %v7894
      %v7937 = vadd.f32 %v7199, %v7897
      %v7938 = vadd.f32 %v7200, %v7902
      %v7939 = vadd.f32 %v7201, %v7905
      %v7940 = vld [vmem:[%s6831] sm:$0xe]
      %v7941 = vld [vmem:[%s6831 + $0xc] sm:$0xe]
      %v7942 = vld [vmem:[%s6831 + $0x18] sm:$0xe]
      %v7943 = vld [vmem:[%s6831 + $0x24] sm:$0xe]
      %v7944 = vld [vmem:[%s6831 + $0x30] sm:$0xe]
      %v7945 = vld [vmem:[%s6831 + $0x3c] sm:$0xe]
      %v7946 = vld [vmem:[%s6831 + $0x48] sm:$0xe]
      %v7947 = vld [vmem:[%s6831 + $0x54] sm:$0xe]
      %v7948 = vld [vmem:[%s6831 + $0x60] sm:$0xe]
      %v7949 = vld [vmem:[%s6831 + $0x6c] sm:$0xe]
      %v7950 = vld [vmem:[%s6831 + $0x78] sm:$0xe]
      %v7951 = vld [vmem:[%s6831 + $0x84] sm:$0xe]
      %v7952 = vld [vmem:[%s6831 + $0x90] sm:$0xe]
      %v7953 = vld [vmem:[%s6831 + $0x9c] sm:$0xe]
      %v7954 = vld [vmem:[%s6831 + $0xa8] sm:$0xe]
      %v7955 = vld [vmem:[%s6831 + $0xb4] sm:$0xe]
      %v8004 = vrot.slane %v7940, 5
      %v8005 = vrot.slane %v8004, 4
      %v8006 = vrot.slane %v7203, 5
      %v8007 = vsel %vm1336, %v8005, %v8006
      %v8008 = vrot.slane %v8006, 4
      %v8009 = vrot.slane %v7204, 5
      %v8010 = vsel %vm1336, %v8008, %v8009
      %v8011 = vrot.slane %v7941, 5
      %v8012 = vrot.slane %v8011, 4
      %v8013 = vrot.slane %v7206, 5
      %v8014 = vsel %vm1336, %v8012, %v8013
      %v8015 = vrot.slane %v8013, 4
      %v8016 = vrot.slane %v7207, 5
      %v8017 = vsel %vm1336, %v8015, %v8016
      %v8018 = vrot.slane %v7942, 5
      %v8019 = vrot.slane %v8018, 4
      %v8020 = vrot.slane %v7209, 5
      %v8021 = vsel %vm1336, %v8019, %v8020
      %v8022 = vrot.slane %v8020, 4
      %v8023 = vrot.slane %v7210, 5
      %v8024 = vsel %vm1336, %v8022, %v8023
      %v8025 = vrot.slane %v7943, 5
      %v8026 = vrot.slane %v8025, 4
      %v8027 = vrot.slane %v7212, 5
      %v8028 = vsel %vm1336, %v8026, %v8027
      %v8029 = vrot.slane %v8027, 4
      %v8030 = vrot.slane %v7213, 5
      %v8031 = vsel %vm1336, %v8029, %v8030
      %v8032 = vrot.slane %v7944, 5
      %v8033 = vrot.slane %v8032, 4
      %v8034 = vrot.slane %v7215, 5
      %v8035 = vsel %vm1336, %v8033, %v8034
      %v8036 = vrot.slane %v8034, 4
      %v8037 = vrot.slane %v7216, 5
      %v8038 = vsel %vm1336, %v8036, %v8037
      %v8039 = vrot.slane %v7945, 5
      %v8040 = vrot.slane %v8039, 4
      %v8041 = vrot.slane %v7218, 5
      %v8042 = vsel %vm1336, %v8040, %v8041
      %v8043 = vrot.slane %v8041, 4
      %v8044 = vrot.slane %v7219, 5
      %v8045 = vsel %vm1336, %v8043, %v8044
      %v8046 = vrot.slane %v7946, 5
      %v8047 = vrot.slane %v8046, 4
      %v8048 = vrot.slane %v7221, 5
      %v8049 = vsel %vm1336, %v8047, %v8048
      %v8050 = vrot.slane %v8048, 4
      %v8051 = vrot.slane %v7222, 5
      %v8052 = vsel %vm1336, %v8050, %v8051
      %v8053 = vrot.slane %v7947, 5
      %v8054 = vrot.slane %v8053, 4
      %v8055 = vrot.slane %v7224, 5
      %v8056 = vsel %vm1336, %v8054, %v8055
      %v8057 = vrot.slane %v8055, 4
      %v8058 = vrot.slane %v7225, 5
      %v8059 = vsel %vm1336, %v8057, %v8058
      %v8060 = vrot.slane %v7948, 5
      %v8061 = vrot.slane %v8060, 4
      %v8062 = vrot.slane %v7227, 5
      %v8063 = vsel %vm1336, %v8061, %v8062
      %v8064 = vrot.slane %v8062, 4
      %v8065 = vrot.slane %v7228, 5
      %v8066 = vsel %vm1336, %v8064, %v8065
      %v8067 = vrot.slane %v7949, 5
      %v8068 = vrot.slane %v8067, 4
      %v8069 = vrot.slane %v7230, 5
      %v8070 = vsel %vm1336, %v8068, %v8069
      %v8071 = vrot.slane %v8069, 4
      %v8072 = vrot.slane %v7231, 5
      %v8073 = vsel %vm1336, %v8071, %v8072
      %v8074 = vrot.slane %v7950, 5
      %v8075 = vrot.slane %v8074, 4
      %v8076 = vrot.slane %v7233, 5
      %v8077 = vsel %vm1336, %v8075, %v8076
      %v8078 = vrot.slane %v8076, 4
      %v8079 = vrot.slane %v7234, 5
      %v8080 = vsel %vm1336, %v8078, %v8079
      %v8081 = vrot.slane %v7951, 5
      %v8082 = vrot.slane %v8081, 4
      %v8083 = vrot.slane %v7236, 5
      %v8084 = vsel %vm1336, %v8082, %v8083
      %v8085 = vrot.slane %v8083, 4
      %v8086 = vrot.slane %v7237, 5
      %v8087 = vsel %vm1336, %v8085, %v8086
      %v8088 = vrot.slane %v7952, 5
      %v8089 = vrot.slane %v8088, 4
      %v8090 = vrot.slane %v7239, 5
      %v8091 = vsel %vm1336, %v8089, %v8090
      %v8092 = vrot.slane %v8090, 4
      %v8093 = vrot.slane %v7240, 5
      %v8094 = vsel %vm1336, %v8092, %v8093
      %v8095 = vrot.slane %v7953, 5
      %v8096 = vrot.slane %v8095, 4
      %v8097 = vrot.slane %v7242, 5
      %v8098 = vsel %vm1336, %v8096, %v8097
      %v8099 = vrot.slane %v8097, 4
      %v8100 = vrot.slane %v7243, 5
      %v8101 = vsel %vm1336, %v8099, %v8100
      %v8102 = vrot.slane %v7954, 5
      %v8103 = vrot.slane %v8102, 4
      %v8104 = vrot.slane %v7245, 5
      %v8105 = vsel %vm1336, %v8103, %v8104
      %v8106 = vrot.slane %v8104, 4
      %v8107 = vrot.slane %v7246, 5
      %v8108 = vsel %vm1336, %v8106, %v8107
      %v8109 = vrot.slane %v7955, 5
      %v8110 = vrot.slane %v8109, 4
      %v8111 = vrot.slane %v7248, 5
      %v8112 = vsel %vm1336, %v8110, %v8111
      %v8113 = vrot.slane %v8111, 4
      %v8114 = vrot.slane %v7249, 5
      %v8115 = vsel %vm1336, %v8113, %v8114
      %s8116 = scalar_lea.vmem %s3, 128
      %v8117 = vld [vmem:[%s8116] sm:$0xf]
      %v8118 = vld [vmem:[%s8116 + $0x4] sm:$0xf]
      %v8119 = vld [vmem:[%s8116 + $0x8] sm:$0xf]
      %v8120 = vld [vmem:[%s8116 + $0xc] sm:$0xf]
      %v8121 = vunpack.c.l.b16 %v8007
      %v8122 = vunpack.c.l.b16 %v8010
      %v8123 = vunpack.c.l.b16 %v8014
      %v8124 = vunpack.c.l.b16 %v8017
      %v8125 = vunpack.c.l.b16 %v8021
      %v8126 = vunpack.c.l.b16 %v8024
      %v8127 = vunpack.c.l.b16 %v8028
      %v8128 = vunpack.c.l.b16 %v8031
      %v8129 = vunpack.c.l.b16 %v8035
      %v8130 = vunpack.c.l.b16 %v8038
      %v8131 = vunpack.c.l.b16 %v8042
      %v8132 = vunpack.c.l.b16 %v8045
      %v8133 = vunpack.c.l.b16 %v8049
      %v8134 = vunpack.c.l.b16 %v8052
      %v8135 = vunpack.c.l.b16 %v8056
      %v8136 = vunpack.c.l.b16 %v8059
      %v8137 = vunpack.c.l.b16 %v8063
      %v8138 = vunpack.c.l.b16 %v8066
      %v8139 = vunpack.c.l.b16 %v8070
      %v8140 = vunpack.c.l.b16 %v8073
      %v8141 = vunpack.c.l.b16 %v8077
      %v8142 = vunpack.c.l.b16 %v8080
      %v8143 = vunpack.c.l.b16 %v8084
      %v8144 = vunpack.c.l.b16 %v8087
      %v8145 = vunpack.c.l.b16 %v8091
      %v8146 = vunpack.c.l.b16 %v8094
      %v8147 = vunpack.c.l.b16 %v8098
      %v8148 = vunpack.c.l.b16 %v8101
      %v8149 = vunpack.c.l.b16 %v8105
      %v8150 = vunpack.c.l.b16 %v8108
      %v8151 = vunpack.c.l.b16 %v8112
      %v8152 = vunpack.c.l.b16 %v8115
      %v8153 = vpack.c.b16 %v8122, %v8121
      %v8154 = vpack.c.b16 %v8124, %v8123
      %v8155 = vpack.c.b16 %v8126, %v8125
      %v8156 = vpack.c.b16 %v8128, %v8127
      %v8157 = vpack.c.b16 %v8130, %v8129
      %v8158 = vpack.c.b16 %v8132, %v8131
      %v8159 = vpack.c.b16 %v8134, %v8133
      %v8160 = vpack.c.b16 %v8136, %v8135
      %v8161 = vpack.c.b16 %v8138, %v8137
      %v8162 = vpack.c.b16 %v8140, %v8139
      %v8163 = vpack.c.b16 %v8142, %v8141
      %v8164 = vpack.c.b16 %v8144, %v8143
      %v8165 = vpack.c.b16 %v8146, %v8145
      %v8166 = vpack.c.b16 %v8148, %v8147
      %v8167 = vpack.c.b16 %v8150, %v8149
      %v8168 = vpack.c.b16 %v8152, %v8151
      %v8173 = vunpack.c.l.b16 %v8117
      %v8174 = vunpack.c.l.b16 %v8118
      %v8175 = vunpack.c.l.b16 %v8119
      %v8176 = vunpack.c.l.b16 %v8120
      %v8177 = vpack.c.b16 %v8174, %v8173
      %v8178 = vpack.c.b16 %v8176, %v8175
      %v8182 = vsel %vm4264, %v8153, 0
      %v8185 = vsel %vm4264, %v8154, 0
      %v8188 = vsel %vm4264, %v8155, 0
      %v8191 = vsel %vm4264, %v8156, 0
      %v8194 = vsel %vm4264, %v8157, 0
      %v8197 = vsel %vm4264, %v8158, 0
      %v8200 = vsel %vm4264, %v8159, 0
      %v8203 = vsel %vm4264, %v8160, 0
      %v8206 = vsel %vm4264, %v8161, 0
      %v8209 = vsel %vm4264, %v8162, 0
      %v8212 = vsel %vm4264, %v8163, 0
      %v8215 = vsel %vm4264, %v8164, 0
      %v8218 = vsel %vm4264, %v8165, 0
      %v8221 = vsel %vm4264, %v8166, 0
      %v8224 = vsel %vm4264, %v8167, 0
      %v8227 = vsel %vm4264, %v8168, 0
      %8229 = vmatprep.subr.bf16.mxu0 0
      %8230 = vmatpush1.bf16.msra.mxu0 %v8177
      %8231 = vmatprep.subr.bf16.mxu0 0
      %8232 = vmatpush1.bf16.msra.mxu0 %v8178
      %8233 = vmatprep.subr.bf16.mxu0 0
      %8234 = vmatpush1.bf16.msra.mxu0 0
      %8235 = vmatprep.subr.bf16.mxu0 0
      %8236 = vmatpush1.bf16.msra.mxu0 0
      %8237 = vmatprep.subr.bf16.mxu0 0
      %8238 = vmatpush1.bf16.msra.mxu0 0
      %8239 = vmatprep.subr.bf16.mxu0 0
      %8240 = vmatpush1.bf16.msra.mxu0 0
      %8241 = vmatprep.subr.bf16.mxu0 0
      %8242 = vmatpush1.bf16.msra.mxu0 0
      %8243 = vmatprep.subr.bf16.mxu0 0
      %8244 = vmatpush1.bf16.msra.mxu0 0
      %8245 = vmatprep.subr.bf16.mxu0 0
      %8246 = vmatpush1.bf16.msra.mxu0 0
      %8247 = vmatprep.subr.bf16.mxu0 0
      %8248 = vmatpush1.bf16.msra.mxu0 0
      %8249 = vmatprep.subr.bf16.mxu0 0
      %8250 = vmatpush1.bf16.msra.mxu0 0
      %8251 = vmatprep.subr.bf16.mxu0 0
      %8252 = vmatpush1.bf16.msra.mxu0 0
      %8253 = vmatprep.subr.bf16.mxu0 0
      %8254 = vmatpush1.bf16.msra.mxu0 0
      %8255 = vmatprep.subr.bf16.mxu0 0
      %8256 = vmatpush1.bf16.msra.mxu0 0
      %8257 = vmatprep.subr.bf16.mxu0 0
      %8258 = vmatpush1.bf16.msra.mxu0 0
      %8259 = vmatprep.subr.bf16.mxu0 0
      %8260 = vmatpush1.bf16.msra.mxu0 0
      %8261 = vmatprep.mubr.bf16.mxu0 0
      %8262 = vmatmul.mubr.bf16.gmra.mrb[0].mxu0 %v8182
      %v8263 = vpop.f32.mrb[0].mxu0
      %v8264 = vadd.f32 0.0, %v8263
      %v8265 = vpop.f32.mrb[0].mxu0
      %v8266 = vpop.f32.mrb[0].mxu0
      %v8267 = vadd.f32 0.0, %v8266
      %v8268 = vpop.f32.mrb[0].mxu0
      %8269 = vmatprep.mubr.bf16.mxu0 0
      %8270 = vmatmul.mubr.bf16.gmra.mrb[0].mxu0 %v8185
      %v8271 = vpop.f32.mrb[0].mxu0
      %v8272 = vadd.f32 0.0, %v8271
      %v8273 = vpop.f32.mrb[0].mxu0
      %v8274 = vpop.f32.mrb[0].mxu0
      %v8275 = vadd.f32 0.0, %v8274
      %v8276 = vpop.f32.mrb[0].mxu0
      %8277 = vmatprep.mubr.bf16.mxu0 0
      %8278 = vmatmul.mubr.bf16.gmra.mrb[0].mxu0 %v8188
      %v8279 = vpop.f32.mrb[0].mxu0
      %v8280 = vadd.f32 0.0, %v8279
      %v8281 = vpop.f32.mrb[0].mxu0
      %v8282 = vpop.f32.mrb[0].mxu0
      %v8283 = vadd.f32 0.0, %v8282
      %v8284 = vpop.f32.mrb[0].mxu0
      %8285 = vmatprep.mubr.bf16.mxu0 0
      %8286 = vmatmul.mubr.bf16.gmra.mrb[0].mxu0 %v8191
      %v8287 = vpop.f32.mrb[0].mxu0
      %v8288 = vadd.f32 0.0, %v8287
      %v8289 = vpop.f32.mrb[0].mxu0
      %v8290 = vpop.f32.mrb[0].mxu0
      %v8291 = vadd.f32 0.0, %v8290
      %v8292 = vpop.f32.mrb[0].mxu0
      %8293 = vmatprep.mubr.bf16.mxu0 0
      %8294 = vmatmul.mubr.bf16.gmra.mrb[0].mxu0 %v8194
      %v8295 = vpop.f32.mrb[0].mxu0
      %v8296 = vadd.f32 0.0, %v8295
      %v8297 = vpop.f32.mrb[0].mxu0
      %v8298 = vpop.f32.mrb[0].mxu0
      %v8299 = vadd.f32 0.0, %v8298
      %v8300 = vpop.f32.mrb[0].mxu0
      %8301 = vmatprep.mubr.bf16.mxu0 0
      %8302 = vmatmul.mubr.bf16.gmra.mrb[0].mxu0 %v8197
      %v8303 = vpop.f32.mrb[0].mxu0
      %v8304 = vadd.f32 0.0, %v8303
      %v8305 = vpop.f32.mrb[0].mxu0
      %v8306 = vpop.f32.mrb[0].mxu0
      %v8307 = vadd.f32 0.0, %v8306
      %v8308 = vpop.f32.mrb[0].mxu0
      %8309 = vmatprep.mubr.bf16.mxu0 0
      %8310 = vmatmul.mubr.bf16.gmra.mrb[0].mxu0 %v8200
      %v8311 = vpop.f32.mrb[0].mxu0
      %v8312 = vadd.f32 0.0, %v8311
      %v8313 = vpop.f32.mrb[0].mxu0
      %v8314 = vpop.f32.mrb[0].mxu0
      %v8315 = vadd.f32 0.0, %v8314
      %v8316 = vpop.f32.mrb[0].mxu0
      %8317 = vmatprep.mubr.bf16.mxu0 0
      %8318 = vmatmul.mubr.bf16.gmra.mrb[0].mxu0 %v8203
      %v8319 = vpop.f32.mrb[0].mxu0
      %v8320 = vadd.f32 0.0, %v8319
      %v8321 = vpop.f32.mrb[0].mxu0
      %v8322 = vpop.f32.mrb[0].mxu0
      %v8323 = vadd.f32 0.0, %v8322
      %v8324 = vpop.f32.mrb[0].mxu0
      %8325 = vmatprep.mubr.bf16.mxu0 0
      %8326 = vmatmul.mubr.bf16.gmra.mrb[0].mxu0 %v8206
      %v8327 = vpop.f32.mrb[0].mxu0
      %v8328 = vadd.f32 0.0, %v8327
      %v8329 = vpop.f32.mrb[0].mxu0
      %v8330 = vpop.f32.mrb[0].mxu0
      %v8331 = vadd.f32 0.0, %v8330
      %v8332 = vpop.f32.mrb[0].mxu0
      %8333 = vmatprep.mubr.bf16.mxu0 0
      %8334 = vmatmul.mubr.bf16.gmra.mrb[0].mxu0 %v8209
      %v8335 = vpop.f32.mrb[0].mxu0
      %v8336 = vadd.f32 0.0, %v8335
      %v8337 = vpop.f32.mrb[0].mxu0
      %v8338 = vpop.f32.mrb[0].mxu0
      %v8339 = vadd.f32 0.0, %v8338
      %v8340 = vpop.f32.mrb[0].mxu0
      %8341 = vmatprep.mubr.bf16.mxu0 0
      %8342 = vmatmul.mubr.bf16.gmra.mrb[0].mxu0 %v8212
      %v8343 = vpop.f32.mrb[0].mxu0
      %v8344 = vadd.f32 0.0, %v8343
      %v8345 = vpop.f32.mrb[0].mxu0
      %v8346 = vpop.f32.mrb[0].mxu0
      %v8347 = vadd.f32 0.0, %v8346
      %v8348 = vpop.f32.mrb[0].mxu0
      %8349 = vmatprep.mubr.bf16.mxu0 0
      %8350 = vmatmul.mubr.bf16.gmra.mrb[0].mxu0 %v8215
      %v8351 = vpop.f32.mrb[0].mxu0
      %v8352 = vadd.f32 0.0, %v8351
      %v8353 = vpop.f32.mrb[0].mxu0
      %v8354 = vpop.f32.mrb[0].mxu0
      %v8355 = vadd.f32 0.0, %v8354
      %v8356 = vpop.f32.mrb[0].mxu0
      %8357 = vmatprep.mubr.bf16.mxu0 0
      %8358 = vmatmul.mubr.bf16.gmra.mrb[0].mxu0 %v8218
      %v8359 = vpop.f32.mrb[0].mxu0
      %v8360 = vadd.f32 0.0, %v8359
      %v8361 = vpop.f32.mrb[0].mxu0
      %v8362 = vpop.f32.mrb[0].mxu0
      %v8363 = vadd.f32 0.0, %v8362
      %v8364 = vpop.f32.mrb[0].mxu0
      %8365 = vmatprep.mubr.bf16.mxu0 0
      %8366 = vmatmul.mubr.bf16.gmra.mrb[0].mxu0 %v8221
      %v8367 = vpop.f32.mrb[0].mxu0
      %v8368 = vadd.f32 0.0, %v8367
      %v8369 = vpop.f32.mrb[0].mxu0
      %v8370 = vpop.f32.mrb[0].mxu0
      %v8371 = vadd.f32 0.0, %v8370
      %v8372 = vpop.f32.mrb[0].mxu0
      %8373 = vmatprep.mubr.bf16.mxu0 0
      %8374 = vmatmul.mubr.bf16.gmra.mrb[0].mxu0 %v8224
      %v8375 = vpop.f32.mrb[0].mxu0
      %v8376 = vadd.f32 0.0, %v8375
      %v8377 = vpop.f32.mrb[0].mxu0
      %v8378 = vpop.f32.mrb[0].mxu0
      %v8379 = vadd.f32 0.0, %v8378
      %v8380 = vpop.f32.mrb[0].mxu0
      %8381 = vmatprep.mubr.bf16.mxu0 0
      %8382 = vmatmul.mubr.bf16.gmra.mrb[0].mxu0 %v8227
      %v8383 = vpop.f32.mrb[0].mxu0
      %v8384 = vadd.f32 0.0, %v8383
      %v8385 = vpop.f32.mrb[0].mxu0
      %v8386 = vpop.f32.mrb[0].mxu0
      %v8387 = vadd.f32 0.0, %v8386
      %v8388 = vpop.f32.mrb[0].mxu0
      %8389 = vdwg.mxu0
      %v8390 = vadd.f32 %v7908, %v8264
      %v8391 = vadd.f32 %v7909, %v8267
      %v8392 = vadd.f32 %v7910, %v8272
      %v8393 = vadd.f32 %v7911, %v8275
      %v8394 = vadd.f32 %v7912, %v8280
      %v8395 = vadd.f32 %v7913, %v8283
      %v8396 = vadd.f32 %v7914, %v8288
      %v8397 = vadd.f32 %v7915, %v8291
      %v8398 = vadd.f32 %v7916, %v8296
      %v8399 = vadd.f32 %v7917, %v8299
      %v8400 = vadd.f32 %v7918, %v8304
      %v8401 = vadd.f32 %v7919, %v8307
      %v8402 = vadd.f32 %v7920, %v8312
      %v8403 = vadd.f32 %v7921, %v8315
      %v8404 = vadd.f32 %v7922, %v8320
      %v8405 = vadd.f32 %v7923, %v8323
      %v8406 = vadd.f32 %v7924, %v8328
      %v8407 = vadd.f32 %v7925, %v8331
      %v8408 = vadd.f32 %v7926, %v8336
      %v8409 = vadd.f32 %v7927, %v8339
      %v8410 = vadd.f32 %v7928, %v8344
      %v8411 = vadd.f32 %v7929, %v8347
      %v8412 = vadd.f32 %v7930, %v8352
      %v8413 = vadd.f32 %v7931, %v8355
      %v8414 = vadd.f32 %v7932, %v8360
      %v8415 = vadd.f32 %v7933, %v8363
      %v8416 = vadd.f32 %v7934, %v8368
      %v8417 = vadd.f32 %v7935, %v8371
      %v8418 = vadd.f32 %v7936, %v8376
      %v8419 = vadd.f32 %v7937, %v8379
      %v8420 = vadd.f32 %v7938, %v8384
      %v8421 = vadd.f32 %v7939, %v8387
      %v8422 = vld [vmem:[%s4] sm:$0x1]
      %v8424 = vlaneseq
      %v8425 = vshrl.u32 %v8424, 7
      %v8426 = vsub.s32 0, %v8425
      %v8427 = vrot.slane %v8422, %v8426
      %v8429 = vadd.f32 %v8390, %v8427
      %v8430 = vadd.f32 %v8391, %v8427
      %v8431 = vadd.f32 %v8392, %v8427
      %v8432 = vadd.f32 %v8393, %v8427
      %v8433 = vadd.f32 %v8394, %v8427
      %v8434 = vadd.f32 %v8395, %v8427
      %v8435 = vadd.f32 %v8396, %v8427
      %v8436 = vadd.f32 %v8397, %v8427
      %v8437 = vadd.f32 %v8398, %v8427
      %v8438 = vadd.f32 %v8399, %v8427
      %v8439 = vadd.f32 %v8400, %v8427
      %v8440 = vadd.f32 %v8401, %v8427
      %v8441 = vadd.f32 %v8402, %v8427
      %v8442 = vadd.f32 %v8403, %v8427
      %v8443 = vadd.f32 %v8404, %v8427
      %v8444 = vadd.f32 %v8405, %v8427
      %v8445 = vadd.f32 %v8406, %v8427
      %v8446 = vadd.f32 %v8407, %v8427
      %v8447 = vadd.f32 %v8408, %v8427
      %v8448 = vadd.f32 %v8409, %v8427
      %v8449 = vadd.f32 %v8410, %v8427
      %v8450 = vadd.f32 %v8411, %v8427
      %v8451 = vadd.f32 %v8412, %v8427
      %v8452 = vadd.f32 %v8413, %v8427
      %v8453 = vadd.f32 %v8414, %v8427
      %v8454 = vadd.f32 %v8415, %v8427
      %v8455 = vadd.f32 %v8416, %v8427
      %v8456 = vadd.f32 %v8417, %v8427
      %v8457 = vadd.f32 %v8418, %v8427
      %v8458 = vadd.f32 %v8419, %v8427
      %v8459 = vadd.f32 %v8420, %v8427
      %v8460 = vadd.f32 %v8421, %v8427
      %v8461 = vmax.f32 %v8429, 0.0
      %v8462 = vmax.f32 %v8430, 0.0
      %v8463 = vmax.f32 %v8431, 0.0
      %v8464 = vmax.f32 %v8432, 0.0
      %v8465 = vmax.f32 %v8433, 0.0
      %v8466 = vmax.f32 %v8434, 0.0
      %v8467 = vmax.f32 %v8435, 0.0
      %v8468 = vmax.f32 %v8436, 0.0
      %v8469 = vmax.f32 %v8437, 0.0
      %v8470 = vmax.f32 %v8438, 0.0
      %v8471 = vmax.f32 %v8439, 0.0
      %v8472 = vmax.f32 %v8440, 0.0
      %v8473 = vmax.f32 %v8441, 0.0
      %v8474 = vmax.f32 %v8442, 0.0
      %v8475 = vmax.f32 %v8443, 0.0
      %v8476 = vmax.f32 %v8444, 0.0
      %v8477 = vmax.f32 %v8445, 0.0
      %v8478 = vmax.f32 %v8446, 0.0
      %v8479 = vmax.f32 %v8447, 0.0
      %v8480 = vmax.f32 %v8448, 0.0
      %v8481 = vmax.f32 %v8449, 0.0
      %v8482 = vmax.f32 %v8450, 0.0
      %v8483 = vmax.f32 %v8451, 0.0
      %v8484 = vmax.f32 %v8452, 0.0
      %v8485 = vmax.f32 %v8453, 0.0
      %v8486 = vmax.f32 %v8454, 0.0
      %v8487 = vmax.f32 %v8455, 0.0
      %v8488 = vmax.f32 %v8456, 0.0
      %v8489 = vmax.f32 %v8457, 0.0
      %v8490 = vmax.f32 %v8458, 0.0
      %v8491 = vmax.f32 %v8459, 0.0
      %v8492 = vmax.f32 %v8460, 0.0
      %v8493 = vpack.c.bf16 %v8462, %v8461
      %v8494 = vpack.c.bf16 %v8464, %v8463
      %v8495 = vpack.c.bf16 %v8466, %v8465
      %v8496 = vpack.c.bf16 %v8468, %v8467
      %v8497 = vpack.c.bf16 %v8470, %v8469
      %v8498 = vpack.c.bf16 %v8472, %v8471
      %v8499 = vpack.c.bf16 %v8474, %v8473
      %v8500 = vpack.c.bf16 %v8476, %v8475
      %v8501 = vpack.c.bf16 %v8478, %v8477
      %v8502 = vpack.c.bf16 %v8480, %v8479
      %v8503 = vpack.c.bf16 %v8482, %v8481
      %v8504 = vpack.c.bf16 %v8484, %v8483
      %v8505 = vpack.c.bf16 %v8486, %v8485
      %v8506 = vpack.c.bf16 %v8488, %v8487
      %v8507 = vpack.c.bf16 %v8490, %v8489
      %v8508 = vpack.c.bf16 %v8492, %v8491
      %v8509 = vld [vmem:[%s5] sm:$0xf]
      %v8510 = vld [vmem:[%s5 + $0x4] sm:$0xf]
      %v8511 = vld [vmem:[%s5 + $0x8] sm:$0xf]
      %v8512 = vld [vmem:[%s5 + $0xc] sm:$0xf]
      %v8513 = vld [vmem:[%s6] sm:$0x1]
      %v8515 = vlaneseq
      %v8516 = vshrl.u32 %v8515, 7
      %v8517 = vsub.s32 0, %v8516
      %v8518 = vrot.slane %v8513, %v8517
      %v8524 = vunpack.c.l.b16 %v8509
      %v8525 = vunpack.c.l.b16 %v8510
      %v8526 = vunpack.c.l.b16 %v8511
      %v8527 = vunpack.c.l.b16 %v8512
      %v8528 = vpack.c.b16 %v8525, %v8524
      %v8529 = vpack.c.b16 %v8527, %v8526
      %v8533 = vsel %vm4264, %v8493, 0
      %v8536 = vsel %vm4264, %v8494, 0
      %v8539 = vsel %vm4264, %v8495, 0
      %v8542 = vsel %vm4264, %v8496, 0
      %v8545 = vsel %vm4264, %v8497, 0
      %v8548 = vsel %vm4264, %v8498, 0
      %v8551 = vsel %vm4264, %v8499, 0
      %v8554 = vsel %vm4264, %v8500, 0
      %v8557 = vsel %vm4264, %v8501, 0
      %v8560 = vsel %vm4264, %v8502, 0
      %v8563 = vsel %vm4264, %v8503, 0
      %v8566 = vsel %vm4264, %v8504, 0
      %v8569 = vsel %vm4264, %v8505, 0
      %v8572 = vsel %vm4264, %v8506, 0
      %v8575 = vsel %vm4264, %v8507, 0
      %v8578 = vsel %vm4264, %v8508, 0
      %8580 = vmatprep.subr.bf16.mxu0 0
      %8581 = vmatpush1.bf16.msra.mxu0 %v8528
      %8582 = vmatprep.subr.bf16.mxu0 0
      %8583 = vmatpush1.bf16.msra.mxu0 %v8529
      %8584 = vmatprep.subr.bf16.mxu0 0
      %8585 = vmatpush1.bf16.msra.mxu0 0
      %8586 = vmatprep.subr.bf16.mxu0 0
      %8587 = vmatpush1.bf16.msra.mxu0 0
      %8588 = vmatprep.subr.bf16.mxu0 0
      %8589 = vmatpush1.bf16.msra.mxu0 0
      %8590 = vmatprep.subr.bf16.mxu0 0
      %8591 = vmatpush1.bf16.msra.mxu0 0
      %8592 = vmatprep.subr.bf16.mxu0 0
      %8593 = vmatpush1.bf16.msra.mxu0 0
      %8594 = vmatprep.subr.bf16.mxu0 0
      %8595 = vmatpush1.bf16.msra.mxu0 0
      %8596 = vmatprep.subr.bf16.mxu0 0
      %8597 = vmatpush1.bf16.msra.mxu0 0
      %8598 = vmatprep.subr.bf16.mxu0 0
      %8599 = vmatpush1.bf16.msra.mxu0 0
      %8600 = vmatprep.subr.bf16.mxu0 0
      %8601 = vmatpush1.bf16.msra.mxu0 0
      %8602 = vmatprep.subr.bf16.mxu0 0
      %8603 = vmatpush1.bf16.msra.mxu0 0
      %8604 = vmatprep.subr.bf16.mxu0 0
      %8605 = vmatpush1.bf16.msra.mxu0 0
      %8606 = vmatprep.subr.bf16.mxu0 0
      %8607 = vmatpush1.bf16.msra.mxu0 0
      %8608 = vmatprep.subr.bf16.mxu0 0
      %8609 = vmatpush1.bf16.msra.mxu0 0
      %8610 = vmatprep.subr.bf16.mxu0 0
      %8611 = vmatpush1.bf16.msra.mxu0 0
      %8612 = vmatprep.mubr.bf16.mxu0 0
      %8613 = vmatmul.mubr.bf16.gmra.mrb[0].mxu0 %v8533
      %v8614 = vpop.f32.mrb[0].mxu0
      %v8615 = vadd.f32 %v8518, %v8614
      %v8616 = vpop.f32.mrb[0].mxu0
      %v8617 = vpop.f32.mrb[0].mxu0
      %v8618 = vadd.f32 %v8518, %v8617
      %v8619 = vpop.f32.mrb[0].mxu0
      %8620 = vmatprep.mubr.bf16.mxu0 0
      %8621 = vmatmul.mubr.bf16.gmra.mrb[0].mxu0 %v8536
      %v8622 = vpop.f32.mrb[0].mxu0
      %v8623 = vadd.f32 %v8518, %v8622
      %v8624 = vpop.f32.mrb[0].mxu0
      %v8625 = vpop.f32.mrb[0].mxu0
      %v8626 = vadd.f32 %v8518, %v8625
      %v8627 = vpop.f32.mrb[0].mxu0
      %8628 = vmatprep.mubr.bf16.mxu0 0
      %8629 = vmatmul.mubr.bf16.gmra.mrb[0].mxu0 %v8539
      %v8630 = vpop.f32.mrb[0].mxu0
      %v8631 = vadd.f32 %v8518, %v8630
      %v8632 = vpop.f32.mrb[0].mxu0
      %v8633 = vpop.f32.mrb[0].mxu0
      %v8634 = vadd.f32 %v8518, %v8633
      %v8635 = vpop.f32.mrb[0].mxu0
      %8636 = vmatprep.mubr.bf16.mxu0 0
      %8637 = vmatmul.mubr.bf16.gmra.mrb[0].mxu0 %v8542
      %v8638 = vpop.f32.mrb[0].mxu0
      %v8639 = vadd.f32 %v8518, %v8638
      %v8640 = vpop.f32.mrb[0].mxu0
      %v8641 = vpop.f32.mrb[0].mxu0
      %v8642 = vadd.f32 %v8518, %v8641
      %v8643 = vpop.f32.mrb[0].mxu0
      %8644 = vmatprep.mubr.bf16.mxu0 0
      %8645 = vmatmul.mubr.bf16.gmra.mrb[0].mxu0 %v8545
      %v8646 = vpop.f32.mrb[0].mxu0
      %v8647 = vadd.f32 %v8518, %v8646
      %v8648 = vpop.f32.mrb[0].mxu0
      %v8649 = vpop.f32.mrb[0].mxu0
      %v8650 = vadd.f32 %v8518, %v8649
      %v8651 = vpop.f32.mrb[0].mxu0
      %8652 = vmatprep.mubr.bf16.mxu0 0
      %8653 = vmatmul.mubr.bf16.gmra.mrb[0].mxu0 %v8548
      %v8654 = vpop.f32.mrb[0].mxu0
      %v8655 = vadd.f32 %v8518, %v8654
      %v8656 = vpop.f32.mrb[0].mxu0
      %v8657 = vpop.f32.mrb[0].mxu0
      %v8658 = vadd.f32 %v8518, %v8657
      %v8659 = vpop.f32.mrb[0].mxu0
      %8660 = vmatprep.mubr.bf16.mxu0 0
      %8661 = vmatmul.mubr.bf16.gmra.mrb[0].mxu0 %v8551
      %v8662 = vpop.f32.mrb[0].mxu0
      %v8663 = vadd.f32 %v8518, %v8662
      %v8664 = vpop.f32.mrb[0].mxu0
      %v8665 = vpop.f32.mrb[0].mxu0
      %v8666 = vadd.f32 %v8518, %v8665
      %v8667 = vpop.f32.mrb[0].mxu0
      %8668 = vmatprep.mubr.bf16.mxu0 0
      %8669 = vmatmul.mubr.bf16.gmra.mrb[0].mxu0 %v8554
      %v8670 = vpop.f32.mrb[0].mxu0
      %v8671 = vadd.f32 %v8518, %v8670
      %v8672 = vpop.f32.mrb[0].mxu0
      %v8673 = vpop.f32.mrb[0].mxu0
      %v8674 = vadd.f32 %v8518, %v8673
      %v8675 = vpop.f32.mrb[0].mxu0
      %8676 = vmatprep.mubr.bf16.mxu0 0
      %8677 = vmatmul.mubr.bf16.gmra.mrb[0].mxu0 %v8557
      %v8678 = vpop.f32.mrb[0].mxu0
      %v8679 = vadd.f32 %v8518, %v8678
      %v8680 = vpop.f32.mrb[0].mxu0
      %v8681 = vpop.f32.mrb[0].mxu0
      %v8682 = vadd.f32 %v8518, %v8681
      %v8683 = vpop.f32.mrb[0].mxu0
      %8684 = vmatprep.mubr.bf16.mxu0 0
      %8685 = vmatmul.mubr.bf16.gmra.mrb[0].mxu0 %v8560
      %v8686 = vpop.f32.mrb[0].mxu0
      %v8687 = vadd.f32 %v8518, %v8686
      %v8688 = vpop.f32.mrb[0].mxu0
      %v8689 = vpop.f32.mrb[0].mxu0
      %v8690 = vadd.f32 %v8518, %v8689
      %v8691 = vpop.f32.mrb[0].mxu0
      %8692 = vmatprep.mubr.bf16.mxu0 0
      %8693 = vmatmul.mubr.bf16.gmra.mrb[0].mxu0 %v8563
      %v8694 = vpop.f32.mrb[0].mxu0
      %v8695 = vadd.f32 %v8518, %v8694
      %v8696 = vpop.f32.mrb[0].mxu0
      %v8697 = vpop.f32.mrb[0].mxu0
      %v8698 = vadd.f32 %v8518, %v8697
      %v8699 = vpop.f32.mrb[0].mxu0
      %8700 = vmatprep.mubr.bf16.mxu0 0
      %8701 = vmatmul.mubr.bf16.gmra.mrb[0].mxu0 %v8566
      %v8702 = vpop.f32.mrb[0].mxu0
      %v8703 = vadd.f32 %v8518, %v8702
      %v8704 = vpop.f32.mrb[0].mxu0
      %v8705 = vpop.f32.mrb[0].mxu0
      %v8706 = vadd.f32 %v8518, %v8705
      %v8707 = vpop.f32.mrb[0].mxu0
      %8708 = vmatprep.mubr.bf16.mxu0 0
      %8709 = vmatmul.mubr.bf16.gmra.mrb[0].mxu0 %v8569
      %v8710 = vpop.f32.mrb[0].mxu0
      %v8711 = vadd.f32 %v8518, %v8710
      %v8712 = vpop.f32.mrb[0].mxu0
      %v8713 = vpop.f32.mrb[0].mxu0
      %v8714 = vadd.f32 %v8518, %v8713
      %v8715 = vpop.f32.mrb[0].mxu0
      %8716 = vmatprep.mubr.bf16.mxu0 0
      %8717 = vmatmul.mubr.bf16.gmra.mrb[0].mxu0 %v8572
      %v8718 = vpop.f32.mrb[0].mxu0
      %v8719 = vadd.f32 %v8518, %v8718
      %v8720 = vpop.f32.mrb[0].mxu0
      %v8721 = vpop.f32.mrb[0].mxu0
      %v8722 = vadd.f32 %v8518, %v8721
      %v8723 = vpop.f32.mrb[0].mxu0
      %8724 = vmatprep.mubr.bf16.mxu0 0
      %8725 = vmatmul.mubr.bf16.gmra.mrb[0].mxu0 %v8575
      %v8726 = vpop.f32.mrb[0].mxu0
      %v8727 = vadd.f32 %v8518, %v8726
      %v8728 = vpop.f32.mrb[0].mxu0
      %v8729 = vpop.f32.mrb[0].mxu0
      %v8730 = vadd.f32 %v8518, %v8729
      %v8731 = vpop.f32.mrb[0].mxu0
      %8732 = vmatprep.mubr.bf16.mxu0 0
      %8733 = vmatmul.mubr.bf16.gmra.mrb[0].mxu0 %v8578
      %v8734 = vpop.f32.mrb[0].mxu0
      %v8735 = vadd.f32 %v8518, %v8734
      %v8736 = vpop.f32.mrb[0].mxu0
      %v8737 = vpop.f32.mrb[0].mxu0
      %v8738 = vadd.f32 %v8518, %v8737
      %v8739 = vpop.f32.mrb[0].mxu0
      %8740 = vdwg.mxu0
      %vm8741 = vcmask 130048
      %8742 = vst.msk [vmem:[%s318] sm:$0xff] %vm8741, %v8615
      %8743 = vst.msk [vmem:[%s318 + $0x8] sm:$0xff] %vm8741, %v8618
      %8744 = vst.msk [vmem:[%s318 + $0x10] sm:$0xff] %vm8741, %v8623
      %8745 = vst.msk [vmem:[%s318 + $0x18] sm:$0xff] %vm8741, %v8626
      %8746 = vst.msk [vmem:[%s318 + $0x20] sm:$0xff] %vm8741, %v8631
      %8747 = vst.msk [vmem:[%s318 + $0x28] sm:$0xff] %vm8741, %v8634
      %8748 = vst.msk [vmem:[%s318 + $0x30] sm:$0xff] %vm8741, %v8639
      %8749 = vst.msk [vmem:[%s318 + $0x38] sm:$0xff] %vm8741, %v8642
      %8750 = vst.msk [vmem:[%s318 + $0x40] sm:$0xff] %vm8741, %v8647
      %8751 = vst.msk [vmem:[%s318 + $0x48] sm:$0xff] %vm8741, %v8650
      %8752 = vst.msk [vmem:[%s318 + $0x50] sm:$0xff] %vm8741, %v8655
      %8753 = vst.msk [vmem:[%s318 + $0x58] sm:$0xff] %vm8741, %v8658
      %8754 = vst.msk [vmem:[%s318 + $0x60] sm:$0xff] %vm8741, %v8663
      %8755 = vst.msk [vmem:[%s318 + $0x68] sm:$0xff] %vm8741, %v8666
      %8756 = vst.msk [vmem:[%s318 + $0x70] sm:$0xff] %vm8741, %v8671
      %8757 = vst.msk [vmem:[%s318 + $0x78] sm:$0xff] %vm8741, %v8674
      %8758 = vst.msk [vmem:[%s318 + $0x80] sm:$0xff] %vm8741, %v8679
      %8759 = vst.msk [vmem:[%s318 + $0x88] sm:$0xff] %vm8741, %v8682
      %8760 = vst.msk [vmem:[%s318 + $0x90] sm:$0xff] %vm8741, %v8687
      %8761 = vst.msk [vmem:[%s318 + $0x98] sm:$0xff] %vm8741, %v8690
      %8762 = vst.msk [vmem:[%s318 + $0xa0] sm:$0xff] %vm8741, %v8695
      %8763 = vst.msk [vmem:[%s318 + $0xa8] sm:$0xff] %vm8741, %v8698
      %8764 = vst.msk [vmem:[%s318 + $0xb0] sm:$0xff] %vm8741, %v8703
      %8765 = vst.msk [vmem:[%s318 + $0xb8] sm:$0xff] %vm8741, %v8706
      %8766 = vst.msk [vmem:[%s318 + $0xc0] sm:$0xff] %vm8741, %v8711
      %8767 = vst.msk [vmem:[%s318 + $0xc8] sm:$0xff] %vm8741, %v8714
      %8768 = vst.msk [vmem:[%s318 + $0xd0] sm:$0xff] %vm8741, %v8719
      %8769 = vst.msk [vmem:[%s318 + $0xd8] sm:$0xff] %vm8741, %v8722
      %8770 = vst.msk [vmem:[%s318 + $0xe0] sm:$0xff] %vm8741, %v8727
      %8771 = vst.msk [vmem:[%s318 + $0xe8] sm:$0xff] %vm8741, %v8730
      %8772 = vst.msk [vmem:[%s318 + $0xf0] sm:$0xff] %vm8741, %v8735
      %8773 = vst.msk [vmem:[%s318 + $0xf8] sm:$0xff] %vm8741, %v8738
      %p8774 = scmp.lt.s32.totalorder %s20, 1
      %s8775 = scalar_select %p8774, %s20, 1
      %s8776 = smul.addr %s8775, 32
      %s8777 = smul.addr %s8776, 4
      %s8778 = scalar_lea.vmem %s7, %s8777
      %p8779 = scmp.lt.s32.totalorder %s20, 1
      %s8780 = scalar_select %p8779, %s20, 1
      %s8781 = smul.addr %s8780, 32
      %s8782 = smul.addr %s8781, 8
      %s8783 = scalar_lea.vmem %s8, %s8782
      // Predicated region
      $region49: #{faster_rcnn_forward.2} parent=47 // pred_check
        %p8784 = pneg %p190
      $region50: #{faster_rcnn_forward.2} parent=47 // pred_check_branch
        %8786 = sbr.rel (%p8784) target = $region52
      $region51: #{faster_rcnn_forward.2} parent=47 // pred_region
        _
      $region52: #{faster_rcnn_forward.2} parent=47 // pred_fallthru
        _
      // Predicated region
      $region53: #{faster_rcnn_forward.2} parent=47 // pred_check
        %p8787 = pneg %p216
      $region54: #{faster_rcnn_forward.2} parent=47 // pred_check_branch
        %8789 = sbr.rel (%p8787) target = $region56
      $region55: #{faster_rcnn_forward.2} parent=47 // pred_region
        _
      $region56: #{faster_rcnn_forward.2} parent=47 // pred_fallthru
        _
    $region48: #{faster_rcnn_forward.2} parent=5 // pred_fallthru
      _
    %p8790 = scmp.le.s32.totalorder 2, %s15
    // Predicated region
    $region57: #{faster_rcnn_forward.2} parent=5 // pred_check
      %p8791 = pneg %p8790
    $region58: #{faster_rcnn_forward.2} parent=5 // pred_check_branch
      %8793 = sbr.rel (%p8791) target = $region60
    $region59: #{faster_rcnn_forward.2} parent=5 // pred_region
      %s8794 = ssub.s32 %s15, 2
      // Predicated region
      $region61: #{faster_rcnn_forward.2} parent=59 // pred_check
        %p8795 = pneg %p196
      $region62: #{faster_rcnn_forward.2} parent=59 // pred_check_branch
        %8797 = sbr.rel (%p8795) target = $region64
      $region63: #{faster_rcnn_forward.2} parent=59 // pred_region
        %p8798 = scmp.lt.s32.totalorder %s21, 1
        %s8799 = scalar_select %p8798, %s21, 1
        %s8800 = smul.addr %s8799, 32
        %s8801 = smul.addr %s8800, 4
        %s8802 = scalar_lea.vmem %s7, %s8801
      $region64: #{faster_rcnn_forward.2} parent=59 // pred_fallthru
        _
      // Predicated region
      $region65: #{faster_rcnn_forward.2} parent=59 // pred_check
        %p8803 = pneg %p222
      $region66: #{faster_rcnn_forward.2} parent=59 // pred_check_branch
        %8805 = sbr.rel (%p8803) target = $region68
      $region67: #{faster_rcnn_forward.2} parent=59 // pred_region
        %p8806 = scmp.lt.s32.totalorder %s21, 1
        %s8807 = scalar_select %p8806, %s21, 1
        %s8808 = smul.addr %s8807, 32
        %s8809 = smul.addr %s8808, 8
        %s8810 = scalar_lea.vmem %s8, %s8809
      $region68: #{faster_rcnn_forward.2} parent=59 // pred_fallthru
        _
    $region60: #{faster_rcnn_forward.2} parent=5 // pred_fallthru
      _
  $region6: #{faster_rcnn_forward.2} parent=0 // loop_footer
    %s19 = sadd.s32 1, %s15
  $region7: #{faster_rcnn_forward.2} parent=0 // loop_footer_branch
    %14 = sbr.rel target = $region3
  $region8: #{faster_rcnn_forward.2} parent=0 // loop_exit
    _

</llo_original>
